<compile_context>
chip_gen: v6e
topology: v6e:2x2x1
jax: 0.10.0
libtpu: 0.0.40
codegen_flags: <defaults>
</compile_context>

<pallas_src>
import functools

import jax
import jax.numpy as jnp
from jax.experimental import pallas as pl
from jax.experimental.pallas import tpu as pltpu

EPS = 1e-5                      # torch.nn.LayerNorm default eps
_INV_SQRT2 = 0.7071067811865476
_TAPS = (-3, -2, -1, 1, 2, 3)
_VMEM = pltpu.MemorySpace.VMEM


# --------------------------------------------------------------------------
# In-kernel helpers (traced inside Pallas kernels)
# --------------------------------------------------------------------------
def _layernorm(y, g, b):
    mu = jnp.mean(y, axis=-1, keepdims=True)
    var = jnp.mean(jnp.square(y - mu), axis=-1, keepdims=True)
    return (y - mu) * jax.lax.rsqrt(var + EPS) * g + b


def _gelu_exact(h):
    # nn.GELU() default = exact erf-based GELU
    return 0.5 * h * (1.0 + jax.lax.erf(h * _INV_SQRT2))


# --------------------------------------------------------------------------
# Fused per-stage kernel (one grid step = one batch element)
#   head (stem / downsample matmul [+ stem LN])
#   -> depth x ConvNeXt block (dwconv7 via rolls -> LN -> pw1 -> GELU -> pw2
#      -> layer-scale -> residual)
#   -> tail (next downsample LN  OR  mean-pool + final LN)
# --------------------------------------------------------------------------
def _make_stage_kernel(seq, C, depth, with_head_ln, with_pool):
    def kernel(*refs):
        it = iter(refs)
        x_ref = next(it)            # (seq, Kin) per-batch patchified/paired input
        hw_ref = next(it)           # (Kin, C)   bf16 stem / downsample conv weight
        hb_ref = next(it)           # (1, C)
        if with_head_ln:
            hg_ref = next(it)       # (1, C) stem LayerNorm
            hbb_ref = next(it)
        dww_ref = next(it)          # (d, 7, C)
        dwb_ref = next(it)          # (d, C)
        lng_ref = next(it)          # (d, C)
        lnb_ref = next(it)          # (d, C)
        w1_ref = next(it)           # (d, C, 4C)  bf16
        b1_ref = next(it)           # (d, 4C)
        w2_ref = next(it)           # (d, 4C, C)  bf16
        b2_ref = next(it)           # (d, C)
        gam_ref = next(it)          # (d, C)
        tg_ref = next(it)           # (1, C) tail LayerNorm
        tb_ref = next(it)
        o_ref = next(it)            # (seq, C) or (1, C)

        # ---- head: stem (k=4,s=4) or downsample (k=2,s=2) conv as one matmul
        # over the pre-merged rows of this batch element (bf16 in, f32 acc).
        x = jnp.dot(x_ref[...].astype(jnp.bfloat16), hw_ref[...],
                    preferred_element_type=jnp.float32) + hb_ref[...]
        if with_head_ln:
            x = _layernorm(x, hg_ref[...], hbb_ref[...])

        # ---- depthwise-conv edge masks: tap s of row l reads position l+s;
        # anything outside [0, seq) is zeroed (this is the conv zero-padding).
        # Built once per stage from an in-kernel iota and pre-broadcast to
        # (seq, C) float32 so the depth loop only does plain multiplies.
        lpos = jax.lax.broadcasted_iota(jnp.int32, (seq, 1), 0)
        maskf = {}
        for s in _TAPS:
            valid = jnp.logical_and(lpos + s >= 0, lpos + s < seq)
            maskf[s] = jnp.broadcast_to(valid.astype(jnp.float32), (seq, C))

        # ---- ConvNeXt blocks (static unroll over depth)
        for j in range(depth):
            resid = x
            # depthwise conv k=7, pad=3, groups=C via XLU sublane rolls + masks
            y = x * dww_ref[j, 3]
            for s in _TAPS:
                # jnp.roll semantics: shift = -s gives shifted[l] = x[l + s]
                # (wraparound rows are zeroed by the mask).
                shifted = pltpu.roll(x, shift=(-s) % seq, axis=0)
                y = y + (shifted * maskf[s]) * dww_ref[j, 3 + s]
            y = y + dwb_ref[j]
            y = _layernorm(y, lng_ref[j], lnb_ref[j])
            # pwconv1 -> GELU -> pwconv2 on the MXU, bf16 operands / f32 acc
            h = jnp.dot(y.astype(jnp.bfloat16), w1_ref[j],
                        preferred_element_type=jnp.float32) + b1_ref[j]
            h = _gelu_exact(h)
            h = jnp.dot(h.astype(jnp.bfloat16), w2_ref[j],
                        preferred_element_type=jnp.float32) + b2_ref[j]
            # layer scale + residual (DropPath is identity at rate 0 / eval)
            x = resid + gam_ref[j] * h

        # ---- tail
        if with_pool:
            # global mean over the sequence (cross-sublane reduction on the
            # resident tile) + final LayerNorm
            m = jnp.sum(x, axis=0, keepdims=True) * (1.0 / seq)
            o_ref[...] = _layernorm(m, tg_ref[...], tb_ref[...])
        else:
            # next downsample layer's LayerNorm, applied here so the stride-2
            # pairing stays a free HBM reshape between stage kernels.
            # (Lane-dense paired stores would need an in-kernel reshape; kept
            # in the wrapper for robustness at these sizes.)
            o_ref[...] = _layernorm(x, tg_ref[...], tb_ref[...])

    return kernel


def _full_vmem_spec(a):
    nd = a.ndim
    return pl.BlockSpec(a.shape, lambda b, _nd=nd: (0,) * _nd,
                        memory_space=_VMEM)


def stage_call(xin, head_w, head_b, head_ln, blk, tail_g, tail_b, *, last):
    N, seq, Kin = xin.shape
    depth, _, C = blk["dw_w"].shape
    kernel = _make_stage_kernel(seq, C, depth, head_ln is not None, last)

    args = [xin, head_w, head_b]
    if head_ln is not None:
        args += [head_ln[0], head_ln[1]]
    args += [blk["dw_w"], blk["dw_b"], blk["ln_g"], blk["ln_b"],
             blk["w1"], blk["b1"], blk["w2"], blk["b2"], blk["gamma"],
             tail_g, tail_b]

    in_specs = [pl.BlockSpec((None, seq, Kin), lambda b: (b, 0, 0),
                             memory_space=_VMEM)]
    in_specs += [_full_vmem_spec(a) for a in args[1:]]

    out_shape = (N, 1, C) if last else (N, seq, C)
    out_specs = pl.BlockSpec((None,) + out_shape[1:], lambda b: (b, 0, 0),
                             memory_space=_VMEM)

    # ---- advisory cost estimate for XLA's scheduler
    mm_flops = 2 * seq * Kin * C + depth * (2 * 2 * seq * C * 4 * C)
    dw_flops = depth * (2 * 7 * seq * C)
    flops = int(N * (mm_flops + dw_flops))
    transcendentals = int(N * depth * seq * 4 * C)
    weight_bytes = int(sum(a.size * a.dtype.itemsize for a in args[1:]))
    in_bytes = int(xin.size * xin.dtype.itemsize)
    out_bytes = int(N * out_shape[1] * out_shape[2] * 4)
    cost = pl.CostEstimate(flops=flops, transcendentals=transcendentals,
                           bytes_accessed=weight_bytes + in_bytes + out_bytes)

    # ---- size-aware VMEM budget: (double-buffered) weights + per-batch
    # in/out blocks + headroom for the (seq, 4C) hidden activation and temps.
    block_in = seq * Kin * 4
    block_out = out_shape[1] * out_shape[2] * 4
    work = 8 * seq * 4 * C * 4
    need = 2 * weight_bytes + 2 * (block_in + block_out) + work
    vmem_limit = int(min(max(int(1.5 * need), 16 * 2 ** 20), 64 * 2 ** 20))

    return pl.pallas_call(
        kernel,
        out_shape=jax.ShapeDtypeStruct(out_shape, jnp.float32),
        grid=(N,),
        in_specs=in_specs,
        out_specs=out_specs,
        compiler_params=pltpu.CompilerParams(
            dimension_semantics=("parallel",),
            vmem_limit_bytes=vmem_limit),
        cost_estimate=cost,
    )(*args)


# --------------------------------------------------------------------------
# Parameter init (deterministic, mirrors the PyTorch __init__ / _init_weights)
# --------------------------------------------------------------------------
def _trunc_normal(key, shape, std=0.02):
    return (std * jax.random.truncated_normal(key, -2.0, 2.0, shape)).astype(
        jnp.float32)


def init_params(key, in_chans, depths, dims, layer_scale_init_value=1e-6):
    f32, bf16 = jnp.float32, jnp.bfloat16
    keys = iter(jax.random.split(key, 4 + 3 * sum(depths)))

    # stem: Conv1d(in_chans, dims[0], k=4, s=4) + LayerNorm(dims[0])
    w = _trunc_normal(next(keys), (dims[0], in_chans, 4))
    stem = dict(
        w=jnp.transpose(w, (2, 1, 0)).reshape(4 * in_chans, dims[0]).astype(bf16),
        b=jnp.zeros((1, dims[0]), f32),
        ln_g=jnp.ones((1, dims[0]), f32),
        ln_b=jnp.zeros((1, dims[0]), f32),
    )

    # downsample layers 1..3: LayerNorm(dims[i-1]) + Conv1d(dims[i-1], dims[i], k=2, s=2)
    downs = []
    for i in range(1, 4):
        cin, cout = dims[i - 1], dims[i]
        w = _trunc_normal(next(keys), (cout, cin, 2))
        downs.append(dict(
            ln_g=jnp.ones((1, cin), f32),
            ln_b=jnp.zeros((1, cin), f32),
            w=jnp.transpose(w, (2, 1, 0)).reshape(2 * cin, cout).astype(bf16),
            b=jnp.zeros((1, cout), f32),
        ))

    # ConvNeXt blocks, stacked per stage along a leading depth axis
    stages = []
    for i in range(4):
        C, d = dims[i], depths[i]
        dw_ws, w1s, w2s = [], [], []
        for _ in range(d):
            dw = _trunc_normal(next(keys), (C, 1, 7))
            w1 = _trunc_normal(next(keys), (4 * C, C))
            w2 = _trunc_normal(next(keys), (C, 4 * C))
            dw_ws.append(jnp.transpose(dw[:, 0, :]))      # (7, C)
            w1s.append(jnp.transpose(w1))                 # (C, 4C)
            w2s.append(jnp.transpose(w2))                 # (4C, C)
        stages.append(dict(
            dw_w=jnp.stack(dw_ws),                        # (d, 7, C)  f32
            dw_b=jnp.zeros((d, C), f32),
            ln_g=jnp.ones((d, C), f32),
            ln_b=jnp.zeros((d, C), f32),
            w1=jnp.stack(w1s).astype(bf16),               # (d, C, 4C) bf16
            b1=jnp.zeros((d, 4 * C), f32),
            w2=jnp.stack(w2s).astype(bf16),               # (d, 4C, C) bf16
            b2=jnp.zeros((d, C), f32),
            gamma=jnp.full((d, C), layer_scale_init_value, f32),
        ))

    norm = dict(g=jnp.ones((1, dims[-1]), f32), b=jnp.zeros((1, dims[-1]), f32))
    # TODO(synk): self.head exists in __init__ but is not applied in forward()
    # when regression=False, so it is intentionally omitted here.
    return dict(stem=stem, downs=downs, stages=stages, norm=norm)


# --------------------------------------------------------------------------
# Forward (matches ConvNeXt1D.forward with keep_sequence=False, regression=False)
# --------------------------------------------------------------------------
def convnext1d_forward(params, x_ncl):
    # PyTorch layout is NCL; kernels run channels-last, one batch per grid step.
    x = jnp.transpose(x_ncl, (0, 2, 1)).astype(jnp.float32)    # (N, L, Cin)
    N, L, Cin = x.shape
    n_stages = len(params["stages"])

    seq = L // 4
    xin = x.reshape(N, seq, 4 * Cin)   # free patchify reshape for the k=4 s=4 stem

    for i in range(n_stages):
        blk = params["stages"][i]
        last = i == n_stages - 1

        if i == 0:
            stem = params["stem"]
            head_w, head_b = stem["w"], stem["b"]
            head_ln = (stem["ln_g"], stem["ln_b"])
        else:
            dwn = params["downs"][i - 1]
            head_w, head_b = dwn["w"], dwn["b"]
            head_ln = None

        if last:
            tail_g, tail_b = params["norm"]["g"], params["norm"]["b"]
        else:
            nxt = params["downs"][i]
            tail_g, tail_b = nxt["ln_g"], nxt["ln_b"]

        xin = stage_call(xin, head_w, head_b, head_ln, blk, tail_g, tail_b,
                         last=last)

        if not last:
            # stride-2 downsample pairing: free contiguous HBM reshape; the
            # conv itself is a (2*C_in -> C_out) matmul inside the next kernel.
            C = xin.shape[-1]
            xin = xin.reshape(N, seq // 2, 2 * C)
            seq //= 2

    return xin.reshape(N, -1)   # (N, dims[-1]) == norm(mean(x, -1))


# --------------------------------------------------------------------------
if __name__ == "__main__":
    key = jax.random.PRNGKey(0)
    pkey, xkey = jax.random.split(key)

    in_chans = 1
    depths = (1, 1, 2, 1)
    dims = (32, 64, 128, 256)
    # L divisible by 4*2*2*2 = 32; L=256 keeps every per-stage sequence >= 8
    # rows so the sublane rolls of the depthwise conv stay on full tiles.
    N, L = 2, 256

    params = init_params(pkey, in_chans, depths, dims)
    x = jax.random.normal(xkey, (N, in_chans, L), jnp.float32)

    fwd = jax.jit(functools.partial(convnext1d_forward, params))
    out = fwd(x)
    jax.block_until_ready(out)

    assert out.shape == (N, dims[-1]), out.shape
    assert out.dtype == jnp.float32
    print("KERNEL_OK")
</pallas_src>

<mosaic_0001>
module attributes {stable_mosaic.version = 11 : i64} {
  func.func @kernel(%arg0: i32, %arg1: memref<1x8x256xf32, #tpu.memory_space<vmem>>, %arg2: memref<256x256xbf16, #tpu.memory_space<vmem>>, %arg3: memref<1x256xf32, #tpu.memory_space<vmem>>, %arg4: memref<1x7x256xf32, #tpu.memory_space<vmem>>, %arg5: memref<1x256xf32, #tpu.memory_space<vmem>>, %arg6: memref<1x256xf32, #tpu.memory_space<vmem>>, %arg7: memref<1x256xf32, #tpu.memory_space<vmem>>, %arg8: memref<1x256x1024xbf16, #tpu.memory_space<vmem>>, %arg9: memref<1x1024xf32, #tpu.memory_space<vmem>>, %arg10: memref<1x1024x256xbf16, #tpu.memory_space<vmem>>, %arg11: memref<1x256xf32, #tpu.memory_space<vmem>>, %arg12: memref<1x256xf32, #tpu.memory_space<vmem>>, %arg13: memref<1x256xf32, #tpu.memory_space<vmem>>, %arg14: memref<1x256xf32, #tpu.memory_space<vmem>>, %arg15: memref<1x1x256xf32, #tpu.memory_space<vmem>>) attributes {dimension_semantics = [#tpu.dimension_semantics<parallel>], iteration_bounds = array<i64: 2>, scalar_prefetch = 0 : i64, scratch_operands = 0 : i64, tpu.core_type = #tpu.core_type<tc>, window_params = [{transform_indices = @transform_0, window_bounds = array<i64: 1, 8, 256>}, {pipeline_mode = #tpu.pipeline_mode<synchronous>, transform_indices = @transform_1, window_bounds = array<i64: 256, 256>}, {pipeline_mode = #tpu.pipeline_mode<synchronous>, transform_indices = @transform_2, window_bounds = array<i64: 1, 256>}, {pipeline_mode = #tpu.pipeline_mode<synchronous>, transform_indices = @transform_3, window_bounds = array<i64: 1, 7, 256>}, {pipeline_mode = #tpu.pipeline_mode<synchronous>, transform_indices = @transform_4, window_bounds = array<i64: 1, 256>}, {pipeline_mode = #tpu.pipeline_mode<synchronous>, transform_indices = @transform_5, window_bounds = array<i64: 1, 256>}, {pipeline_mode = #tpu.pipeline_mode<synchronous>, transform_indices = @transform_6, window_bounds = array<i64: 1, 256>}, {pipeline_mode = #tpu.pipeline_mode<synchronous>, transform_indices = @transform_7, window_bounds = array<i64: 1, 256, 1024>}, {pipeline_mode = #tpu.pipeline_mode<synchronous>, transform_indices = @transform_8, window_bounds = array<i64: 1, 1024>}, {pipeline_mode = #tpu.pipeline_mode<synchronous>, transform_indices = @transform_9, window_bounds = array<i64: 1, 1024, 256>}, {pipeline_mode = #tpu.pipeline_mode<synchronous>, transform_indices = @transform_10, window_bounds = array<i64: 1, 256>}, {pipeline_mode = #tpu.pipeline_mode<synchronous>, transform_indices = @transform_11, window_bounds = array<i64: 1, 256>}, {pipeline_mode = #tpu.pipeline_mode<synchronous>, transform_indices = @transform_12, window_bounds = array<i64: 1, 256>}, {pipeline_mode = #tpu.pipeline_mode<synchronous>, transform_indices = @transform_13, window_bounds = array<i64: 1, 256>}, {transform_indices = @transform_14, window_bounds = array<i64: 1, 1, 256>}]} {
    %c0 = arith.constant 0 : index
    %c0_0 = arith.constant 0 : index
    %c0_1 = arith.constant 0 : index
    %0 = vector.load %arg1[%c0, %c0_0, %c0_1] : memref<1x8x256xf32, #tpu.memory_space<vmem>>, vector<1x8x256xf32>
    %1 = vector.shape_cast %0 : vector<1x8x256xf32> to vector<8x256xf32>
    %2 = arith.truncf %1 : vector<8x256xf32> to vector<8x256xbf16>
    %c0_2 = arith.constant 0 : index
    %c0_3 = arith.constant 0 : index
    %3 = vector.load %arg2[%c0_2, %c0_3] : memref<256x256xbf16, #tpu.memory_space<vmem>>, vector<256x256xbf16>
    %cst = arith.constant dense<0.000000e+00> : vector<8x256xf32>
    %4 = tpu.matmul %2, %3, %cst {dimension_numbers = #tpu.dot_dimension_numbers<[1], [0], [0], [1], [0, 0, 1, 1], [], []>} : vector<8x256xbf16>, vector<256x256xbf16>, vector<8x256xf32> -> vector<8x256xf32>
    %c0_4 = arith.constant 0 : index
    %c0_5 = arith.constant 0 : index
    %5 = vector.load %arg3[%c0_4, %c0_5] : memref<1x256xf32, #tpu.memory_space<vmem>>, vector<1x256xf32>
    %6 = vector.broadcast %5 : vector<1x256xf32> to vector<8x256xf32>
    %7 = arith.addf %4, %6 : vector<8x256xf32>
    %8 = tpu.iota {dimensions = array<i32: 0>} : vector<8x1xi32>
    %c-3_i32 = arith.constant -3 : i32
    %9 = vector.broadcast %c-3_i32 : i32 to vector<8x1xi32>
    %10 = arith.addi %8, %9 : vector<8x1xi32>
    %c0_i32 = arith.constant 0 : i32
    %11 = vector.broadcast %c0_i32 : i32 to vector<8x1xi32>
    %12 = arith.cmpi sge, %10, %11 : vector<8x1xi32>
    %c-3_i32_6 = arith.constant -3 : i32
    %13 = vector.broadcast %c-3_i32_6 : i32 to vector<8x1xi32>
    %14 = arith.addi %8, %13 : vector<8x1xi32>
    %c8_i32 = arith.constant 8 : i32
    %15 = vector.broadcast %c8_i32 : i32 to vector<8x1xi32>
    %16 = arith.cmpi slt, %14, %15 : vector<8x1xi32>
    %17 = arith.andi %12, %16 : vector<8x1xi1>
    %18 = arith.extui %17 : vector<8x1xi1> to vector<8x1xi32>
    %19 = arith.sitofp %18 : vector<8x1xi32> to vector<8x1xf32>
    %20 = vector.shape_cast %19 : vector<8x1xf32> to vector<8x1xf32>
    %21 = vector.broadcast %20 : vector<8x1xf32> to vector<8x256xf32>
    %c-2_i32 = arith.constant -2 : i32
    %22 = vector.broadcast %c-2_i32 : i32 to vector<8x1xi32>
    %23 = arith.addi %8, %22 : vector<8x1xi32>
    %c0_i32_7 = arith.constant 0 : i32
    %24 = vector.broadcast %c0_i32_7 : i32 to vector<8x1xi32>
    %25 = arith.cmpi sge, %23, %24 : vector<8x1xi32>
    %c-2_i32_8 = arith.constant -2 : i32
    %26 = vector.broadcast %c-2_i32_8 : i32 to vector<8x1xi32>
    %27 = arith.addi %8, %26 : vector<8x1xi32>
    %c8_i32_9 = arith.constant 8 : i32
    %28 = vector.broadcast %c8_i32_9 : i32 to vector<8x1xi32>
    %29 = arith.cmpi slt, %27, %28 : vector<8x1xi32>
    %30 = arith.andi %25, %29 : vector<8x1xi1>
    %31 = arith.extui %30 : vector<8x1xi1> to vector<8x1xi32>
    %32 = arith.sitofp %31 : vector<8x1xi32> to vector<8x1xf32>
    %33 = vector.shape_cast %32 : vector<8x1xf32> to vector<8x1xf32>
    %34 = vector.broadcast %33 : vector<8x1xf32> to vector<8x256xf32>
    %c-1_i32 = arith.constant -1 : i32
    %35 = vector.broadcast %c-1_i32 : i32 to vector<8x1xi32>
    %36 = arith.addi %8, %35 : vector<8x1xi32>
    %c0_i32_10 = arith.constant 0 : i32
    %37 = vector.broadcast %c0_i32_10 : i32 to vector<8x1xi32>
    %38 = arith.cmpi sge, %36, %37 : vector<8x1xi32>
    %c-1_i32_11 = arith.constant -1 : i32
    %39 = vector.broadcast %c-1_i32_11 : i32 to vector<8x1xi32>
    %40 = arith.addi %8, %39 : vector<8x1xi32>
    %c8_i32_12 = arith.constant 8 : i32
    %41 = vector.broadcast %c8_i32_12 : i32 to vector<8x1xi32>
    %42 = arith.cmpi slt, %40, %41 : vector<8x1xi32>
    %43 = arith.andi %38, %42 : vector<8x1xi1>
    %44 = arith.extui %43 : vector<8x1xi1> to vector<8x1xi32>
    %45 = arith.sitofp %44 : vector<8x1xi32> to vector<8x1xf32>
    %46 = vector.shape_cast %45 : vector<8x1xf32> to vector<8x1xf32>
    %47 = vector.broadcast %46 : vector<8x1xf32> to vector<8x256xf32>
    %c1_i32 = arith.constant 1 : i32
    %48 = vector.broadcast %c1_i32 : i32 to vector<8x1xi32>
    %49 = arith.addi %8, %48 : vector<8x1xi32>
    %c0_i32_13 = arith.constant 0 : i32
    %50 = vector.broadcast %c0_i32_13 : i32 to vector<8x1xi32>
    %51 = arith.cmpi sge, %49, %50 : vector<8x1xi32>
    %c1_i32_14 = arith.constant 1 : i32
    %52 = vector.broadcast %c1_i32_14 : i32 to vector<8x1xi32>
    %53 = arith.addi %8, %52 : vector<8x1xi32>
    %c8_i32_15 = arith.constant 8 : i32
    %54 = vector.broadcast %c8_i32_15 : i32 to vector<8x1xi32>
    %55 = arith.cmpi slt, %53, %54 : vector<8x1xi32>
    %56 = arith.andi %51, %55 : vector<8x1xi1>
    %57 = arith.extui %56 : vector<8x1xi1> to vector<8x1xi32>
    %58 = arith.sitofp %57 : vector<8x1xi32> to vector<8x1xf32>
    %59 = vector.shape_cast %58 : vector<8x1xf32> to vector<8x1xf32>
    %60 = vector.broadcast %59 : vector<8x1xf32> to vector<8x256xf32>
    %c2_i32 = arith.constant 2 : i32
    %61 = vector.broadcast %c2_i32 : i32 to vector<8x1xi32>
    %62 = arith.addi %8, %61 : vector<8x1xi32>
    %c0_i32_16 = arith.constant 0 : i32
    %63 = vector.broadcast %c0_i32_16 : i32 to vector<8x1xi32>
    %64 = arith.cmpi sge, %62, %63 : vector<8x1xi32>
    %c2_i32_17 = arith.constant 2 : i32
    %65 = vector.broadcast %c2_i32_17 : i32 to vector<8x1xi32>
    %66 = arith.addi %8, %65 : vector<8x1xi32>
    %c8_i32_18 = arith.constant 8 : i32
    %67 = vector.broadcast %c8_i32_18 : i32 to vector<8x1xi32>
    %68 = arith.cmpi slt, %66, %67 : vector<8x1xi32>
    %69 = arith.andi %64, %68 : vector<8x1xi1>
    %70 = arith.extui %69 : vector<8x1xi1> to vector<8x1xi32>
    %71 = arith.sitofp %70 : vector<8x1xi32> to vector<8x1xf32>
    %72 = vector.shape_cast %71 : vector<8x1xf32> to vector<8x1xf32>
    %73 = vector.broadcast %72 : vector<8x1xf32> to vector<8x256xf32>
    %c3_i32 = arith.constant 3 : i32
    %74 = vector.broadcast %c3_i32 : i32 to vector<8x1xi32>
    %75 = arith.addi %8, %74 : vector<8x1xi32>
    %c0_i32_19 = arith.constant 0 : i32
    %76 = vector.broadcast %c0_i32_19 : i32 to vector<8x1xi32>
    %77 = arith.cmpi sge, %75, %76 : vector<8x1xi32>
    %c3_i32_20 = arith.constant 3 : i32
    %78 = vector.broadcast %c3_i32_20 : i32 to vector<8x1xi32>
    %79 = arith.addi %8, %78 : vector<8x1xi32>
    %c8_i32_21 = arith.constant 8 : i32
    %80 = vector.broadcast %c8_i32_21 : i32 to vector<8x1xi32>
    %81 = arith.cmpi slt, %79, %80 : vector<8x1xi32>
    %82 = arith.andi %77, %81 : vector<8x1xi1>
    %83 = arith.extui %82 : vector<8x1xi1> to vector<8x1xi32>
    %84 = arith.sitofp %83 : vector<8x1xi32> to vector<8x1xf32>
    %85 = vector.shape_cast %84 : vector<8x1xf32> to vector<8x1xf32>
    %86 = vector.broadcast %85 : vector<8x1xf32> to vector<8x256xf32>
    %c0_22 = arith.constant 0 : index
    %c3 = arith.constant 3 : index
    %c0_23 = arith.constant 0 : index
    %87 = vector.load %arg4[%c0_22, %c3, %c0_23] : memref<1x7x256xf32, #tpu.memory_space<vmem>>, vector<1x1x256xf32>
    %88 = vector.shape_cast %87 : vector<1x1x256xf32> to vector<256xf32>
    %89 = vector.shape_cast %88 : vector<256xf32> to vector<1x256xf32>
    %90 = vector.broadcast %89 : vector<1x256xf32> to vector<8x256xf32>
    %91 = arith.mulf %7, %90 : vector<8x256xf32>
    %c3_i32_24 = arith.constant 3 : i32
    %92 = tpu.dynamic_rotate %7 by %c3_i32_24 dim 0 : vector<8x256xf32>, i32 -> vector<8x256xf32>
    %93 = arith.mulf %92, %21 : vector<8x256xf32>
    %c0_25 = arith.constant 0 : index
    %c0_26 = arith.constant 0 : index
    %c0_27 = arith.constant 0 : index
    %94 = vector.load %arg4[%c0_25, %c0_26, %c0_27] : memref<1x7x256xf32, #tpu.memory_space<vmem>>, vector<1x1x256xf32>
    %95 = vector.shape_cast %94 : vector<1x1x256xf32> to vector<256xf32>
    %96 = vector.shape_cast %95 : vector<256xf32> to vector<1x256xf32>
    %97 = vector.broadcast %96 : vector<1x256xf32> to vector<8x256xf32>
    %98 = arith.mulf %93, %97 : vector<8x256xf32>
    %99 = arith.addf %91, %98 : vector<8x256xf32>
    %c2_i32_28 = arith.constant 2 : i32
    %100 = tpu.dynamic_rotate %7 by %c2_i32_28 dim 0 : vector<8x256xf32>, i32 -> vector<8x256xf32>
    %101 = arith.mulf %100, %34 : vector<8x256xf32>
    %c0_29 = arith.constant 0 : index
    %c1 = arith.constant 1 : index
    %c0_30 = arith.constant 0 : index
    %102 = vector.load %arg4[%c0_29, %c1, %c0_30] : memref<1x7x256xf32, #tpu.memory_space<vmem>>, vector<1x1x256xf32>
    %103 = vector.shape_cast %102 : vector<1x1x256xf32> to vector<256xf32>
    %104 = vector.shape_cast %103 : vector<256xf32> to vector<1x256xf32>
    %105 = vector.broadcast %104 : vector<1x256xf32> to vector<8x256xf32>
    %106 = arith.mulf %101, %105 : vector<8x256xf32>
    %107 = arith.addf %99, %106 : vector<8x256xf32>
    %c1_i32_31 = arith.constant 1 : i32
    %108 = tpu.dynamic_rotate %7 by %c1_i32_31 dim 0 : vector<8x256xf32>, i32 -> vector<8x256xf32>
    %109 = arith.mulf %108, %47 : vector<8x256xf32>
    %c0_32 = arith.constant 0 : index
    %c2 = arith.constant 2 : index
    %c0_33 = arith.constant 0 : index
    %110 = vector.load %arg4[%c0_32, %c2, %c0_33] : memref<1x7x256xf32, #tpu.memory_space<vmem>>, vector<1x1x256xf32>
    %111 = vector.shape_cast %110 : vector<1x1x256xf32> to vector<256xf32>
    %112 = vector.shape_cast %111 : vector<256xf32> to vector<1x256xf32>
    %113 = vector.broadcast %112 : vector<1x256xf32> to vector<8x256xf32>
    %114 = arith.mulf %109, %113 : vector<8x256xf32>
    %115 = arith.addf %107, %114 : vector<8x256xf32>
    %c7_i32 = arith.constant 7 : i32
    %116 = tpu.dynamic_rotate %7 by %c7_i32 dim 0 : vector<8x256xf32>, i32 -> vector<8x256xf32>
    %117 = arith.mulf %116, %60 : vector<8x256xf32>
    %c0_34 = arith.constant 0 : index
    %c4 = arith.constant 4 : index
    %c0_35 = arith.constant 0 : index
    %118 = vector.load %arg4[%c0_34, %c4, %c0_35] : memref<1x7x256xf32, #tpu.memory_space<vmem>>, vector<1x1x256xf32>
    %119 = vector.shape_cast %118 : vector<1x1x256xf32> to vector<256xf32>
    %120 = vector.shape_cast %119 : vector<256xf32> to vector<1x256xf32>
    %121 = vector.broadcast %120 : vector<1x256xf32> to vector<8x256xf32>
    %122 = arith.mulf %117, %121 : vector<8x256xf32>
    %123 = arith.addf %115, %122 : vector<8x256xf32>
    %c6_i32 = arith.constant 6 : i32
    %124 = tpu.dynamic_rotate %7 by %c6_i32 dim 0 : vector<8x256xf32>, i32 -> vector<8x256xf32>
    %125 = arith.mulf %124, %73 : vector<8x256xf32>
    %c0_36 = arith.constant 0 : index
    %c5 = arith.constant 5 : index
    %c0_37 = arith.constant 0 : index
    %126 = vector.load %arg4[%c0_36, %c5, %c0_37] : memref<1x7x256xf32, #tpu.memory_space<vmem>>, vector<1x1x256xf32>
    %127 = vector.shape_cast %126 : vector<1x1x256xf32> to vector<256xf32>
    %128 = vector.shape_cast %127 : vector<256xf32> to vector<1x256xf32>
    %129 = vector.broadcast %128 : vector<1x256xf32> to vector<8x256xf32>
    %130 = arith.mulf %125, %129 : vector<8x256xf32>
    %131 = arith.addf %123, %130 : vector<8x256xf32>
    %c5_i32 = arith.constant 5 : i32
    %132 = tpu.dynamic_rotate %7 by %c5_i32 dim 0 : vector<8x256xf32>, i32 -> vector<8x256xf32>
    %133 = arith.mulf %132, %86 : vector<8x256xf32>
    %c0_38 = arith.constant 0 : index
    %c6 = arith.constant 6 : index
    %c0_39 = arith.constant 0 : index
    %134 = vector.load %arg4[%c0_38, %c6, %c0_39] : memref<1x7x256xf32, #tpu.memory_space<vmem>>, vector<1x1x256xf32>
    %135 = vector.shape_cast %134 : vector<1x1x256xf32> to vector<256xf32>
    %136 = vector.shape_cast %135 : vector<256xf32> to vector<1x256xf32>
    %137 = vector.broadcast %136 : vector<1x256xf32> to vector<8x256xf32>
    %138 = arith.mulf %133, %137 : vector<8x256xf32>
    %139 = arith.addf %131, %138 : vector<8x256xf32>
    %c0_40 = arith.constant 0 : index
    %c0_41 = arith.constant 0 : index
    %140 = vector.load %arg5[%c0_40, %c0_41] : memref<1x256xf32, #tpu.memory_space<vmem>>, vector<1x256xf32>
    %141 = vector.shape_cast %140 : vector<1x256xf32> to vector<256xf32>
    %142 = vector.shape_cast %141 : vector<256xf32> to vector<1x256xf32>
    %143 = vector.broadcast %142 : vector<1x256xf32> to vector<8x256xf32>
    %144 = arith.addf %139, %143 : vector<8x256xf32>
    %c0_42 = arith.constant 0 : index
    %c0_43 = arith.constant 0 : index
    %145 = vector.load %arg6[%c0_42, %c0_43] : memref<1x256xf32, #tpu.memory_space<vmem>>, vector<1x256xf32>
    %146 = vector.shape_cast %145 : vector<1x256xf32> to vector<256xf32>
    %c0_44 = arith.constant 0 : index
    %c0_45 = arith.constant 0 : index
    %147 = vector.load %arg7[%c0_44, %c0_45] : memref<1x256xf32, #tpu.memory_space<vmem>>, vector<1x256xf32>
    %148 = vector.shape_cast %147 : vector<1x256xf32> to vector<256xf32>
    %cst_46 = arith.constant dense<0.000000e+00> : vector<8xf32>
    %149 = vector.multi_reduction <add>, %144, %cst_46 [1] : vector<8x256xf32> to vector<8xf32>
    %150 = vector.shape_cast %149 : vector<8xf32> to vector<8x1xf32>
    %cst_47 = arith.constant 2.560000e+02 : f32
    %151 = vector.broadcast %cst_47 : f32 to vector<8x1xf32>
    %152 = arith.divf %150, %151 : vector<8x1xf32>
    %153 = vector.broadcast %152 : vector<8x1xf32> to vector<8x256xf32>
    %154 = arith.subf %144, %153 : vector<8x256xf32>
    %155 = arith.mulf %154, %154 : vector<8x256xf32>
    %cst_48 = arith.constant dense<0.000000e+00> : vector<8xf32>
    %156 = vector.multi_reduction <add>, %155, %cst_48 [1] : vector<8x256xf32> to vector<8xf32>
    %157 = vector.shape_cast %156 : vector<8xf32> to vector<8x1xf32>
    %cst_49 = arith.constant 2.560000e+02 : f32
    %158 = vector.broadcast %cst_49 : f32 to vector<8x1xf32>
    %159 = arith.divf %157, %158 : vector<8x1xf32>
    %160 = vector.broadcast %152 : vector<8x1xf32> to vector<8x256xf32>
    %161 = arith.subf %144, %160 : vector<8x256xf32>
    %cst_50 = arith.constant 9.99999974E-6 : f32
    %162 = vector.broadcast %cst_50 : f32 to vector<8x1xf32>
    %163 = arith.addf %159, %162 : vector<8x1xf32>
    %164 = math.rsqrt %163 : vector<8x1xf32>
    %165 = vector.broadcast %164 : vector<8x1xf32> to vector<8x256xf32>
    %166 = arith.mulf %161, %165 : vector<8x256xf32>
    %167 = vector.shape_cast %146 : vector<256xf32> to vector<1x256xf32>
    %168 = vector.broadcast %167 : vector<1x256xf32> to vector<8x256xf32>
    %169 = arith.mulf %166, %168 : vector<8x256xf32>
    %170 = vector.shape_cast %148 : vector<256xf32> to vector<1x256xf32>
    %171 = vector.broadcast %170 : vector<1x256xf32> to vector<8x256xf32>
    %172 = arith.addf %169, %171 : vector<8x256xf32>
    %173 = arith.truncf %172 : vector<8x256xf32> to vector<8x256xbf16>
    %c0_51 = arith.constant 0 : index
    %c0_52 = arith.constant 0 : index
    %c0_53 = arith.constant 0 : index
    %174 = vector.load %arg8[%c0_51, %c0_52, %c0_53] : memref<1x256x1024xbf16, #tpu.memory_space<vmem>>, vector<1x256x1024xbf16>
    %175 = vector.shape_cast %174 : vector<1x256x1024xbf16> to vector<256x1024xbf16>
    %cst_54 = arith.constant dense<0.000000e+00> : vector<8x1024xf32>
    %176 = tpu.matmul %173, %175, %cst_54 {dimension_numbers = #tpu.dot_dimension_numbers<[1], [0], [0], [1], [0, 0, 1, 1], [], []>} : vector<8x256xbf16>, vector<256x1024xbf16>, vector<8x1024xf32> -> vector<8x1024xf32>
    %c0_55 = arith.constant 0 : index
    %c0_56 = arith.constant 0 : index
    %177 = vector.load %arg9[%c0_55, %c0_56] : memref<1x1024xf32, #tpu.memory_space<vmem>>, vector<1x1024xf32>
    %178 = vector.shape_cast %177 : vector<1x1024xf32> to vector<1024xf32>
    %179 = vector.shape_cast %178 : vector<1024xf32> to vector<1x1024xf32>
    %180 = vector.broadcast %179 : vector<1x1024xf32> to vector<8x1024xf32>
    %181 = arith.addf %176, %180 : vector<8x1024xf32>
    %cst_57 = arith.constant 5.000000e-01 : f32
    %182 = vector.broadcast %cst_57 : f32 to vector<8x1024xf32>
    %183 = arith.mulf %182, %181 : vector<8x1024xf32>
    %cst_58 = arith.constant 0.707106769 : f32
    %184 = vector.broadcast %cst_58 : f32 to vector<8x1024xf32>
    %185 = arith.mulf %181, %184 : vector<8x1024xf32>
    %186 = math.erf %185 : vector<8x1024xf32>
    %cst_59 = arith.constant 1.000000e+00 : f32
    %187 = vector.broadcast %cst_59 : f32 to vector<8x1024xf32>
    %188 = arith.addf %187, %186 : vector<8x1024xf32>
    %189 = arith.mulf %183, %188 : vector<8x1024xf32>
    %190 = arith.truncf %189 : vector<8x1024xf32> to vector<8x1024xbf16>
    %c0_60 = arith.constant 0 : index
    %c0_61 = arith.constant 0 : index
    %c0_62 = arith.constant 0 : index
    %191 = vector.load %arg10[%c0_60, %c0_61, %c0_62] : memref<1x1024x256xbf16, #tpu.memory_space<vmem>>, vector<1x1024x256xbf16>
    %192 = vector.shape_cast %191 : vector<1x1024x256xbf16> to vector<1024x256xbf16>
    %cst_63 = arith.constant dense<0.000000e+00> : vector<8x256xf32>
    %193 = tpu.matmul %190, %192, %cst_63 {dimension_numbers = #tpu.dot_dimension_numbers<[1], [0], [0], [1], [0, 0, 1, 1], [], []>} : vector<8x1024xbf16>, vector<1024x256xbf16>, vector<8x256xf32> -> vector<8x256xf32>
    %c0_64 = arith.constant 0 : index
    %c0_65 = arith.constant 0 : index
    %194 = vector.load %arg11[%c0_64, %c0_65] : memref<1x256xf32, #tpu.memory_space<vmem>>, vector<1x256xf32>
    %195 = vector.shape_cast %194 : vector<1x256xf32> to vector<256xf32>
    %196 = vector.shape_cast %195 : vector<256xf32> to vector<1x256xf32>
    %197 = vector.broadcast %196 : vector<1x256xf32> to vector<8x256xf32>
    %198 = arith.addf %193, %197 : vector<8x256xf32>
    %c0_66 = arith.constant 0 : index
    %c0_67 = arith.constant 0 : index
    %199 = vector.load %arg12[%c0_66, %c0_67] : memref<1x256xf32, #tpu.memory_space<vmem>>, vector<1x256xf32>
    %200 = vector.shape_cast %199 : vector<1x256xf32> to vector<256xf32>
    %201 = vector.shape_cast %200 : vector<256xf32> to vector<1x256xf32>
    %202 = vector.broadcast %201 : vector<1x256xf32> to vector<8x256xf32>
    %203 = arith.mulf %202, %198 : vector<8x256xf32>
    %204 = arith.addf %7, %203 : vector<8x256xf32>
    %cst_68 = arith.constant dense<0.000000e+00> : vector<256xf32>
    %205 = vector.multi_reduction <add>, %204, %cst_68 [0] : vector<8x256xf32> to vector<256xf32>
    %206 = vector.shape_cast %205 : vector<256xf32> to vector<1x256xf32>
    %cst_69 = arith.constant 1.250000e-01 : f32
    %207 = vector.broadcast %cst_69 : f32 to vector<1x256xf32>
    %208 = arith.mulf %206, %207 : vector<1x256xf32>
    %c0_70 = arith.constant 0 : index
    %c0_71 = arith.constant 0 : index
    %209 = vector.load %arg13[%c0_70, %c0_71] : memref<1x256xf32, #tpu.memory_space<vmem>>, vector<1x256xf32>
    %c0_72 = arith.constant 0 : index
    %c0_73 = arith.constant 0 : index
    %210 = vector.load %arg14[%c0_72, %c0_73] : memref<1x256xf32, #tpu.memory_space<vmem>>, vector<1x256xf32>
    %cst_74 = arith.constant dense<0.000000e+00> : vector<1xf32>
    %211 = vector.multi_reduction <add>, %208, %cst_74 [1] : vector<1x256xf32> to vector<1xf32>
    %212 = vector.shape_cast %211 : vector<1xf32> to vector<1x1xf32>
    %cst_75 = arith.constant 2.560000e+02 : f32
    %213 = vector.broadcast %cst_75 : f32 to vector<1x1xf32>
    %214 = arith.divf %212, %213 : vector<1x1xf32>
    %215 = vector.broadcast %214 : vector<1x1xf32> to vector<1x256xf32>
    %216 = arith.subf %208, %215 : vector<1x256xf32>
    %217 = arith.mulf %216, %216 : vector<1x256xf32>
    %cst_76 = arith.constant dense<0.000000e+00> : vector<1xf32>
    %218 = vector.multi_reduction <add>, %217, %cst_76 [1] : vector<1x256xf32> to vector<1xf32>
    %219 = vector.shape_cast %218 : vector<1xf32> to vector<1x1xf32>
    %cst_77 = arith.constant 2.560000e+02 : f32
    %220 = vector.broadcast %cst_77 : f32 to vector<1x1xf32>
    %221 = arith.divf %219, %220 : vector<1x1xf32>
    %222 = vector.broadcast %214 : vector<1x1xf32> to vector<1x256xf32>
    %223 = arith.subf %208, %222 : vector<1x256xf32>
    %cst_78 = arith.constant 9.99999974E-6 : f32
    %224 = vector.broadcast %cst_78 : f32 to vector<1x1xf32>
    %225 = arith.addf %221, %224 : vector<1x1xf32>
    %226 = math.rsqrt %225 : vector<1x1xf32>
    %227 = vector.broadcast %226 : vector<1x1xf32> to vector<1x256xf32>
    %228 = arith.mulf %223, %227 : vector<1x256xf32>
    %229 = arith.mulf %228, %209 : vector<1x256xf32>
    %230 = arith.addf %229, %210 : vector<1x256xf32>
    %c0_79 = arith.constant 0 : index
    %c0_80 = arith.constant 0 : index
    %c0_81 = arith.constant 0 : index
    %231 = vector.load %arg15[%c0_79, %c0_80, %c0_81] : memref<1x1x256xf32, #tpu.memory_space<vmem>>, vector<1x1x256xf32>
    %232 = vector.shape_cast %231 : vector<1x1x256xf32> to vector<1x256xf32>
    %233 = vector.shape_cast %230 : vector<1x256xf32> to vector<1x1x256xf32>
    tpu.vector_store %arg15[%c0_79, %c0_80, %c0_81], %233 {strides = array<i32>} : memref<1x1x256xf32, #tpu.memory_space<vmem>>, vector<1x1x256xf32>,
    return
  }
  func.func @transform_0(%arg0: i32) -> (i32, i32, i32) {
    %c0_i32 = arith.constant 0 : i32
    %c0_i32_0 = arith.constant 0 : i32
    %c0_i32_1 = arith.constant 0 : i32
    return %arg0, %c0_i32, %c0_i32_0 : i32, i32, i32
  }
  func.func @transform_1(%arg0: i32) -> (i32, i32) {
    %c0_i32 = arith.constant 0 : i32
    %c0_i32_0 = arith.constant 0 : i32
    %c0_i32_1 = arith.constant 0 : i32
    return %c0_i32, %c0_i32_0 : i32, i32
  }
  func.func @transform_2(%arg0: i32) -> (i32, i32) {
    %c0_i32 = arith.constant 0 : i32
    %c0_i32_0 = arith.constant 0 : i32
    %c0_i32_1 = arith.constant 0 : i32
    return %c0_i32, %c0_i32_0 : i32, i32
  }
  func.func @transform_3(%arg0: i32) -> (i32, i32, i32) {
    %c0_i32 = arith.constant 0 : i32
    %c0_i32_0 = arith.constant 0 : i32
    %c0_i32_1 = arith.constant 0 : i32
    %c0_i32_2 = arith.constant 0 : i32
    return %c0_i32, %c0_i32_0, %c0_i32_1 : i32, i32, i32
  }
  func.func @transform_4(%arg0: i32) -> (i32, i32) {
    %c0_i32 = arith.constant 0 : i32
    %c0_i32_0 = arith.constant 0 : i32
    %c0_i32_1 = arith.constant 0 : i32
    return %c0_i32, %c0_i32_0 : i32, i32
  }
  func.func @transform_5(%arg0: i32) -> (i32, i32) {
    %c0_i32 = arith.constant 0 : i32
    %c0_i32_0 = arith.constant 0 : i32
    %c0_i32_1 = arith.constant 0 : i32
    return %c0_i32, %c0_i32_0 : i32, i32
  }
  func.func @transform_6(%arg0: i32) -> (i32, i32) {
    %c0_i32 = arith.constant 0 : i32
    %c0_i32_0 = arith.constant 0 : i32
    %c0_i32_1 = arith.constant 0 : i32
    return %c0_i32, %c0_i32_0 : i32, i32
  }
  func.func @transform_7(%arg0: i32) -> (i32, i32, i32) {
    %c0_i32 = arith.constant 0 : i32
    %c0_i32_0 = arith.constant 0 : i32
    %c0_i32_1 = arith.constant 0 : i32
    %c0_i32_2 = arith.constant 0 : i32
    return %c0_i32, %c0_i32_0, %c0_i32_1 : i32, i32, i32
  }
  func.func @transform_8(%arg0: i32) -> (i32, i32) {
    %c0_i32 = arith.constant 0 : i32
    %c0_i32_0 = arith.constant 0 : i32
    %c0_i32_1 = arith.constant 0 : i32
    return %c0_i32, %c0_i32_0 : i32, i32
  }
  func.func @transform_9(%arg0: i32) -> (i32, i32, i32) {
    %c0_i32 = arith.constant 0 : i32
    %c0_i32_0 = arith.constant 0 : i32
    %c0_i32_1 = arith.constant 0 : i32
    %c0_i32_2 = arith.constant 0 : i32
    return %c0_i32, %c0_i32_0, %c0_i32_1 : i32, i32, i32
  }
  func.func @transform_10(%arg0: i32) -> (i32, i32) {
    %c0_i32 = arith.constant 0 : i32
    %c0_i32_0 = arith.constant 0 : i32
    %c0_i32_1 = arith.constant 0 : i32
    return %c0_i32, %c0_i32_0 : i32, i32
  }
  func.func @transform_11(%arg0: i32) -> (i32, i32) {
    %c0_i32 = arith.constant 0 : i32
    %c0_i32_0 = arith.constant 0 : i32
    %c0_i32_1 = arith.constant 0 : i32
    return %c0_i32, %c0_i32_0 : i32, i32
  }
  func.func @transform_12(%arg0: i32) -> (i32, i32) {
    %c0_i32 = arith.constant 0 : i32
    %c0_i32_0 = arith.constant 0 : i32
    %c0_i32_1 = arith.constant 0 : i32
    return %c0_i32, %c0_i32_0 : i32, i32
  }
  func.func @transform_13(%arg0: i32) -> (i32, i32) {
    %c0_i32 = arith.constant 0 : i32
    %c0_i32_0 = arith.constant 0 : i32
    %c0_i32_1 = arith.constant 0 : i32
    return %c0_i32, %c0_i32_0 : i32, i32
  }
  func.func @transform_14(%arg0: i32) -> (i32, i32, i32) {
    %c0_i32 = arith.constant 0 : i32
    %c0_i32_0 = arith.constant 0 : i32
    %c0_i32_1 = arith.constant 0 : i32
    return %arg0, %c0_i32, %c0_i32_0 : i32, i32, i32
  }
}

module attributes {stable_mosaic.version = 11 : i64} {
  func.func @kernel(%arg0: i32, %arg1: memref<1x64x4xf32, #tpu.memory_space<vmem>>, %arg2: memref<4x32xbf16, #tpu.memory_space<vmem>>, %arg3: memref<1x32xf32, #tpu.memory_space<vmem>>, %arg4: memref<1x32xf32, #tpu.memory_space<vmem>>, %arg5: memref<1x32xf32, #tpu.memory_space<vmem>>, %arg6: memref<1x7x32xf32, #tpu.memory_space<vmem>>, %arg7: memref<1x32xf32, #tpu.memory_space<vmem>>, %arg8: memref<1x32xf32, #tpu.memory_space<vmem>>, %arg9: memref<1x32xf32, #tpu.memory_space<vmem>>, %arg10: memref<1x32x128xbf16, #tpu.memory_space<vmem>>, %arg11: memref<1x128xf32, #tpu.memory_space<vmem>>, %arg12: memref<1x128x32xbf16, #tpu.memory_space<vmem>>, %arg13: memref<1x32xf32, #tpu.memory_space<vmem>>, %arg14: memref<1x32xf32, #tpu.memory_space<vmem>>, %arg15: memref<1x32xf32, #tpu.memory_space<vmem>>, %arg16: memref<1x32xf32, #tpu.memory_space<vmem>>, %arg17: memref<1x64x32xf32, #tpu.memory_space<vmem>>) attributes {dimension_semantics = [#tpu.dimension_semantics<parallel>], iteration_bounds = array<i64: 2>, scalar_prefetch = 0 : i64, scratch_operands = 0 : i64, tpu.core_type = #tpu.core_type<tc>, window_params = [{transform_indices = @transform_0, window_bounds = array<i64: 1, 64, 4>}, {pipeline_mode = #tpu.pipeline_mode<synchronous>, transform_indices = @transform_1, window_bounds = array<i64: 4, 32>}, {pipeline_mode = #tpu.pipeline_mode<synchronous>, transform_indices = @transform_2, window_bounds = array<i64: 1, 32>}, {pipeline_mode = #tpu.pipeline_mode<synchronous>, transform_indices = @transform_3, window_bounds = array<i64: 1, 32>}, {pipeline_mode = #tpu.pipeline_mode<synchronous>, transform_indices = @transform_4, window_bounds = array<i64: 1, 32>}, {pipeline_mode = #tpu.pipeline_mode<synchronous>, transform_indices = @transform_5, window_bounds = array<i64: 1, 7, 32>}, {pipeline_mode = #tpu.pipeline_mode<synchronous>, transform_indices = @transform_6, window_bounds = array<i64: 1, 32>}, {pipeline_mode = #tpu.pipeline_mode<synchronous>, transform_indices = @transform_7, window_bounds = array<i64: 1, 32>}, {pipeline_mode = #tpu.pipeline_mode<synchronous>, transform_indices = @transform_8, window_bounds = array<i64: 1, 32>}, {pipeline_mode = #tpu.pipeline_mode<synchronous>, transform_indices = @transform_9, window_bounds = array<i64: 1, 32, 128>}, {pipeline_mode = #tpu.pipeline_mode<synchronous>, transform_indices = @transform_10, window_bounds = array<i64: 1, 128>}, {pipeline_mode = #tpu.pipeline_mode<synchronous>, transform_indices = @transform_11, window_bounds = array<i64: 1, 128, 32>}, {pipeline_mode = #tpu.pipeline_mode<synchronous>, transform_indices = @transform_12, window_bounds = array<i64: 1, 32>}, {pipeline_mode = #tpu.pipeline_mode<synchronous>, transform_indices = @transform_13, window_bounds = array<i64: 1, 32>}, {pipeline_mode = #tpu.pipeline_mode<synchronous>, transform_indices = @transform_14, window_bounds = array<i64: 1, 32>}, {pipeline_mode = #tpu.pipeline_mode<synchronous>, transform_indices = @transform_15, window_bounds = array<i64: 1, 32>}, {transform_indices = @transform_16, window_bounds = array<i64: 1, 64, 32>}]} {
    %c0 = arith.constant 0 : index
    %c0_0 = arith.constant 0 : index
    %c0_1 = arith.constant 0 : index
    %0 = vector.load %arg1[%c0, %c0_0, %c0_1] : memref<1x64x4xf32, #tpu.memory_space<vmem>>, vector<1x64x4xf32>
    %1 = vector.shape_cast %0 : vector<1x64x4xf32> to vector<64x4xf32>
    %2 = arith.truncf %1 : vector<64x4xf32> to vector<64x4xbf16>
    %c0_2 = arith.constant 0 : index
    %c0_3 = arith.constant 0 : index
    %3 = vector.load %arg2[%c0_2, %c0_3] : memref<4x32xbf16, #tpu.memory_space<vmem>>, vector<4x32xbf16>
    %cst = arith.constant dense<0.000000e+00> : vector<64x32xf32>
    %4 = tpu.matmul %2, %3, %cst {dimension_numbers = #tpu.dot_dimension_numbers<[1], [0], [0], [1], [0, 0, 1, 1], [], []>} : vector<64x4xbf16>, vector<4x32xbf16>, vector<64x32xf32> -> vector<64x32xf32>
    %c0_4 = arith.constant 0 : index
    %c0_5 = arith.constant 0 : index
    %5 = vector.load %arg3[%c0_4, %c0_5] : memref<1x32xf32, #tpu.memory_space<vmem>>, vector<1x32xf32>
    %6 = vector.broadcast %5 : vector<1x32xf32> to vector<64x32xf32>
    %7 = arith.addf %4, %6 : vector<64x32xf32>
    %c0_6 = arith.constant 0 : index
    %c0_7 = arith.constant 0 : index
    %8 = vector.load %arg4[%c0_6, %c0_7] : memref<1x32xf32, #tpu.memory_space<vmem>>, vector<1x32xf32>
    %c0_8 = arith.constant 0 : index
    %c0_9 = arith.constant 0 : index
    %9 = vector.load %arg5[%c0_8, %c0_9] : memref<1x32xf32, #tpu.memory_space<vmem>>, vector<1x32xf32>
    %cst_10 = arith.constant dense<0.000000e+00> : vector<64xf32>
    %10 = vector.multi_reduction <add>, %7, %cst_10 [1] : vector<64x32xf32> to vector<64xf32>
    %11 = vector.shape_cast %10 : vector<64xf32> to vector<64x1xf32>
    %cst_11 = arith.constant 3.200000e+01 : f32
    %12 = vector.broadcast %cst_11 : f32 to vector<64x1xf32>
    %13 = arith.divf %11, %12 : vector<64x1xf32>
    %14 = vector.broadcast %13 : vector<64x1xf32> to vector<64x32xf32>
    %15 = arith.subf %7, %14 : vector<64x32xf32>
    %16 = arith.mulf %15, %15 : vector<64x32xf32>
    %cst_12 = arith.constant dense<0.000000e+00> : vector<64xf32>
    %17 = vector.multi_reduction <add>, %16, %cst_12 [1] : vector<64x32xf32> to vector<64xf32>
    %18 = vector.shape_cast %17 : vector<64xf32> to vector<64x1xf32>
    %cst_13 = arith.constant 3.200000e+01 : f32
    %19 = vector.broadcast %cst_13 : f32 to vector<64x1xf32>
    %20 = arith.divf %18, %19 : vector<64x1xf32>
    %21 = vector.broadcast %13 : vector<64x1xf32> to vector<64x32xf32>
    %22 = arith.subf %7, %21 : vector<64x32xf32>
    %cst_14 = arith.constant 9.99999974E-6 : f32
    %23 = vector.broadcast %cst_14 : f32 to vector<64x1xf32>
    %24 = arith.addf %20, %23 : vector<64x1xf32>
    %25 = math.rsqrt %24 : vector<64x1xf32>
    %26 = vector.broadcast %25 : vector<64x1xf32> to vector<64x32xf32>
    %27 = arith.mulf %22, %26 : vector<64x32xf32>
    %28 = vector.broadcast %8 : vector<1x32xf32> to vector<64x32xf32>
    %29 = arith.mulf %27, %28 : vector<64x32xf32>
    %30 = vector.broadcast %9 : vector<1x32xf32> to vector<64x32xf32>
    %31 = arith.addf %29, %30 : vector<64x32xf32>
    %32 = tpu.iota {dimensions = array<i32: 0>} : vector<64x1xi32>
    %c-3_i32 = arith.constant -3 : i32
    %33 = vector.broadcast %c-3_i32 : i32 to vector<64x1xi32>
    %34 = arith.addi %32, %33 : vector<64x1xi32>
    %c0_i32 = arith.constant 0 : i32
    %35 = vector.broadcast %c0_i32 : i32 to vector<64x1xi32>
    %36 = arith.cmpi sge, %34, %35 : vector<64x1xi32>
    %c-3_i32_15 = arith.constant -3 : i32
    %37 = vector.broadcast %c-3_i32_15 : i32 to vector<64x1xi32>
    %38 = arith.addi %32, %37 : vector<64x1xi32>
    %c64_i32 = arith.constant 64 : i32
    %39 = vector.broadcast %c64_i32 : i32 to vector<64x1xi32>
    %40 = arith.cmpi slt, %38, %39 : vector<64x1xi32>
    %41 = arith.andi %36, %40 : vector<64x1xi1>
    %42 = arith.extui %41 : vector<64x1xi1> to vector<64x1xi32>
    %43 = arith.sitofp %42 : vector<64x1xi32> to vector<64x1xf32>
    %44 = vector.shape_cast %43 : vector<64x1xf32> to vector<64x1xf32>
    %45 = vector.broadcast %44 : vector<64x1xf32> to vector<64x32xf32>
    %c-2_i32 = arith.constant -2 : i32
    %46 = vector.broadcast %c-2_i32 : i32 to vector<64x1xi32>
    %47 = arith.addi %32, %46 : vector<64x1xi32>
    %c0_i32_16 = arith.constant 0 : i32
    %48 = vector.broadcast %c0_i32_16 : i32 to vector<64x1xi32>
    %49 = arith.cmpi sge, %47, %48 : vector<64x1xi32>
    %c-2_i32_17 = arith.constant -2 : i32
    %50 = vector.broadcast %c-2_i32_17 : i32 to vector<64x1xi32>
    %51 = arith.addi %32, %50 : vector<64x1xi32>
    %c64_i32_18 = arith.constant 64 : i32
    %52 = vector.broadcast %c64_i32_18 : i32 to vector<64x1xi32>
    %53 = arith.cmpi slt, %51, %52 : vector<64x1xi32>
    %54 = arith.andi %49, %53 : vector<64x1xi1>
    %55 = arith.extui %54 : vector<64x1xi1> to vector<64x1xi32>
    %56 = arith.sitofp %55 : vector<64x1xi32> to vector<64x1xf32>
    %57 = vector.shape_cast %56 : vector<64x1xf32> to vector<64x1xf32>
    %58 = vector.broadcast %57 : vector<64x1xf32> to vector<64x32xf32>
    %c-1_i32 = arith.constant -1 : i32
    %59 = vector.broadcast %c-1_i32 : i32 to vector<64x1xi32>
    %60 = arith.addi %32, %59 : vector<64x1xi32>
    %c0_i32_19 = arith.constant 0 : i32
    %61 = vector.broadcast %c0_i32_19 : i32 to vector<64x1xi32>
    %62 = arith.cmpi sge, %60, %61 : vector<64x1xi32>
    %c-1_i32_20 = arith.constant -1 : i32
    %63 = vector.broadcast %c-1_i32_20 : i32 to vector<64x1xi32>
    %64 = arith.addi %32, %63 : vector<64x1xi32>
    %c64_i32_21 = arith.constant 64 : i32
    %65 = vector.broadcast %c64_i32_21 : i32 to vector<64x1xi32>
    %66 = arith.cmpi slt, %64, %65 : vector<64x1xi32>
    %67 = arith.andi %62, %66 : vector<64x1xi1>
    %68 = arith.extui %67 : vector<64x1xi1> to vector<64x1xi32>
    %69 = arith.sitofp %68 : vector<64x1xi32> to vector<64x1xf32>
    %70 = vector.shape_cast %69 : vector<64x1xf32> to vector<64x1xf32>
    %71 = vector.broadcast %70 : vector<64x1xf32> to vector<64x32xf32>
    %c1_i32 = arith.constant 1 : i32
    %72 = vector.broadcast %c1_i32 : i32 to vector<64x1xi32>
    %73 = arith.addi %32, %72 : vector<64x1xi32>
    %c0_i32_22 = arith.constant 0 : i32
    %74 = vector.broadcast %c0_i32_22 : i32 to vector<64x1xi32>
    %75 = arith.cmpi sge, %73, %74 : vector<64x1xi32>
    %c1_i32_23 = arith.constant 1 : i32
    %76 = vector.broadcast %c1_i32_23 : i32 to vector<64x1xi32>
    %77 = arith.addi %32, %76 : vector<64x1xi32>
    %c64_i32_24 = arith.constant 64 : i32
    %78 = vector.broadcast %c64_i32_24 : i32 to vector<64x1xi32>
    %79 = arith.cmpi slt, %77, %78 : vector<64x1xi32>
    %80 = arith.andi %75, %79 : vector<64x1xi1>
    %81 = arith.extui %80 : vector<64x1xi1> to vector<64x1xi32>
    %82 = arith.sitofp %81 : vector<64x1xi32> to vector<64x1xf32>
    %83 = vector.shape_cast %82 : vector<64x1xf32> to vector<64x1xf32>
    %84 = vector.broadcast %83 : vector<64x1xf32> to vector<64x32xf32>
    %c2_i32 = arith.constant 2 : i32
    %85 = vector.broadcast %c2_i32 : i32 to vector<64x1xi32>
    %86 = arith.addi %32, %85 : vector<64x1xi32>
    %c0_i32_25 = arith.constant 0 : i32
    %87 = vector.broadcast %c0_i32_25 : i32 to vector<64x1xi32>
    %88 = arith.cmpi sge, %86, %87 : vector<64x1xi32>
    %c2_i32_26 = arith.constant 2 : i32
    %89 = vector.broadcast %c2_i32_26 : i32 to vector<64x1xi32>
    %90 = arith.addi %32, %89 : vector<64x1xi32>
    %c64_i32_27 = arith.constant 64 : i32
    %91 = vector.broadcast %c64_i32_27 : i32 to vector<64x1xi32>
    %92 = arith.cmpi slt, %90, %91 : vector<64x1xi32>
    %93 = arith.andi %88, %92 : vector<64x1xi1>
    %94 = arith.extui %93 : vector<64x1xi1> to vector<64x1xi32>
    %95 = arith.sitofp %94 : vector<64x1xi32> to vector<64x1xf32>
    %96 = vector.shape_cast %95 : vector<64x1xf32> to vector<64x1xf32>
    %97 = vector.broadcast %96 : vector<64x1xf32> to vector<64x32xf32>
    %c3_i32 = arith.constant 3 : i32
    %98 = vector.broadcast %c3_i32 : i32 to vector<64x1xi32>
    %99 = arith.addi %32, %98 : vector<64x1xi32>
    %c0_i32_28 = arith.constant 0 : i32
    %100 = vector.broadcast %c0_i32_28 : i32 to vector<64x1xi32>
    %101 = arith.cmpi sge, %99, %100 : vector<64x1xi32>
    %c3_i32_29 = arith.constant 3 : i32
    %102 = vector.broadcast %c3_i32_29 : i32 to vector<64x1xi32>
    %103 = arith.addi %32, %102 : vector<64x1xi32>
    %c64_i32_30 = arith.constant 64 : i32
    %104 = vector.broadcast %c64_i32_30 : i32 to vector<64x1xi32>
    %105 = arith.cmpi slt, %103, %104 : vector<64x1xi32>
    %106 = arith.andi %101, %105 : vector<64x1xi1>
    %107 = arith.extui %106 : vector<64x1xi1> to vector<64x1xi32>
    %108 = arith.sitofp %107 : vector<64x1xi32> to vector<64x1xf32>
    %109 = vector.shape_cast %108 : vector<64x1xf32> to vector<64x1xf32>
    %110 = vector.broadcast %109 : vector<64x1xf32> to vector<64x32xf32>
    %c0_31 = arith.constant 0 : index
    %c3 = arith.constant 3 : index
    %c0_32 = arith.constant 0 : index
    %111 = vector.load %arg6[%c0_31, %c3, %c0_32] : memref<1x7x32xf32, #tpu.memory_space<vmem>>, vector<1x1x32xf32>
    %112 = vector.shape_cast %111 : vector<1x1x32xf32> to vector<32xf32>
    %113 = vector.shape_cast %112 : vector<32xf32> to vector<1x32xf32>
    %114 = vector.broadcast %113 : vector<1x32xf32> to vector<64x32xf32>
    %115 = arith.mulf %31, %114 : vector<64x32xf32>
    %c3_i32_33 = arith.constant 3 : i32
    %116 = tpu.dynamic_rotate %31 by %c3_i32_33 dim 0 : vector<64x32xf32>, i32 -> vector<64x32xf32>
    %117 = arith.mulf %116, %45 : vector<64x32xf32>
    %c0_34 = arith.constant 0 : index
    %c0_35 = arith.constant 0 : index
    %c0_36 = arith.constant 0 : index
    %118 = vector.load %arg6[%c0_34, %c0_35, %c0_36] : memref<1x7x32xf32, #tpu.memory_space<vmem>>, vector<1x1x32xf32>
    %119 = vector.shape_cast %118 : vector<1x1x32xf32> to vector<32xf32>
    %120 = vector.shape_cast %119 : vector<32xf32> to vector<1x32xf32>
    %121 = vector.broadcast %120 : vector<1x32xf32> to vector<64x32xf32>
    %122 = arith.mulf %117, %121 : vector<64x32xf32>
    %123 = arith.addf %115, %122 : vector<64x32xf32>
    %c2_i32_37 = arith.constant 2 : i32
    %124 = tpu.dynamic_rotate %31 by %c2_i32_37 dim 0 : vector<64x32xf32>, i32 -> vector<64x32xf32>
    %125 = arith.mulf %124, %58 : vector<64x32xf32>
    %c0_38 = arith.constant 0 : index
    %c1 = arith.constant 1 : index
    %c0_39 = arith.constant 0 : index
    %126 = vector.load %arg6[%c0_38, %c1, %c0_39] : memref<1x7x32xf32, #tpu.memory_space<vmem>>, vector<1x1x32xf32>
    %127 = vector.shape_cast %126 : vector<1x1x32xf32> to vector<32xf32>
    %128 = vector.shape_cast %127 : vector<32xf32> to vector<1x32xf32>
    %129 = vector.broadcast %128 : vector<1x32xf32> to vector<64x32xf32>
    %130 = arith.mulf %125, %129 : vector<64x32xf32>
    %131 = arith.addf %123, %130 : vector<64x32xf32>
    %c1_i32_40 = arith.constant 1 : i32
    %132 = tpu.dynamic_rotate %31 by %c1_i32_40 dim 0 : vector<64x32xf32>, i32 -> vector<64x32xf32>
    %133 = arith.mulf %132, %71 : vector<64x32xf32>
    %c0_41 = arith.constant 0 : index
    %c2 = arith.constant 2 : index
    %c0_42 = arith.constant 0 : index
    %134 = vector.load %arg6[%c0_41, %c2, %c0_42] : memref<1x7x32xf32, #tpu.memory_space<vmem>>, vector<1x1x32xf32>
    %135 = vector.shape_cast %134 : vector<1x1x32xf32> to vector<32xf32>
    %136 = vector.shape_cast %135 : vector<32xf32> to vector<1x32xf32>
    %137 = vector.broadcast %136 : vector<1x32xf32> to vector<64x32xf32>
    %138 = arith.mulf %133, %137 : vector<64x32xf32>
    %139 = arith.addf %131, %138 : vector<64x32xf32>
    %c63_i32 = arith.constant 63 : i32
    %140 = tpu.dynamic_rotate %31 by %c63_i32 dim 0 : vector<64x32xf32>, i32 -> vector<64x32xf32>
    %141 = arith.mulf %140, %84 : vector<64x32xf32>
    %c0_43 = arith.constant 0 : index
    %c4 = arith.constant 4 : index
    %c0_44 = arith.constant 0 : index
    %142 = vector.load %arg6[%c0_43, %c4, %c0_44] : memref<1x7x32xf32, #tpu.memory_space<vmem>>, vector<1x1x32xf32>
    %143 = vector.shape_cast %142 : vector<1x1x32xf32> to vector<32xf32>
    %144 = vector.shape_cast %143 : vector<32xf32> to vector<1x32xf32>
    %145 = vector.broadcast %144 : vector<1x32xf32> to vector<64x32xf32>
    %146 = arith.mulf %141, %145 : vector<64x32xf32>
    %147 = arith.addf %139, %146 : vector<64x32xf32>
    %c62_i32 = arith.constant 62 : i32
    %148 = tpu.dynamic_rotate %31 by %c62_i32 dim 0 : vector<64x32xf32>, i32 -> vector<64x32xf32>
    %149 = arith.mulf %148, %97 : vector<64x32xf32>
    %c0_45 = arith.constant 0 : index
    %c5 = arith.constant 5 : index
    %c0_46 = arith.constant 0 : index
    %150 = vector.load %arg6[%c0_45, %c5, %c0_46] : memref<1x7x32xf32, #tpu.memory_space<vmem>>, vector<1x1x32xf32>
    %151 = vector.shape_cast %150 : vector<1x1x32xf32> to vector<32xf32>
    %152 = vector.shape_cast %151 : vector<32xf32> to vector<1x32xf32>
    %153 = vector.broadcast %152 : vector<1x32xf32> to vector<64x32xf32>
    %154 = arith.mulf %149, %153 : vector<64x32xf32>
    %155 = arith.addf %147, %154 : vector<64x32xf32>
    %c61_i32 = arith.constant 61 : i32
    %156 = tpu.dynamic_rotate %31 by %c61_i32 dim 0 : vector<64x32xf32>, i32 -> vector<64x32xf32>
    %157 = arith.mulf %156, %110 : vector<64x32xf32>
    %c0_47 = arith.constant 0 : index
    %c6 = arith.constant 6 : index
    %c0_48 = arith.constant 0 : index
    %158 = vector.load %arg6[%c0_47, %c6, %c0_48] : memref<1x7x32xf32, #tpu.memory_space<vmem>>, vector<1x1x32xf32>
    %159 = vector.shape_cast %158 : vector<1x1x32xf32> to vector<32xf32>
    %160 = vector.shape_cast %159 : vector<32xf32> to vector<1x32xf32>
    %161 = vector.broadcast %160 : vector<1x32xf32> to vector<64x32xf32>
    %162 = arith.mulf %157, %161 : vector<64x32xf32>
    %163 = arith.addf %155, %162 : vector<64x32xf32>
    %c0_49 = arith.constant 0 : index
    %c0_50 = arith.constant 0 : index
    %164 = vector.load %arg7[%c0_49, %c0_50] : memref<1x32xf32, #tpu.memory_space<vmem>>, vector<1x32xf32>
    %165 = vector.shape_cast %164 : vector<1x32xf32> to vector<32xf32>
    %166 = vector.shape_cast %165 : vector<32xf32> to vector<1x32xf32>
    %167 = vector.broadcast %166 : vector<1x32xf32> to vector<64x32xf32>
    %168 = arith.addf %163, %167 : vector<64x32xf32>
    %c0_51 = arith.constant 0 : index
    %c0_52 = arith.constant 0 : index
    %169 = vector.load %arg8[%c0_51, %c0_52] : memref<1x32xf32, #tpu.memory_space<vmem>>, vector<1x32xf32>
    %170 = vector.shape_cast %169 : vector<1x32xf32> to vector<32xf32>
    %c0_53 = arith.constant 0 : index
    %c0_54 = arith.constant 0 : index
    %171 = vector.load %arg9[%c0_53, %c0_54] : memref<1x32xf32, #tpu.memory_space<vmem>>, vector<1x32xf32>
    %172 = vector.shape_cast %171 : vector<1x32xf32> to vector<32xf32>
    %cst_55 = arith.constant dense<0.000000e+00> : vector<64xf32>
    %173 = vector.multi_reduction <add>, %168, %cst_55 [1] : vector<64x32xf32> to vector<64xf32>
    %174 = vector.shape_cast %173 : vector<64xf32> to vector<64x1xf32>
    %cst_56 = arith.constant 3.200000e+01 : f32
    %175 = vector.broadcast %cst_56 : f32 to vector<64x1xf32>
    %176 = arith.divf %174, %175 : vector<64x1xf32>
    %177 = vector.broadcast %176 : vector<64x1xf32> to vector<64x32xf32>
    %178 = arith.subf %168, %177 : vector<64x32xf32>
    %179 = arith.mulf %178, %178 : vector<64x32xf32>
    %cst_57 = arith.constant dense<0.000000e+00> : vector<64xf32>
    %180 = vector.multi_reduction <add>, %179, %cst_57 [1] : vector<64x32xf32> to vector<64xf32>
    %181 = vector.shape_cast %180 : vector<64xf32> to vector<64x1xf32>
    %cst_58 = arith.constant 3.200000e+01 : f32
    %182 = vector.broadcast %cst_58 : f32 to vector<64x1xf32>
    %183 = arith.divf %181, %182 : vector<64x1xf32>
    %184 = vector.broadcast %176 : vector<64x1xf32> to vector<64x32xf32>
    %185 = arith.subf %168, %184 : vector<64x32xf32>
    %cst_59 = arith.constant 9.99999974E-6 : f32
    %186 = vector.broadcast %cst_59 : f32 to vector<64x1xf32>
    %187 = arith.addf %183, %186 : vector<64x1xf32>
    %188 = math.rsqrt %187 : vector<64x1xf32>
    %189 = vector.broadcast %188 : vector<64x1xf32> to vector<64x32xf32>
    %190 = arith.mulf %185, %189 : vector<64x32xf32>
    %191 = vector.shape_cast %170 : vector<32xf32> to vector<1x32xf32>
    %192 = vector.broadcast %191 : vector<1x32xf32> to vector<64x32xf32>
    %193 = arith.mulf %190, %192 : vector<64x32xf32>
    %194 = vector.shape_cast %172 : vector<32xf32> to vector<1x32xf32>
    %195 = vector.broadcast %194 : vector<1x32xf32> to vector<64x32xf32>
    %196 = arith.addf %193, %195 : vector<64x32xf32>
    %197 = arith.truncf %196 : vector<64x32xf32> to vector<64x32xbf16>
    %c0_60 = arith.constant 0 : index
    %c0_61 = arith.constant 0 : index
    %c0_62 = arith.constant 0 : index
    %198 = vector.load %arg10[%c0_60, %c0_61, %c0_62] : memref<1x32x128xbf16, #tpu.memory_space<vmem>>, vector<1x32x128xbf16>
    %199 = vector.shape_cast %198 : vector<1x32x128xbf16> to vector<32x128xbf16>
    %cst_63 = arith.constant dense<0.000000e+00> : vector<64x128xf32>
    %200 = tpu.matmul %197, %199, %cst_63 {dimension_numbers = #tpu.dot_dimension_numbers<[1], [0], [0], [1], [0, 0, 1, 1], [], []>} : vector<64x32xbf16>, vector<32x128xbf16>, vector<64x128xf32> -> vector<64x128xf32>
    %c0_64 = arith.constant 0 : index
    %c0_65 = arith.constant 0 : index
    %201 = vector.load %arg11[%c0_64, %c0_65] : memref<1x128xf32, #tpu.memory_space<vmem>>, vector<1x128xf32>
    %202 = vector.shape_cast %201 : vector<1x128xf32> to vector<128xf32>
    %203 = vector.shape_cast %202 : vector<128xf32> to vector<1x128xf32>
    %204 = vector.broadcast %203 : vector<1x128xf32> to vector<64x128xf32>
    %205 = arith.addf %200, %204 : vector<64x128xf32>
    %cst_66 = arith.constant 5.000000e-01 : f32
    %206 = vector.broadcast %cst_66 : f32 to vector<64x128xf32>
    %207 = arith.mulf %206, %205 : vector<64x128xf32>
    %cst_67 = arith.constant 0.707106769 : f32
    %208 = vector.broadcast %cst_67 : f32 to vector<64x128xf32>
    %209 = arith.mulf %205, %208 : vector<64x128xf32>
    %210 = math.erf %209 : vector<64x128xf32>
    %cst_68 = arith.constant 1.000000e+00 : f32
    %211 = vector.broadcast %cst_68 : f32 to vector<64x128xf32>
    %212 = arith.addf %211, %210 : vector<64x128xf32>
    %213 = arith.mulf %207, %212 : vector<64x128xf32>
    %214 = arith.truncf %213 : vector<64x128xf32> to vector<64x128xbf16>
    %c0_69 = arith.constant 0 : index
    %c0_70 = arith.constant 0 : index
    %c0_71 = arith.constant 0 : index
    %215 = vector.load %arg12[%c0_69, %c0_70, %c0_71] : memref<1x128x32xbf16, #tpu.memory_space<vmem>>, vector<1x128x32xbf16>
    %216 = vector.shape_cast %215 : vector<1x128x32xbf16> to vector<128x32xbf16>
    %cst_72 = arith.constant dense<0.000000e+00> : vector<64x32xf32>
    %217 = tpu.matmul %214, %216, %cst_72 {dimension_numbers = #tpu.dot_dimension_numbers<[1], [0], [0], [1], [0, 0, 1, 1], [], []>} : vector<64x128xbf16>, vector<128x32xbf16>, vector<64x32xf32> -> vector<64x32xf32>
    %c0_73 = arith.constant 0 : index
    %c0_74 = arith.constant 0 : index
    %218 = vector.load %arg13[%c0_73, %c0_74] : memref<1x32xf32, #tpu.memory_space<vmem>>, vector<1x32xf32>
    %219 = vector.shape_cast %218 : vector<1x32xf32> to vector<32xf32>
    %220 = vector.shape_cast %219 : vector<32xf32> to vector<1x32xf32>
    %221 = vector.broadcast %220 : vector<1x32xf32> to vector<64x32xf32>
    %222 = arith.addf %217, %221 : vector<64x32xf32>
    %c0_75 = arith.constant 0 : index
    %c0_76 = arith.constant 0 : index
    %223 = vector.load %arg14[%c0_75, %c0_76] : memref<1x32xf32, #tpu.memory_space<vmem>>, vector<1x32xf32>
    %224 = vector.shape_cast %223 : vector<1x32xf32> to vector<32xf32>
    %225 = vector.shape_cast %224 : vector<32xf32> to vector<1x32xf32>
    %226 = vector.broadcast %225 : vector<1x32xf32> to vector<64x32xf32>
    %227 = arith.mulf %226, %222 : vector<64x32xf32>
    %228 = arith.addf %31, %227 : vector<64x32xf32>
    %c0_77 = arith.constant 0 : index
    %c0_78 = arith.constant 0 : index
    %229 = vector.load %arg15[%c0_77, %c0_78] : memref<1x32xf32, #tpu.memory_space<vmem>>, vector<1x32xf32>
    %c0_79 = arith.constant 0 : index
    %c0_80 = arith.constant 0 : index
    %230 = vector.load %arg16[%c0_79, %c0_80] : memref<1x32xf32, #tpu.memory_space<vmem>>, vector<1x32xf32>
    %cst_81 = arith.constant dense<0.000000e+00> : vector<64xf32>
    %231 = vector.multi_reduction <add>, %228, %cst_81 [1] : vector<64x32xf32> to vector<64xf32>
    %232 = vector.shape_cast %231 : vector<64xf32> to vector<64x1xf32>
    %cst_82 = arith.constant 3.200000e+01 : f32
    %233 = vector.broadcast %cst_82 : f32 to vector<64x1xf32>
    %234 = arith.divf %232, %233 : vector<64x1xf32>
    %235 = vector.broadcast %234 : vector<64x1xf32> to vector<64x32xf32>
    %236 = arith.subf %228, %235 : vector<64x32xf32>
    %237 = arith.mulf %236, %236 : vector<64x32xf32>
    %cst_83 = arith.constant dense<0.000000e+00> : vector<64xf32>
    %238 = vector.multi_reduction <add>, %237, %cst_83 [1] : vector<64x32xf32> to vector<64xf32>
    %239 = vector.shape_cast %238 : vector<64xf32> to vector<64x1xf32>
    %cst_84 = arith.constant 3.200000e+01 : f32
    %240 = vector.broadcast %cst_84 : f32 to vector<64x1xf32>
    %241 = arith.divf %239, %240 : vector<64x1xf32>
    %242 = vector.broadcast %234 : vector<64x1xf32> to vector<64x32xf32>
    %243 = arith.subf %228, %242 : vector<64x32xf32>
    %cst_85 = arith.constant 9.99999974E-6 : f32
    %244 = vector.broadcast %cst_85 : f32 to vector<64x1xf32>
    %245 = arith.addf %241, %244 : vector<64x1xf32>
    %246 = math.rsqrt %245 : vector<64x1xf32>
    %247 = vector.broadcast %246 : vector<64x1xf32> to vector<64x32xf32>
    %248 = arith.mulf %243, %247 : vector<64x32xf32>
    %249 = vector.broadcast %229 : vector<1x32xf32> to vector<64x32xf32>
    %250 = arith.mulf %248, %249 : vector<64x32xf32>
    %251 = vector.broadcast %230 : vector<1x32xf32> to vector<64x32xf32>
    %252 = arith.addf %250, %251 : vector<64x32xf32>
    %c0_86 = arith.constant 0 : index
    %c0_87 = arith.constant 0 : index
    %c0_88 = arith.constant 0 : index
    %253 = vector.load %arg17[%c0_86, %c0_87, %c0_88] : memref<1x64x32xf32, #tpu.memory_space<vmem>>, vector<1x64x32xf32>
    %254 = vector.shape_cast %253 : vector<1x64x32xf32> to vector<64x32xf32>
    %255 = vector.shape_cast %252 : vector<64x32xf32> to vector<1x64x32xf32>
    tpu.vector_store %arg17[%c0_86, %c0_87, %c0_88], %255 {strides = array<i32>} : memref<1x64x32xf32, #tpu.memory_space<vmem>>, vector<1x64x32xf32>,
    return
  }
  func.func @transform_0(%arg0: i32) -> (i32, i32, i32) {
    %c0_i32 = arith.constant 0 : i32
    %c0_i32_0 = arith.constant 0 : i32
    %c0_i32_1 = arith.constant 0 : i32
    return %arg0, %c0_i32, %c0_i32_0 : i32, i32, i32
  }
  func.func @transform_1(%arg0: i32) -> (i32, i32) {
    %c0_i32 = arith.constant 0 : i32
    %c0_i32_0 = arith.constant 0 : i32
    %c0_i32_1 = arith.constant 0 : i32
    return %c0_i32, %c0_i32_0 : i32, i32
  }
  func.func @transform_2(%arg0: i32) -> (i32, i32) {
    %c0_i32 = arith.constant 0 : i32
    %c0_i32_0 = arith.constant 0 : i32
    %c0_i32_1 = arith.constant 0 : i32
    return %c0_i32, %c0_i32_0 : i32, i32
  }
  func.func @transform_3(%arg0: i32) -> (i32, i32) {
    %c0_i32 = arith.constant 0 : i32
    %c0_i32_0 = arith.constant 0 : i32
    %c0_i32_1 = arith.constant 0 : i32
    return %c0_i32, %c0_i32_0 : i32, i32
  }
  func.func @transform_4(%arg0: i32) -> (i32, i32) {
    %c0_i32 = arith.constant 0 : i32
    %c0_i32_0 = arith.constant 0 : i32
    %c0_i32_1 = arith.constant 0 : i32
    return %c0_i32, %c0_i32_0 : i32, i32
  }
  func.func @transform_5(%arg0: i32) -> (i32, i32, i32) {
    %c0_i32 = arith.constant 0 : i32
    %c0_i32_0 = arith.constant 0 : i32
    %c0_i32_1 = arith.constant 0 : i32
    %c0_i32_2 = arith.constant 0 : i32
    return %c0_i32, %c0_i32_0, %c0_i32_1 : i32, i32, i32
  }
  func.func @transform_6(%arg0: i32) -> (i32, i32) {
    %c0_i32 = arith.constant 0 : i32
    %c0_i32_0 = arith.constant 0 : i32
    %c0_i32_1 = arith.constant 0 : i32
    return %c0_i32, %c0_i32_0 : i32, i32
  }
  func.func @transform_7(%arg0: i32) -> (i32, i32) {
    %c0_i32 = arith.constant 0 : i32
    %c0_i32_0 = arith.constant 0 : i32
    %c0_i32_1 = arith.constant 0 : i32
    return %c0_i32, %c0_i32_0 : i32, i32
  }
  func.func @transform_8(%arg0: i32) -> (i32, i32) {
    %c0_i32 = arith.constant 0 : i32
    %c0_i32_0 = arith.constant 0 : i32
    %c0_i32_1 = arith.constant 0 : i32
    return %c0_i32, %c0_i32_0 : i32, i32
  }
  func.func @transform_9(%arg0: i32) -> (i32, i32, i32) {
    %c0_i32 = arith.constant 0 : i32
    %c0_i32_0 = arith.constant 0 : i32
    %c0_i32_1 = arith.constant 0 : i32
    %c0_i32_2 = arith.constant 0 : i32
    return %c0_i32, %c0_i32_0, %c0_i32_1 : i32, i32, i32
  }
  func.func @transform_10(%arg0: i32) -> (i32, i32) {
    %c0_i32 = arith.constant 0 : i32
    %c0_i32_0 = arith.constant 0 : i32
    %c0_i32_1 = arith.constant 0 : i32
    return %c0_i32, %c0_i32_0 : i32, i32
  }
  func.func @transform_11(%arg0: i32) -> (i32, i32, i32) {
    %c0_i32 = arith.constant 0 : i32
    %c0_i32_0 = arith.constant 0 : i32
    %c0_i32_1 = arith.constant 0 : i32
    %c0_i32_2 = arith.constant 0 : i32
    return %c0_i32, %c0_i32_0, %c0_i32_1 : i32, i32, i32
  }
  func.func @transform_12(%arg0: i32) -> (i32, i32) {
    %c0_i32 = arith.constant 0 : i32
    %c0_i32_0 = arith.constant 0 : i32
    %c0_i32_1 = arith.constant 0 : i32
    return %c0_i32, %c0_i32_0 : i32, i32
  }
  func.func @transform_13(%arg0: i32) -> (i32, i32) {
    %c0_i32 = arith.constant 0 : i32
    %c0_i32_0 = arith.constant 0 : i32
    %c0_i32_1 = arith.constant 0 : i32
    return %c0_i32, %c0_i32_0 : i32, i32
  }
  func.func @transform_14(%arg0: i32) -> (i32, i32) {
    %c0_i32 = arith.constant 0 : i32
    %c0_i32_0 = arith.constant 0 : i32
    %c0_i32_1 = arith.constant 0 : i32
    return %c0_i32, %c0_i32_0 : i32, i32
  }
  func.func @transform_15(%arg0: i32) -> (i32, i32) {
    %c0_i32 = arith.constant 0 : i32
    %c0_i32_0 = arith.constant 0 : i32
    %c0_i32_1 = arith.constant 0 : i32
    return %c0_i32, %c0_i32_0 : i32, i32
  }
  func.func @transform_16(%arg0: i32) -> (i32, i32, i32) {
    %c0_i32 = arith.constant 0 : i32
    %c0_i32_0 = arith.constant 0 : i32
    %c0_i32_1 = arith.constant 0 : i32
    return %arg0, %c0_i32, %c0_i32_0 : i32, i32, i32
  }
}

module attributes {stable_mosaic.version = 11 : i64} {
  func.func @kernel(%arg0: i32, %arg1: memref<1x32x64xf32, #tpu.memory_space<vmem>>, %arg2: memref<64x64xbf16, #tpu.memory_space<vmem>>, %arg3: memref<1x64xf32, #tpu.memory_space<vmem>>, %arg4: memref<1x7x64xf32, #tpu.memory_space<vmem>>, %arg5: memref<1x64xf32, #tpu.memory_space<vmem>>, %arg6: memref<1x64xf32, #tpu.memory_space<vmem>>, %arg7: memref<1x64xf32, #tpu.memory_space<vmem>>, %arg8: memref<1x64x256xbf16, #tpu.memory_space<vmem>>, %arg9: memref<1x256xf32, #tpu.memory_space<vmem>>, %arg10: memref<1x256x64xbf16, #tpu.memory_space<vmem>>, %arg11: memref<1x64xf32, #tpu.memory_space<vmem>>, %arg12: memref<1x64xf32, #tpu.memory_space<vmem>>, %arg13: memref<1x64xf32, #tpu.memory_space<vmem>>, %arg14: memref<1x64xf32, #tpu.memory_space<vmem>>, %arg15: memref<1x32x64xf32, #tpu.memory_space<vmem>>) attributes {dimension_semantics = [#tpu.dimension_semantics<parallel>], iteration_bounds = array<i64: 2>, scalar_prefetch = 0 : i64, scratch_operands = 0 : i64, tpu.core_type = #tpu.core_type<tc>, window_params = [{transform_indices = @transform_0, window_bounds = array<i64: 1, 32, 64>}, {pipeline_mode = #tpu.pipeline_mode<synchronous>, transform_indices = @transform_1, window_bounds = array<i64: 64, 64>}, {pipeline_mode = #tpu.pipeline_mode<synchronous>, transform_indices = @transform_2, window_bounds = array<i64: 1, 64>}, {pipeline_mode = #tpu.pipeline_mode<synchronous>, transform_indices = @transform_3, window_bounds = array<i64: 1, 7, 64>}, {pipeline_mode = #tpu.pipeline_mode<synchronous>, transform_indices = @transform_4, window_bounds = array<i64: 1, 64>}, {pipeline_mode = #tpu.pipeline_mode<synchronous>, transform_indices = @transform_5, window_bounds = array<i64: 1, 64>}, {pipeline_mode = #tpu.pipeline_mode<synchronous>, transform_indices = @transform_6, window_bounds = array<i64: 1, 64>}, {pipeline_mode = #tpu.pipeline_mode<synchronous>, transform_indices = @transform_7, window_bounds = array<i64: 1, 64, 256>}, {pipeline_mode = #tpu.pipeline_mode<synchronous>, transform_indices = @transform_8, window_bounds = array<i64: 1, 256>}, {pipeline_mode = #tpu.pipeline_mode<synchronous>, transform_indices = @transform_9, window_bounds = array<i64: 1, 256, 64>}, {pipeline_mode = #tpu.pipeline_mode<synchronous>, transform_indices = @transform_10, window_bounds = array<i64: 1, 64>}, {pipeline_mode = #tpu.pipeline_mode<synchronous>, transform_indices = @transform_11, window_bounds = array<i64: 1, 64>}, {pipeline_mode = #tpu.pipeline_mode<synchronous>, transform_indices = @transform_12, window_bounds = array<i64: 1, 64>}, {pipeline_mode = #tpu.pipeline_mode<synchronous>, transform_indices = @transform_13, window_bounds = array<i64: 1, 64>}, {transform_indices = @transform_14, window_bounds = array<i64: 1, 32, 64>}]} {
    %c0 = arith.constant 0 : index
    %c0_0 = arith.constant 0 : index
    %c0_1 = arith.constant 0 : index
    %0 = vector.load %arg1[%c0, %c0_0, %c0_1] : memref<1x32x64xf32, #tpu.memory_space<vmem>>, vector<1x32x64xf32>
    %1 = vector.shape_cast %0 : vector<1x32x64xf32> to vector<32x64xf32>
    %2 = arith.truncf %1 : vector<32x64xf32> to vector<32x64xbf16>
    %c0_2 = arith.constant 0 : index
    %c0_3 = arith.constant 0 : index
    %3 = vector.load %arg2[%c0_2, %c0_3] : memref<64x64xbf16, #tpu.memory_space<vmem>>, vector<64x64xbf16>
    %cst = arith.constant dense<0.000000e+00> : vector<32x64xf32>
    %4 = tpu.matmul %2, %3, %cst {dimension_numbers = #tpu.dot_dimension_numbers<[1], [0], [0], [1], [0, 0, 1, 1], [], []>} : vector<32x64xbf16>, vector<64x64xbf16>, vector<32x64xf32> -> vector<32x64xf32>
    %c0_4 = arith.constant 0 : index
    %c0_5 = arith.constant 0 : index
    %5 = vector.load %arg3[%c0_4, %c0_5] : memref<1x64xf32, #tpu.memory_space<vmem>>, vector<1x64xf32>
    %6 = vector.broadcast %5 : vector<1x64xf32> to vector<32x64xf32>
    %7 = arith.addf %4, %6 : vector<32x64xf32>
    %8 = tpu.iota {dimensions = array<i32: 0>} : vector<32x1xi32>
    %c-3_i32 = arith.constant -3 : i32
    %9 = vector.broadcast %c-3_i32 : i32 to vector<32x1xi32>
    %10 = arith.addi %8, %9 : vector<32x1xi32>
    %c0_i32 = arith.constant 0 : i32
    %11 = vector.broadcast %c0_i32 : i32 to vector<32x1xi32>
    %12 = arith.cmpi sge, %10, %11 : vector<32x1xi32>
    %c-3_i32_6 = arith.constant -3 : i32
    %13 = vector.broadcast %c-3_i32_6 : i32 to vector<32x1xi32>
    %14 = arith.addi %8, %13 : vector<32x1xi32>
    %c32_i32 = arith.constant 32 : i32
    %15 = vector.broadcast %c32_i32 : i32 to vector<32x1xi32>
    %16 = arith.cmpi slt, %14, %15 : vector<32x1xi32>
    %17 = arith.andi %12, %16 : vector<32x1xi1>
    %18 = arith.extui %17 : vector<32x1xi1> to vector<32x1xi32>
    %19 = arith.sitofp %18 : vector<32x1xi32> to vector<32x1xf32>
    %20 = vector.shape_cast %19 : vector<32x1xf32> to vector<32x1xf32>
    %21 = vector.broadcast %20 : vector<32x1xf32> to vector<32x64xf32>
    %c-2_i32 = arith.constant -2 : i32
    %22 = vector.broadcast %c-2_i32 : i32 to vector<32x1xi32>
    %23 = arith.addi %8, %22 : vector<32x1xi32>
    %c0_i32_7 = arith.constant 0 : i32
    %24 = vector.broadcast %c0_i32_7 : i32 to vector<32x1xi32>
    %25 = arith.cmpi sge, %23, %24 : vector<32x1xi32>
    %c-2_i32_8 = arith.constant -2 : i32
    %26 = vector.broadcast %c-2_i32_8 : i32 to vector<32x1xi32>
    %27 = arith.addi %8, %26 : vector<32x1xi32>
    %c32_i32_9 = arith.constant 32 : i32
    %28 = vector.broadcast %c32_i32_9 : i32 to vector<32x1xi32>
    %29 = arith.cmpi slt, %27, %28 : vector<32x1xi32>
    %30 = arith.andi %25, %29 : vector<32x1xi1>
    %31 = arith.extui %30 : vector<32x1xi1> to vector<32x1xi32>
    %32 = arith.sitofp %31 : vector<32x1xi32> to vector<32x1xf32>
    %33 = vector.shape_cast %32 : vector<32x1xf32> to vector<32x1xf32>
    %34 = vector.broadcast %33 : vector<32x1xf32> to vector<32x64xf32>
    %c-1_i32 = arith.constant -1 : i32
    %35 = vector.broadcast %c-1_i32 : i32 to vector<32x1xi32>
    %36 = arith.addi %8, %35 : vector<32x1xi32>
    %c0_i32_10 = arith.constant 0 : i32
    %37 = vector.broadcast %c0_i32_10 : i32 to vector<32x1xi32>
    %38 = arith.cmpi sge, %36, %37 : vector<32x1xi32>
    %c-1_i32_11 = arith.constant -1 : i32
    %39 = vector.broadcast %c-1_i32_11 : i32 to vector<32x1xi32>
    %40 = arith.addi %8, %39 : vector<32x1xi32>
    %c32_i32_12 = arith.constant 32 : i32
    %41 = vector.broadcast %c32_i32_12 : i32 to vector<32x1xi32>
    %42 = arith.cmpi slt, %40, %41 : vector<32x1xi32>
    %43 = arith.andi %38, %42 : vector<32x1xi1>
    %44 = arith.extui %43 : vector<32x1xi1> to vector<32x1xi32>
    %45 = arith.sitofp %44 : vector<32x1xi32> to vector<32x1xf32>
    %46 = vector.shape_cast %45 : vector<32x1xf32> to vector<32x1xf32>
    %47 = vector.broadcast %46 : vector<32x1xf32> to vector<32x64xf32>
    %c1_i32 = arith.constant 1 : i32
    %48 = vector.broadcast %c1_i32 : i32 to vector<32x1xi32>
    %49 = arith.addi %8, %48 : vector<32x1xi32>
    %c0_i32_13 = arith.constant 0 : i32
    %50 = vector.broadcast %c0_i32_13 : i32 to vector<32x1xi32>
    %51 = arith.cmpi sge, %49, %50 : vector<32x1xi32>
    %c1_i32_14 = arith.constant 1 : i32
    %52 = vector.broadcast %c1_i32_14 : i32 to vector<32x1xi32>
    %53 = arith.addi %8, %52 : vector<32x1xi32>
    %c32_i32_15 = arith.constant 32 : i32
    %54 = vector.broadcast %c32_i32_15 : i32 to vector<32x1xi32>
    %55 = arith.cmpi slt, %53, %54 : vector<32x1xi32>
    %56 = arith.andi %51, %55 : vector<32x1xi1>
    %57 = arith.extui %56 : vector<32x1xi1> to vector<32x1xi32>
    %58 = arith.sitofp %57 : vector<32x1xi32> to vector<32x1xf32>
    %59 = vector.shape_cast %58 : vector<32x1xf32> to vector<32x1xf32>
    %60 = vector.broadcast %59 : vector<32x1xf32> to vector<32x64xf32>
    %c2_i32 = arith.constant 2 : i32
    %61 = vector.broadcast %c2_i32 : i32 to vector<32x1xi32>
    %62 = arith.addi %8, %61 : vector<32x1xi32>
    %c0_i32_16 = arith.constant 0 : i32
    %63 = vector.broadcast %c0_i32_16 : i32 to vector<32x1xi32>
    %64 = arith.cmpi sge, %62, %63 : vector<32x1xi32>
    %c2_i32_17 = arith.constant 2 : i32
    %65 = vector.broadcast %c2_i32_17 : i32 to vector<32x1xi32>
    %66 = arith.addi %8, %65 : vector<32x1xi32>
    %c32_i32_18 = arith.constant 32 : i32
    %67 = vector.broadcast %c32_i32_18 : i32 to vector<32x1xi32>
    %68 = arith.cmpi slt, %66, %67 : vector<32x1xi32>
    %69 = arith.andi %64, %68 : vector<32x1xi1>
    %70 = arith.extui %69 : vector<32x1xi1> to vector<32x1xi32>
    %71 = arith.sitofp %70 : vector<32x1xi32> to vector<32x1xf32>
    %72 = vector.shape_cast %71 : vector<32x1xf32> to vector<32x1xf32>
    %73 = vector.broadcast %72 : vector<32x1xf32> to vector<32x64xf32>
    %c3_i32 = arith.constant 3 : i32
    %74 = vector.broadcast %c3_i32 : i32 to vector<32x1xi32>
    %75 = arith.addi %8, %74 : vector<32x1xi32>
    %c0_i32_19 = arith.constant 0 : i32
    %76 = vector.broadcast %c0_i32_19 : i32 to vector<32x1xi32>
    %77 = arith.cmpi sge, %75, %76 : vector<32x1xi32>
    %c3_i32_20 = arith.constant 3 : i32
    %78 = vector.broadcast %c3_i32_20 : i32 to vector<32x1xi32>
    %79 = arith.addi %8, %78 : vector<32x1xi32>
    %c32_i32_21 = arith.constant 32 : i32
    %80 = vector.broadcast %c32_i32_21 : i32 to vector<32x1xi32>
    %81 = arith.cmpi slt, %79, %80 : vector<32x1xi32>
    %82 = arith.andi %77, %81 : vector<32x1xi1>
    %83 = arith.extui %82 : vector<32x1xi1> to vector<32x1xi32>
    %84 = arith.sitofp %83 : vector<32x1xi32> to vector<32x1xf32>
    %85 = vector.shape_cast %84 : vector<32x1xf32> to vector<32x1xf32>
    %86 = vector.broadcast %85 : vector<32x1xf32> to vector<32x64xf32>
    %c0_22 = arith.constant 0 : index
    %c3 = arith.constant 3 : index
    %c0_23 = arith.constant 0 : index
    %87 = vector.load %arg4[%c0_22, %c3, %c0_23] : memref<1x7x64xf32, #tpu.memory_space<vmem>>, vector<1x1x64xf32>
    %88 = vector.shape_cast %87 : vector<1x1x64xf32> to vector<64xf32>
    %89 = vector.shape_cast %88 : vector<64xf32> to vector<1x64xf32>
    %90 = vector.broadcast %89 : vector<1x64xf32> to vector<32x64xf32>
    %91 = arith.mulf %7, %90 : vector<32x64xf32>
    %c3_i32_24 = arith.constant 3 : i32
    %92 = tpu.dynamic_rotate %7 by %c3_i32_24 dim 0 : vector<32x64xf32>, i32 -> vector<32x64xf32>
    %93 = arith.mulf %92, %21 : vector<32x64xf32>
    %c0_25 = arith.constant 0 : index
    %c0_26 = arith.constant 0 : index
    %c0_27 = arith.constant 0 : index
    %94 = vector.load %arg4[%c0_25, %c0_26, %c0_27] : memref<1x7x64xf32, #tpu.memory_space<vmem>>, vector<1x1x64xf32>
    %95 = vector.shape_cast %94 : vector<1x1x64xf32> to vector<64xf32>
    %96 = vector.shape_cast %95 : vector<64xf32> to vector<1x64xf32>
    %97 = vector.broadcast %96 : vector<1x64xf32> to vector<32x64xf32>
    %98 = arith.mulf %93, %97 : vector<32x64xf32>
    %99 = arith.addf %91, %98 : vector<32x64xf32>
    %c2_i32_28 = arith.constant 2 : i32
    %100 = tpu.dynamic_rotate %7 by %c2_i32_28 dim 0 : vector<32x64xf32>, i32 -> vector<32x64xf32>
    %101 = arith.mulf %100, %34 : vector<32x64xf32>
    %c0_29 = arith.constant 0 : index
    %c1 = arith.constant 1 : index
    %c0_30 = arith.constant 0 : index
    %102 = vector.load %arg4[%c0_29, %c1, %c0_30] : memref<1x7x64xf32, #tpu.memory_space<vmem>>, vector<1x1x64xf32>
    %103 = vector.shape_cast %102 : vector<1x1x64xf32> to vector<64xf32>
    %104 = vector.shape_cast %103 : vector<64xf32> to vector<1x64xf32>
    %105 = vector.broadcast %104 : vector<1x64xf32> to vector<32x64xf32>
    %106 = arith.mulf %101, %105 : vector<32x64xf32>
    %107 = arith.addf %99, %106 : vector<32x64xf32>
    %c1_i32_31 = arith.constant 1 : i32
    %108 = tpu.dynamic_rotate %7 by %c1_i32_31 dim 0 : vector<32x64xf32>, i32 -> vector<32x64xf32>
    %109 = arith.mulf %108, %47 : vector<32x64xf32>
    %c0_32 = arith.constant 0 : index
    %c2 = arith.constant 2 : index
    %c0_33 = arith.constant 0 : index
    %110 = vector.load %arg4[%c0_32, %c2, %c0_33] : memref<1x7x64xf32, #tpu.memory_space<vmem>>, vector<1x1x64xf32>
    %111 = vector.shape_cast %110 : vector<1x1x64xf32> to vector<64xf32>
    %112 = vector.shape_cast %111 : vector<64xf32> to vector<1x64xf32>
    %113 = vector.broadcast %112 : vector<1x64xf32> to vector<32x64xf32>
    %114 = arith.mulf %109, %113 : vector<32x64xf32>
    %115 = arith.addf %107, %114 : vector<32x64xf32>
    %c31_i32 = arith.constant 31 : i32
    %116 = tpu.dynamic_rotate %7 by %c31_i32 dim 0 : vector<32x64xf32>, i32 -> vector<32x64xf32>
    %117 = arith.mulf %116, %60 : vector<32x64xf32>
    %c0_34 = arith.constant 0 : index
    %c4 = arith.constant 4 : index
    %c0_35 = arith.constant 0 : index
    %118 = vector.load %arg4[%c0_34, %c4, %c0_35] : memref<1x7x64xf32, #tpu.memory_space<vmem>>, vector<1x1x64xf32>
    %119 = vector.shape_cast %118 : vector<1x1x64xf32> to vector<64xf32>
    %120 = vector.shape_cast %119 : vector<64xf32> to vector<1x64xf32>
    %121 = vector.broadcast %120 : vector<1x64xf32> to vector<32x64xf32>
    %122 = arith.mulf %117, %121 : vector<32x64xf32>
    %123 = arith.addf %115, %122 : vector<32x64xf32>
    %c30_i32 = arith.constant 30 : i32
    %124 = tpu.dynamic_rotate %7 by %c30_i32 dim 0 : vector<32x64xf32>, i32 -> vector<32x64xf32>
    %125 = arith.mulf %124, %73 : vector<32x64xf32>
    %c0_36 = arith.constant 0 : index
    %c5 = arith.constant 5 : index
    %c0_37 = arith.constant 0 : index
    %126 = vector.load %arg4[%c0_36, %c5, %c0_37] : memref<1x7x64xf32, #tpu.memory_space<vmem>>, vector<1x1x64xf32>
    %127 = vector.shape_cast %126 : vector<1x1x64xf32> to vector<64xf32>
    %128 = vector.shape_cast %127 : vector<64xf32> to vector<1x64xf32>
    %129 = vector.broadcast %128 : vector<1x64xf32> to vector<32x64xf32>
    %130 = arith.mulf %125, %129 : vector<32x64xf32>
    %131 = arith.addf %123, %130 : vector<32x64xf32>
    %c29_i32 = arith.constant 29 : i32
    %132 = tpu.dynamic_rotate %7 by %c29_i32 dim 0 : vector<32x64xf32>, i32 -> vector<32x64xf32>
    %133 = arith.mulf %132, %86 : vector<32x64xf32>
    %c0_38 = arith.constant 0 : index
    %c6 = arith.constant 6 : index
    %c0_39 = arith.constant 0 : index
    %134 = vector.load %arg4[%c0_38, %c6, %c0_39] : memref<1x7x64xf32, #tpu.memory_space<vmem>>, vector<1x1x64xf32>
    %135 = vector.shape_cast %134 : vector<1x1x64xf32> to vector<64xf32>
    %136 = vector.shape_cast %135 : vector<64xf32> to vector<1x64xf32>
    %137 = vector.broadcast %136 : vector<1x64xf32> to vector<32x64xf32>
    %138 = arith.mulf %133, %137 : vector<32x64xf32>
    %139 = arith.addf %131, %138 : vector<32x64xf32>
    %c0_40 = arith.constant 0 : index
    %c0_41 = arith.constant 0 : index
    %140 = vector.load %arg5[%c0_40, %c0_41] : memref<1x64xf32, #tpu.memory_space<vmem>>, vector<1x64xf32>
    %141 = vector.shape_cast %140 : vector<1x64xf32> to vector<64xf32>
    %142 = vector.shape_cast %141 : vector<64xf32> to vector<1x64xf32>
    %143 = vector.broadcast %142 : vector<1x64xf32> to vector<32x64xf32>
    %144 = arith.addf %139, %143 : vector<32x64xf32>
    %c0_42 = arith.constant 0 : index
    %c0_43 = arith.constant 0 : index
    %145 = vector.load %arg6[%c0_42, %c0_43] : memref<1x64xf32, #tpu.memory_space<vmem>>, vector<1x64xf32>
    %146 = vector.shape_cast %145 : vector<1x64xf32> to vector<64xf32>
    %c0_44 = arith.constant 0 : index
    %c0_45 = arith.constant 0 : index
    %147 = vector.load %arg7[%c0_44, %c0_45] : memref<1x64xf32, #tpu.memory_space<vmem>>, vector<1x64xf32>
    %148 = vector.shape_cast %147 : vector<1x64xf32> to vector<64xf32>
    %cst_46 = arith.constant dense<0.000000e+00> : vector<32xf32>
    %149 = vector.multi_reduction <add>, %144, %cst_46 [1] : vector<32x64xf32> to vector<32xf32>
    %150 = vector.shape_cast %149 : vector<32xf32> to vector<32x1xf32>
    %cst_47 = arith.constant 6.400000e+01 : f32
    %151 = vector.broadcast %cst_47 : f32 to vector<32x1xf32>
    %152 = arith.divf %150, %151 : vector<32x1xf32>
    %153 = vector.broadcast %152 : vector<32x1xf32> to vector<32x64xf32>
    %154 = arith.subf %144, %153 : vector<32x64xf32>
    %155 = arith.mulf %154, %154 : vector<32x64xf32>
    %cst_48 = arith.constant dense<0.000000e+00> : vector<32xf32>
    %156 = vector.multi_reduction <add>, %155, %cst_48 [1] : vector<32x64xf32> to vector<32xf32>
    %157 = vector.shape_cast %156 : vector<32xf32> to vector<32x1xf32>
    %cst_49 = arith.constant 6.400000e+01 : f32
    %158 = vector.broadcast %cst_49 : f32 to vector<32x1xf32>
    %159 = arith.divf %157, %158 : vector<32x1xf32>
    %160 = vector.broadcast %152 : vector<32x1xf32> to vector<32x64xf32>
    %161 = arith.subf %144, %160 : vector<32x64xf32>
    %cst_50 = arith.constant 9.99999974E-6 : f32
    %162 = vector.broadcast %cst_50 : f32 to vector<32x1xf32>
    %163 = arith.addf %159, %162 : vector<32x1xf32>
    %164 = math.rsqrt %163 : vector<32x1xf32>
    %165 = vector.broadcast %164 : vector<32x1xf32> to vector<32x64xf32>
    %166 = arith.mulf %161, %165 : vector<32x64xf32>
    %167 = vector.shape_cast %146 : vector<64xf32> to vector<1x64xf32>
    %168 = vector.broadcast %167 : vector<1x64xf32> to vector<32x64xf32>
    %169 = arith.mulf %166, %168 : vector<32x64xf32>
    %170 = vector.shape_cast %148 : vector<64xf32> to vector<1x64xf32>
    %171 = vector.broadcast %170 : vector<1x64xf32> to vector<32x64xf32>
    %172 = arith.addf %169, %171 : vector<32x64xf32>
    %173 = arith.truncf %172 : vector<32x64xf32> to vector<32x64xbf16>
    %c0_51 = arith.constant 0 : index
    %c0_52 = arith.constant 0 : index
    %c0_53 = arith.constant 0 : index
    %174 = vector.load %arg8[%c0_51, %c0_52, %c0_53] : memref<1x64x256xbf16, #tpu.memory_space<vmem>>, vector<1x64x256xbf16>
    %175 = vector.shape_cast %174 : vector<1x64x256xbf16> to vector<64x256xbf16>
    %cst_54 = arith.constant dense<0.000000e+00> : vector<32x256xf32>
    %176 = tpu.matmul %173, %175, %cst_54 {dimension_numbers = #tpu.dot_dimension_numbers<[1], [0], [0], [1], [0, 0, 1, 1], [], []>} : vector<32x64xbf16>, vector<64x256xbf16>, vector<32x256xf32> -> vector<32x256xf32>
    %c0_55 = arith.constant 0 : index
    %c0_56 = arith.constant 0 : index
    %177 = vector.load %arg9[%c0_55, %c0_56] : memref<1x256xf32, #tpu.memory_space<vmem>>, vector<1x256xf32>
    %178 = vector.shape_cast %177 : vector<1x256xf32> to vector<256xf32>
    %179 = vector.shape_cast %178 : vector<256xf32> to vector<1x256xf32>
    %180 = vector.broadcast %179 : vector<1x256xf32> to vector<32x256xf32>
    %181 = arith.addf %176, %180 : vector<32x256xf32>
    %cst_57 = arith.constant 5.000000e-01 : f32
    %182 = vector.broadcast %cst_57 : f32 to vector<32x256xf32>
    %183 = arith.mulf %182, %181 : vector<32x256xf32>
    %cst_58 = arith.constant 0.707106769 : f32
    %184 = vector.broadcast %cst_58 : f32 to vector<32x256xf32>
    %185 = arith.mulf %181, %184 : vector<32x256xf32>
    %186 = math.erf %185 : vector<32x256xf32>
    %cst_59 = arith.constant 1.000000e+00 : f32
    %187 = vector.broadcast %cst_59 : f32 to vector<32x256xf32>
    %188 = arith.addf %187, %186 : vector<32x256xf32>
    %189 = arith.mulf %183, %188 : vector<32x256xf32>
    %190 = arith.truncf %189 : vector<32x256xf32> to vector<32x256xbf16>
    %c0_60 = arith.constant 0 : index
    %c0_61 = arith.constant 0 : index
    %c0_62 = arith.constant 0 : index
    %191 = vector.load %arg10[%c0_60, %c0_61, %c0_62] : memref<1x256x64xbf16, #tpu.memory_space<vmem>>, vector<1x256x64xbf16>
    %192 = vector.shape_cast %191 : vector<1x256x64xbf16> to vector<256x64xbf16>
    %cst_63 = arith.constant dense<0.000000e+00> : vector<32x64xf32>
    %193 = tpu.matmul %190, %192, %cst_63 {dimension_numbers = #tpu.dot_dimension_numbers<[1], [0], [0], [1], [0, 0, 1, 1], [], []>} : vector<32x256xbf16>, vector<256x64xbf16>, vector<32x64xf32> -> vector<32x64xf32>
    %c0_64 = arith.constant 0 : index
    %c0_65 = arith.constant 0 : index
    %194 = vector.load %arg11[%c0_64, %c0_65] : memref<1x64xf32, #tpu.memory_space<vmem>>, vector<1x64xf32>
    %195 = vector.shape_cast %194 : vector<1x64xf32> to vector<64xf32>
    %196 = vector.shape_cast %195 : vector<64xf32> to vector<1x64xf32>
    %197 = vector.broadcast %196 : vector<1x64xf32> to vector<32x64xf32>
    %198 = arith.addf %193, %197 : vector<32x64xf32>
    %c0_66 = arith.constant 0 : index
    %c0_67 = arith.constant 0 : index
    %199 = vector.load %arg12[%c0_66, %c0_67] : memref<1x64xf32, #tpu.memory_space<vmem>>, vector<1x64xf32>
    %200 = vector.shape_cast %199 : vector<1x64xf32> to vector<64xf32>
    %201 = vector.shape_cast %200 : vector<64xf32> to vector<1x64xf32>
    %202 = vector.broadcast %201 : vector<1x64xf32> to vector<32x64xf32>
    %203 = arith.mulf %202, %198 : vector<32x64xf32>
    %204 = arith.addf %7, %203 : vector<32x64xf32>
    %c0_68 = arith.constant 0 : index
    %c0_69 = arith.constant 0 : index
    %205 = vector.load %arg13[%c0_68, %c0_69] : memref<1x64xf32, #tpu.memory_space<vmem>>, vector<1x64xf32>
    %c0_70 = arith.constant 0 : index
    %c0_71 = arith.constant 0 : index
    %206 = vector.load %arg14[%c0_70, %c0_71] : memref<1x64xf32, #tpu.memory_space<vmem>>, vector<1x64xf32>
    %cst_72 = arith.constant dense<0.000000e+00> : vector<32xf32>
    %207 = vector.multi_reduction <add>, %204, %cst_72 [1] : vector<32x64xf32> to vector<32xf32>
    %208 = vector.shape_cast %207 : vector<32xf32> to vector<32x1xf32>
    %cst_73 = arith.constant 6.400000e+01 : f32
    %209 = vector.broadcast %cst_73 : f32 to vector<32x1xf32>
    %210 = arith.divf %208, %209 : vector<32x1xf32>
    %211 = vector.broadcast %210 : vector<32x1xf32> to vector<32x64xf32>
    %212 = arith.subf %204, %211 : vector<32x64xf32>
    %213 = arith.mulf %212, %212 : vector<32x64xf32>
    %cst_74 = arith.constant dense<0.000000e+00> : vector<32xf32>
    %214 = vector.multi_reduction <add>, %213, %cst_74 [1] : vector<32x64xf32> to vector<32xf32>
    %215 = vector.shape_cast %214 : vector<32xf32> to vector<32x1xf32>
    %cst_75 = arith.constant 6.400000e+01 : f32
    %216 = vector.broadcast %cst_75 : f32 to vector<32x1xf32>
    %217 = arith.divf %215, %216 : vector<32x1xf32>
    %218 = vector.broadcast %210 : vector<32x1xf32> to vector<32x64xf32>
    %219 = arith.subf %204, %218 : vector<32x64xf32>
    %cst_76 = arith.constant 9.99999974E-6 : f32
    %220 = vector.broadcast %cst_76 : f32 to vector<32x1xf32>
    %221 = arith.addf %217, %220 : vector<32x1xf32>
    %222 = math.rsqrt %221 : vector<32x1xf32>
    %223 = vector.broadcast %222 : vector<32x1xf32> to vector<32x64xf32>
    %224 = arith.mulf %219, %223 : vector<32x64xf32>
    %225 = vector.broadcast %205 : vector<1x64xf32> to vector<32x64xf32>
    %226 = arith.mulf %224, %225 : vector<32x64xf32>
    %227 = vector.broadcast %206 : vector<1x64xf32> to vector<32x64xf32>
    %228 = arith.addf %226, %227 : vector<32x64xf32>
    %c0_77 = arith.constant 0 : index
    %c0_78 = arith.constant 0 : index
    %c0_79 = arith.constant 0 : index
    %229 = vector.load %arg15[%c0_77, %c0_78, %c0_79] : memref<1x32x64xf32, #tpu.memory_space<vmem>>, vector<1x32x64xf32>
    %230 = vector.shape_cast %229 : vector<1x32x64xf32> to vector<32x64xf32>
    %231 = vector.shape_cast %228 : vector<32x64xf32> to vector<1x32x64xf32>
    tpu.vector_store %arg15[%c0_77, %c0_78, %c0_79], %231 {strides = array<i32>} : memref<1x32x64xf32, #tpu.memory_space<vmem>>, vector<1x32x64xf32>,
    return
  }
  func.func @transform_0(%arg0: i32) -> (i32, i32, i32) {
    %c0_i32 = arith.constant 0 : i32
    %c0_i32_0 = arith.constant 0 : i32
    %c0_i32_1 = arith.constant 0 : i32
    return %arg0, %c0_i32, %c0_i32_0 : i32, i32, i32
  }
  func.func @transform_1(%arg0: i32) -> (i32, i32) {
    %c0_i32 = arith.constant 0 : i32
    %c0_i32_0 = arith.constant 0 : i32
    %c0_i32_1 = arith.constant 0 : i32
    return %c0_i32, %c0_i32_0 : i32, i32
  }
  func.func @transform_2(%arg0: i32) -> (i32, i32) {
    %c0_i32 = arith.constant 0 : i32
    %c0_i32_0 = arith.constant 0 : i32
    %c0_i32_1 = arith.constant 0 : i32
    return %c0_i32, %c0_i32_0 : i32, i32
  }
  func.func @transform_3(%arg0: i32) -> (i32, i32, i32) {
    %c0_i32 = arith.constant 0 : i32
    %c0_i32_0 = arith.constant 0 : i32
    %c0_i32_1 = arith.constant 0 : i32
    %c0_i32_2 = arith.constant 0 : i32
    return %c0_i32, %c0_i32_0, %c0_i32_1 : i32, i32, i32
  }
  func.func @transform_4(%arg0: i32) -> (i32, i32) {
    %c0_i32 = arith.constant 0 : i32
    %c0_i32_0 = arith.constant 0 : i32
    %c0_i32_1 = arith.constant 0 : i32
    return %c0_i32, %c0_i32_0 : i32, i32
  }
  func.func @transform_5(%arg0: i32) -> (i32, i32) {
    %c0_i32 = arith.constant 0 : i32
    %c0_i32_0 = arith.constant 0 : i32
    %c0_i32_1 = arith.constant 0 : i32
    return %c0_i32, %c0_i32_0 : i32, i32
  }
  func.func @transform_6(%arg0: i32) -> (i32, i32) {
    %c0_i32 = arith.constant 0 : i32
    %c0_i32_0 = arith.constant 0 : i32
    %c0_i32_1 = arith.constant 0 : i32
    return %c0_i32, %c0_i32_0 : i32, i32
  }
  func.func @transform_7(%arg0: i32) -> (i32, i32, i32) {
    %c0_i32 = arith.constant 0 : i32
    %c0_i32_0 = arith.constant 0 : i32
    %c0_i32_1 = arith.constant 0 : i32
    %c0_i32_2 = arith.constant 0 : i32
    return %c0_i32, %c0_i32_0, %c0_i32_1 : i32, i32, i32
  }
  func.func @transform_8(%arg0: i32) -> (i32, i32) {
    %c0_i32 = arith.constant 0 : i32
    %c0_i32_0 = arith.constant 0 : i32
    %c0_i32_1 = arith.constant 0 : i32
    return %c0_i32, %c0_i32_0 : i32, i32
  }
  func.func @transform_9(%arg0: i32) -> (i32, i32, i32) {
    %c0_i32 = arith.constant 0 : i32
    %c0_i32_0 = arith.constant 0 : i32
    %c0_i32_1 = arith.constant 0 : i32
    %c0_i32_2 = arith.constant 0 : i32
    return %c0_i32, %c0_i32_0, %c0_i32_1 : i32, i32, i32
  }
  func.func @transform_10(%arg0: i32) -> (i32, i32) {
    %c0_i32 = arith.constant 0 : i32
    %c0_i32_0 = arith.constant 0 : i32
    %c0_i32_1 = arith.constant 0 : i32
    return %c0_i32, %c0_i32_0 : i32, i32
  }
  func.func @transform_11(%arg0: i32) -> (i32, i32) {
    %c0_i32 = arith.constant 0 : i32
    %c0_i32_0 = arith.constant 0 : i32
    %c0_i32_1 = arith.constant 0 : i32
    return %c0_i32, %c0_i32_0 : i32, i32
  }
  func.func @transform_12(%arg0: i32) -> (i32, i32) {
    %c0_i32 = arith.constant 0 : i32
    %c0_i32_0 = arith.constant 0 : i32
    %c0_i32_1 = arith.constant 0 : i32
    return %c0_i32, %c0_i32_0 : i32, i32
  }
  func.func @transform_13(%arg0: i32) -> (i32, i32) {
    %c0_i32 = arith.constant 0 : i32
    %c0_i32_0 = arith.constant 0 : i32
    %c0_i32_1 = arith.constant 0 : i32
    return %c0_i32, %c0_i32_0 : i32, i32
  }
  func.func @transform_14(%arg0: i32) -> (i32, i32, i32) {
    %c0_i32 = arith.constant 0 : i32
    %c0_i32_0 = arith.constant 0 : i32
    %c0_i32_1 = arith.constant 0 : i32
    return %arg0, %c0_i32, %c0_i32_0 : i32, i32, i32
  }
}

module attributes {stable_mosaic.version = 11 : i64} {
  func.func @kernel(%arg0: i32, %arg1: memref<1x16x128xf32, #tpu.memory_space<vmem>>, %arg2: memref<128x128xbf16, #tpu.memory_space<vmem>>, %arg3: memref<1x128xf32, #tpu.memory_space<vmem>>, %arg4: memref<2x7x128xf32, #tpu.memory_space<vmem>>, %arg5: memref<2x128xf32, #tpu.memory_space<vmem>>, %arg6: memref<2x128xf32, #tpu.memory_space<vmem>>, %arg7: memref<2x128xf32, #tpu.memory_space<vmem>>, %arg8: memref<2x128x512xbf16, #tpu.memory_space<vmem>>, %arg9: memref<2x512xf32, #tpu.memory_space<vmem>>, %arg10: memref<2x512x128xbf16, #tpu.memory_space<vmem>>, %arg11: memref<2x128xf32, #tpu.memory_space<vmem>>, %arg12: memref<2x128xf32, #tpu.memory_space<vmem>>, %arg13: memref<1x128xf32, #tpu.memory_space<vmem>>, %arg14: memref<1x128xf32, #tpu.memory_space<vmem>>, %arg15: memref<1x16x128xf32, #tpu.memory_space<vmem>>) attributes {dimension_semantics = [#tpu.dimension_semantics<parallel>], iteration_bounds = array<i64: 2>, scalar_prefetch = 0 : i64, scratch_operands = 0 : i64, tpu.core_type = #tpu.core_type<tc>, window_params = [{transform_indices = @transform_0, window_bounds = array<i64: 1, 16, 128>}, {pipeline_mode = #tpu.pipeline_mode<synchronous>, transform_indices = @transform_1, window_bounds = array<i64: 128, 128>}, {pipeline_mode = #tpu.pipeline_mode<synchronous>, transform_indices = @transform_2, window_bounds = array<i64: 1, 128>}, {pipeline_mode = #tpu.pipeline_mode<synchronous>, transform_indices = @transform_3, window_bounds = array<i64: 2, 7, 128>}, {pipeline_mode = #tpu.pipeline_mode<synchronous>, transform_indices = @transform_4, window_bounds = array<i64: 2, 128>}, {pipeline_mode = #tpu.pipeline_mode<synchronous>, transform_indices = @transform_5, window_bounds = array<i64: 2, 128>}, {pipeline_mode = #tpu.pipeline_mode<synchronous>, transform_indices = @transform_6, window_bounds = array<i64: 2, 128>}, {pipeline_mode = #tpu.pipeline_mode<synchronous>, transform_indices = @transform_7, window_bounds = array<i64: 2, 128, 512>}, {pipeline_mode = #tpu.pipeline_mode<synchronous>, transform_indices = @transform_8, window_bounds = array<i64: 2, 512>}, {pipeline_mode = #tpu.pipeline_mode<synchronous>, transform_indices = @transform_9, window_bounds = array<i64: 2, 512, 128>}, {pipeline_mode = #tpu.pipeline_mode<synchronous>, transform_indices = @transform_10, window_bounds = array<i64: 2, 128>}, {pipeline_mode = #tpu.pipeline_mode<synchronous>, transform_indices = @transform_11, window_bounds = array<i64: 2, 128>}, {pipeline_mode = #tpu.pipeline_mode<synchronous>, transform_indices = @transform_12, window_bounds = array<i64: 1, 128>}, {pipeline_mode = #tpu.pipeline_mode<synchronous>, transform_indices = @transform_13, window_bounds = array<i64: 1, 128>}, {transform_indices = @transform_14, window_bounds = array<i64: 1, 16, 128>}]} {
    %c0 = arith.constant 0 : index
    %c0_0 = arith.constant 0 : index
    %c0_1 = arith.constant 0 : index
    %0 = vector.load %arg1[%c0, %c0_0, %c0_1] : memref<1x16x128xf32, #tpu.memory_space<vmem>>, vector<1x16x128xf32>
    %1 = vector.shape_cast %0 : vector<1x16x128xf32> to vector<16x128xf32>
    %2 = arith.truncf %1 : vector<16x128xf32> to vector<16x128xbf16>
    %c0_2 = arith.constant 0 : index
    %c0_3 = arith.constant 0 : index
    %3 = vector.load %arg2[%c0_2, %c0_3] : memref<128x128xbf16, #tpu.memory_space<vmem>>, vector<128x128xbf16>
    %cst = arith.constant dense<0.000000e+00> : vector<16x128xf32>
    %4 = tpu.matmul %2, %3, %cst {dimension_numbers = #tpu.dot_dimension_numbers<[1], [0], [0], [1], [0, 0, 1, 1], [], []>} : vector<16x128xbf16>, vector<128x128xbf16>, vector<16x128xf32> -> vector<16x128xf32>
    %c0_4 = arith.constant 0 : index
    %c0_5 = arith.constant 0 : index
    %5 = vector.load %arg3[%c0_4, %c0_5] : memref<1x128xf32, #tpu.memory_space<vmem>>, vector<1x128xf32>
    %6 = vector.broadcast %5 : vector<1x128xf32> to vector<16x128xf32>
    %7 = arith.addf %4, %6 : vector<16x128xf32>
    %8 = tpu.iota {dimensions = array<i32: 0>} : vector<16x1xi32>
    %c-3_i32 = arith.constant -3 : i32
    %9 = vector.broadcast %c-3_i32 : i32 to vector<16x1xi32>
    %10 = arith.addi %8, %9 : vector<16x1xi32>
    %c0_i32 = arith.constant 0 : i32
    %11 = vector.broadcast %c0_i32 : i32 to vector<16x1xi32>
    %12 = arith.cmpi sge, %10, %11 : vector<16x1xi32>
    %c-3_i32_6 = arith.constant -3 : i32
    %13 = vector.broadcast %c-3_i32_6 : i32 to vector<16x1xi32>
    %14 = arith.addi %8, %13 : vector<16x1xi32>
    %c16_i32 = arith.constant 16 : i32
    %15 = vector.broadcast %c16_i32 : i32 to vector<16x1xi32>
    %16 = arith.cmpi slt, %14, %15 : vector<16x1xi32>
    %17 = arith.andi %12, %16 : vector<16x1xi1>
    %18 = arith.extui %17 : vector<16x1xi1> to vector<16x1xi32>
    %19 = arith.sitofp %18 : vector<16x1xi32> to vector<16x1xf32>
    %20 = vector.shape_cast %19 : vector<16x1xf32> to vector<16x1xf32>
    %21 = vector.broadcast %20 : vector<16x1xf32> to vector<16x128xf32>
    %c-2_i32 = arith.constant -2 : i32
    %22 = vector.broadcast %c-2_i32 : i32 to vector<16x1xi32>
    %23 = arith.addi %8, %22 : vector<16x1xi32>
    %c0_i32_7 = arith.constant 0 : i32
    %24 = vector.broadcast %c0_i32_7 : i32 to vector<16x1xi32>
    %25 = arith.cmpi sge, %23, %24 : vector<16x1xi32>
    %c-2_i32_8 = arith.constant -2 : i32
    %26 = vector.broadcast %c-2_i32_8 : i32 to vector<16x1xi32>
    %27 = arith.addi %8, %26 : vector<16x1xi32>
    %c16_i32_9 = arith.constant 16 : i32
    %28 = vector.broadcast %c16_i32_9 : i32 to vector<16x1xi32>
    %29 = arith.cmpi slt, %27, %28 : vector<16x1xi32>
    %30 = arith.andi %25, %29 : vector<16x1xi1>
    %31 = arith.extui %30 : vector<16x1xi1> to vector<16x1xi32>
    %32 = arith.sitofp %31 : vector<16x1xi32> to vector<16x1xf32>
    %33 = vector.shape_cast %32 : vector<16x1xf32> to vector<16x1xf32>
    %34 = vector.broadcast %33 : vector<16x1xf32> to vector<16x128xf32>
    %c-1_i32 = arith.constant -1 : i32
    %35 = vector.broadcast %c-1_i32 : i32 to vector<16x1xi32>
    %36 = arith.addi %8, %35 : vector<16x1xi32>
    %c0_i32_10 = arith.constant 0 : i32
    %37 = vector.broadcast %c0_i32_10 : i32 to vector<16x1xi32>
    %38 = arith.cmpi sge, %36, %37 : vector<16x1xi32>
    %c-1_i32_11 = arith.constant -1 : i32
    %39 = vector.broadcast %c-1_i32_11 : i32 to vector<16x1xi32>
    %40 = arith.addi %8, %39 : vector<16x1xi32>
    %c16_i32_12 = arith.constant 16 : i32
    %41 = vector.broadcast %c16_i32_12 : i32 to vector<16x1xi32>
    %42 = arith.cmpi slt, %40, %41 : vector<16x1xi32>
    %43 = arith.andi %38, %42 : vector<16x1xi1>
    %44 = arith.extui %43 : vector<16x1xi1> to vector<16x1xi32>
    %45 = arith.sitofp %44 : vector<16x1xi32> to vector<16x1xf32>
    %46 = vector.shape_cast %45 : vector<16x1xf32> to vector<16x1xf32>
    %47 = vector.broadcast %46 : vector<16x1xf32> to vector<16x128xf32>
    %c1_i32 = arith.constant 1 : i32
    %48 = vector.broadcast %c1_i32 : i32 to vector<16x1xi32>
    %49 = arith.addi %8, %48 : vector<16x1xi32>
    %c0_i32_13 = arith.constant 0 : i32
    %50 = vector.broadcast %c0_i32_13 : i32 to vector<16x1xi32>
    %51 = arith.cmpi sge, %49, %50 : vector<16x1xi32>
    %c1_i32_14 = arith.constant 1 : i32
    %52 = vector.broadcast %c1_i32_14 : i32 to vector<16x1xi32>
    %53 = arith.addi %8, %52 : vector<16x1xi32>
    %c16_i32_15 = arith.constant 16 : i32
    %54 = vector.broadcast %c16_i32_15 : i32 to vector<16x1xi32>
    %55 = arith.cmpi slt, %53, %54 : vector<16x1xi32>
    %56 = arith.andi %51, %55 : vector<16x1xi1>
    %57 = arith.extui %56 : vector<16x1xi1> to vector<16x1xi32>
    %58 = arith.sitofp %57 : vector<16x1xi32> to vector<16x1xf32>
    %59 = vector.shape_cast %58 : vector<16x1xf32> to vector<16x1xf32>
    %60 = vector.broadcast %59 : vector<16x1xf32> to vector<16x128xf32>
    %c2_i32 = arith.constant 2 : i32
    %61 = vector.broadcast %c2_i32 : i32 to vector<16x1xi32>
    %62 = arith.addi %8, %61 : vector<16x1xi32>
    %c0_i32_16 = arith.constant 0 : i32
    %63 = vector.broadcast %c0_i32_16 : i32 to vector<16x1xi32>
    %64 = arith.cmpi sge, %62, %63 : vector<16x1xi32>
    %c2_i32_17 = arith.constant 2 : i32
    %65 = vector.broadcast %c2_i32_17 : i32 to vector<16x1xi32>
    %66 = arith.addi %8, %65 : vector<16x1xi32>
    %c16_i32_18 = arith.constant 16 : i32
    %67 = vector.broadcast %c16_i32_18 : i32 to vector<16x1xi32>
    %68 = arith.cmpi slt, %66, %67 : vector<16x1xi32>
    %69 = arith.andi %64, %68 : vector<16x1xi1>
    %70 = arith.extui %69 : vector<16x1xi1> to vector<16x1xi32>
    %71 = arith.sitofp %70 : vector<16x1xi32> to vector<16x1xf32>
    %72 = vector.shape_cast %71 : vector<16x1xf32> to vector<16x1xf32>
    %73 = vector.broadcast %72 : vector<16x1xf32> to vector<16x128xf32>
    %c3_i32 = arith.constant 3 : i32
    %74 = vector.broadcast %c3_i32 : i32 to vector<16x1xi32>
    %75 = arith.addi %8, %74 : vector<16x1xi32>
    %c0_i32_19 = arith.constant 0 : i32
    %76 = vector.broadcast %c0_i32_19 : i32 to vector<16x1xi32>
    %77 = arith.cmpi sge, %75, %76 : vector<16x1xi32>
    %c3_i32_20 = arith.constant 3 : i32
    %78 = vector.broadcast %c3_i32_20 : i32 to vector<16x1xi32>
    %79 = arith.addi %8, %78 : vector<16x1xi32>
    %c16_i32_21 = arith.constant 16 : i32
    %80 = vector.broadcast %c16_i32_21 : i32 to vector<16x1xi32>
    %81 = arith.cmpi slt, %79, %80 : vector<16x1xi32>
    %82 = arith.andi %77, %81 : vector<16x1xi1>
    %83 = arith.extui %82 : vector<16x1xi1> to vector<16x1xi32>
    %84 = arith.sitofp %83 : vector<16x1xi32> to vector<16x1xf32>
    %85 = vector.shape_cast %84 : vector<16x1xf32> to vector<16x1xf32>
    %86 = vector.broadcast %85 : vector<16x1xf32> to vector<16x128xf32>
    %c0_22 = arith.constant 0 : index
    %c3 = arith.constant 3 : index
    %c0_23 = arith.constant 0 : index
    %87 = vector.load %arg4[%c0_22, %c3, %c0_23] : memref<2x7x128xf32, #tpu.memory_space<vmem>>, vector<1x1x128xf32>
    %88 = vector.shape_cast %87 : vector<1x1x128xf32> to vector<128xf32>
    %89 = vector.shape_cast %88 : vector<128xf32> to vector<1x128xf32>
    %90 = vector.broadcast %89 : vector<1x128xf32> to vector<16x128xf32>
    %91 = arith.mulf %7, %90 : vector<16x128xf32>
    %c3_i32_24 = arith.constant 3 : i32
    %92 = tpu.dynamic_rotate %7 by %c3_i32_24 dim 0 : vector<16x128xf32>, i32 -> vector<16x128xf32>
    %93 = arith.mulf %92, %21 : vector<16x128xf32>
    %c0_25 = arith.constant 0 : index
    %c0_26 = arith.constant 0 : index
    %c0_27 = arith.constant 0 : index
    %94 = vector.load %arg4[%c0_25, %c0_26, %c0_27] : memref<2x7x128xf32, #tpu.memory_space<vmem>>, vector<1x1x128xf32>
    %95 = vector.shape_cast %94 : vector<1x1x128xf32> to vector<128xf32>
    %96 = vector.shape_cast %95 : vector<128xf32> to vector<1x128xf32>
    %97 = vector.broadcast %96 : vector<1x128xf32> to vector<16x128xf32>
    %98 = arith.mulf %93, %97 : vector<16x128xf32>
    %99 = arith.addf %91, %98 : vector<16x128xf32>
    %c2_i32_28 = arith.constant 2 : i32
    %100 = tpu.dynamic_rotate %7 by %c2_i32_28 dim 0 : vector<16x128xf32>, i32 -> vector<16x128xf32>
    %101 = arith.mulf %100, %34 : vector<16x128xf32>
    %c0_29 = arith.constant 0 : index
    %c1 = arith.constant 1 : index
    %c0_30 = arith.constant 0 : index
    %102 = vector.load %arg4[%c0_29, %c1, %c0_30] : memref<2x7x128xf32, #tpu.memory_space<vmem>>, vector<1x1x128xf32>
    %103 = vector.shape_cast %102 : vector<1x1x128xf32> to vector<128xf32>
    %104 = vector.shape_cast %103 : vector<128xf32> to vector<1x128xf32>
    %105 = vector.broadcast %104 : vector<1x128xf32> to vector<16x128xf32>
    %106 = arith.mulf %101, %105 : vector<16x128xf32>
    %107 = arith.addf %99, %106 : vector<16x128xf32>
    %c1_i32_31 = arith.constant 1 : i32
    %108 = tpu.dynamic_rotate %7 by %c1_i32_31 dim 0 : vector<16x128xf32>, i32 -> vector<16x128xf32>
    %109 = arith.mulf %108, %47 : vector<16x128xf32>
    %c0_32 = arith.constant 0 : index
    %c2 = arith.constant 2 : index
    %c0_33 = arith.constant 0 : index
    %110 = vector.load %arg4[%c0_32, %c2, %c0_33] : memref<2x7x128xf32, #tpu.memory_space<vmem>>, vector<1x1x128xf32>
    %111 = vector.shape_cast %110 : vector<1x1x128xf32> to vector<128xf32>
    %112 = vector.shape_cast %111 : vector<128xf32> to vector<1x128xf32>
    %113 = vector.broadcast %112 : vector<1x128xf32> to vector<16x128xf32>
    %114 = arith.mulf %109, %113 : vector<16x128xf32>
    %115 = arith.addf %107, %114 : vector<16x128xf32>
    %c15_i32 = arith.constant 15 : i32
    %116 = tpu.dynamic_rotate %7 by %c15_i32 dim 0 : vector<16x128xf32>, i32 -> vector<16x128xf32>
    %117 = arith.mulf %116, %60 : vector<16x128xf32>
    %c0_34 = arith.constant 0 : index
    %c4 = arith.constant 4 : index
    %c0_35 = arith.constant 0 : index
    %118 = vector.load %arg4[%c0_34, %c4, %c0_35] : memref<2x7x128xf32, #tpu.memory_space<vmem>>, vector<1x1x128xf32>
    %119 = vector.shape_cast %118 : vector<1x1x128xf32> to vector<128xf32>
    %120 = vector.shape_cast %119 : vector<128xf32> to vector<1x128xf32>
    %121 = vector.broadcast %120 : vector<1x128xf32> to vector<16x128xf32>
    %122 = arith.mulf %117, %121 : vector<16x128xf32>
    %123 = arith.addf %115, %122 : vector<16x128xf32>
    %c14_i32 = arith.constant 14 : i32
    %124 = tpu.dynamic_rotate %7 by %c14_i32 dim 0 : vector<16x128xf32>, i32 -> vector<16x128xf32>
    %125 = arith.mulf %124, %73 : vector<16x128xf32>
    %c0_36 = arith.constant 0 : index
    %c5 = arith.constant 5 : index
    %c0_37 = arith.constant 0 : index
    %126 = vector.load %arg4[%c0_36, %c5, %c0_37] : memref<2x7x128xf32, #tpu.memory_space<vmem>>, vector<1x1x128xf32>
    %127 = vector.shape_cast %126 : vector<1x1x128xf32> to vector<128xf32>
    %128 = vector.shape_cast %127 : vector<128xf32> to vector<1x128xf32>
    %129 = vector.broadcast %128 : vector<1x128xf32> to vector<16x128xf32>
    %130 = arith.mulf %125, %129 : vector<16x128xf32>
    %131 = arith.addf %123, %130 : vector<16x128xf32>
    %c13_i32 = arith.constant 13 : i32
    %132 = tpu.dynamic_rotate %7 by %c13_i32 dim 0 : vector<16x128xf32>, i32 -> vector<16x128xf32>
    %133 = arith.mulf %132, %86 : vector<16x128xf32>
    %c0_38 = arith.constant 0 : index
    %c6 = arith.constant 6 : index
    %c0_39 = arith.constant 0 : index
    %134 = vector.load %arg4[%c0_38, %c6, %c0_39] : memref<2x7x128xf32, #tpu.memory_space<vmem>>, vector<1x1x128xf32>
    %135 = vector.shape_cast %134 : vector<1x1x128xf32> to vector<128xf32>
    %136 = vector.shape_cast %135 : vector<128xf32> to vector<1x128xf32>
    %137 = vector.broadcast %136 : vector<1x128xf32> to vector<16x128xf32>
    %138 = arith.mulf %133, %137 : vector<16x128xf32>
    %139 = arith.addf %131, %138 : vector<16x128xf32>
    %c0_40 = arith.constant 0 : index
    %c0_41 = arith.constant 0 : index
    %140 = vector.load %arg5[%c0_40, %c0_41] : memref<2x128xf32, #tpu.memory_space<vmem>>, vector<1x128xf32>
    %141 = vector.shape_cast %140 : vector<1x128xf32> to vector<128xf32>
    %142 = vector.shape_cast %141 : vector<128xf32> to vector<1x128xf32>
    %143 = vector.broadcast %142 : vector<1x128xf32> to vector<16x128xf32>
    %144 = arith.addf %139, %143 : vector<16x128xf32>
    %c0_42 = arith.constant 0 : index
    %c0_43 = arith.constant 0 : index
    %145 = vector.load %arg6[%c0_42, %c0_43] : memref<2x128xf32, #tpu.memory_space<vmem>>, vector<1x128xf32>
    %146 = vector.shape_cast %145 : vector<1x128xf32> to vector<128xf32>
    %c0_44 = arith.constant 0 : index
    %c0_45 = arith.constant 0 : index
    %147 = vector.load %arg7[%c0_44, %c0_45] : memref<2x128xf32, #tpu.memory_space<vmem>>, vector<1x128xf32>
    %148 = vector.shape_cast %147 : vector<1x128xf32> to vector<128xf32>
    %cst_46 = arith.constant dense<0.000000e+00> : vector<16xf32>
    %149 = vector.multi_reduction <add>, %144, %cst_46 [1] : vector<16x128xf32> to vector<16xf32>
    %150 = vector.shape_cast %149 : vector<16xf32> to vector<16x1xf32>
    %cst_47 = arith.constant 1.280000e+02 : f32
    %151 = vector.broadcast %cst_47 : f32 to vector<16x1xf32>
    %152 = arith.divf %150, %151 : vector<16x1xf32>
    %153 = vector.broadcast %152 : vector<16x1xf32> to vector<16x128xf32>
    %154 = arith.subf %144, %153 : vector<16x128xf32>
    %155 = arith.mulf %154, %154 : vector<16x128xf32>
    %cst_48 = arith.constant dense<0.000000e+00> : vector<16xf32>
    %156 = vector.multi_reduction <add>, %155, %cst_48 [1] : vector<16x128xf32> to vector<16xf32>
    %157 = vector.shape_cast %156 : vector<16xf32> to vector<16x1xf32>
    %cst_49 = arith.constant 1.280000e+02 : f32
    %158 = vector.broadcast %cst_49 : f32 to vector<16x1xf32>
    %159 = arith.divf %157, %158 : vector<16x1xf32>
    %160 = vector.broadcast %152 : vector<16x1xf32> to vector<16x128xf32>
    %161 = arith.subf %144, %160 : vector<16x128xf32>
    %cst_50 = arith.constant 9.99999974E-6 : f32
    %162 = vector.broadcast %cst_50 : f32 to vector<16x1xf32>
    %163 = arith.addf %159, %162 : vector<16x1xf32>
    %164 = math.rsqrt %163 : vector<16x1xf32>
    %165 = vector.broadcast %164 : vector<16x1xf32> to vector<16x128xf32>
    %166 = arith.mulf %161, %165 : vector<16x128xf32>
    %167 = vector.shape_cast %146 : vector<128xf32> to vector<1x128xf32>
    %168 = vector.broadcast %167 : vector<1x128xf32> to vector<16x128xf32>
    %169 = arith.mulf %166, %168 : vector<16x128xf32>
    %170 = vector.shape_cast %148 : vector<128xf32> to vector<1x128xf32>
    %171 = vector.broadcast %170 : vector<1x128xf32> to vector<16x128xf32>
    %172 = arith.addf %169, %171 : vector<16x128xf32>
    %173 = arith.truncf %172 : vector<16x128xf32> to vector<16x128xbf16>
    %c0_51 = arith.constant 0 : index
    %c0_52 = arith.constant 0 : index
    %c0_53 = arith.constant 0 : index
    %174 = vector.load %arg8[%c0_51, %c0_52, %c0_53] : memref<2x128x512xbf16, #tpu.memory_space<vmem>>, vector<1x128x512xbf16>
    %175 = vector.shape_cast %174 : vector<1x128x512xbf16> to vector<128x512xbf16>
    %cst_54 = arith.constant dense<0.000000e+00> : vector<16x512xf32>
    %176 = tpu.matmul %173, %175, %cst_54 {dimension_numbers = #tpu.dot_dimension_numbers<[1], [0], [0], [1], [0, 0, 1, 1], [], []>} : vector<16x128xbf16>, vector<128x512xbf16>, vector<16x512xf32> -> vector<16x512xf32>
    %c0_55 = arith.constant 0 : index
    %c0_56 = arith.constant 0 : index
    %177 = vector.load %arg9[%c0_55, %c0_56] : memref<2x512xf32, #tpu.memory_space<vmem>>, vector<1x512xf32>
    %178 = vector.shape_cast %177 : vector<1x512xf32> to vector<512xf32>
    %179 = vector.shape_cast %178 : vector<512xf32> to vector<1x512xf32>
    %180 = vector.broadcast %179 : vector<1x512xf32> to vector<16x512xf32>
    %181 = arith.addf %176, %180 : vector<16x512xf32>
    %cst_57 = arith.constant 5.000000e-01 : f32
    %182 = vector.broadcast %cst_57 : f32 to vector<16x512xf32>
    %183 = arith.mulf %182, %181 : vector<16x512xf32>
    %cst_58 = arith.constant 0.707106769 : f32
    %184 = vector.broadcast %cst_58 : f32 to vector<16x512xf32>
    %185 = arith.mulf %181, %184 : vector<16x512xf32>
    %186 = math.erf %185 : vector<16x512xf32>
    %cst_59 = arith.constant 1.000000e+00 : f32
    %187 = vector.broadcast %cst_59 : f32 to vector<16x512xf32>
    %188 = arith.addf %187, %186 : vector<16x512xf32>
    %189 = arith.mulf %183, %188 : vector<16x512xf32>
    %190 = arith.truncf %189 : vector<16x512xf32> to vector<16x512xbf16>
    %c0_60 = arith.constant 0 : index
    %c0_61 = arith.constant 0 : index
    %c0_62 = arith.constant 0 : index
    %191 = vector.load %arg10[%c0_60, %c0_61, %c0_62] : memref<2x512x128xbf16, #tpu.memory_space<vmem>>, vector<1x512x128xbf16>
    %192 = vector.shape_cast %191 : vector<1x512x128xbf16> to vector<512x128xbf16>
    %cst_63 = arith.constant dense<0.000000e+00> : vector<16x128xf32>
    %193 = tpu.matmul %190, %192, %cst_63 {dimension_numbers = #tpu.dot_dimension_numbers<[1], [0], [0], [1], [0, 0, 1, 1], [], []>} : vector<16x512xbf16>, vector<512x128xbf16>, vector<16x128xf32> -> vector<16x128xf32>
    %c0_64 = arith.constant 0 : index
    %c0_65 = arith.constant 0 : index
    %194 = vector.load %arg11[%c0_64, %c0_65] : memref<2x128xf32, #tpu.memory_space<vmem>>, vector<1x128xf32>
    %195 = vector.shape_cast %194 : vector<1x128xf32> to vector<128xf32>
    %196 = vector.shape_cast %195 : vector<128xf32> to vector<1x128xf32>
    %197 = vector.broadcast %196 : vector<1x128xf32> to vector<16x128xf32>
    %198 = arith.addf %193, %197 : vector<16x128xf32>
    %c0_66 = arith.constant 0 : index
    %c0_67 = arith.constant 0 : index
    %199 = vector.load %arg12[%c0_66, %c0_67] : memref<2x128xf32, #tpu.memory_space<vmem>>, vector<1x128xf32>
    %200 = vector.shape_cast %199 : vector<1x128xf32> to vector<128xf32>
    %201 = vector.shape_cast %200 : vector<128xf32> to vector<1x128xf32>
    %202 = vector.broadcast %201 : vector<1x128xf32> to vector<16x128xf32>
    %203 = arith.mulf %202, %198 : vector<16x128xf32>
    %204 = arith.addf %7, %203 : vector<16x128xf32>
    %c1_68 = arith.constant 1 : index
    %c3_69 = arith.constant 3 : index
    %c0_70 = arith.constant 0 : index
    %205 = vector.load %arg4[%c1_68, %c3_69, %c0_70] : memref<2x7x128xf32, #tpu.memory_space<vmem>>, vector<1x1x128xf32>
    %206 = vector.shape_cast %205 : vector<1x1x128xf32> to vector<128xf32>
    %207 = vector.shape_cast %206 : vector<128xf32> to vector<1x128xf32>
    %208 = vector.broadcast %207 : vector<1x128xf32> to vector<16x128xf32>
    %209 = arith.mulf %204, %208 : vector<16x128xf32>
    %c3_i32_71 = arith.constant 3 : i32
    %210 = tpu.dynamic_rotate %204 by %c3_i32_71 dim 0 : vector<16x128xf32>, i32 -> vector<16x128xf32>
    %211 = arith.mulf %210, %21 : vector<16x128xf32>
    %c1_72 = arith.constant 1 : index
    %c0_73 = arith.constant 0 : index
    %c0_74 = arith.constant 0 : index
    %212 = vector.load %arg4[%c1_72, %c0_73, %c0_74] : memref<2x7x128xf32, #tpu.memory_space<vmem>>, vector<1x1x128xf32>
    %213 = vector.shape_cast %212 : vector<1x1x128xf32> to vector<128xf32>
    %214 = vector.shape_cast %213 : vector<128xf32> to vector<1x128xf32>
    %215 = vector.broadcast %214 : vector<1x128xf32> to vector<16x128xf32>
    %216 = arith.mulf %211, %215 : vector<16x128xf32>
    %217 = arith.addf %209, %216 : vector<16x128xf32>
    %c2_i32_75 = arith.constant 2 : i32
    %218 = tpu.dynamic_rotate %204 by %c2_i32_75 dim 0 : vector<16x128xf32>, i32 -> vector<16x128xf32>
    %219 = arith.mulf %218, %34 : vector<16x128xf32>
    %c1_76 = arith.constant 1 : index
    %c1_77 = arith.constant 1 : index
    %c0_78 = arith.constant 0 : index
    %220 = vector.load %arg4[%c1_76, %c1_77, %c0_78] : memref<2x7x128xf32, #tpu.memory_space<vmem>>, vector<1x1x128xf32>
    %221 = vector.shape_cast %220 : vector<1x1x128xf32> to vector<128xf32>
    %222 = vector.shape_cast %221 : vector<128xf32> to vector<1x128xf32>
    %223 = vector.broadcast %222 : vector<1x128xf32> to vector<16x128xf32>
    %224 = arith.mulf %219, %223 : vector<16x128xf32>
    %225 = arith.addf %217, %224 : vector<16x128xf32>
    %c1_i32_79 = arith.constant 1 : i32
    %226 = tpu.dynamic_rotate %204 by %c1_i32_79 dim 0 : vector<16x128xf32>, i32 -> vector<16x128xf32>
    %227 = arith.mulf %226, %47 : vector<16x128xf32>
    %c1_80 = arith.constant 1 : index
    %c2_81 = arith.constant 2 : index
    %c0_82 = arith.constant 0 : index
    %228 = vector.load %arg4[%c1_80, %c2_81, %c0_82] : memref<2x7x128xf32, #tpu.memory_space<vmem>>, vector<1x1x128xf32>
    %229 = vector.shape_cast %228 : vector<1x1x128xf32> to vector<128xf32>
    %230 = vector.shape_cast %229 : vector<128xf32> to vector<1x128xf32>
    %231 = vector.broadcast %230 : vector<1x128xf32> to vector<16x128xf32>
    %232 = arith.mulf %227, %231 : vector<16x128xf32>
    %233 = arith.addf %225, %232 : vector<16x128xf32>
    %c15_i32_83 = arith.constant 15 : i32
    %234 = tpu.dynamic_rotate %204 by %c15_i32_83 dim 0 : vector<16x128xf32>, i32 -> vector<16x128xf32>
    %235 = arith.mulf %234, %60 : vector<16x128xf32>
    %c1_84 = arith.constant 1 : index
    %c4_85 = arith.constant 4 : index
    %c0_86 = arith.constant 0 : index
    %236 = vector.load %arg4[%c1_84, %c4_85, %c0_86] : memref<2x7x128xf32, #tpu.memory_space<vmem>>, vector<1x1x128xf32>
    %237 = vector.shape_cast %236 : vector<1x1x128xf32> to vector<128xf32>
    %238 = vector.shape_cast %237 : vector<128xf32> to vector<1x128xf32>
    %239 = vector.broadcast %238 : vector<1x128xf32> to vector<16x128xf32>
    %240 = arith.mulf %235, %239 : vector<16x128xf32>
    %241 = arith.addf %233, %240 : vector<16x128xf32>
    %c14_i32_87 = arith.constant 14 : i32
    %242 = tpu.dynamic_rotate %204 by %c14_i32_87 dim 0 : vector<16x128xf32>, i32 -> vector<16x128xf32>
    %243 = arith.mulf %242, %73 : vector<16x128xf32>
    %c1_88 = arith.constant 1 : index
    %c5_89 = arith.constant 5 : index
    %c0_90 = arith.constant 0 : index
    %244 = vector.load %arg4[%c1_88, %c5_89, %c0_90] : memref<2x7x128xf32, #tpu.memory_space<vmem>>, vector<1x1x128xf32>
    %245 = vector.shape_cast %244 : vector<1x1x128xf32> to vector<128xf32>
    %246 = vector.shape_cast %245 : vector<128xf32> to vector<1x128xf32>
    %247 = vector.broadcast %246 : vector<1x128xf32> to vector<16x128xf32>
    %248 = arith.mulf %243, %247 : vector<16x128xf32>
    %249 = arith.addf %241, %248 : vector<16x128xf32>
    %c13_i32_91 = arith.constant 13 : i32
    %250 = tpu.dynamic_rotate %204 by %c13_i32_91 dim 0 : vector<16x128xf32>, i32 -> vector<16x128xf32>
    %251 = arith.mulf %250, %86 : vector<16x128xf32>
    %c1_92 = arith.constant 1 : index
    %c6_93 = arith.constant 6 : index
    %c0_94 = arith.constant 0 : index
    %252 = vector.load %arg4[%c1_92, %c6_93, %c0_94] : memref<2x7x128xf32, #tpu.memory_space<vmem>>, vector<1x1x128xf32>
    %253 = vector.shape_cast %252 : vector<1x1x128xf32> to vector<128xf32>
    %254 = vector.shape_cast %253 : vector<128xf32> to vector<1x128xf32>
    %255 = vector.broadcast %254 : vector<1x128xf32> to vector<16x128xf32>
    %256 = arith.mulf %251, %255 : vector<16x128xf32>
    %257 = arith.addf %249, %256 : vector<16x128xf32>
    %c1_95 = arith.constant 1 : index
    %c0_96 = arith.constant 0 : index
    %258 = vector.load %arg5[%c1_95, %c0_96] : memref<2x128xf32, #tpu.memory_space<vmem>>, vector<1x128xf32>
    %259 = vector.shape_cast %258 : vector<1x128xf32> to vector<128xf32>
    %260 = vector.shape_cast %259 : vector<128xf32> to vector<1x128xf32>
    %261 = vector.broadcast %260 : vector<1x128xf32> to vector<16x128xf32>
    %262 = arith.addf %257, %261 : vector<16x128xf32>
    %c1_97 = arith.constant 1 : index
    %c0_98 = arith.constant 0 : index
    %263 = vector.load %arg6[%c1_97, %c0_98] : memref<2x128xf32, #tpu.memory_space<vmem>>, vector<1x128xf32>
    %264 = vector.shape_cast %263 : vector<1x128xf32> to vector<128xf32>
    %c1_99 = arith.constant 1 : index
    %c0_100 = arith.constant 0 : index
    %265 = vector.load %arg7[%c1_99, %c0_100] : memref<2x128xf32, #tpu.memory_space<vmem>>, vector<1x128xf32>
    %266 = vector.shape_cast %265 : vector<1x128xf32> to vector<128xf32>
    %cst_101 = arith.constant dense<0.000000e+00> : vector<16xf32>
    %267 = vector.multi_reduction <add>, %262, %cst_101 [1] : vector<16x128xf32> to vector<16xf32>
    %268 = vector.shape_cast %267 : vector<16xf32> to vector<16x1xf32>
    %cst_102 = arith.constant 1.280000e+02 : f32
    %269 = vector.broadcast %cst_102 : f32 to vector<16x1xf32>
    %270 = arith.divf %268, %269 : vector<16x1xf32>
    %271 = vector.broadcast %270 : vector<16x1xf32> to vector<16x128xf32>
    %272 = arith.subf %262, %271 : vector<16x128xf32>
    %273 = arith.mulf %272, %272 : vector<16x128xf32>
    %cst_103 = arith.constant dense<0.000000e+00> : vector<16xf32>
    %274 = vector.multi_reduction <add>, %273, %cst_103 [1] : vector<16x128xf32> to vector<16xf32>
    %275 = vector.shape_cast %274 : vector<16xf32> to vector<16x1xf32>
    %cst_104 = arith.constant 1.280000e+02 : f32
    %276 = vector.broadcast %cst_104 : f32 to vector<16x1xf32>
    %277 = arith.divf %275, %276 : vector<16x1xf32>
    %278 = vector.broadcast %270 : vector<16x1xf32> to vector<16x128xf32>
    %279 = arith.subf %262, %278 : vector<16x128xf32>
    %cst_105 = arith.constant 9.99999974E-6 : f32
    %280 = vector.broadcast %cst_105 : f32 to vector<16x1xf32>
    %281 = arith.addf %277, %280 : vector<16x1xf32>
    %282 = math.rsqrt %281 : vector<16x1xf32>
    %283 = vector.broadcast %282 : vector<16x1xf32> to vector<16x128xf32>
    %284 = arith.mulf %279, %283 : vector<16x128xf32>
    %285 = vector.shape_cast %264 : vector<128xf32> to vector<1x128xf32>
    %286 = vector.broadcast %285 : vector<1x128xf32> to vector<16x128xf32>
    %287 = arith.mulf %284, %286 : vector<16x128xf32>
    %288 = vector.shape_cast %266 : vector<128xf32> to vector<1x128xf32>
    %289 = vector.broadcast %288 : vector<1x128xf32> to vector<16x128xf32>
    %290 = arith.addf %287, %289 : vector<16x128xf32>
    %291 = arith.truncf %290 : vector<16x128xf32> to vector<16x128xbf16>
    %c1_106 = arith.constant 1 : index
    %c0_107 = arith.constant 0 : index
    %c0_108 = arith.constant 0 : index
    %292 = vector.load %arg8[%c1_106, %c0_107, %c0_108] : memref<2x128x512xbf16, #tpu.memory_space<vmem>>, vector<1x128x512xbf16>
    %293 = vector.shape_cast %292 : vector<1x128x512xbf16> to vector<128x512xbf16>
    %cst_109 = arith.constant dense<0.000000e+00> : vector<16x512xf32>
    %294 = tpu.matmul %291, %293, %cst_109 {dimension_numbers = #tpu.dot_dimension_numbers<[1], [0], [0], [1], [0, 0, 1, 1], [], []>} : vector<16x128xbf16>, vector<128x512xbf16>, vector<16x512xf32> -> vector<16x512xf32>
    %c1_110 = arith.constant 1 : index
    %c0_111 = arith.constant 0 : index
    %295 = vector.load %arg9[%c1_110, %c0_111] : memref<2x512xf32, #tpu.memory_space<vmem>>, vector<1x512xf32>
    %296 = vector.shape_cast %295 : vector<1x512xf32> to vector<512xf32>
    %297 = vector.shape_cast %296 : vector<512xf32> to vector<1x512xf32>
    %298 = vector.broadcast %297 : vector<1x512xf32> to vector<16x512xf32>
    %299 = arith.addf %294, %298 : vector<16x512xf32>
    %cst_112 = arith.constant 5.000000e-01 : f32
    %300 = vector.broadcast %cst_112 : f32 to vector<16x512xf32>
    %301 = arith.mulf %300, %299 : vector<16x512xf32>
    %cst_113 = arith.constant 0.707106769 : f32
    %302 = vector.broadcast %cst_113 : f32 to vector<16x512xf32>
    %303 = arith.mulf %299, %302 : vector<16x512xf32>
    %304 = math.erf %303 : vector<16x512xf32>
    %cst_114 = arith.constant 1.000000e+00 : f32
    %305 = vector.broadcast %cst_114 : f32 to vector<16x512xf32>
    %306 = arith.addf %305, %304 : vector<16x512xf32>
    %307 = arith.mulf %301, %306 : vector<16x512xf32>
    %308 = arith.truncf %307 : vector<16x512xf32> to vector<16x512xbf16>
    %c1_115 = arith.constant 1 : index
    %c0_116 = arith.constant 0 : index
    %c0_117 = arith.constant 0 : index
    %309 = vector.load %arg10[%c1_115, %c0_116, %c0_117] : memref<2x512x128xbf16, #tpu.memory_space<vmem>>, vector<1x512x128xbf16>
    %310 = vector.shape_cast %309 : vector<1x512x128xbf16> to vector<512x128xbf16>
    %cst_118 = arith.constant dense<0.000000e+00> : vector<16x128xf32>
    %311 = tpu.matmul %308, %310, %cst_118 {dimension_numbers = #tpu.dot_dimension_numbers<[1], [0], [0], [1], [0, 0, 1, 1], [], []>} : vector<16x512xbf16>, vector<512x128xbf16>, vector<16x128xf32> -> vector<16x128xf32>
    %c1_119 = arith.constant 1 : index
    %c0_120 = arith.constant 0 : index
    %312 = vector.load %arg11[%c1_119, %c0_120] : memref<2x128xf32, #tpu.memory_space<vmem>>, vector<1x128xf32>
    %313 = vector.shape_cast %312 : vector<1x128xf32> to vector<128xf32>
    %314 = vector.shape_cast %313 : vector<128xf32> to vector<1x128xf32>
    %315 = vector.broadcast %314 : vector<1x128xf32> to vector<16x128xf32>
    %316 = arith.addf %311, %315 : vector<16x128xf32>
    %c1_121 = arith.constant 1 : index
    %c0_122 = arith.constant 0 : index
    %317 = vector.load %arg12[%c1_121, %c0_122] : memref<2x128xf32, #tpu.memory_space<vmem>>, vector<1x128xf32>
    %318 = vector.shape_cast %317 : vector<1x128xf32> to vector<128xf32>
    %319 = vector.shape_cast %318 : vector<128xf32> to vector<1x128xf32>
    %320 = vector.broadcast %319 : vector<1x128xf32> to vector<16x128xf32>
    %321 = arith.mulf %320, %316 : vector<16x128xf32>
    %322 = arith.addf %204, %321 : vector<16x128xf32>
    %c0_123 = arith.constant 0 : index
    %c0_124 = arith.constant 0 : index
    %323 = vector.load %arg13[%c0_123, %c0_124] : memref<1x128xf32, #tpu.memory_space<vmem>>, vector<1x128xf32>
    %c0_125 = arith.constant 0 : index
    %c0_126 = arith.constant 0 : index
    %324 = vector.load %arg14[%c0_125, %c0_126] : memref<1x128xf32, #tpu.memory_space<vmem>>, vector<1x128xf32>
    %cst_127 = arith.constant dense<0.000000e+00> : vector<16xf32>
    %325 = vector.multi_reduction <add>, %322, %cst_127 [1] : vector<16x128xf32> to vector<16xf32>
    %326 = vector.shape_cast %325 : vector<16xf32> to vector<16x1xf32>
    %cst_128 = arith.constant 1.280000e+02 : f32
    %327 = vector.broadcast %cst_128 : f32 to vector<16x1xf32>
    %328 = arith.divf %326, %327 : vector<16x1xf32>
    %329 = vector.broadcast %328 : vector<16x1xf32> to vector<16x128xf32>
    %330 = arith.subf %322, %329 : vector<16x128xf32>
    %331 = arith.mulf %330, %330 : vector<16x128xf32>
    %cst_129 = arith.constant dense<0.000000e+00> : vector<16xf32>
    %332 = vector.multi_reduction <add>, %331, %cst_129 [1] : vector<16x128xf32> to vector<16xf32>
    %333 = vector.shape_cast %332 : vector<16xf32> to vector<16x1xf32>
    %cst_130 = arith.constant 1.280000e+02 : f32
    %334 = vector.broadcast %cst_130 : f32 to vector<16x1xf32>
    %335 = arith.divf %333, %334 : vector<16x1xf32>
    %336 = vector.broadcast %328 : vector<16x1xf32> to vector<16x128xf32>
    %337 = arith.subf %322, %336 : vector<16x128xf32>
    %cst_131 = arith.constant 9.99999974E-6 : f32
    %338 = vector.broadcast %cst_131 : f32 to vector<16x1xf32>
    %339 = arith.addf %335, %338 : vector<16x1xf32>
    %340 = math.rsqrt %339 : vector<16x1xf32>
    %341 = vector.broadcast %340 : vector<16x1xf32> to vector<16x128xf32>
    %342 = arith.mulf %337, %341 : vector<16x128xf32>
    %343 = vector.broadcast %323 : vector<1x128xf32> to vector<16x128xf32>
    %344 = arith.mulf %342, %343 : vector<16x128xf32>
    %345 = vector.broadcast %324 : vector<1x128xf32> to vector<16x128xf32>
    %346 = arith.addf %344, %345 : vector<16x128xf32>
    %c0_132 = arith.constant 0 : index
    %c0_133 = arith.constant 0 : index
    %c0_134 = arith.constant 0 : index
    %347 = vector.load %arg15[%c0_132, %c0_133, %c0_134] : memref<1x16x128xf32, #tpu.memory_space<vmem>>, vector<1x16x128xf32>
    %348 = vector.shape_cast %347 : vector<1x16x128xf32> to vector<16x128xf32>
    %349 = vector.shape_cast %346 : vector<16x128xf32> to vector<1x16x128xf32>
    tpu.vector_store %arg15[%c0_132, %c0_133, %c0_134], %349 {strides = array<i32>} : memref<1x16x128xf32, #tpu.memory_space<vmem>>, vector<1x16x128xf32>,
    return
  }
  func.func @transform_0(%arg0: i32) -> (i32, i32, i32) {
    %c0_i32 = arith.constant 0 : i32
    %c0_i32_0 = arith.constant 0 : i32
    %c0_i32_1 = arith.constant 0 : i32
    return %arg0, %c0_i32, %c0_i32_0 : i32, i32, i32
  }
  func.func @transform_1(%arg0: i32) -> (i32, i32) {
    %c0_i32 = arith.constant 0 : i32
    %c0_i32_0 = arith.constant 0 : i32
    %c0_i32_1 = arith.constant 0 : i32
    return %c0_i32, %c0_i32_0 : i32, i32
  }
  func.func @transform_2(%arg0: i32) -> (i32, i32) {
    %c0_i32 = arith.constant 0 : i32
    %c0_i32_0 = arith.constant 0 : i32
    %c0_i32_1 = arith.constant 0 : i32
    return %c0_i32, %c0_i32_0 : i32, i32
  }
  func.func @transform_3(%arg0: i32) -> (i32, i32, i32) {
    %c0_i32 = arith.constant 0 : i32
    %c0_i32_0 = arith.constant 0 : i32
    %c0_i32_1 = arith.constant 0 : i32
    %c0_i32_2 = arith.constant 0 : i32
    return %c0_i32, %c0_i32_0, %c0_i32_1 : i32, i32, i32
  }
  func.func @transform_4(%arg0: i32) -> (i32, i32) {
    %c0_i32 = arith.constant 0 : i32
    %c0_i32_0 = arith.constant 0 : i32
    %c0_i32_1 = arith.constant 0 : i32
    return %c0_i32, %c0_i32_0 : i32, i32
  }
  func.func @transform_5(%arg0: i32) -> (i32, i32) {
    %c0_i32 = arith.constant 0 : i32
    %c0_i32_0 = arith.constant 0 : i32
    %c0_i32_1 = arith.constant 0 : i32
    return %c0_i32, %c0_i32_0 : i32, i32
  }
  func.func @transform_6(%arg0: i32) -> (i32, i32) {
    %c0_i32 = arith.constant 0 : i32
    %c0_i32_0 = arith.constant 0 : i32
    %c0_i32_1 = arith.constant 0 : i32
    return %c0_i32, %c0_i32_0 : i32, i32
  }
  func.func @transform_7(%arg0: i32) -> (i32, i32, i32) {
    %c0_i32 = arith.constant 0 : i32
    %c0_i32_0 = arith.constant 0 : i32
    %c0_i32_1 = arith.constant 0 : i32
    %c0_i32_2 = arith.constant 0 : i32
    return %c0_i32, %c0_i32_0, %c0_i32_1 : i32, i32, i32
  }
  func.func @transform_8(%arg0: i32) -> (i32, i32) {
    %c0_i32 = arith.constant 0 : i32
    %c0_i32_0 = arith.constant 0 : i32
    %c0_i32_1 = arith.constant 0 : i32
    return %c0_i32, %c0_i32_0 : i32, i32
  }
  func.func @transform_9(%arg0: i32) -> (i32, i32, i32) {
    %c0_i32 = arith.constant 0 : i32
    %c0_i32_0 = arith.constant 0 : i32
    %c0_i32_1 = arith.constant 0 : i32
    %c0_i32_2 = arith.constant 0 : i32
    return %c0_i32, %c0_i32_0, %c0_i32_1 : i32, i32, i32
  }
  func.func @transform_10(%arg0: i32) -> (i32, i32) {
    %c0_i32 = arith.constant 0 : i32
    %c0_i32_0 = arith.constant 0 : i32
    %c0_i32_1 = arith.constant 0 : i32
    return %c0_i32, %c0_i32_0 : i32, i32
  }
  func.func @transform_11(%arg0: i32) -> (i32, i32) {
    %c0_i32 = arith.constant 0 : i32
    %c0_i32_0 = arith.constant 0 : i32
    %c0_i32_1 = arith.constant 0 : i32
    return %c0_i32, %c0_i32_0 : i32, i32
  }
  func.func @transform_12(%arg0: i32) -> (i32, i32) {
    %c0_i32 = arith.constant 0 : i32
    %c0_i32_0 = arith.constant 0 : i32
    %c0_i32_1 = arith.constant 0 : i32
    return %c0_i32, %c0_i32_0 : i32, i32
  }
  func.func @transform_13(%arg0: i32) -> (i32, i32) {
    %c0_i32 = arith.constant 0 : i32
    %c0_i32_0 = arith.constant 0 : i32
    %c0_i32_1 = arith.constant 0 : i32
    return %c0_i32, %c0_i32_0 : i32, i32
  }
  func.func @transform_14(%arg0: i32) -> (i32, i32, i32) {
    %c0_i32 = arith.constant 0 : i32
    %c0_i32_0 = arith.constant 0 : i32
    %c0_i32_1 = arith.constant 0 : i32
    return %arg0, %c0_i32, %c0_i32_0 : i32, i32, i32
  }
}

</mosaic_0001>

<llo_original>
// kernel: convnext1d_forward.5
$region0: #{convnext1d_forward.5}
  #allocation0 [shape = 'u32[]', space=smem, size = 0x4, offset = 0x4, fixed_abs, tag = 'smem constant byte address 0x4 - core index']
  #allocation1 [shape = 'u32[144,128]{1,0:T(1,128)}', space=vmem, size = 0x12000, scoped, tag = 'internal scratch']
  %s0 = inlined_call_operand.vmem [shape: f32[2,32,64], index: 0, kind: input, shape index: {}]
  %s1 = inlined_call_operand.vmem [shape: bf16[64,64], index: 1, kind: input, shape index: {}]
  %s2 = inlined_call_operand.vmem [shape: f32[1,64], index: 2, kind: input, shape index: {}, may-alias: {2,4,6,10,13}]
  %s3 = inlined_call_operand.hbm [shape: f32[1,7,64], index: 3, kind: input, shape index: {}]
  %s4 = inlined_call_operand.vmem [shape: f32[1,64], index: 4, kind: input, shape index: {}, may-alias: {2,4,6,10,13}]
  %s5 = inlined_call_operand.vmem [shape: f32[1,64], index: 5, kind: input, shape index: {}, may-alias: {5,12}]
  %s6 = inlined_call_operand.vmem [shape: f32[1,64], index: 6, kind: input, shape index: {}, may-alias: {2,4,6,10,13}]
  %s7 = inlined_call_operand.hbm [shape: bf16[1,64,256], index: 7, kind: input, shape index: {}]
  %s8 = inlined_call_operand.vmem [shape: f32[1,256], index: 8, kind: input, shape index: {}]
  %s9 = inlined_call_operand.vmem [shape: bf16[1,256,64], index: 9, kind: input, shape index: {}]
  %s10 = inlined_call_operand.vmem [shape: f32[1,64], index: 10, kind: input, shape index: {}, may-alias: {2,4,6,10,13}]
  %s11 = inlined_call_operand.vmem [shape: f32[1,64], index: 11, kind: input, shape index: {}]
  %s12 = inlined_call_operand.vmem [shape: f32[1,64], index: 12, kind: input, shape index: {}, may-alias: {5,12}]
  %s13 = inlined_call_operand.vmem [shape: f32[1,64], index: 13, kind: input, shape index: {}, may-alias: {2,4,6,10,13}]
  %s14 = inlined_call_operand.vmem [shape: f32[2,32,64], index: 14, kind: output, shape index: {}]
  %s15 = sld [smem:[#allocation0]]
  $region97: #{convnext1d_forward.5} parent=0
    _
  %s17 = ssub.s32 1, %s15
  %s18 = scalar_select 0, %s17, %s15
  $region1: #{convnext1d_forward.5} parent=0
    #allocation2 [shape = 'u8[4096]{0}', space=vmem, size = 0x1000, scoped, tag = 'input window, operand 3, single buffered']
    #allocation3 [shape = 's32[2]{0}', space=sflag, size = 0x8, scoped, tag = 'scoped memory for convnext1d_forward.5']
    #allocation4 [shape = 'u8[32768]{0}', space=vmem, size = 0x8000, scoped, tag = 'input window, operand 7, single buffered']
    #allocation5 [shape = 's32[1]{0}', space=sflag, size = 0x4, scoped, tag = 'scoped memory for convnext1d_forward.5']
    %19 = vsyncpa [#allocation3], 0
    %20 = vsyncpa [#allocation5], 0
    loop: start=0, step=1, limit=4
    $region2: #{convnext1d_forward.5} parent=1 // loop_pre_header
      _
    $region3: #{convnext1d_forward.5} parent=1 // loop_header
      %s22 = sphi 0, %s26
      %p23 = scmp.ge.s32.totalorder %s22, 4
      %s32 = sphi 0, %s34
      %s35 = sphi 0, %s32
      %s36 = sphi 0, %s35
      %s52 = sphi 0, %s36
      %s56 = sphi 0, %s56
      %s58 = sphi 0, %s56
      %s59 = sphi 0, %s58
      %s73 = sphi 0, %s59
      %s77 = sphi 0, %s77
      %s79 = sphi 0, %s77
      %s80 = sphi 0, %s79
      %s94 = sphi 0, %s80
      %s98 = sphi 0, %s98
      %s100 = sphi 0, %s98
      %s101 = sphi 0, %s100
      %s115 = sphi 0, %s101
      %s119 = sphi 0, %s119
      %s121 = sphi 0, %s119
      %s122 = sphi 0, %s121
      %s136 = sphi 0, %s122
      %s140 = sphi 0, %s140
      %s142 = sphi 0, %s140
      %s143 = sphi 0, %s142
      %s157 = sphi 0, %s143
      %s161 = sphi 0, %s161
      %s163 = sphi 0, %s161
      %s164 = sphi 0, %s163
      %s178 = sphi 0, %s164
      %s182 = sphi 0, %s182
      %s184 = sphi 0, %s182
      %s185 = sphi 0, %s184
      %s199 = sphi 0, %s185
      %s203 = sphi 0, %s203
      %s205 = sphi 0, %s203
      %s206 = sphi 0, %s205
      %s220 = sphi 0, %s206
      %s224 = sphi 0, %s224
      %s226 = sphi 0, %s224
      %s227 = sphi 0, %s226
      %s241 = sphi 0, %s227
      %s245 = sphi 0, %s245
      %s247 = sphi 0, %s245
      %s248 = sphi 0, %s247
      %s262 = sphi 0, %s248
      %s266 = sphi 0, %s266
      %s268 = sphi 0, %s266
      %s269 = sphi 0, %s268
      %s283 = sphi 0, %s269
      %s287 = sphi 0, %s287
      %s289 = sphi 0, %s287
      %s290 = sphi 0, %s289
      %s304 = sphi 0, %s290
      %s308 = sphi 0, %s308
      %s310 = sphi 0, %s308
      %s311 = sphi 0, %s310
      %s325 = sphi 0, %s311
      %s331 = sphi 0, %s333
      %s334 = sphi 0, %s331
      %s335 = sphi 0, %s334
      %s351 = sphi 0, %s335
    $region4: #{convnext1d_forward.5} parent=1 // loop_header_branch
      %25 = sbr.rel (%p23) target = $region8
    $region5: #{convnext1d_forward.5} parent=1 // loop_body
      %s27 = ssub.s32 %s22, 1
      %s28 = ssub.s32 %s22, 2
      %s29 = sadd.s32 %s22, 1
      %s30 = ssub.s32 %s22, %s29
      %p31 = scmp.eq.s32.totalorder %s30, 0
      %s33 = sadd.s32 %s32, 1
      %s34 = scalar_select %p31, %s32, %s33
      %p37 = pneg %p31
      %p38 = scmp.eq.s32.totalorder %s22, 1
      %p39 = por %p37, %p38
      %p40 = scmp.ne.s32.totalorder %s32, %s35
      %p41 = scmp.eq.s32.totalorder %s22, 0
      %p42 = por %p40, %p41
      %p43 = scmp.ne.s32.totalorder %s32, %s35
      %p44 = scmp.eq.s32.totalorder %s27, 1
      %p45 = por %p43, %p44
      %p46 = scmp.ne.s32.totalorder %s35, %s36
      %p47 = scmp.eq.s32.totalorder %s27, 0
      %p48 = por %p46, %p47
      %p49 = scmp.ne.s32.totalorder %s35, %s36
      %p50 = scmp.eq.s32.totalorder %s28, 1
      %p51 = por %p49, %p50
      %p53 = scmp.ne.s32.totalorder %s36, %s52
      %p54 = scmp.eq.s32.totalorder %s28, 0
      %p55 = por %p53, %p54
      %s57 = sadd.s32 %s56, 1
      %p60 = scmp.eq.s32.totalorder %s22, 1
      %p61 = scmp.ne.s32.totalorder %s56, %s58
      %p62 = scmp.eq.s32.totalorder %s22, 0
      %p63 = por %p61, %p62
      %p64 = scmp.ne.s32.totalorder %s56, %s58
      %p65 = scmp.eq.s32.totalorder %s27, 1
      %p66 = por %p64, %p65
      %p67 = scmp.ne.s32.totalorder %s58, %s59
      %p68 = scmp.eq.s32.totalorder %s27, 0
      %p69 = por %p67, %p68
      %p70 = scmp.ne.s32.totalorder %s58, %s59
      %p71 = scmp.eq.s32.totalorder %s28, 1
      %p72 = por %p70, %p71
      %p74 = scmp.ne.s32.totalorder %s59, %s73
      %p75 = scmp.eq.s32.totalorder %s28, 0
      %p76 = por %p74, %p75
      %s78 = sadd.s32 %s77, 1
      %p81 = scmp.eq.s32.totalorder %s22, 1
      %p82 = scmp.ne.s32.totalorder %s77, %s79
      %p83 = scmp.eq.s32.totalorder %s22, 0
      %p84 = por %p82, %p83
      %p85 = scmp.ne.s32.totalorder %s77, %s79
      %p86 = scmp.eq.s32.totalorder %s27, 1
      %p87 = por %p85, %p86
      %p88 = scmp.ne.s32.totalorder %s79, %s80
      %p89 = scmp.eq.s32.totalorder %s27, 0
      %p90 = por %p88, %p89
      %p91 = scmp.ne.s32.totalorder %s79, %s80
      %p92 = scmp.eq.s32.totalorder %s28, 1
      %p93 = por %p91, %p92
      %p95 = scmp.ne.s32.totalorder %s80, %s94
      %p96 = scmp.eq.s32.totalorder %s28, 0
      %p97 = por %p95, %p96
      %s99 = sadd.s32 %s98, 1
      %p102 = scmp.eq.s32.totalorder %s22, 1
      %p103 = scmp.ne.s32.totalorder %s98, %s100
      %p104 = scmp.eq.s32.totalorder %s22, 0
      %p105 = por %p103, %p104
      %p106 = scmp.ne.s32.totalorder %s98, %s100
      %p107 = scmp.eq.s32.totalorder %s27, 1
      %p108 = por %p106, %p107
      %p109 = scmp.ne.s32.totalorder %s100, %s101
      %p110 = scmp.eq.s32.totalorder %s27, 0
      %p111 = por %p109, %p110
      %p112 = scmp.ne.s32.totalorder %s100, %s101
      %p113 = scmp.eq.s32.totalorder %s28, 1
      %p114 = por %p112, %p113
      %p116 = scmp.ne.s32.totalorder %s101, %s115
      %p117 = scmp.eq.s32.totalorder %s28, 0
      %p118 = por %p116, %p117
      %s120 = sadd.s32 %s119, 1
      %p123 = scmp.eq.s32.totalorder %s22, 1
      %p124 = scmp.ne.s32.totalorder %s119, %s121
      %p125 = scmp.eq.s32.totalorder %s22, 0
      %p126 = por %p124, %p125
      %p127 = scmp.ne.s32.totalorder %s119, %s121
      %p128 = scmp.eq.s32.totalorder %s27, 1
      %p129 = por %p127, %p128
      %p130 = scmp.ne.s32.totalorder %s121, %s122
      %p131 = scmp.eq.s32.totalorder %s27, 0
      %p132 = por %p130, %p131
      %p133 = scmp.ne.s32.totalorder %s121, %s122
      %p134 = scmp.eq.s32.totalorder %s28, 1
      %p135 = por %p133, %p134
      %p137 = scmp.ne.s32.totalorder %s122, %s136
      %p138 = scmp.eq.s32.totalorder %s28, 0
      %p139 = por %p137, %p138
      %s141 = sadd.s32 %s140, 1
      %p144 = scmp.eq.s32.totalorder %s22, 1
      %p145 = scmp.ne.s32.totalorder %s140, %s142
      %p146 = scmp.eq.s32.totalorder %s22, 0
      %p147 = por %p145, %p146
      %p148 = scmp.ne.s32.totalorder %s140, %s142
      %p149 = scmp.eq.s32.totalorder %s27, 1
      %p150 = por %p148, %p149
      %p151 = scmp.ne.s32.totalorder %s142, %s143
      %p152 = scmp.eq.s32.totalorder %s27, 0
      %p153 = por %p151, %p152
      %p154 = scmp.ne.s32.totalorder %s142, %s143
      %p155 = scmp.eq.s32.totalorder %s28, 1
      %p156 = por %p154, %p155
      %p158 = scmp.ne.s32.totalorder %s143, %s157
      %p159 = scmp.eq.s32.totalorder %s28, 0
      %p160 = por %p158, %p159
      %s162 = sadd.s32 %s161, 1
      %p165 = scmp.eq.s32.totalorder %s22, 1
      %p166 = scmp.ne.s32.totalorder %s161, %s163
      %p167 = scmp.eq.s32.totalorder %s22, 0
      %p168 = por %p166, %p167
      %p169 = scmp.ne.s32.totalorder %s161, %s163
      %p170 = scmp.eq.s32.totalorder %s27, 1
      %p171 = por %p169, %p170
      %p172 = scmp.ne.s32.totalorder %s163, %s164
      %p173 = scmp.eq.s32.totalorder %s27, 0
      %p174 = por %p172, %p173
      %p175 = scmp.ne.s32.totalorder %s163, %s164
      %p176 = scmp.eq.s32.totalorder %s28, 1
      %p177 = por %p175, %p176
      %p179 = scmp.ne.s32.totalorder %s164, %s178
      %p180 = scmp.eq.s32.totalorder %s28, 0
      %p181 = por %p179, %p180
      %s183 = sadd.s32 %s182, 1
      %p186 = scmp.eq.s32.totalorder %s22, 1
      %p187 = scmp.ne.s32.totalorder %s182, %s184
      %p188 = scmp.eq.s32.totalorder %s22, 0
      %p189 = por %p187, %p188
      %p190 = scmp.ne.s32.totalorder %s182, %s184
      %p191 = scmp.eq.s32.totalorder %s27, 1
      %p192 = por %p190, %p191
      %p193 = scmp.ne.s32.totalorder %s184, %s185
      %p194 = scmp.eq.s32.totalorder %s27, 0
      %p195 = por %p193, %p194
      %p196 = scmp.ne.s32.totalorder %s184, %s185
      %p197 = scmp.eq.s32.totalorder %s28, 1
      %p198 = por %p196, %p197
      %p200 = scmp.ne.s32.totalorder %s185, %s199
      %p201 = scmp.eq.s32.totalorder %s28, 0
      %p202 = por %p200, %p201
      %s204 = sadd.s32 %s203, 1
      %p207 = scmp.eq.s32.totalorder %s22, 1
      %p208 = scmp.ne.s32.totalorder %s203, %s205
      %p209 = scmp.eq.s32.totalorder %s22, 0
      %p210 = por %p208, %p209
      %p211 = scmp.ne.s32.totalorder %s203, %s205
      %p212 = scmp.eq.s32.totalorder %s27, 1
      %p213 = por %p211, %p212
      %p214 = scmp.ne.s32.totalorder %s205, %s206
      %p215 = scmp.eq.s32.totalorder %s27, 0
      %p216 = por %p214, %p215
      %p217 = scmp.ne.s32.totalorder %s205, %s206
      %p218 = scmp.eq.s32.totalorder %s28, 1
      %p219 = por %p217, %p218
      %p221 = scmp.ne.s32.totalorder %s206, %s220
      %p222 = scmp.eq.s32.totalorder %s28, 0
      %p223 = por %p221, %p222
      %s225 = sadd.s32 %s224, 1
      %p228 = scmp.eq.s32.totalorder %s22, 1
      %p229 = scmp.ne.s32.totalorder %s224, %s226
      %p230 = scmp.eq.s32.totalorder %s22, 0
      %p231 = por %p229, %p230
      %p232 = scmp.ne.s32.totalorder %s224, %s226
      %p233 = scmp.eq.s32.totalorder %s27, 1
      %p234 = por %p232, %p233
      %p235 = scmp.ne.s32.totalorder %s226, %s227
      %p236 = scmp.eq.s32.totalorder %s27, 0
      %p237 = por %p235, %p236
      %p238 = scmp.ne.s32.totalorder %s226, %s227
      %p239 = scmp.eq.s32.totalorder %s28, 1
      %p240 = por %p238, %p239
      %p242 = scmp.ne.s32.totalorder %s227, %s241
      %p243 = scmp.eq.s32.totalorder %s28, 0
      %p244 = por %p242, %p243
      %s246 = sadd.s32 %s245, 1
      %p249 = scmp.eq.s32.totalorder %s22, 1
      %p250 = scmp.ne.s32.totalorder %s245, %s247
      %p251 = scmp.eq.s32.totalorder %s22, 0
      %p252 = por %p250, %p251
      %p253 = scmp.ne.s32.totalorder %s245, %s247
      %p254 = scmp.eq.s32.totalorder %s27, 1
      %p255 = por %p253, %p254
      %p256 = scmp.ne.s32.totalorder %s247, %s248
      %p257 = scmp.eq.s32.totalorder %s27, 0
      %p258 = por %p256, %p257
      %p259 = scmp.ne.s32.totalorder %s247, %s248
      %p260 = scmp.eq.s32.totalorder %s28, 1
      %p261 = por %p259, %p260
      %p263 = scmp.ne.s32.totalorder %s248, %s262
      %p264 = scmp.eq.s32.totalorder %s28, 0
      %p265 = por %p263, %p264
      %s267 = sadd.s32 %s266, 1
      %p270 = scmp.eq.s32.totalorder %s22, 1
      %p271 = scmp.ne.s32.totalorder %s266, %s268
      %p272 = scmp.eq.s32.totalorder %s22, 0
      %p273 = por %p271, %p272
      %p274 = scmp.ne.s32.totalorder %s266, %s268
      %p275 = scmp.eq.s32.totalorder %s27, 1
      %p276 = por %p274, %p275
      %p277 = scmp.ne.s32.totalorder %s268, %s269
      %p278 = scmp.eq.s32.totalorder %s27, 0
      %p279 = por %p277, %p278
      %p280 = scmp.ne.s32.totalorder %s268, %s269
      %p281 = scmp.eq.s32.totalorder %s28, 1
      %p282 = por %p280, %p281
      %p284 = scmp.ne.s32.totalorder %s269, %s283
      %p285 = scmp.eq.s32.totalorder %s28, 0
      %p286 = por %p284, %p285
      %s288 = sadd.s32 %s287, 1
      %p291 = scmp.eq.s32.totalorder %s22, 1
      %p292 = scmp.ne.s32.totalorder %s287, %s289
      %p293 = scmp.eq.s32.totalorder %s22, 0
      %p294 = por %p292, %p293
      %p295 = scmp.ne.s32.totalorder %s287, %s289
      %p296 = scmp.eq.s32.totalorder %s27, 1
      %p297 = por %p295, %p296
      %p298 = scmp.ne.s32.totalorder %s289, %s290
      %p299 = scmp.eq.s32.totalorder %s27, 0
      %p300 = por %p298, %p299
      %p301 = scmp.ne.s32.totalorder %s289, %s290
      %p302 = scmp.eq.s32.totalorder %s28, 1
      %p303 = por %p301, %p302
      %p305 = scmp.ne.s32.totalorder %s290, %s304
      %p306 = scmp.eq.s32.totalorder %s28, 0
      %p307 = por %p305, %p306
      %s309 = sadd.s32 %s308, 1
      %p312 = scmp.eq.s32.totalorder %s22, 1
      %p313 = scmp.ne.s32.totalorder %s308, %s310
      %p314 = scmp.eq.s32.totalorder %s22, 0
      %p315 = por %p313, %p314
      %p316 = scmp.ne.s32.totalorder %s308, %s310
      %p317 = scmp.eq.s32.totalorder %s27, 1
      %p318 = por %p316, %p317
      %p319 = scmp.ne.s32.totalorder %s310, %s311
      %p320 = scmp.eq.s32.totalorder %s27, 0
      %p321 = por %p319, %p320
      %p322 = scmp.ne.s32.totalorder %s310, %s311
      %p323 = scmp.eq.s32.totalorder %s28, 1
      %p324 = por %p322, %p323
      %p326 = scmp.ne.s32.totalorder %s311, %s325
      %p327 = scmp.eq.s32.totalorder %s28, 0
      %p328 = por %p326, %p327
      %s329 = ssub.s32 %s22, %s29
      %p330 = scmp.eq.s32.totalorder %s329, 0
      %s332 = sadd.s32 %s331, 1
      %s333 = scalar_select %p330, %s331, %s332
      %p336 = pneg %p330
      %p337 = scmp.eq.s32.totalorder %s22, 1
      %p338 = por %p336, %p337
      %p339 = scmp.ne.s32.totalorder %s331, %s334
      %p340 = scmp.eq.s32.totalorder %s22, 0
      %p341 = por %p339, %p340
      %p342 = scmp.ne.s32.totalorder %s331, %s334
      %p343 = scmp.eq.s32.totalorder %s27, 1
      %p344 = por %p342, %p343
      %p345 = scmp.ne.s32.totalorder %s334, %s335
      %p346 = scmp.eq.s32.totalorder %s27, 0
      %p347 = por %p345, %p346
      %p348 = scmp.ne.s32.totalorder %s334, %s335
      %p349 = scmp.eq.s32.totalorder %s28, 1
      %p350 = por %p348, %p349
      %p352 = scmp.ne.s32.totalorder %s335, %s351
      %p353 = scmp.eq.s32.totalorder %s28, 0
      %p354 = por %p352, %p353
      %p355 = scmp.le.s32.totalorder 1, %s22
      %p356 = scmp.lt.s32.totalorder %s22, 3
      %p357 = pnand %p355, %p356
      %p358 = pneg %p357
      // Predicated region
      $region9: #{convnext1d_forward.5} parent=5 // pred_check
        _
      $region10: #{convnext1d_forward.5} parent=5 // pred_check_branch
        %360 = sbr.rel (%p357) target = $region12
      $region11: #{convnext1d_forward.5} parent=5 // pred_region
        %s361 = ssub.s32 %s22, 1
        // Predicated region
        $region13: #{convnext1d_forward.5} parent=11 // pred_check
          %p362 = pneg %p69
        $region14: #{convnext1d_forward.5} parent=11 // pred_check_branch
          %364 = sbr.rel (%p362) target = $region16
        $region15: #{convnext1d_forward.5} parent=11 // pred_region
          _
        $region16: #{convnext1d_forward.5} parent=11 // pred_fallthru
          _
        // Predicated region
        $region17: #{convnext1d_forward.5} parent=11 // pred_check
          %p365 = pneg %p90
        $region18: #{convnext1d_forward.5} parent=11 // pred_check_branch
          %367 = sbr.rel (%p365) target = $region20
        $region19: #{convnext1d_forward.5} parent=11 // pred_region
          _
        $region20: #{convnext1d_forward.5} parent=11 // pred_fallthru
          _
        // Predicated region
        $region21: #{convnext1d_forward.5} parent=11 // pred_check
          %p368 = pneg %p111
        $region22: #{convnext1d_forward.5} parent=11 // pred_check_branch
          %370 = sbr.rel (%p368) target = $region24
        $region23: #{convnext1d_forward.5} parent=11 // pred_region
          %s372 = ssub.s32 128, 128
          %373 = vsyncadd [#allocation3], %s372
          %s375 = sshll.u32 [#allocation2], 4
          %s376 = int_to_ptr.vmem [resolvable:$true] %s375
          %378 = dma.hbm_to_vmem [thread:$0]  %s3, 128, %s376, [#allocation3]
        $region24: #{convnext1d_forward.5} parent=11 // pred_fallthru
          _
        // Predicated region
        $region25: #{convnext1d_forward.5} parent=11 // pred_check
          %p379 = pneg %p132
        $region26: #{convnext1d_forward.5} parent=11 // pred_check_branch
          %381 = sbr.rel (%p379) target = $region28
        $region27: #{convnext1d_forward.5} parent=11 // pred_region
          _
        $region28: #{convnext1d_forward.5} parent=11 // pred_fallthru
          _
        // Predicated region
        $region29: #{convnext1d_forward.5} parent=11 // pred_check
          %p382 = pneg %p153
        $region30: #{convnext1d_forward.5} parent=11 // pred_check_branch
          %384 = sbr.rel (%p382) target = $region32
        $region31: #{convnext1d_forward.5} parent=11 // pred_region
          _
        $region32: #{convnext1d_forward.5} parent=11 // pred_fallthru
          _
        // Predicated region
        $region33: #{convnext1d_forward.5} parent=11 // pred_check
          %p385 = pneg %p174
        $region34: #{convnext1d_forward.5} parent=11 // pred_check_branch
          %387 = sbr.rel (%p385) target = $region36
        $region35: #{convnext1d_forward.5} parent=11 // pred_region
          _
        $region36: #{convnext1d_forward.5} parent=11 // pred_fallthru
          _
        // Predicated region
        $region37: #{convnext1d_forward.5} parent=11 // pred_check
          %p388 = pneg %p195
        $region38: #{convnext1d_forward.5} parent=11 // pred_check_branch
          %390 = sbr.rel (%p388) target = $region40
        $region39: #{convnext1d_forward.5} parent=11 // pred_region
          %s392 = ssub.s32 1024, 1024
          %393 = vsyncadd [#allocation5], %s392
          %s394 = sshll.u32 [#allocation4], 4
          %s395 = int_to_ptr.vmem [resolvable:$true] %s394
          %400 = dma.hbm_to_vmem [thread:$0]  %s7, 1024, %s395, [#allocation5], 128, 128, 8
        $region40: #{convnext1d_forward.5} parent=11 // pred_fallthru
          _
        // Predicated region
        $region41: #{convnext1d_forward.5} parent=11 // pred_check
          %p401 = pneg %p216
        $region42: #{convnext1d_forward.5} parent=11 // pred_check_branch
          %403 = sbr.rel (%p401) target = $region44
        $region43: #{convnext1d_forward.5} parent=11 // pred_region
          _
        $region44: #{convnext1d_forward.5} parent=11 // pred_fallthru
          _
        // Predicated region
        $region45: #{convnext1d_forward.5} parent=11 // pred_check
          %p404 = pneg %p237
        $region46: #{convnext1d_forward.5} parent=11 // pred_check_branch
          %406 = sbr.rel (%p404) target = $region48
        $region47: #{convnext1d_forward.5} parent=11 // pred_region
          _
        $region48: #{convnext1d_forward.5} parent=11 // pred_fallthru
          _
        // Predicated region
        $region49: #{convnext1d_forward.5} parent=11 // pred_check
          %p407 = pneg %p258
        $region50: #{convnext1d_forward.5} parent=11 // pred_check_branch
          %409 = sbr.rel (%p407) target = $region52
        $region51: #{convnext1d_forward.5} parent=11 // pred_region
          _
        $region52: #{convnext1d_forward.5} parent=11 // pred_fallthru
          _
        // Predicated region
        $region53: #{convnext1d_forward.5} parent=11 // pred_check
          %p410 = pneg %p279
        $region54: #{convnext1d_forward.5} parent=11 // pred_check_branch
          %412 = sbr.rel (%p410) target = $region56
        $region55: #{convnext1d_forward.5} parent=11 // pred_region
          _
        $region56: #{convnext1d_forward.5} parent=11 // pred_fallthru
          _
        // Predicated region
        $region57: #{convnext1d_forward.5} parent=11 // pred_check
          %p413 = pneg %p300
        $region58: #{convnext1d_forward.5} parent=11 // pred_check_branch
          %415 = sbr.rel (%p413) target = $region60
        $region59: #{convnext1d_forward.5} parent=11 // pred_region
          _
        $region60: #{convnext1d_forward.5} parent=11 // pred_fallthru
          _
        // Predicated region
        $region61: #{convnext1d_forward.5} parent=11 // pred_check
          %p416 = pneg %p321
        $region62: #{convnext1d_forward.5} parent=11 // pred_check_branch
          %418 = sbr.rel (%p416) target = $region64
        $region63: #{convnext1d_forward.5} parent=11 // pred_region
          _
        $region64: #{convnext1d_forward.5} parent=11 // pred_fallthru
          _
      $region12: #{convnext1d_forward.5} parent=5 // pred_fallthru
        _
      %p419 = scmp.lt.s32.totalorder %s22, 2
      // Predicated region
      $region65: #{convnext1d_forward.5} parent=5 // pred_check
        %p420 = pneg %p419
      $region66: #{convnext1d_forward.5} parent=5 // pred_check_branch
        %422 = sbr.rel (%p420) target = $region68
      $region67: #{convnext1d_forward.5} parent=5 // pred_region
        // Predicated region
        $region69: #{convnext1d_forward.5} parent=67 // pred_check
          %p423 = pneg %p42
        $region70: #{convnext1d_forward.5} parent=67 // pred_check_branch
          %425 = sbr.rel (%p423) target = $region72
        $region71: #{convnext1d_forward.5} parent=67 // pred_region
          %p426 = scmp.lt.s32.totalorder %s22, 1
          %s427 = scalar_select %p426, %s22, 1
          %s428 = smul.addr %s427, 4
          %s429 = smul.addr %s428, 8
          %s430 = scalar_lea.vmem %s0, %s429
        $region72: #{convnext1d_forward.5} parent=67 // pred_fallthru
          _
      $region68: #{convnext1d_forward.5} parent=5 // pred_fallthru
        _
      %p431 = scmp.le.s32.totalorder 1, %s22
      %p432 = scmp.lt.s32.totalorder %s22, 3
      %p433 = pnand %p431, %p432
      %p434 = pneg %p433
      // Predicated region
      $region73: #{convnext1d_forward.5} parent=5 // pred_check
        _
      $region74: #{convnext1d_forward.5} parent=5 // pred_check_branch
        %436 = sbr.rel (%p433) target = $region76
      $region75: #{convnext1d_forward.5} parent=5 // pred_region
        %s437 = ssub.s32 %s22, 1
        // Predicated region
        $region77: #{convnext1d_forward.5} parent=75 // pred_check
          %p438 = pneg %p111
        $region78: #{convnext1d_forward.5} parent=75 // pred_check_branch
          %440 = sbr.rel (%p438) target = $region80
        $region79: #{convnext1d_forward.5} parent=75 // pred_region
          %441 = dma.done [#allocation3], 128
        $region80: #{convnext1d_forward.5} parent=75 // pred_fallthru
          _
        // Predicated region
        $region81: #{convnext1d_forward.5} parent=75 // pred_check
          %p442 = pneg %p195
        $region82: #{convnext1d_forward.5} parent=75 // pred_check_branch
          %444 = sbr.rel (%p442) target = $region84
        $region83: #{convnext1d_forward.5} parent=75 // pred_region
          %445 = dma.done [#allocation5], 1024
        $region84: #{convnext1d_forward.5} parent=75 // pred_fallthru
          _
        %p446 = scmp.lt.s32.totalorder %s27, 1
        %s447 = scalar_select %p446, %s27, 1
        %s448 = smul.addr %s447, 4
        %s449 = smul.addr %s448, 8
        %s450 = scalar_lea.vmem %s0, %s449
        %p451 = pneg %p48
        %p452 = pneg %p45
        %p453 = pneg %p69
        %p454 = pneg %p66
        %p455 = pneg %p90
        %p456 = pneg %p87
        %p457 = pneg %p111
        %p458 = pneg %p108
        %p459 = pneg %p132
        %p460 = pneg %p129
        %p461 = pneg %p153
        %p462 = pneg %p150
        %p463 = pneg %p174
        %p464 = pneg %p171
        %p465 = pneg %p195
        %p466 = pneg %p192
        %p467 = pneg %p216
        %p468 = pneg %p213
        %p469 = pneg %p237
        %p470 = pneg %p234
        %p471 = pneg %p258
        %p472 = pneg %p255
        %p473 = pneg %p279
        %p474 = pneg %p276
        %p475 = pneg %p300
        %p476 = pneg %p297
        %p477 = pneg %p321
        %p478 = pneg %p318
        %p479 = pneg %p347
        %p480 = pneg %p344
        %p481 = scmp.lt.s32.totalorder %s27, 1
        %s482 = scalar_select %p481, %s27, 1
        %s483 = smul.addr %s482, 4
        %s484 = smul.addr %s483, 8
        %s485 = scalar_lea.vmem %s14, %s484
        %p486 = scmp.lt.s32.totalorder %s27, 1
        %s487 = scalar_select %p486, %s27, 1
        %s488 = smul.addr %s487, 4
        %s489 = smul.addr %s488, 8
        %s490 = scalar_lea.vmem %s0, %s489
        %p491 = scmp.lt.s32.totalorder %s27, 1
        %s492 = scalar_select %p491, %s27, 1
        %s493 = smul.addr %s492, 4
        %s494 = smul.addr %s493, 8
        %s495 = scalar_lea.vmem %s14, %s494
        %v497 = vld [vmem:[%s490] sm:$0xff]
        %v498 = vld [vmem:[%s490 + $0x8] sm:$0xff]
        %v499 = vld [vmem:[%s490 + $0x10] sm:$0xff]
        %v500 = vld [vmem:[%s490 + $0x18] sm:$0xff]
        %v501 = vpack.c.bf16 %v498, %v497
        %v502 = vpack.c.bf16 %v500, %v499
        %v503 = vld [vmem:[%s1] sm:$0xf]
        %v504 = vld [vmem:[%s1 + $0x4] sm:$0xf]
        %v505 = vld [vmem:[%s1 + $0x8] sm:$0xf]
        %v506 = vld [vmem:[%s1 + $0xc] sm:$0xf]
        %v507 = vld [vmem:[%s1 + $0x10] sm:$0xf]
        %v508 = vld [vmem:[%s1 + $0x14] sm:$0xf]
        %v509 = vld [vmem:[%s1 + $0x18] sm:$0xf]
        %v510 = vld [vmem:[%s1 + $0x1c] sm:$0xf]
        %v511 = vld [vmem:[%s2] sm:$0x1]
        %v513 = vlaneseq
        %v514 = vshrl.u32 %v513, 7
        %v515 = vsub.s32 0, %v514
        %v516 = vrot.slane %v511, %v515
        %v526 = vunpack.c.l.b16 %v503
        %v527 = vunpack.c.l.b16 %v504
        %v528 = vunpack.c.l.b16 %v505
        %v529 = vunpack.c.l.b16 %v506
        %v530 = vunpack.c.l.b16 %v507
        %v531 = vunpack.c.l.b16 %v508
        %v532 = vunpack.c.l.b16 %v509
        %v533 = vunpack.c.l.b16 %v510
        %v534 = vpack.c.b16 %v527, %v526
        %v535 = vpack.c.b16 %v529, %v528
        %v536 = vpack.c.b16 %v531, %v530
        %v537 = vpack.c.b16 %v533, %v532
        %vm542 = vcmask 523264
        %v544 = vsel %vm542, %v501, 0
        %v547 = vsel %vm542, %v502, 0
        %549 = vmatprep.subr.bf16.mxu0 0
        %550 = vmatpush1.bf16.msra.mxu0 0
        %551 = vmatprep.subr.bf16.mxu0 0
        %552 = vmatpush1.bf16.msra.mxu0 0
        %553 = vmatprep.subr.bf16.mxu0 0
        %554 = vmatpush1.bf16.msra.mxu0 0
        %555 = vmatprep.subr.bf16.mxu0 0
        %556 = vmatpush1.bf16.msra.mxu0 0
        %557 = vmatprep.subr.bf16.mxu0 0
        %558 = vmatpush1.bf16.msra.mxu0 %v537
        %559 = vmatprep.subr.bf16.mxu0 0
        %560 = vmatpush1.bf16.msra.mxu0 %v536
        %561 = vmatprep.subr.bf16.mxu0 0
        %562 = vmatpush1.bf16.msra.mxu0 %v535
        %563 = vmatprep.subr.bf16.mxu0 0
        %564 = vmatpush1.bf16.msra.mxu0 %v534
        %565 = vmatprep.subr.bf16.mxu0 0
        %566 = vmatpush2.bf16.msra.mxu0 0
        %567 = vmatprep.subr.bf16.mxu0 0
        %568 = vmatpush2.bf16.msra.mxu0 0
        %569 = vmatprep.subr.bf16.mxu0 0
        %570 = vmatpush2.bf16.msra.mxu0 0
        %571 = vmatprep.subr.bf16.mxu0 0
        %572 = vmatpush2.bf16.msra.mxu0 0
        %573 = vmatprep.subr.bf16.mxu0 0
        %574 = vmatpush2.bf16.msra.mxu0 0
        %575 = vmatprep.subr.bf16.mxu0 0
        %576 = vmatpush2.bf16.msra.mxu0 0
        %577 = vmatprep.subr.bf16.mxu0 0
        %578 = vmatpush2.bf16.msra.mxu0 0
        %579 = vmatprep.subr.bf16.mxu0 0
        %580 = vmatpush2.bf16.msra.mxu0 0
        %581 = vmatprep.mubr.bf16.mxu0 0
        %582 = vmatmul.mubr.bf16.gmra.mxu0 %v544
        %v583 = vpop.f32.mrf.mxu0
        %v584 = vadd.f32 %v516, %v583
        %v585 = vpop.f32.mrf.mxu0
        %v586 = vpop.f32.mrf.mxu0
        %v587 = vadd.f32 %v516, %v586
        %v588 = vpop.f32.mrf.mxu0
        %589 = vmatprep.mubr.bf16.mxu0 0
        %590 = vmatmul.mubr.bf16.gmra.mxu0 %v547
        %v591 = vpop.f32.mrf.mxu0
        %v592 = vadd.f32 %v516, %v591
        %v593 = vpop.f32.mrf.mxu0
        %v594 = vpop.f32.mrf.mxu0
        %v595 = vadd.f32 %v516, %v594
        %v596 = vpop.f32.mrf.mxu0
        %597 = vdwg.mxu0
        %v598 = vlaneseq
        %v599 = vshrl.u32 %v598, 7
        %v600 = vadd.s32 %v599, 8
        %v601 = vadd.s32 %v599, 16
        %v602 = vadd.s32 %v599, 24
        %v603 = vadd.s32 %v599, 4294967293
        %v604 = vadd.s32 %v600, 4294967293
        %v605 = vadd.s32 %v601, 4294967293
        %v606 = vadd.s32 %v602, 4294967293
        %vm607 = vcmp.ge.s32.totalorder %v603, 0
        %vm608 = vcmp.ge.s32.totalorder %v604, 0
        %vm609 = vcmp.ge.s32.totalorder %v605, 0
        %vm610 = vcmp.ge.s32.totalorder %v606, 0
        %vm611 = vcmp.lt.s32.totalorder %v603, 32
        %vm612 = vcmp.lt.s32.totalorder %v604, 32
        %vm613 = vcmp.lt.s32.totalorder %v605, 32
        %vm614 = vcmp.lt.s32.totalorder %v606, 32
        %vm615 = vmand %vm607, %vm611
        %vm616 = vmand %vm608, %vm612
        %vm617 = vmand %vm609, %vm613
        %vm618 = vmand %vm610, %vm614
        %v619 = vsel %vm615, 1, 0
        %v620 = vsel %vm616, 1, 0
        %v621 = vsel %vm617, 1, 0
        %v622 = vsel %vm618, 1, 0
        %v623 = vcvt.s32.f32 %v619
        %v624 = vcvt.s32.f32 %v620
        %v625 = vcvt.s32.f32 %v621
        %v626 = vcvt.s32.f32 %v622
        %v627 = vadd.s32 %v599, 4294967294
        %v628 = vadd.s32 %v600, 4294967294
        %v629 = vadd.s32 %v601, 4294967294
        %v630 = vadd.s32 %v602, 4294967294
        %vm631 = vcmp.ge.s32.totalorder %v627, 0
        %vm632 = vcmp.ge.s32.totalorder %v628, 0
        %vm633 = vcmp.ge.s32.totalorder %v629, 0
        %vm634 = vcmp.ge.s32.totalorder %v630, 0
        %vm635 = vcmp.lt.s32.totalorder %v627, 32
        %vm636 = vcmp.lt.s32.totalorder %v628, 32
        %vm637 = vcmp.lt.s32.totalorder %v629, 32
        %vm638 = vcmp.lt.s32.totalorder %v630, 32
        %vm639 = vmand %vm631, %vm635
        %vm640 = vmand %vm632, %vm636
        %vm641 = vmand %vm633, %vm637
        %vm642 = vmand %vm634, %vm638
        %v643 = vsel %vm639, 1, 0
        %v644 = vsel %vm640, 1, 0
        %v645 = vsel %vm641, 1, 0
        %v646 = vsel %vm642, 1, 0
        %v647 = vcvt.s32.f32 %v643
        %v648 = vcvt.s32.f32 %v644
        %v649 = vcvt.s32.f32 %v645
        %v650 = vcvt.s32.f32 %v646
        %v651 = vadd.s32 %v599, 4294967295
        %v652 = vadd.s32 %v600, 4294967295
        %v653 = vadd.s32 %v601, 4294967295
        %v654 = vadd.s32 %v602, 4294967295
        %vm655 = vcmp.ge.s32.totalorder %v651, 0
        %vm656 = vcmp.ge.s32.totalorder %v652, 0
        %vm657 = vcmp.ge.s32.totalorder %v653, 0
        %vm658 = vcmp.ge.s32.totalorder %v654, 0
        %vm659 = vcmp.lt.s32.totalorder %v651, 32
        %vm660 = vcmp.lt.s32.totalorder %v652, 32
        %vm661 = vcmp.lt.s32.totalorder %v653, 32
        %vm662 = vcmp.lt.s32.totalorder %v654, 32
        %vm663 = vmand %vm655, %vm659
        %vm664 = vmand %vm656, %vm660
        %vm665 = vmand %vm657, %vm661
        %vm666 = vmand %vm658, %vm662
        %v667 = vsel %vm663, 1, 0
        %v668 = vsel %vm664, 1, 0
        %v669 = vsel %vm665, 1, 0
        %v670 = vsel %vm666, 1, 0
        %v671 = vcvt.s32.f32 %v667
        %v672 = vcvt.s32.f32 %v668
        %v673 = vcvt.s32.f32 %v669
        %v674 = vcvt.s32.f32 %v670
        %v675 = vadd.s32 %v599, 1
        %v676 = vadd.s32 %v600, 1
        %v677 = vadd.s32 %v601, 1
        %v678 = vadd.s32 %v602, 1
        %vm679 = vcmp.ge.s32.totalorder %v675, 0
        %vm680 = vcmp.ge.s32.totalorder %v676, 0
        %vm681 = vcmp.ge.s32.totalorder %v677, 0
        %vm682 = vcmp.ge.s32.totalorder %v678, 0
        %vm683 = vcmp.lt.s32.totalorder %v675, 32
        %vm684 = vcmp.lt.s32.totalorder %v676, 32
        %vm685 = vcmp.lt.s32.totalorder %v677, 32
        %vm686 = vcmp.lt.s32.totalorder %v678, 32
        %vm687 = vmand %vm679, %vm683
        %vm688 = vmand %vm680, %vm684
        %vm689 = vmand %vm681, %vm685
        %vm690 = vmand %vm682, %vm686
        %v691 = vsel %vm687, 1, 0
        %v692 = vsel %vm688, 1, 0
        %v693 = vsel %vm689, 1, 0
        %v694 = vsel %vm690, 1, 0
        %v695 = vcvt.s32.f32 %v691
        %v696 = vcvt.s32.f32 %v692
        %v697 = vcvt.s32.f32 %v693
        %v698 = vcvt.s32.f32 %v694
        %v699 = vadd.s32 %v599, 2
        %v700 = vadd.s32 %v600, 2
        %v701 = vadd.s32 %v601, 2
        %v702 = vadd.s32 %v602, 2
        %vm703 = vcmp.ge.s32.totalorder %v699, 0
        %vm704 = vcmp.ge.s32.totalorder %v700, 0
        %vm705 = vcmp.ge.s32.totalorder %v701, 0
        %vm706 = vcmp.ge.s32.totalorder %v702, 0
        %vm707 = vcmp.lt.s32.totalorder %v699, 32
        %vm708 = vcmp.lt.s32.totalorder %v700, 32
        %vm709 = vcmp.lt.s32.totalorder %v701, 32
        %vm710 = vcmp.lt.s32.totalorder %v702, 32
        %vm711 = vmand %vm703, %vm707
        %vm712 = vmand %vm704, %vm708
        %vm713 = vmand %vm705, %vm709
        %vm714 = vmand %vm706, %vm710
        %v715 = vsel %vm711, 1, 0
        %v716 = vsel %vm712, 1, 0
        %v717 = vsel %vm713, 1, 0
        %v718 = vsel %vm714, 1, 0
        %v719 = vcvt.s32.f32 %v715
        %v720 = vcvt.s32.f32 %v716
        %v721 = vcvt.s32.f32 %v717
        %v722 = vcvt.s32.f32 %v718
        %v723 = vadd.s32 %v599, 3
        %v724 = vadd.s32 %v600, 3
        %v725 = vadd.s32 %v601, 3
        %v726 = vadd.s32 %v602, 3
        %vm727 = vcmp.ge.s32.totalorder %v723, 0
        %vm728 = vcmp.ge.s32.totalorder %v724, 0
        %vm729 = vcmp.ge.s32.totalorder %v725, 0
        %vm730 = vcmp.ge.s32.totalorder %v726, 0
        %vm731 = vcmp.lt.s32.totalorder %v723, 32
        %vm732 = vcmp.lt.s32.totalorder %v724, 32
        %vm733 = vcmp.lt.s32.totalorder %v725, 32
        %vm734 = vcmp.lt.s32.totalorder %v726, 32
        %vm735 = vmand %vm727, %vm731
        %vm736 = vmand %vm728, %vm732
        %vm737 = vmand %vm729, %vm733
        %vm738 = vmand %vm730, %vm734
        %v739 = vsel %vm735, 1, 0
        %v740 = vsel %vm736, 1, 0
        %v741 = vsel %vm737, 1, 0
        %v742 = vsel %vm738, 1, 0
        %v743 = vcvt.s32.f32 %v739
        %v744 = vcvt.s32.f32 %v740
        %v745 = vcvt.s32.f32 %v741
        %v746 = vcvt.s32.f32 %v742
        %v747 = vld [vmem:[#allocation2 + $0x3] sm:$0x1]
        %v748 = vlaneseq
        %v749 = vshrl.u32 %v748, 7
        %v750 = vsub.s32 0, %v749
        %v751 = vrot.slane %v747, %v750
        %v752 = vmul.f32 %v584, %v751
        %v753 = vmul.f32 %v587, %v751
        %v754 = vmul.f32 %v592, %v751
        %v755 = vmul.f32 %v595, %v751
        %v756 = vrot.slane %v584, 5
        %v757 = vrot.slane %v587, 5
        %v758 = vrot.slane %v592, 5
        %v759 = vrot.slane %v595, 5
        %vm760 = vcmp.lt.s32.totalorder %v599, 3
        %v761 = vsel %vm760, %v758, %v759
        %v762 = vsel %vm760, %v757, %v758
        %v763 = vsel %vm760, %v756, %v757
        %v764 = vsel %vm760, %v759, %v756
        %v765 = vmul.f32 %v764, %v623
        %v766 = vmul.f32 %v763, %v624
        %v767 = vmul.f32 %v762, %v625
        %v768 = vmul.f32 %v761, %v626
        %v769 = vld [vmem:[#allocation2] sm:$0x1]
        %v770 = vlaneseq
        %v771 = vshrl.u32 %v770, 7
        %v772 = vsub.s32 0, %v771
        %v773 = vrot.slane %v769, %v772
        %v774 = vmul.f32 %v765, %v773
        %v775 = vmul.f32 %v766, %v773
        %v776 = vmul.f32 %v767, %v773
        %v777 = vmul.f32 %v768, %v773
        %v778 = vadd.f32 %v752, %v774
        %v779 = vadd.f32 %v753, %v775
        %v780 = vadd.f32 %v754, %v776
        %v781 = vadd.f32 %v755, %v777
        %v782 = vrot.slane %v584, 6
        %v783 = vrot.slane %v587, 6
        %v784 = vrot.slane %v592, 6
        %v785 = vrot.slane %v595, 6
        %vm786 = vcmp.lt.s32.totalorder %v599, 2
        %v787 = vsel %vm786, %v784, %v785
        %v788 = vsel %vm786, %v783, %v784
        %v789 = vsel %vm786, %v782, %v783
        %v790 = vsel %vm786, %v785, %v782
        %v791 = vmul.f32 %v790, %v647
        %v792 = vmul.f32 %v789, %v648
        %v793 = vmul.f32 %v788, %v649
        %v794 = vmul.f32 %v787, %v650
        %v795 = vld [vmem:[#allocation2 + $0x1] sm:$0x1]
        %v796 = vlaneseq
        %v797 = vshrl.u32 %v796, 7
        %v798 = vsub.s32 0, %v797
        %v799 = vrot.slane %v795, %v798
        %v800 = vmul.f32 %v791, %v799
        %v801 = vmul.f32 %v792, %v799
        %v802 = vmul.f32 %v793, %v799
        %v803 = vmul.f32 %v794, %v799
        %v804 = vadd.f32 %v778, %v800
        %v805 = vadd.f32 %v779, %v801
        %v806 = vadd.f32 %v780, %v802
        %v807 = vadd.f32 %v781, %v803
        %v808 = vrot.slane %v584, 7
        %v809 = vrot.slane %v587, 7
        %v810 = vrot.slane %v592, 7
        %v811 = vrot.slane %v595, 7
        %vm812 = vcmp.lt.s32.totalorder %v599, 1
        %v813 = vsel %vm812, %v810, %v811
        %v814 = vsel %vm812, %v809, %v810
        %v815 = vsel %vm812, %v808, %v809
        %v816 = vsel %vm812, %v811, %v808
        %v817 = vmul.f32 %v816, %v671
        %v818 = vmul.f32 %v815, %v672
        %v819 = vmul.f32 %v814, %v673
        %v820 = vmul.f32 %v813, %v674
        %v821 = vld [vmem:[#allocation2 + $0x2] sm:$0x1]
        %v822 = vlaneseq
        %v823 = vshrl.u32 %v822, 7
        %v824 = vsub.s32 0, %v823
        %v825 = vrot.slane %v821, %v824
        %v826 = vmul.f32 %v817, %v825
        %v827 = vmul.f32 %v818, %v825
        %v828 = vmul.f32 %v819, %v825
        %v829 = vmul.f32 %v820, %v825
        %v830 = vadd.f32 %v804, %v826
        %v831 = vadd.f32 %v805, %v827
        %v832 = vadd.f32 %v806, %v828
        %v833 = vadd.f32 %v807, %v829
        %v834 = vrot.slane %v584, 1
        %v835 = vrot.slane %v587, 1
        %v836 = vrot.slane %v592, 1
        %v837 = vrot.slane %v595, 1
        %vm838 = vcmp.lt.s32.totalorder %v599, 7
        %v839 = vsel %vm838, %v836, %v837
        %v840 = vsel %vm838, %v835, %v836
        %v841 = vsel %vm838, %v834, %v835
        %v842 = vsel %vm838, %v837, %v834
        %v843 = vmul.f32 %v841, %v695
        %v844 = vmul.f32 %v840, %v696
        %v845 = vmul.f32 %v839, %v697
        %v846 = vmul.f32 %v842, %v698
        %v847 = vld [vmem:[#allocation2 + $0x4] sm:$0x1]
        %v848 = vlaneseq
        %v849 = vshrl.u32 %v848, 7
        %v850 = vsub.s32 0, %v849
        %v851 = vrot.slane %v847, %v850
        %v852 = vmul.f32 %v843, %v851
        %v853 = vmul.f32 %v844, %v851
        %v854 = vmul.f32 %v845, %v851
        %v855 = vmul.f32 %v846, %v851
        %v856 = vadd.f32 %v830, %v852
        %v857 = vadd.f32 %v831, %v853
        %v858 = vadd.f32 %v832, %v854
        %v859 = vadd.f32 %v833, %v855
        %v860 = vrot.slane %v584, 2
        %v861 = vrot.slane %v587, 2
        %v862 = vrot.slane %v592, 2
        %v863 = vrot.slane %v595, 2
        %vm864 = vcmp.lt.s32.totalorder %v599, 6
        %v865 = vsel %vm864, %v862, %v863
        %v866 = vsel %vm864, %v861, %v862
        %v867 = vsel %vm864, %v860, %v861
        %v868 = vsel %vm864, %v863, %v860
        %v869 = vmul.f32 %v867, %v719
        %v870 = vmul.f32 %v866, %v720
        %v871 = vmul.f32 %v865, %v721
        %v872 = vmul.f32 %v868, %v722
        %v873 = vld [vmem:[#allocation2 + $0x5] sm:$0x1]
        %v874 = vlaneseq
        %v875 = vshrl.u32 %v874, 7
        %v876 = vsub.s32 0, %v875
        %v877 = vrot.slane %v873, %v876
        %v878 = vmul.f32 %v869, %v877
        %v879 = vmul.f32 %v870, %v877
        %v880 = vmul.f32 %v871, %v877
        %v881 = vmul.f32 %v872, %v877
        %v882 = vadd.f32 %v856, %v878
        %v883 = vadd.f32 %v857, %v879
        %v884 = vadd.f32 %v858, %v880
        %v885 = vadd.f32 %v859, %v881
        %v886 = vrot.slane %v584, 3
        %v887 = vrot.slane %v587, 3
        %v888 = vrot.slane %v592, 3
        %v889 = vrot.slane %v595, 3
        %vm890 = vcmp.lt.s32.totalorder %v599, 5
        %v891 = vsel %vm890, %v888, %v889
        %v892 = vsel %vm890, %v887, %v888
        %v893 = vsel %vm890, %v886, %v887
        %v894 = vsel %vm890, %v889, %v886
        %v895 = vmul.f32 %v893, %v743
        %v896 = vmul.f32 %v892, %v744
        %v897 = vmul.f32 %v891, %v745
        %v898 = vmul.f32 %v894, %v746
        %v899 = vld [vmem:[#allocation2 + $0x6] sm:$0x1]
        %v900 = vlaneseq
        %v901 = vshrl.u32 %v900, 7
        %v902 = vsub.s32 0, %v901
        %v903 = vrot.slane %v899, %v902
        %v904 = vmul.f32 %v895, %v903
        %v905 = vmul.f32 %v896, %v903
        %v906 = vmul.f32 %v897, %v903
        %v907 = vmul.f32 %v898, %v903
        %v908 = vadd.f32 %v882, %v904
        %v909 = vadd.f32 %v883, %v905
        %v910 = vadd.f32 %v884, %v906
        %v911 = vadd.f32 %v885, %v907
        %v912 = vld [vmem:[%s4] sm:$0x1]
        %v914 = vlaneseq
        %v915 = vshrl.u32 %v914, 7
        %v916 = vsub.s32 0, %v915
        %v917 = vrot.slane %v912, %v916
        %v919 = vadd.f32 %v908, %v917
        %v920 = vadd.f32 %v909, %v917
        %v921 = vadd.f32 %v910, %v917
        %v922 = vadd.f32 %v911, %v917
        %v923 = vld [vmem:[%s5] sm:$0x1]
        %v924 = vld [vmem:[%s6] sm:$0x1]
        %v925 = vsel %vm542, %v919, 0.0
        %926 = vadd.xlane.f32.xlu0 %v925
        %v927 = vpop.xlane.xlu0 %926
        %v928 = vsel %vm542, %v920, 0.0
        %929 = vadd.xlane.f32.xlu0 %v928
        %v930 = vpop.xlane.xlu0 %929
        %v931 = vsel %vm542, %v921, 0.0
        %932 = vadd.xlane.f32.xlu0 %v931
        %v933 = vpop.xlane.xlu0 %932
        %v934 = vsel %vm542, %v922, 0.0
        %935 = vadd.xlane.f32.xlu0 %v934
        %v936 = vpop.xlane.xlu0 %935
        %v937 = vrcp.pop 64.0
        %v938 = vmul.f32 %v927, %v937
        %v939 = vmul.f32 %v930, %v937
        %v940 = vmul.f32 %v933, %v937
        %v941 = vmul.f32 %v936, %v937
        %v942 = vsub.f32 %v919, %v938
        %v943 = vsub.f32 %v920, %v939
        %v944 = vsub.f32 %v921, %v940
        %v945 = vsub.f32 %v922, %v941
        %v946 = vmul.f32 %v942, %v942
        %v947 = vmul.f32 %v943, %v943
        %v948 = vmul.f32 %v944, %v944
        %v949 = vmul.f32 %v945, %v945
        %v950 = vsel %vm542, %v946, 0.0
        %951 = vadd.xlane.f32.xlu0 %v950
        %v952 = vpop.xlane.xlu0 %951
        %v953 = vsel %vm542, %v947, 0.0
        %954 = vadd.xlane.f32.xlu0 %v953
        %v955 = vpop.xlane.xlu0 %954
        %v956 = vsel %vm542, %v948, 0.0
        %957 = vadd.xlane.f32.xlu0 %v956
        %v958 = vpop.xlane.xlu0 %957
        %v959 = vsel %vm542, %v949, 0.0
        %960 = vadd.xlane.f32.xlu0 %v959
        %v961 = vpop.xlane.xlu0 %960
        %v962 = vmul.f32 %v952, %v937
        %v963 = vmul.f32 %v955, %v937
        %v964 = vmul.f32 %v958, %v937
        %v965 = vmul.f32 %v961, %v937
        %v966 = vadd.f32 %v962, 1e-05
        %v967 = vadd.f32 %v963, 1e-05
        %v968 = vadd.f32 %v964, 1e-05
        %v969 = vadd.f32 %v965, 1e-05
        %v970 = vrsqrt.pop %v966
        %v971 = vrsqrt.pop %v967
        %v972 = vrsqrt.pop %v968
        %v973 = vrsqrt.pop %v969
        %v974 = vmul.f32 %v942, %v970
        %v975 = vmul.f32 %v943, %v971
        %v976 = vmul.f32 %v944, %v972
        %v977 = vmul.f32 %v945, %v973
        %v979 = vlaneseq
        %v980 = vshrl.u32 %v979, 7
        %v981 = vsub.s32 0, %v980
        %v982 = vrot.slane %v923, %v981
        %v984 = vmul.f32 %v974, %v982
        %v985 = vmul.f32 %v975, %v982
        %v986 = vmul.f32 %v976, %v982
        %v987 = vmul.f32 %v977, %v982
        %v989 = vlaneseq
        %v990 = vshrl.u32 %v989, 7
        %v991 = vsub.s32 0, %v990
        %v992 = vrot.slane %v924, %v991
        %v994 = vadd.f32 %v984, %v992
        %v995 = vadd.f32 %v985, %v992
        %v996 = vadd.f32 %v986, %v992
        %v997 = vadd.f32 %v987, %v992
        %v998 = vpack.c.bf16 %v995, %v994
        %v999 = vpack.c.bf16 %v997, %v996
        %v1000 = vld [vmem:[#allocation4] sm:$0xff]
        %v1001 = vld [vmem:[#allocation4 + $0x8] sm:$0xff]
        %v1002 = vld [vmem:[#allocation4 + $0x10] sm:$0xff]
        %v1003 = vld [vmem:[#allocation4 + $0x18] sm:$0xff]
        %v1004 = vld [vmem:[#allocation4 + $0x20] sm:$0xff]
        %v1005 = vld [vmem:[#allocation4 + $0x28] sm:$0xff]
        %v1006 = vld [vmem:[#allocation4 + $0x30] sm:$0xff]
        %v1007 = vld [vmem:[#allocation4 + $0x38] sm:$0xff]
        %v1008 = vld [vmem:[%s8] sm:$0x3]
        %v1010 = vlaneseq
        %v1011 = vshrl.u32 %v1010, 7
        %v1012 = vsub.s32 0, %v1011
        %v1013 = vrot.slane %v1008, %v1012
        %v1014 = vlaneseq
        %v1015 = vshrl.u32 %v1014, 7
        %v1016 = vsub.s32 1, %v1015
        %v1017 = vrot.slane %v1008, %v1016
        %v1028 = vunpack.c.l.b16 %v1000
        %v1029 = vunpack.c.h.b16 %v1000
        %v1030 = vunpack.c.l.b16 %v1001
        %v1031 = vunpack.c.h.b16 %v1001
        %v1032 = vunpack.c.l.b16 %v1002
        %v1033 = vunpack.c.h.b16 %v1002
        %v1034 = vunpack.c.l.b16 %v1003
        %v1035 = vunpack.c.h.b16 %v1003
        %v1036 = vunpack.c.l.b16 %v1004
        %v1037 = vunpack.c.h.b16 %v1004
        %v1038 = vunpack.c.l.b16 %v1005
        %v1039 = vunpack.c.h.b16 %v1005
        %v1040 = vunpack.c.l.b16 %v1006
        %v1041 = vunpack.c.h.b16 %v1006
        %v1042 = vunpack.c.l.b16 %v1007
        %v1043 = vunpack.c.h.b16 %v1007
        %v1044 = vpack.c.b16 %v1030, %v1028
        %v1045 = vpack.c.b16 %v1031, %v1029
        %v1046 = vpack.c.b16 %v1034, %v1032
        %v1047 = vpack.c.b16 %v1035, %v1033
        %v1048 = vpack.c.b16 %v1038, %v1036
        %v1049 = vpack.c.b16 %v1039, %v1037
        %v1050 = vpack.c.b16 %v1042, %v1040
        %v1051 = vpack.c.b16 %v1043, %v1041
        %v1061 = vsel %vm542, %v998, 0
        %v1064 = vsel %vm542, %v999, 0
        %1066 = vmatprep.subr.bf16.mxu0 0
        %1067 = vmatpush1.bf16.msra.mxu0 0
        %1068 = vmatprep.subr.bf16.mxu0 0
        %1069 = vmatpush1.bf16.msra.mxu0 0
        %1070 = vmatprep.subr.bf16.mxu0 0
        %1071 = vmatpush1.bf16.msra.mxu0 0
        %1072 = vmatprep.subr.bf16.mxu0 0
        %1073 = vmatpush1.bf16.msra.mxu0 0
        %1074 = vmatprep.subr.bf16.mxu0 %v1051
        %1075 = vmatpush1.bf16.msra.mxu0 %v1050
        %1076 = vmatprep.subr.bf16.mxu0 %v1049
        %1077 = vmatpush1.bf16.msra.mxu0 %v1048
        %1078 = vmatprep.subr.bf16.mxu0 %v1047
        %1079 = vmatpush1.bf16.msra.mxu0 %v1046
        %1080 = vmatprep.subr.bf16.mxu0 %v1045
        %1081 = vmatpush1.bf16.msra.mxu0 %v1044
        %1082 = vmatprep.subr.bf16.mxu0 0
        %1083 = vmatpush2.bf16.msra.mxu0 0
        %1084 = vmatprep.subr.bf16.mxu0 0
        %1085 = vmatpush2.bf16.msra.mxu0 0
        %1086 = vmatprep.subr.bf16.mxu0 0
        %1087 = vmatpush2.bf16.msra.mxu0 0
        %1088 = vmatprep.subr.bf16.mxu0 0
        %1089 = vmatpush2.bf16.msra.mxu0 0
        %1090 = vmatprep.subr.bf16.mxu0 0
        %1091 = vmatpush2.bf16.msra.mxu0 0
        %1092 = vmatprep.subr.bf16.mxu0 0
        %1093 = vmatpush2.bf16.msra.mxu0 0
        %1094 = vmatprep.subr.bf16.mxu0 0
        %1095 = vmatpush2.bf16.msra.mxu0 0
        %1096 = vmatprep.subr.bf16.mxu0 0
        %1097 = vmatpush2.bf16.msra.mxu0 0
        %1098 = vmatprep.mubr.bf16.mxu0 0
        %1099 = vmatmul.mubr.bf16.gmra.mxu0 %v1061
        %v1100 = vpop.f32.mrf.mxu0
        %v1101 = vadd.f32 %v1013, %v1100
        %v1102 = vpop.f32.mrf.mxu0
        %v1103 = vadd.f32 %v1017, %v1102
        %v1104 = vpop.f32.mrf.mxu0
        %v1105 = vadd.f32 %v1013, %v1104
        %v1106 = vpop.f32.mrf.mxu0
        %v1107 = vadd.f32 %v1017, %v1106
        %1108 = vmatprep.mubr.bf16.mxu0 0
        %1109 = vmatmul.mubr.bf16.gmra.mxu0 %v1064
        %v1110 = vpop.f32.mrf.mxu0
        %v1111 = vadd.f32 %v1013, %v1110
        %v1112 = vpop.f32.mrf.mxu0
        %v1113 = vadd.f32 %v1017, %v1112
        %v1114 = vpop.f32.mrf.mxu0
        %v1115 = vadd.f32 %v1013, %v1114
        %v1116 = vpop.f32.mrf.mxu0
        %v1117 = vadd.f32 %v1017, %v1116
        %1118 = vdwg.mxu0
        %v1119 = vmul.f32 %v1101, 0.5
        %v1120 = vmul.f32 %v1103, 0.5
        %v1121 = vmul.f32 %v1105, 0.5
        %v1122 = vmul.f32 %v1107, 0.5
        %v1123 = vmul.f32 %v1111, 0.5
        %v1124 = vmul.f32 %v1113, 0.5
        %v1125 = vmul.f32 %v1115, 0.5
        %v1126 = vmul.f32 %v1117, 0.5
        %v1127 = vmul.f32 %v1101, 0.70710677
        %v1128 = vmul.f32 %v1103, 0.70710677
        %v1129 = vmul.f32 %v1105, 0.70710677
        %v1130 = vmul.f32 %v1107, 0.70710677
        %v1131 = vmul.f32 %v1111, 0.70710677
        %v1132 = vmul.f32 %v1113, 0.70710677
        %v1133 = vmul.f32 %v1115, 0.70710677
        %v1134 = vmul.f32 %v1117, 0.70710677
        %v1135 = verf.f32.pop %v1127
        %v1136 = verf.f32.pop %v1128
        %v1137 = verf.f32.pop %v1129
        %v1138 = verf.f32.pop %v1130
        %v1139 = verf.f32.pop %v1131
        %v1140 = verf.f32.pop %v1132
        %v1141 = verf.f32.pop %v1133
        %v1142 = verf.f32.pop %v1134
        %v1143 = vadd.f32 %v1135, 1.0
        %v1144 = vadd.f32 %v1136, 1.0
        %v1145 = vadd.f32 %v1137, 1.0
        %v1146 = vadd.f32 %v1138, 1.0
        %v1147 = vadd.f32 %v1139, 1.0
        %v1148 = vadd.f32 %v1140, 1.0
        %v1149 = vadd.f32 %v1141, 1.0
        %v1150 = vadd.f32 %v1142, 1.0
        %v1151 = vmul.f32 %v1119, %v1143
        %v1152 = vmul.f32 %v1120, %v1144
        %v1153 = vmul.f32 %v1121, %v1145
        %v1154 = vmul.f32 %v1122, %v1146
        %v1155 = vmul.f32 %v1123, %v1147
        %v1156 = vmul.f32 %v1124, %v1148
        %v1157 = vmul.f32 %v1125, %v1149
        %v1158 = vmul.f32 %v1126, %v1150
        %v1159 = vpack.c.bf16 %v1153, %v1151
        %v1160 = vpack.c.bf16 %v1154, %v1152
        %v1161 = vpack.c.bf16 %v1157, %v1155
        %v1162 = vpack.c.bf16 %v1158, %v1156
        %v1163 = vld [vmem:[%s9] sm:$0xf]
        %v1164 = vld [vmem:[%s9 + $0x4] sm:$0xf]
        %v1165 = vld [vmem:[%s9 + $0x8] sm:$0xf]
        %v1166 = vld [vmem:[%s9 + $0xc] sm:$0xf]
        %v1167 = vld [vmem:[%s9 + $0x10] sm:$0xf]
        %v1168 = vld [vmem:[%s9 + $0x14] sm:$0xf]
        %v1169 = vld [vmem:[%s9 + $0x18] sm:$0xf]
        %v1170 = vld [vmem:[%s9 + $0x1c] sm:$0xf]
        %v1171 = vld [vmem:[%s9 + $0x20] sm:$0xf]
        %v1172 = vld [vmem:[%s9 + $0x24] sm:$0xf]
        %v1173 = vld [vmem:[%s9 + $0x28] sm:$0xf]
        %v1174 = vld [vmem:[%s9 + $0x2c] sm:$0xf]
        %v1175 = vld [vmem:[%s9 + $0x30] sm:$0xf]
        %v1176 = vld [vmem:[%s9 + $0x34] sm:$0xf]
        %v1177 = vld [vmem:[%s9 + $0x38] sm:$0xf]
        %v1178 = vld [vmem:[%s9 + $0x3c] sm:$0xf]
        %v1179 = vld [vmem:[%s9 + $0x40] sm:$0xf]
        %v1180 = vld [vmem:[%s9 + $0x44] sm:$0xf]
        %v1181 = vld [vmem:[%s9 + $0x48] sm:$0xf]
        %v1182 = vld [vmem:[%s9 + $0x4c] sm:$0xf]
        %v1183 = vld [vmem:[%s9 + $0x50] sm:$0xf]
        %v1184 = vld [vmem:[%s9 + $0x54] sm:$0xf]
        %v1185 = vld [vmem:[%s9 + $0x58] sm:$0xf]
        %v1186 = vld [vmem:[%s9 + $0x5c] sm:$0xf]
        %v1187 = vld [vmem:[%s9 + $0x60] sm:$0xf]
        %v1188 = vld [vmem:[%s9 + $0x64] sm:$0xf]
        %v1189 = vld [vmem:[%s9 + $0x68] sm:$0xf]
        %v1190 = vld [vmem:[%s9 + $0x6c] sm:$0xf]
        %v1191 = vld [vmem:[%s9 + $0x70] sm:$0xf]
        %v1192 = vld [vmem:[%s9 + $0x74] sm:$0xf]
        %v1193 = vld [vmem:[%s9 + $0x78] sm:$0xf]
        %v1194 = vld [vmem:[%s9 + $0x7c] sm:$0xf]
        %v1195 = vld [vmem:[%s10] sm:$0x1]
        %v1197 = vlaneseq
        %v1198 = vshrl.u32 %v1197, 7
        %v1199 = vsub.s32 0, %v1198
        %v1200 = vrot.slane %v1195, %v1199
        %v1234 = vunpack.c.l.b16 %v1163
        %v1235 = vunpack.c.l.b16 %v1164
        %v1236 = vunpack.c.l.b16 %v1165
        %v1237 = vunpack.c.l.b16 %v1166
        %v1238 = vunpack.c.l.b16 %v1167
        %v1239 = vunpack.c.l.b16 %v1168
        %v1240 = vunpack.c.l.b16 %v1169
        %v1241 = vunpack.c.l.b16 %v1170
        %v1242 = vunpack.c.l.b16 %v1171
        %v1243 = vunpack.c.l.b16 %v1172
        %v1244 = vunpack.c.l.b16 %v1173
        %v1245 = vunpack.c.l.b16 %v1174
        %v1246 = vunpack.c.l.b16 %v1175
        %v1247 = vunpack.c.l.b16 %v1176
        %v1248 = vunpack.c.l.b16 %v1177
        %v1249 = vunpack.c.l.b16 %v1178
        %v1250 = vunpack.c.l.b16 %v1179
        %v1251 = vunpack.c.l.b16 %v1180
        %v1252 = vunpack.c.l.b16 %v1181
        %v1253 = vunpack.c.l.b16 %v1182
        %v1254 = vunpack.c.l.b16 %v1183
        %v1255 = vunpack.c.l.b16 %v1184
        %v1256 = vunpack.c.l.b16 %v1185
        %v1257 = vunpack.c.l.b16 %v1186
        %v1258 = vunpack.c.l.b16 %v1187
        %v1259 = vunpack.c.l.b16 %v1188
        %v1260 = vunpack.c.l.b16 %v1189
        %v1261 = vunpack.c.l.b16 %v1190
        %v1262 = vunpack.c.l.b16 %v1191
        %v1263 = vunpack.c.l.b16 %v1192
        %v1264 = vunpack.c.l.b16 %v1193
        %v1265 = vunpack.c.l.b16 %v1194
        %v1266 = vpack.c.b16 %v1235, %v1234
        %v1267 = vpack.c.b16 %v1237, %v1236
        %v1268 = vpack.c.b16 %v1239, %v1238
        %v1269 = vpack.c.b16 %v1241, %v1240
        %v1270 = vpack.c.b16 %v1243, %v1242
        %v1271 = vpack.c.b16 %v1245, %v1244
        %v1272 = vpack.c.b16 %v1247, %v1246
        %v1273 = vpack.c.b16 %v1249, %v1248
        %v1274 = vpack.c.b16 %v1251, %v1250
        %v1275 = vpack.c.b16 %v1253, %v1252
        %v1276 = vpack.c.b16 %v1255, %v1254
        %v1277 = vpack.c.b16 %v1257, %v1256
        %v1278 = vpack.c.b16 %v1259, %v1258
        %v1279 = vpack.c.b16 %v1261, %v1260
        %v1280 = vpack.c.b16 %v1263, %v1262
        %v1281 = vpack.c.b16 %v1265, %v1264
        %1298 = vmatprep.subr.bf16.mxu0 0
        %1299 = vmatpush1.bf16.msra.mxu0 %v1273
        %1300 = vmatprep.subr.bf16.mxu0 0
        %1301 = vmatpush1.bf16.msra.mxu0 %v1272
        %1302 = vmatprep.subr.bf16.mxu0 0
        %1303 = vmatpush1.bf16.msra.mxu0 %v1271
        %1304 = vmatprep.subr.bf16.mxu0 0
        %1305 = vmatpush1.bf16.msra.mxu0 %v1270
        %1306 = vmatprep.subr.bf16.mxu0 0
        %1307 = vmatpush1.bf16.msra.mxu0 %v1269
        %1308 = vmatprep.subr.bf16.mxu0 0
        %1309 = vmatpush1.bf16.msra.mxu0 %v1268
        %1310 = vmatprep.subr.bf16.mxu0 0
        %1311 = vmatpush1.bf16.msra.mxu0 %v1267
        %1312 = vmatprep.subr.bf16.mxu0 0
        %1313 = vmatpush1.bf16.msra.mxu0 %v1266
        %1314 = vmatprep.subr.bf16.mxu0 0
        %1315 = vmatpush2.bf16.msra.mxu0 %v1281
        %1316 = vmatprep.subr.bf16.mxu0 0
        %1317 = vmatpush2.bf16.msra.mxu0 %v1280
        %1318 = vmatprep.subr.bf16.mxu0 0
        %1319 = vmatpush2.bf16.msra.mxu0 %v1279
        %1320 = vmatprep.subr.bf16.mxu0 0
        %1321 = vmatpush2.bf16.msra.mxu0 %v1278
        %1322 = vmatprep.subr.bf16.mxu0 0
        %1323 = vmatpush2.bf16.msra.mxu0 %v1277
        %1324 = vmatprep.subr.bf16.mxu0 0
        %1325 = vmatpush2.bf16.msra.mxu0 %v1276
        %1326 = vmatprep.subr.bf16.mxu0 0
        %1327 = vmatpush2.bf16.msra.mxu0 %v1275
        %1328 = vmatprep.subr.bf16.mxu0 0
        %1329 = vmatpush2.bf16.msra.mxu0 %v1274
        %1330 = vmatprep.mubr.bf16.mxu0 %v1160
        %1331 = vmatmul.mubr.bf16.gmra.mxu0 %v1159
        %v1332 = vpop.f32.mrf.mxu0
        %v1333 = vadd.f32 %v1200, %v1332
        %v1334 = vpop.f32.mrf.mxu0
        %v1335 = vpop.f32.mrf.mxu0
        %v1336 = vadd.f32 %v1200, %v1335
        %v1337 = vpop.f32.mrf.mxu0
        %1338 = vmatprep.mubr.bf16.mxu0 %v1162
        %1339 = vmatmul.mubr.bf16.gmra.mxu0 %v1161
        %v1340 = vpop.f32.mrf.mxu0
        %v1341 = vadd.f32 %v1200, %v1340
        %v1342 = vpop.f32.mrf.mxu0
        %v1343 = vpop.f32.mrf.mxu0
        %v1344 = vadd.f32 %v1200, %v1343
        %v1345 = vpop.f32.mrf.mxu0
        %1346 = vdwg.mxu0
        %v1347 = vld [vmem:[%s11] sm:$0x1]
        %v1349 = vlaneseq
        %v1350 = vshrl.u32 %v1349, 7
        %v1351 = vsub.s32 0, %v1350
        %v1352 = vrot.slane %v1347, %v1351
        %v1354 = vmul.f32 %v1352, %v1333
        %v1355 = vmul.f32 %v1352, %v1336
        %v1356 = vmul.f32 %v1352, %v1341
        %v1357 = vmul.f32 %v1352, %v1344
        %v1358 = vadd.f32 %v584, %v1354
        %v1359 = vadd.f32 %v587, %v1355
        %v1360 = vadd.f32 %v592, %v1356
        %v1361 = vadd.f32 %v595, %v1357
        %v1362 = vld [vmem:[%s12] sm:$0x1]
        %v1363 = vld [vmem:[%s13] sm:$0x1]
        %v1364 = vsel %vm542, %v1358, 0.0
        %1365 = vadd.xlane.f32.xlu0 %v1364
        %v1366 = vpop.xlane.xlu0 %1365
        %v1367 = vsel %vm542, %v1359, 0.0
        %1368 = vadd.xlane.f32.xlu0 %v1367
        %v1369 = vpop.xlane.xlu0 %1368
        %v1370 = vsel %vm542, %v1360, 0.0
        %1371 = vadd.xlane.f32.xlu0 %v1370
        %v1372 = vpop.xlane.xlu0 %1371
        %v1373 = vsel %vm542, %v1361, 0.0
        %1374 = vadd.xlane.f32.xlu0 %v1373
        %v1375 = vpop.xlane.xlu0 %1374
        %v1376 = vmul.f32 %v1366, %v937
        %v1377 = vmul.f32 %v1369, %v937
        %v1378 = vmul.f32 %v1372, %v937
        %v1379 = vmul.f32 %v1375, %v937
        %v1380 = vsub.f32 %v1358, %v1376
        %v1381 = vsub.f32 %v1359, %v1377
        %v1382 = vsub.f32 %v1360, %v1378
        %v1383 = vsub.f32 %v1361, %v1379
        %v1384 = vmul.f32 %v1380, %v1380
        %v1385 = vmul.f32 %v1381, %v1381
        %v1386 = vmul.f32 %v1382, %v1382
        %v1387 = vmul.f32 %v1383, %v1383
        %v1388 = vsel %vm542, %v1384, 0.0
        %1389 = vadd.xlane.f32.xlu0 %v1388
        %v1390 = vpop.xlane.xlu0 %1389
        %v1391 = vsel %vm542, %v1385, 0.0
        %1392 = vadd.xlane.f32.xlu0 %v1391
        %v1393 = vpop.xlane.xlu0 %1392
        %v1394 = vsel %vm542, %v1386, 0.0
        %1395 = vadd.xlane.f32.xlu0 %v1394
        %v1396 = vpop.xlane.xlu0 %1395
        %v1397 = vsel %vm542, %v1387, 0.0
        %1398 = vadd.xlane.f32.xlu0 %v1397
        %v1399 = vpop.xlane.xlu0 %1398
        %v1400 = vmul.f32 %v1390, %v937
        %v1401 = vmul.f32 %v1393, %v937
        %v1402 = vmul.f32 %v1396, %v937
        %v1403 = vmul.f32 %v1399, %v937
        %v1404 = vadd.f32 %v1400, 1e-05
        %v1405 = vadd.f32 %v1401, 1e-05
        %v1406 = vadd.f32 %v1402, 1e-05
        %v1407 = vadd.f32 %v1403, 1e-05
        %v1408 = vrsqrt.pop %v1404
        %v1409 = vrsqrt.pop %v1405
        %v1410 = vrsqrt.pop %v1406
        %v1411 = vrsqrt.pop %v1407
        %v1412 = vmul.f32 %v1380, %v1408
        %v1413 = vmul.f32 %v1381, %v1409
        %v1414 = vmul.f32 %v1382, %v1410
        %v1415 = vmul.f32 %v1383, %v1411
        %v1417 = vlaneseq
        %v1418 = vshrl.u32 %v1417, 7
        %v1419 = vsub.s32 0, %v1418
        %v1420 = vrot.slane %v1362, %v1419
        %v1422 = vmul.f32 %v1412, %v1420
        %v1423 = vmul.f32 %v1413, %v1420
        %v1424 = vmul.f32 %v1414, %v1420
        %v1425 = vmul.f32 %v1415, %v1420
        %v1427 = vlaneseq
        %v1428 = vshrl.u32 %v1427, 7
        %v1429 = vsub.s32 0, %v1428
        %v1430 = vrot.slane %v1363, %v1429
        %v1432 = vadd.f32 %v1422, %v1430
        %v1433 = vadd.f32 %v1423, %v1430
        %v1434 = vadd.f32 %v1424, %v1430
        %v1435 = vadd.f32 %v1425, %v1430
        %1436 = vst.msk [vmem:[%s495] sm:$0xff] %vm542, %v1432
        %1437 = vst.msk [vmem:[%s495 + $0x8] sm:$0xff] %vm542, %v1433
        %1438 = vst.msk [vmem:[%s495 + $0x10] sm:$0xff] %vm542, %v1434
        %1439 = vst.msk [vmem:[%s495 + $0x18] sm:$0xff] %vm542, %v1435
        %p1440 = scmp.lt.s32.totalorder %s27, 1
        %s1441 = scalar_select %p1440, %s27, 1
        %s1442 = smul.addr %s1441, 4
        %s1443 = smul.addr %s1442, 8
        %s1444 = scalar_lea.vmem %s14, %s1443
        // Predicated region
        $region85: #{convnext1d_forward.5} parent=75 // pred_check
          %p1445 = pneg %p344
        $region86: #{convnext1d_forward.5} parent=75 // pred_check_branch
          %1447 = sbr.rel (%p1445) target = $region88
        $region87: #{convnext1d_forward.5} parent=75 // pred_region
          _
        $region88: #{convnext1d_forward.5} parent=75 // pred_fallthru
          _
      $region76: #{convnext1d_forward.5} parent=5 // pred_fallthru
        _
      %p1448 = scmp.le.s32.totalorder 2, %s22
      // Predicated region
      $region89: #{convnext1d_forward.5} parent=5 // pred_check
        %p1449 = pneg %p1448
      $region90: #{convnext1d_forward.5} parent=5 // pred_check_branch
        %1451 = sbr.rel (%p1449) target = $region92
      $region91: #{convnext1d_forward.5} parent=5 // pred_region
        %s1452 = ssub.s32 %s22, 2
        // Predicated region
        $region93: #{convnext1d_forward.5} parent=91 // pred_check
          %p1453 = pneg %p350
        $region94: #{convnext1d_forward.5} parent=91 // pred_check_branch
          %1455 = sbr.rel (%p1453) target = $region96
        $region95: #{convnext1d_forward.5} parent=91 // pred_region
          %p1456 = scmp.lt.s32.totalorder %s28, 1
          %s1457 = scalar_select %p1456, %s28, 1
          %s1458 = smul.addr %s1457, 4
          %s1459 = smul.addr %s1458, 8
          %s1460 = scalar_lea.vmem %s14, %s1459
        $region96: #{convnext1d_forward.5} parent=91 // pred_fallthru
          _
      $region92: #{convnext1d_forward.5} parent=5 // pred_fallthru
        _
    $region6: #{convnext1d_forward.5} parent=1 // loop_footer
      %s26 = sadd.s32 1, %s22
    $region7: #{convnext1d_forward.5} parent=1 // loop_footer_branch
      %21 = sbr.rel target = $region3
    $region8: #{convnext1d_forward.5} parent=1 // loop_exit
      _
    %1461 = vsyncpa [#allocation3], 1
    %s1462 = scalar_lea.sflag [#allocation3], 1
    %1463 = vsyncpa %s1462, 1
    %1464 = vsyncpa [#allocation5], 1

// kernel: convnext1d_forward.4
$region0: #{convnext1d_forward.4}
  #allocation0 [shape = 'u32[]', space=smem, size = 0x4, offset = 0x4, fixed_abs, tag = 'smem constant byte address 0x4 - core index']
  #allocation1 [shape = 'u32[144,128]{1,0:T(1,128)}', space=vmem, size = 0x12000, scoped, tag = 'internal scratch']
  %s0 = inlined_call_operand.vmem [shape: f32[2,64,4], index: 0, kind: input, shape index: {}]
  %s1 = inlined_call_operand.vmem [shape: bf16[4,32], index: 1, kind: input, shape index: {}]
  %s2 = inlined_call_operand.vmem [shape: f32[1,32], index: 2, kind: input, shape index: {}, may-alias: {2,4,6,8,12,15}]
  %s3 = inlined_call_operand.vmem [shape: f32[1,32], index: 3, kind: input, shape index: {}, may-alias: {3,7,14}]
  %s4 = inlined_call_operand.vmem [shape: f32[1,32], index: 4, kind: input, shape index: {}, may-alias: {2,4,6,8,12,15}]
  %s5 = inlined_call_operand.vmem [shape: f32[1,7,32], index: 5, kind: input, shape index: {}]
  %s6 = inlined_call_operand.vmem [shape: f32[1,32], index: 6, kind: input, shape index: {}, may-alias: {2,4,6,8,12,15}]
  %s7 = inlined_call_operand.vmem [shape: f32[1,32], index: 7, kind: input, shape index: {}, may-alias: {3,7,14}]
  %s8 = inlined_call_operand.vmem [shape: f32[1,32], index: 8, kind: input, shape index: {}, may-alias: {2,4,6,8,12,15}]
  %s9 = inlined_call_operand.vmem [shape: bf16[1,32,128], index: 9, kind: input, shape index: {}]
  %s10 = inlined_call_operand.vmem [shape: f32[1,128], index: 10, kind: input, shape index: {}]
  %s11 = inlined_call_operand.hbm [shape: bf16[1,128,32], index: 11, kind: input, shape index: {}]
  %s12 = inlined_call_operand.vmem [shape: f32[1,32], index: 12, kind: input, shape index: {}, may-alias: {2,4,6,8,12,15}]
  %s13 = inlined_call_operand.vmem [shape: f32[1,32], index: 13, kind: input, shape index: {}]
  %s14 = inlined_call_operand.vmem [shape: f32[1,32], index: 14, kind: input, shape index: {}, may-alias: {3,7,14}]
  %s15 = inlined_call_operand.vmem [shape: f32[1,32], index: 15, kind: input, shape index: {}, may-alias: {2,4,6,8,12,15}]
  %s16 = inlined_call_operand.vmem [shape: f32[2,64,32], index: 16, kind: output, shape index: {}]
  %s17 = sld [smem:[#allocation0]]
  $region101: #{convnext1d_forward.4} parent=0
    _
  %s19 = ssub.s32 1, %s17
  %s20 = scalar_select 0, %s19, %s17
  $region1: #{convnext1d_forward.4} parent=0
    #allocation2 [shape = 'u8[32768]{0}', space=vmem, size = 0x8000, scoped, tag = 'input window, operand 11, single buffered']
    #allocation3 [shape = 's32[2]{0}', space=sflag, size = 0x8, scoped, tag = 'scoped memory for convnext1d_forward.4']
    %21 = vsyncpa [#allocation3], 0
    loop: start=0, step=1, limit=4
    $region2: #{convnext1d_forward.4} parent=1 // loop_pre_header
      _
    $region3: #{convnext1d_forward.4} parent=1 // loop_header
      %s23 = sphi 0, %s27
      %p24 = scmp.ge.s32.totalorder %s23, 4
      %s33 = sphi 0, %s35
      %s36 = sphi 0, %s33
      %s37 = sphi 0, %s36
      %s53 = sphi 0, %s37
      %s57 = sphi 0, %s57
      %s59 = sphi 0, %s57
      %s60 = sphi 0, %s59
      %s74 = sphi 0, %s60
      %s78 = sphi 0, %s78
      %s80 = sphi 0, %s78
      %s81 = sphi 0, %s80
      %s95 = sphi 0, %s81
      %s99 = sphi 0, %s99
      %s101 = sphi 0, %s99
      %s102 = sphi 0, %s101
      %s116 = sphi 0, %s102
      %s120 = sphi 0, %s120
      %s122 = sphi 0, %s120
      %s123 = sphi 0, %s122
      %s137 = sphi 0, %s123
      %s141 = sphi 0, %s141
      %s143 = sphi 0, %s141
      %s144 = sphi 0, %s143
      %s158 = sphi 0, %s144
      %s162 = sphi 0, %s162
      %s164 = sphi 0, %s162
      %s165 = sphi 0, %s164
      %s179 = sphi 0, %s165
      %s183 = sphi 0, %s183
      %s185 = sphi 0, %s183
      %s186 = sphi 0, %s185
      %s200 = sphi 0, %s186
      %s204 = sphi 0, %s204
      %s206 = sphi 0, %s204
      %s207 = sphi 0, %s206
      %s221 = sphi 0, %s207
      %s225 = sphi 0, %s225
      %s227 = sphi 0, %s225
      %s228 = sphi 0, %s227
      %s242 = sphi 0, %s228
      %s246 = sphi 0, %s246
      %s248 = sphi 0, %s246
      %s249 = sphi 0, %s248
      %s263 = sphi 0, %s249
      %s267 = sphi 0, %s267
      %s269 = sphi 0, %s267
      %s270 = sphi 0, %s269
      %s284 = sphi 0, %s270
      %s288 = sphi 0, %s288
      %s290 = sphi 0, %s288
      %s291 = sphi 0, %s290
      %s305 = sphi 0, %s291
      %s309 = sphi 0, %s309
      %s311 = sphi 0, %s309
      %s312 = sphi 0, %s311
      %s326 = sphi 0, %s312
      %s330 = sphi 0, %s330
      %s332 = sphi 0, %s330
      %s333 = sphi 0, %s332
      %s347 = sphi 0, %s333
      %s351 = sphi 0, %s351
      %s353 = sphi 0, %s351
      %s354 = sphi 0, %s353
      %s368 = sphi 0, %s354
      %s374 = sphi 0, %s376
      %s377 = sphi 0, %s374
      %s378 = sphi 0, %s377
      %s394 = sphi 0, %s378
    $region4: #{convnext1d_forward.4} parent=1 // loop_header_branch
      %26 = sbr.rel (%p24) target = $region8
    $region5: #{convnext1d_forward.4} parent=1 // loop_body
      %s28 = ssub.s32 %s23, 1
      %s29 = ssub.s32 %s23, 2
      %s30 = sadd.s32 %s23, 1
      %s31 = ssub.s32 %s23, %s30
      %p32 = scmp.eq.s32.totalorder %s31, 0
      %s34 = sadd.s32 %s33, 1
      %s35 = scalar_select %p32, %s33, %s34
      %p38 = pneg %p32
      %p39 = scmp.eq.s32.totalorder %s23, 1
      %p40 = por %p38, %p39
      %p41 = scmp.ne.s32.totalorder %s33, %s36
      %p42 = scmp.eq.s32.totalorder %s23, 0
      %p43 = por %p41, %p42
      %p44 = scmp.ne.s32.totalorder %s33, %s36
      %p45 = scmp.eq.s32.totalorder %s28, 1
      %p46 = por %p44, %p45
      %p47 = scmp.ne.s32.totalorder %s36, %s37
      %p48 = scmp.eq.s32.totalorder %s28, 0
      %p49 = por %p47, %p48
      %p50 = scmp.ne.s32.totalorder %s36, %s37
      %p51 = scmp.eq.s32.totalorder %s29, 1
      %p52 = por %p50, %p51
      %p54 = scmp.ne.s32.totalorder %s37, %s53
      %p55 = scmp.eq.s32.totalorder %s29, 0
      %p56 = por %p54, %p55
      %s58 = sadd.s32 %s57, 1
      %p61 = scmp.eq.s32.totalorder %s23, 1
      %p62 = scmp.ne.s32.totalorder %s57, %s59
      %p63 = scmp.eq.s32.totalorder %s23, 0
      %p64 = por %p62, %p63
      %p65 = scmp.ne.s32.totalorder %s57, %s59
      %p66 = scmp.eq.s32.totalorder %s28, 1
      %p67 = por %p65, %p66
      %p68 = scmp.ne.s32.totalorder %s59, %s60
      %p69 = scmp.eq.s32.totalorder %s28, 0
      %p70 = por %p68, %p69
      %p71 = scmp.ne.s32.totalorder %s59, %s60
      %p72 = scmp.eq.s32.totalorder %s29, 1
      %p73 = por %p71, %p72
      %p75 = scmp.ne.s32.totalorder %s60, %s74
      %p76 = scmp.eq.s32.totalorder %s29, 0
      %p77 = por %p75, %p76
      %s79 = sadd.s32 %s78, 1
      %p82 = scmp.eq.s32.totalorder %s23, 1
      %p83 = scmp.ne.s32.totalorder %s78, %s80
      %p84 = scmp.eq.s32.totalorder %s23, 0
      %p85 = por %p83, %p84
      %p86 = scmp.ne.s32.totalorder %s78, %s80
      %p87 = scmp.eq.s32.totalorder %s28, 1
      %p88 = por %p86, %p87
      %p89 = scmp.ne.s32.totalorder %s80, %s81
      %p90 = scmp.eq.s32.totalorder %s28, 0
      %p91 = por %p89, %p90
      %p92 = scmp.ne.s32.totalorder %s80, %s81
      %p93 = scmp.eq.s32.totalorder %s29, 1
      %p94 = por %p92, %p93
      %p96 = scmp.ne.s32.totalorder %s81, %s95
      %p97 = scmp.eq.s32.totalorder %s29, 0
      %p98 = por %p96, %p97
      %s100 = sadd.s32 %s99, 1
      %p103 = scmp.eq.s32.totalorder %s23, 1
      %p104 = scmp.ne.s32.totalorder %s99, %s101
      %p105 = scmp.eq.s32.totalorder %s23, 0
      %p106 = por %p104, %p105
      %p107 = scmp.ne.s32.totalorder %s99, %s101
      %p108 = scmp.eq.s32.totalorder %s28, 1
      %p109 = por %p107, %p108
      %p110 = scmp.ne.s32.totalorder %s101, %s102
      %p111 = scmp.eq.s32.totalorder %s28, 0
      %p112 = por %p110, %p111
      %p113 = scmp.ne.s32.totalorder %s101, %s102
      %p114 = scmp.eq.s32.totalorder %s29, 1
      %p115 = por %p113, %p114
      %p117 = scmp.ne.s32.totalorder %s102, %s116
      %p118 = scmp.eq.s32.totalorder %s29, 0
      %p119 = por %p117, %p118
      %s121 = sadd.s32 %s120, 1
      %p124 = scmp.eq.s32.totalorder %s23, 1
      %p125 = scmp.ne.s32.totalorder %s120, %s122
      %p126 = scmp.eq.s32.totalorder %s23, 0
      %p127 = por %p125, %p126
      %p128 = scmp.ne.s32.totalorder %s120, %s122
      %p129 = scmp.eq.s32.totalorder %s28, 1
      %p130 = por %p128, %p129
      %p131 = scmp.ne.s32.totalorder %s122, %s123
      %p132 = scmp.eq.s32.totalorder %s28, 0
      %p133 = por %p131, %p132
      %p134 = scmp.ne.s32.totalorder %s122, %s123
      %p135 = scmp.eq.s32.totalorder %s29, 1
      %p136 = por %p134, %p135
      %p138 = scmp.ne.s32.totalorder %s123, %s137
      %p139 = scmp.eq.s32.totalorder %s29, 0
      %p140 = por %p138, %p139
      %s142 = sadd.s32 %s141, 1
      %p145 = scmp.eq.s32.totalorder %s23, 1
      %p146 = scmp.ne.s32.totalorder %s141, %s143
      %p147 = scmp.eq.s32.totalorder %s23, 0
      %p148 = por %p146, %p147
      %p149 = scmp.ne.s32.totalorder %s141, %s143
      %p150 = scmp.eq.s32.totalorder %s28, 1
      %p151 = por %p149, %p150
      %p152 = scmp.ne.s32.totalorder %s143, %s144
      %p153 = scmp.eq.s32.totalorder %s28, 0
      %p154 = por %p152, %p153
      %p155 = scmp.ne.s32.totalorder %s143, %s144
      %p156 = scmp.eq.s32.totalorder %s29, 1
      %p157 = por %p155, %p156
      %p159 = scmp.ne.s32.totalorder %s144, %s158
      %p160 = scmp.eq.s32.totalorder %s29, 0
      %p161 = por %p159, %p160
      %s163 = sadd.s32 %s162, 1
      %p166 = scmp.eq.s32.totalorder %s23, 1
      %p167 = scmp.ne.s32.totalorder %s162, %s164
      %p168 = scmp.eq.s32.totalorder %s23, 0
      %p169 = por %p167, %p168
      %p170 = scmp.ne.s32.totalorder %s162, %s164
      %p171 = scmp.eq.s32.totalorder %s28, 1
      %p172 = por %p170, %p171
      %p173 = scmp.ne.s32.totalorder %s164, %s165
      %p174 = scmp.eq.s32.totalorder %s28, 0
      %p175 = por %p173, %p174
      %p176 = scmp.ne.s32.totalorder %s164, %s165
      %p177 = scmp.eq.s32.totalorder %s29, 1
      %p178 = por %p176, %p177
      %p180 = scmp.ne.s32.totalorder %s165, %s179
      %p181 = scmp.eq.s32.totalorder %s29, 0
      %p182 = por %p180, %p181
      %s184 = sadd.s32 %s183, 1
      %p187 = scmp.eq.s32.totalorder %s23, 1
      %p188 = scmp.ne.s32.totalorder %s183, %s185
      %p189 = scmp.eq.s32.totalorder %s23, 0
      %p190 = por %p188, %p189
      %p191 = scmp.ne.s32.totalorder %s183, %s185
      %p192 = scmp.eq.s32.totalorder %s28, 1
      %p193 = por %p191, %p192
      %p194 = scmp.ne.s32.totalorder %s185, %s186
      %p195 = scmp.eq.s32.totalorder %s28, 0
      %p196 = por %p194, %p195
      %p197 = scmp.ne.s32.totalorder %s185, %s186
      %p198 = scmp.eq.s32.totalorder %s29, 1
      %p199 = por %p197, %p198
      %p201 = scmp.ne.s32.totalorder %s186, %s200
      %p202 = scmp.eq.s32.totalorder %s29, 0
      %p203 = por %p201, %p202
      %s205 = sadd.s32 %s204, 1
      %p208 = scmp.eq.s32.totalorder %s23, 1
      %p209 = scmp.ne.s32.totalorder %s204, %s206
      %p210 = scmp.eq.s32.totalorder %s23, 0
      %p211 = por %p209, %p210
      %p212 = scmp.ne.s32.totalorder %s204, %s206
      %p213 = scmp.eq.s32.totalorder %s28, 1
      %p214 = por %p212, %p213
      %p215 = scmp.ne.s32.totalorder %s206, %s207
      %p216 = scmp.eq.s32.totalorder %s28, 0
      %p217 = por %p215, %p216
      %p218 = scmp.ne.s32.totalorder %s206, %s207
      %p219 = scmp.eq.s32.totalorder %s29, 1
      %p220 = por %p218, %p219
      %p222 = scmp.ne.s32.totalorder %s207, %s221
      %p223 = scmp.eq.s32.totalorder %s29, 0
      %p224 = por %p222, %p223
      %s226 = sadd.s32 %s225, 1
      %p229 = scmp.eq.s32.totalorder %s23, 1
      %p230 = scmp.ne.s32.totalorder %s225, %s227
      %p231 = scmp.eq.s32.totalorder %s23, 0
      %p232 = por %p230, %p231
      %p233 = scmp.ne.s32.totalorder %s225, %s227
      %p234 = scmp.eq.s32.totalorder %s28, 1
      %p235 = por %p233, %p234
      %p236 = scmp.ne.s32.totalorder %s227, %s228
      %p237 = scmp.eq.s32.totalorder %s28, 0
      %p238 = por %p236, %p237
      %p239 = scmp.ne.s32.totalorder %s227, %s228
      %p240 = scmp.eq.s32.totalorder %s29, 1
      %p241 = por %p239, %p240
      %p243 = scmp.ne.s32.totalorder %s228, %s242
      %p244 = scmp.eq.s32.totalorder %s29, 0
      %p245 = por %p243, %p244
      %s247 = sadd.s32 %s246, 1
      %p250 = scmp.eq.s32.totalorder %s23, 1
      %p251 = scmp.ne.s32.totalorder %s246, %s248
      %p252 = scmp.eq.s32.totalorder %s23, 0
      %p253 = por %p251, %p252
      %p254 = scmp.ne.s32.totalorder %s246, %s248
      %p255 = scmp.eq.s32.totalorder %s28, 1
      %p256 = por %p254, %p255
      %p257 = scmp.ne.s32.totalorder %s248, %s249
      %p258 = scmp.eq.s32.totalorder %s28, 0
      %p259 = por %p257, %p258
      %p260 = scmp.ne.s32.totalorder %s248, %s249
      %p261 = scmp.eq.s32.totalorder %s29, 1
      %p262 = por %p260, %p261
      %p264 = scmp.ne.s32.totalorder %s249, %s263
      %p265 = scmp.eq.s32.totalorder %s29, 0
      %p266 = por %p264, %p265
      %s268 = sadd.s32 %s267, 1
      %p271 = scmp.eq.s32.totalorder %s23, 1
      %p272 = scmp.ne.s32.totalorder %s267, %s269
      %p273 = scmp.eq.s32.totalorder %s23, 0
      %p274 = por %p272, %p273
      %p275 = scmp.ne.s32.totalorder %s267, %s269
      %p276 = scmp.eq.s32.totalorder %s28, 1
      %p277 = por %p275, %p276
      %p278 = scmp.ne.s32.totalorder %s269, %s270
      %p279 = scmp.eq.s32.totalorder %s28, 0
      %p280 = por %p278, %p279
      %p281 = scmp.ne.s32.totalorder %s269, %s270
      %p282 = scmp.eq.s32.totalorder %s29, 1
      %p283 = por %p281, %p282
      %p285 = scmp.ne.s32.totalorder %s270, %s284
      %p286 = scmp.eq.s32.totalorder %s29, 0
      %p287 = por %p285, %p286
      %s289 = sadd.s32 %s288, 1
      %p292 = scmp.eq.s32.totalorder %s23, 1
      %p293 = scmp.ne.s32.totalorder %s288, %s290
      %p294 = scmp.eq.s32.totalorder %s23, 0
      %p295 = por %p293, %p294
      %p296 = scmp.ne.s32.totalorder %s288, %s290
      %p297 = scmp.eq.s32.totalorder %s28, 1
      %p298 = por %p296, %p297
      %p299 = scmp.ne.s32.totalorder %s290, %s291
      %p300 = scmp.eq.s32.totalorder %s28, 0
      %p301 = por %p299, %p300
      %p302 = scmp.ne.s32.totalorder %s290, %s291
      %p303 = scmp.eq.s32.totalorder %s29, 1
      %p304 = por %p302, %p303
      %p306 = scmp.ne.s32.totalorder %s291, %s305
      %p307 = scmp.eq.s32.totalorder %s29, 0
      %p308 = por %p306, %p307
      %s310 = sadd.s32 %s309, 1
      %p313 = scmp.eq.s32.totalorder %s23, 1
      %p314 = scmp.ne.s32.totalorder %s309, %s311
      %p315 = scmp.eq.s32.totalorder %s23, 0
      %p316 = por %p314, %p315
      %p317 = scmp.ne.s32.totalorder %s309, %s311
      %p318 = scmp.eq.s32.totalorder %s28, 1
      %p319 = por %p317, %p318
      %p320 = scmp.ne.s32.totalorder %s311, %s312
      %p321 = scmp.eq.s32.totalorder %s28, 0
      %p322 = por %p320, %p321
      %p323 = scmp.ne.s32.totalorder %s311, %s312
      %p324 = scmp.eq.s32.totalorder %s29, 1
      %p325 = por %p323, %p324
      %p327 = scmp.ne.s32.totalorder %s312, %s326
      %p328 = scmp.eq.s32.totalorder %s29, 0
      %p329 = por %p327, %p328
      %s331 = sadd.s32 %s330, 1
      %p334 = scmp.eq.s32.totalorder %s23, 1
      %p335 = scmp.ne.s32.totalorder %s330, %s332
      %p336 = scmp.eq.s32.totalorder %s23, 0
      %p337 = por %p335, %p336
      %p338 = scmp.ne.s32.totalorder %s330, %s332
      %p339 = scmp.eq.s32.totalorder %s28, 1
      %p340 = por %p338, %p339
      %p341 = scmp.ne.s32.totalorder %s332, %s333
      %p342 = scmp.eq.s32.totalorder %s28, 0
      %p343 = por %p341, %p342
      %p344 = scmp.ne.s32.totalorder %s332, %s333
      %p345 = scmp.eq.s32.totalorder %s29, 1
      %p346 = por %p344, %p345
      %p348 = scmp.ne.s32.totalorder %s333, %s347
      %p349 = scmp.eq.s32.totalorder %s29, 0
      %p350 = por %p348, %p349
      %s352 = sadd.s32 %s351, 1
      %p355 = scmp.eq.s32.totalorder %s23, 1
      %p356 = scmp.ne.s32.totalorder %s351, %s353
      %p357 = scmp.eq.s32.totalorder %s23, 0
      %p358 = por %p356, %p357
      %p359 = scmp.ne.s32.totalorder %s351, %s353
      %p360 = scmp.eq.s32.totalorder %s28, 1
      %p361 = por %p359, %p360
      %p362 = scmp.ne.s32.totalorder %s353, %s354
      %p363 = scmp.eq.s32.totalorder %s28, 0
      %p364 = por %p362, %p363
      %p365 = scmp.ne.s32.totalorder %s353, %s354
      %p366 = scmp.eq.s32.totalorder %s29, 1
      %p367 = por %p365, %p366
      %p369 = scmp.ne.s32.totalorder %s354, %s368
      %p370 = scmp.eq.s32.totalorder %s29, 0
      %p371 = por %p369, %p370
      %s372 = ssub.s32 %s23, %s30
      %p373 = scmp.eq.s32.totalorder %s372, 0
      %s375 = sadd.s32 %s374, 1
      %s376 = scalar_select %p373, %s374, %s375
      %p379 = pneg %p373
      %p380 = scmp.eq.s32.totalorder %s23, 1
      %p381 = por %p379, %p380
      %p382 = scmp.ne.s32.totalorder %s374, %s377
      %p383 = scmp.eq.s32.totalorder %s23, 0
      %p384 = por %p382, %p383
      %p385 = scmp.ne.s32.totalorder %s374, %s377
      %p386 = scmp.eq.s32.totalorder %s28, 1
      %p387 = por %p385, %p386
      %p388 = scmp.ne.s32.totalorder %s377, %s378
      %p389 = scmp.eq.s32.totalorder %s28, 0
      %p390 = por %p388, %p389
      %p391 = scmp.ne.s32.totalorder %s377, %s378
      %p392 = scmp.eq.s32.totalorder %s29, 1
      %p393 = por %p391, %p392
      %p395 = scmp.ne.s32.totalorder %s378, %s394
      %p396 = scmp.eq.s32.totalorder %s29, 0
      %p397 = por %p395, %p396
      %p398 = scmp.le.s32.totalorder 1, %s23
      %p399 = scmp.lt.s32.totalorder %s23, 3
      %p400 = pnand %p398, %p399
      %p401 = pneg %p400
      // Predicated region
      $region9: #{convnext1d_forward.4} parent=5 // pred_check
        _
      $region10: #{convnext1d_forward.4} parent=5 // pred_check_branch
        %403 = sbr.rel (%p400) target = $region12
      $region11: #{convnext1d_forward.4} parent=5 // pred_region
        %s404 = ssub.s32 %s23, 1
        // Predicated region
        $region13: #{convnext1d_forward.4} parent=11 // pred_check
          %p405 = pneg %p70
        $region14: #{convnext1d_forward.4} parent=11 // pred_check_branch
          %407 = sbr.rel (%p405) target = $region16
        $region15: #{convnext1d_forward.4} parent=11 // pred_region
          _
        $region16: #{convnext1d_forward.4} parent=11 // pred_fallthru
          _
        // Predicated region
        $region17: #{convnext1d_forward.4} parent=11 // pred_check
          %p408 = pneg %p91
        $region18: #{convnext1d_forward.4} parent=11 // pred_check_branch
          %410 = sbr.rel (%p408) target = $region20
        $region19: #{convnext1d_forward.4} parent=11 // pred_region
          _
        $region20: #{convnext1d_forward.4} parent=11 // pred_fallthru
          _
        // Predicated region
        $region21: #{convnext1d_forward.4} parent=11 // pred_check
          %p411 = pneg %p112
        $region22: #{convnext1d_forward.4} parent=11 // pred_check_branch
          %413 = sbr.rel (%p411) target = $region24
        $region23: #{convnext1d_forward.4} parent=11 // pred_region
          _
        $region24: #{convnext1d_forward.4} parent=11 // pred_fallthru
          _
        // Predicated region
        $region25: #{convnext1d_forward.4} parent=11 // pred_check
          %p414 = pneg %p133
        $region26: #{convnext1d_forward.4} parent=11 // pred_check_branch
          %416 = sbr.rel (%p414) target = $region28
        $region27: #{convnext1d_forward.4} parent=11 // pred_region
          _
        $region28: #{convnext1d_forward.4} parent=11 // pred_fallthru
          _
        // Predicated region
        $region29: #{convnext1d_forward.4} parent=11 // pred_check
          %p417 = pneg %p154
        $region30: #{convnext1d_forward.4} parent=11 // pred_check_branch
          %419 = sbr.rel (%p417) target = $region32
        $region31: #{convnext1d_forward.4} parent=11 // pred_region
          _
        $region32: #{convnext1d_forward.4} parent=11 // pred_fallthru
          _
        // Predicated region
        $region33: #{convnext1d_forward.4} parent=11 // pred_check
          %p420 = pneg %p175
        $region34: #{convnext1d_forward.4} parent=11 // pred_check_branch
          %422 = sbr.rel (%p420) target = $region36
        $region35: #{convnext1d_forward.4} parent=11 // pred_region
          _
        $region36: #{convnext1d_forward.4} parent=11 // pred_fallthru
          _
        // Predicated region
        $region37: #{convnext1d_forward.4} parent=11 // pred_check
          %p423 = pneg %p196
        $region38: #{convnext1d_forward.4} parent=11 // pred_check_branch
          %425 = sbr.rel (%p423) target = $region40
        $region39: #{convnext1d_forward.4} parent=11 // pred_region
          _
        $region40: #{convnext1d_forward.4} parent=11 // pred_fallthru
          _
        // Predicated region
        $region41: #{convnext1d_forward.4} parent=11 // pred_check
          %p426 = pneg %p217
        $region42: #{convnext1d_forward.4} parent=11 // pred_check_branch
          %428 = sbr.rel (%p426) target = $region44
        $region43: #{convnext1d_forward.4} parent=11 // pred_region
          _
        $region44: #{convnext1d_forward.4} parent=11 // pred_fallthru
          _
        // Predicated region
        $region45: #{convnext1d_forward.4} parent=11 // pred_check
          %p429 = pneg %p238
        $region46: #{convnext1d_forward.4} parent=11 // pred_check_branch
          %431 = sbr.rel (%p429) target = $region48
        $region47: #{convnext1d_forward.4} parent=11 // pred_region
          _
        $region48: #{convnext1d_forward.4} parent=11 // pred_fallthru
          _
        // Predicated region
        $region49: #{convnext1d_forward.4} parent=11 // pred_check
          %p432 = pneg %p259
        $region50: #{convnext1d_forward.4} parent=11 // pred_check_branch
          %434 = sbr.rel (%p432) target = $region52
        $region51: #{convnext1d_forward.4} parent=11 // pred_region
          _
        $region52: #{convnext1d_forward.4} parent=11 // pred_fallthru
          _
        // Predicated region
        $region53: #{convnext1d_forward.4} parent=11 // pred_check
          %p435 = pneg %p280
        $region54: #{convnext1d_forward.4} parent=11 // pred_check_branch
          %437 = sbr.rel (%p435) target = $region56
        $region55: #{convnext1d_forward.4} parent=11 // pred_region
          %s439 = ssub.s32 1024, 1024
          %440 = vsyncadd [#allocation3], %s439
          %s441 = sshll.u32 [#allocation2], 4
          %s442 = int_to_ptr.vmem [resolvable:$true] %s441
          %447 = dma.hbm_to_vmem [thread:$0]  %s11, 1024, %s442, [#allocation3], 64, 64, 4
        $region56: #{convnext1d_forward.4} parent=11 // pred_fallthru
          _
        // Predicated region
        $region57: #{convnext1d_forward.4} parent=11 // pred_check
          %p448 = pneg %p301
        $region58: #{convnext1d_forward.4} parent=11 // pred_check_branch
          %450 = sbr.rel (%p448) target = $region60
        $region59: #{convnext1d_forward.4} parent=11 // pred_region
          _
        $region60: #{convnext1d_forward.4} parent=11 // pred_fallthru
          _
        // Predicated region
        $region61: #{convnext1d_forward.4} parent=11 // pred_check
          %p451 = pneg %p322
        $region62: #{convnext1d_forward.4} parent=11 // pred_check_branch
          %453 = sbr.rel (%p451) target = $region64
        $region63: #{convnext1d_forward.4} parent=11 // pred_region
          _
        $region64: #{convnext1d_forward.4} parent=11 // pred_fallthru
          _
        // Predicated region
        $region65: #{convnext1d_forward.4} parent=11 // pred_check
          %p454 = pneg %p343
        $region66: #{convnext1d_forward.4} parent=11 // pred_check_branch
          %456 = sbr.rel (%p454) target = $region68
        $region67: #{convnext1d_forward.4} parent=11 // pred_region
          _
        $region68: #{convnext1d_forward.4} parent=11 // pred_fallthru
          _
        // Predicated region
        $region69: #{convnext1d_forward.4} parent=11 // pred_check
          %p457 = pneg %p364
        $region70: #{convnext1d_forward.4} parent=11 // pred_check_branch
          %459 = sbr.rel (%p457) target = $region72
        $region71: #{convnext1d_forward.4} parent=11 // pred_region
          _
        $region72: #{convnext1d_forward.4} parent=11 // pred_fallthru
          _
      $region12: #{convnext1d_forward.4} parent=5 // pred_fallthru
        _
      %p460 = scmp.lt.s32.totalorder %s23, 2
      // Predicated region
      $region73: #{convnext1d_forward.4} parent=5 // pred_check
        %p461 = pneg %p460
      $region74: #{convnext1d_forward.4} parent=5 // pred_check_branch
        %463 = sbr.rel (%p461) target = $region76
      $region75: #{convnext1d_forward.4} parent=5 // pred_region
        // Predicated region
        $region77: #{convnext1d_forward.4} parent=75 // pred_check
          %p464 = pneg %p43
        $region78: #{convnext1d_forward.4} parent=75 // pred_check_branch
          %466 = sbr.rel (%p464) target = $region80
        $region79: #{convnext1d_forward.4} parent=75 // pred_region
          %p467 = scmp.lt.s32.totalorder %s23, 1
          %s468 = scalar_select %p467, %s23, 1
          %s469 = smul.addr %s468, 8
          %s470 = smul.addr %s469, 8
          %s471 = scalar_lea.vmem %s0, %s470
        $region80: #{convnext1d_forward.4} parent=75 // pred_fallthru
          _
      $region76: #{convnext1d_forward.4} parent=5 // pred_fallthru
        _
      %p472 = scmp.le.s32.totalorder 1, %s23
      %p473 = scmp.lt.s32.totalorder %s23, 3
      %p474 = pnand %p472, %p473
      %p475 = pneg %p474
      // Predicated region
      $region81: #{convnext1d_forward.4} parent=5 // pred_check
        _
      $region82: #{convnext1d_forward.4} parent=5 // pred_check_branch
        %477 = sbr.rel (%p474) target = $region84
      $region83: #{convnext1d_forward.4} parent=5 // pred_region
        %s478 = ssub.s32 %s23, 1
        // Predicated region
        $region85: #{convnext1d_forward.4} parent=83 // pred_check
          %p479 = pneg %p280
        $region86: #{convnext1d_forward.4} parent=83 // pred_check_branch
          %481 = sbr.rel (%p479) target = $region88
        $region87: #{convnext1d_forward.4} parent=83 // pred_region
          %482 = dma.done [#allocation3], 1024
        $region88: #{convnext1d_forward.4} parent=83 // pred_fallthru
          _
        %p483 = scmp.lt.s32.totalorder %s28, 1
        %s484 = scalar_select %p483, %s28, 1
        %s485 = smul.addr %s484, 8
        %s486 = smul.addr %s485, 8
        %s487 = scalar_lea.vmem %s0, %s486
        %p488 = pneg %p49
        %p489 = pneg %p46
        %p490 = pneg %p70
        %p491 = pneg %p67
        %p492 = pneg %p91
        %p493 = pneg %p88
        %p494 = pneg %p112
        %p495 = pneg %p109
        %p496 = pneg %p133
        %p497 = pneg %p130
        %p498 = pneg %p154
        %p499 = pneg %p151
        %p500 = pneg %p175
        %p501 = pneg %p172
        %p502 = pneg %p196
        %p503 = pneg %p193
        %p504 = pneg %p217
        %p505 = pneg %p214
        %p506 = pneg %p238
        %p507 = pneg %p235
        %p508 = pneg %p259
        %p509 = pneg %p256
        %p510 = pneg %p280
        %p511 = pneg %p277
        %p512 = pneg %p301
        %p513 = pneg %p298
        %p514 = pneg %p322
        %p515 = pneg %p319
        %p516 = pneg %p343
        %p517 = pneg %p340
        %p518 = pneg %p364
        %p519 = pneg %p361
        %p520 = pneg %p390
        %p521 = pneg %p387
        %p522 = scmp.lt.s32.totalorder %s28, 1
        %s523 = scalar_select %p522, %s28, 1
        %s524 = smul.addr %s523, 8
        %s525 = smul.addr %s524, 8
        %s526 = scalar_lea.vmem %s16, %s525
        %p527 = scmp.lt.s32.totalorder %s28, 1
        %s528 = scalar_select %p527, %s28, 1
        %s529 = smul.addr %s528, 8
        %s530 = smul.addr %s529, 8
        %s531 = scalar_lea.vmem %s0, %s530
        %p532 = scmp.lt.s32.totalorder %s28, 1
        %s533 = scalar_select %p532, %s28, 1
        %s534 = smul.addr %s533, 8
        %s535 = smul.addr %s534, 8
        %s536 = scalar_lea.vmem %s16, %s535
        %v538 = vld [vmem:[%s531] sm:$0xff]
        %v539 = vld [vmem:[%s531 + $0x8] sm:$0xff]
        %v540 = vld [vmem:[%s531 + $0x10] sm:$0xff]
        %v541 = vld [vmem:[%s531 + $0x18] sm:$0xff]
        %v542 = vld [vmem:[%s531 + $0x20] sm:$0xff]
        %v543 = vld [vmem:[%s531 + $0x28] sm:$0xff]
        %v544 = vld [vmem:[%s531 + $0x30] sm:$0xff]
        %v545 = vld [vmem:[%s531 + $0x38] sm:$0xff]
        %v546 = vpack.c.bf16 %v539, %v538
        %v547 = vpack.c.bf16 %v541, %v540
        %v548 = vpack.c.bf16 %v543, %v542
        %v549 = vpack.c.bf16 %v545, %v544
        %v550 = vld [vmem:[%s1] sm:$0x3]
        %v551 = vld [vmem:[%s2] sm:$0x1]
        %v553 = vlaneseq
        %v554 = vshrl.u32 %v553, 7
        %v555 = vsub.s32 0, %v554
        %v556 = vrot.slane %v551, %v555
        %vm558 = vcmask 31744
        %v560 = vsel %vm558, %v546, 0
        %v563 = vsel %vm558, %v547, 0
        %v566 = vsel %vm558, %v548, 0
        %v569 = vsel %vm558, %v549, 0
        %vm571 = vcmask 1041408
        %v573 = vsel %vm571, %v550, 0
        %575 = vmatprep.subr.bf16.mxu0 0
        %576 = vmatpush1.bf16.msra.mxu0 0
        %577 = vmatprep.subr.bf16.mxu0 0
        %578 = vmatpush1.bf16.msra.mxu0 0
        %579 = vmatprep.subr.bf16.mxu0 0
        %580 = vmatpush1.bf16.msra.mxu0 0
        %581 = vmatprep.subr.bf16.mxu0 0
        %582 = vmatpush1.bf16.msra.mxu0 0
        %583 = vmatprep.subr.bf16.mxu0 0
        %584 = vmatpush1.bf16.msra.mxu0 0
        %585 = vmatprep.subr.bf16.mxu0 0
        %586 = vmatpush1.bf16.msra.mxu0 0
        %587 = vmatprep.subr.bf16.mxu0 0
        %588 = vmatpush1.bf16.msra.mxu0 0
        %589 = vmatprep.subr.bf16.mxu0 0
        %590 = vmatpush1.bf16.msra.mxu0 %v573
        %591 = vmatprep.subr.bf16.mxu0 0
        %592 = vmatpush2.bf16.msra.mxu0 0
        %593 = vmatprep.subr.bf16.mxu0 0
        %594 = vmatpush2.bf16.msra.mxu0 0
        %595 = vmatprep.subr.bf16.mxu0 0
        %596 = vmatpush2.bf16.msra.mxu0 0
        %597 = vmatprep.subr.bf16.mxu0 0
        %598 = vmatpush2.bf16.msra.mxu0 0
        %599 = vmatprep.subr.bf16.mxu0 0
        %600 = vmatpush2.bf16.msra.mxu0 0
        %601 = vmatprep.subr.bf16.mxu0 0
        %602 = vmatpush2.bf16.msra.mxu0 0
        %603 = vmatprep.subr.bf16.mxu0 0
        %604 = vmatpush2.bf16.msra.mxu0 0
        %605 = vmatprep.subr.bf16.mxu0 0
        %606 = vmatpush2.bf16.msra.mxu0 0
        %607 = vmatprep.mubr.bf16.mxu0 0
        %608 = vmatmul.mubr.bf16.gmra.mxu0 %v560
        %v609 = vpop.f32.mrf.mxu0
        %v610 = vadd.f32 %v556, %v609
        %v611 = vpop.f32.mrf.mxu0
        %v612 = vpop.f32.mrf.mxu0
        %v613 = vadd.f32 %v556, %v612
        %v614 = vpop.f32.mrf.mxu0
        %615 = vmatprep.mubr.bf16.mxu0 0
        %616 = vmatmul.mubr.bf16.gmra.mxu0 %v563
        %v617 = vpop.f32.mrf.mxu0
        %v618 = vadd.f32 %v556, %v617
        %v619 = vpop.f32.mrf.mxu0
        %v620 = vpop.f32.mrf.mxu0
        %v621 = vadd.f32 %v556, %v620
        %v622 = vpop.f32.mrf.mxu0
        %623 = vmatprep.mubr.bf16.mxu0 0
        %624 = vmatmul.mubr.bf16.gmra.mxu0 %v566
        %v625 = vpop.f32.mrf.mxu0
        %v626 = vadd.f32 %v556, %v625
        %v627 = vpop.f32.mrf.mxu0
        %v628 = vpop.f32.mrf.mxu0
        %v629 = vadd.f32 %v556, %v628
        %v630 = vpop.f32.mrf.mxu0
        %631 = vmatprep.mubr.bf16.mxu0 0
        %632 = vmatmul.mubr.bf16.gmra.mxu0 %v569
        %v633 = vpop.f32.mrf.mxu0
        %v634 = vadd.f32 %v556, %v633
        %v635 = vpop.f32.mrf.mxu0
        %v636 = vpop.f32.mrf.mxu0
        %v637 = vadd.f32 %v556, %v636
        %v638 = vpop.f32.mrf.mxu0
        %639 = vdwg.mxu0
        %v640 = vld [vmem:[%s3] sm:$0x1]
        %v641 = vld [vmem:[%s4] sm:$0x1]
        %vm642 = vcmask 261120
        %v643 = vsel %vm642, %v610, 0.0
        %644 = vadd.xlane.f32.xlu0 %v643
        %v645 = vpop.xlane.xlu0 %644
        %v646 = vsel %vm642, %v613, 0.0
        %647 = vadd.xlane.f32.xlu0 %v646
        %v648 = vpop.xlane.xlu0 %647
        %v649 = vsel %vm642, %v618, 0.0
        %650 = vadd.xlane.f32.xlu0 %v649
        %v651 = vpop.xlane.xlu0 %650
        %v652 = vsel %vm642, %v621, 0.0
        %653 = vadd.xlane.f32.xlu0 %v652
        %v654 = vpop.xlane.xlu0 %653
        %v655 = vsel %vm642, %v626, 0.0
        %656 = vadd.xlane.f32.xlu0 %v655
        %v657 = vpop.xlane.xlu0 %656
        %v658 = vsel %vm642, %v629, 0.0
        %659 = vadd.xlane.f32.xlu0 %v658
        %v660 = vpop.xlane.xlu0 %659
        %v661 = vsel %vm642, %v634, 0.0
        %662 = vadd.xlane.f32.xlu0 %v661
        %v663 = vpop.xlane.xlu0 %662
        %v664 = vsel %vm642, %v637, 0.0
        %665 = vadd.xlane.f32.xlu0 %v664
        %v666 = vpop.xlane.xlu0 %665
        %v667 = vrcp.pop 32.0
        %v668 = vmul.f32 %v645, %v667
        %v669 = vmul.f32 %v648, %v667
        %v670 = vmul.f32 %v651, %v667
        %v671 = vmul.f32 %v654, %v667
        %v672 = vmul.f32 %v657, %v667
        %v673 = vmul.f32 %v660, %v667
        %v674 = vmul.f32 %v663, %v667
        %v675 = vmul.f32 %v666, %v667
        %v676 = vsub.f32 %v610, %v668
        %v677 = vsub.f32 %v613, %v669
        %v678 = vsub.f32 %v618, %v670
        %v679 = vsub.f32 %v621, %v671
        %v680 = vsub.f32 %v626, %v672
        %v681 = vsub.f32 %v629, %v673
        %v682 = vsub.f32 %v634, %v674
        %v683 = vsub.f32 %v637, %v675
        %v684 = vmul.f32 %v676, %v676
        %v685 = vmul.f32 %v677, %v677
        %v686 = vmul.f32 %v678, %v678
        %v687 = vmul.f32 %v679, %v679
        %v688 = vmul.f32 %v680, %v680
        %v689 = vmul.f32 %v681, %v681
        %v690 = vmul.f32 %v682, %v682
        %v691 = vmul.f32 %v683, %v683
        %v692 = vsel %vm642, %v684, 0.0
        %693 = vadd.xlane.f32.xlu0 %v692
        %v694 = vpop.xlane.xlu0 %693
        %v695 = vsel %vm642, %v685, 0.0
        %696 = vadd.xlane.f32.xlu0 %v695
        %v697 = vpop.xlane.xlu0 %696
        %v698 = vsel %vm642, %v686, 0.0
        %699 = vadd.xlane.f32.xlu0 %v698
        %v700 = vpop.xlane.xlu0 %699
        %v701 = vsel %vm642, %v687, 0.0
        %702 = vadd.xlane.f32.xlu0 %v701
        %v703 = vpop.xlane.xlu0 %702
        %v704 = vsel %vm642, %v688, 0.0
        %705 = vadd.xlane.f32.xlu0 %v704
        %v706 = vpop.xlane.xlu0 %705
        %v707 = vsel %vm642, %v689, 0.0
        %708 = vadd.xlane.f32.xlu0 %v707
        %v709 = vpop.xlane.xlu0 %708
        %v710 = vsel %vm642, %v690, 0.0
        %711 = vadd.xlane.f32.xlu0 %v710
        %v712 = vpop.xlane.xlu0 %711
        %v713 = vsel %vm642, %v691, 0.0
        %714 = vadd.xlane.f32.xlu0 %v713
        %v715 = vpop.xlane.xlu0 %714
        %v716 = vmul.f32 %v694, %v667
        %v717 = vmul.f32 %v697, %v667
        %v718 = vmul.f32 %v700, %v667
        %v719 = vmul.f32 %v703, %v667
        %v720 = vmul.f32 %v706, %v667
        %v721 = vmul.f32 %v709, %v667
        %v722 = vmul.f32 %v712, %v667
        %v723 = vmul.f32 %v715, %v667
        %v724 = vadd.f32 %v716, 1e-05
        %v725 = vadd.f32 %v717, 1e-05
        %v726 = vadd.f32 %v718, 1e-05
        %v727 = vadd.f32 %v719, 1e-05
        %v728 = vadd.f32 %v720, 1e-05
        %v729 = vadd.f32 %v721, 1e-05
        %v730 = vadd.f32 %v722, 1e-05
        %v731 = vadd.f32 %v723, 1e-05
        %v732 = vrsqrt.pop %v724
        %v733 = vrsqrt.pop %v725
        %v734 = vrsqrt.pop %v726
        %v735 = vrsqrt.pop %v727
        %v736 = vrsqrt.pop %v728
        %v737 = vrsqrt.pop %v729
        %v738 = vrsqrt.pop %v730
        %v739 = vrsqrt.pop %v731
        %v740 = vmul.f32 %v676, %v732
        %v741 = vmul.f32 %v677, %v733
        %v742 = vmul.f32 %v678, %v734
        %v743 = vmul.f32 %v679, %v735
        %v744 = vmul.f32 %v680, %v736
        %v745 = vmul.f32 %v681, %v737
        %v746 = vmul.f32 %v682, %v738
        %v747 = vmul.f32 %v683, %v739
        %v749 = vlaneseq
        %v750 = vshrl.u32 %v749, 7
        %v751 = vsub.s32 0, %v750
        %v752 = vrot.slane %v640, %v751
        %v754 = vmul.f32 %v740, %v752
        %v755 = vmul.f32 %v741, %v752
        %v756 = vmul.f32 %v742, %v752
        %v757 = vmul.f32 %v743, %v752
        %v758 = vmul.f32 %v744, %v752
        %v759 = vmul.f32 %v745, %v752
        %v760 = vmul.f32 %v746, %v752
        %v761 = vmul.f32 %v747, %v752
        %v763 = vlaneseq
        %v764 = vshrl.u32 %v763, 7
        %v765 = vsub.s32 0, %v764
        %v766 = vrot.slane %v641, %v765
        %v768 = vadd.f32 %v754, %v766
        %v769 = vadd.f32 %v755, %v766
        %v770 = vadd.f32 %v756, %v766
        %v771 = vadd.f32 %v757, %v766
        %v772 = vadd.f32 %v758, %v766
        %v773 = vadd.f32 %v759, %v766
        %v774 = vadd.f32 %v760, %v766
        %v775 = vadd.f32 %v761, %v766
        %v776 = vlaneseq
        %v777 = vshrl.u32 %v776, 7
        %v778 = vadd.s32 %v777, 8
        %v779 = vadd.s32 %v777, 16
        %v780 = vadd.s32 %v777, 24
        %v781 = vadd.s32 %v777, 32
        %v782 = vadd.s32 %v777, 40
        %v783 = vadd.s32 %v777, 48
        %v784 = vadd.s32 %v777, 56
        %v785 = vadd.s32 %v777, 4294967293
        %v786 = vadd.s32 %v778, 4294967293
        %v787 = vadd.s32 %v779, 4294967293
        %v788 = vadd.s32 %v780, 4294967293
        %v789 = vadd.s32 %v781, 4294967293
        %v790 = vadd.s32 %v782, 4294967293
        %v791 = vadd.s32 %v783, 4294967293
        %v792 = vadd.s32 %v784, 4294967293
        %vm793 = vcmp.ge.s32.totalorder %v785, 0
        %vm794 = vcmp.ge.s32.totalorder %v786, 0
        %vm795 = vcmp.ge.s32.totalorder %v787, 0
        %vm796 = vcmp.ge.s32.totalorder %v788, 0
        %vm797 = vcmp.ge.s32.totalorder %v789, 0
        %vm798 = vcmp.ge.s32.totalorder %v790, 0
        %vm799 = vcmp.ge.s32.totalorder %v791, 0
        %vm800 = vcmp.ge.s32.totalorder %v792, 0
        %vm801 = vcmp.lt.s32.totalorder %v785, 64
        %vm802 = vcmp.lt.s32.totalorder %v786, 64
        %vm803 = vcmp.lt.s32.totalorder %v787, 64
        %vm804 = vcmp.lt.s32.totalorder %v788, 64
        %vm805 = vcmp.lt.s32.totalorder %v789, 64
        %vm806 = vcmp.lt.s32.totalorder %v790, 64
        %vm807 = vcmp.lt.s32.totalorder %v791, 64
        %vm808 = vcmp.lt.s32.totalorder %v792, 64
        %vm809 = vmand %vm793, %vm801
        %vm810 = vmand %vm794, %vm802
        %vm811 = vmand %vm795, %vm803
        %vm812 = vmand %vm796, %vm804
        %vm813 = vmand %vm797, %vm805
        %vm814 = vmand %vm798, %vm806
        %vm815 = vmand %vm799, %vm807
        %vm816 = vmand %vm800, %vm808
        %v817 = vsel %vm809, 1, 0
        %v818 = vsel %vm810, 1, 0
        %v819 = vsel %vm811, 1, 0
        %v820 = vsel %vm812, 1, 0
        %v821 = vsel %vm813, 1, 0
        %v822 = vsel %vm814, 1, 0
        %v823 = vsel %vm815, 1, 0
        %v824 = vsel %vm816, 1, 0
        %v825 = vcvt.s32.f32 %v817
        %v826 = vcvt.s32.f32 %v818
        %v827 = vcvt.s32.f32 %v819
        %v828 = vcvt.s32.f32 %v820
        %v829 = vcvt.s32.f32 %v821
        %v830 = vcvt.s32.f32 %v822
        %v831 = vcvt.s32.f32 %v823
        %v832 = vcvt.s32.f32 %v824
        %v833 = vadd.s32 %v777, 4294967294
        %v834 = vadd.s32 %v778, 4294967294
        %v835 = vadd.s32 %v779, 4294967294
        %v836 = vadd.s32 %v780, 4294967294
        %v837 = vadd.s32 %v781, 4294967294
        %v838 = vadd.s32 %v782, 4294967294
        %v839 = vadd.s32 %v783, 4294967294
        %v840 = vadd.s32 %v784, 4294967294
        %vm841 = vcmp.ge.s32.totalorder %v833, 0
        %vm842 = vcmp.ge.s32.totalorder %v834, 0
        %vm843 = vcmp.ge.s32.totalorder %v835, 0
        %vm844 = vcmp.ge.s32.totalorder %v836, 0
        %vm845 = vcmp.ge.s32.totalorder %v837, 0
        %vm846 = vcmp.ge.s32.totalorder %v838, 0
        %vm847 = vcmp.ge.s32.totalorder %v839, 0
        %vm848 = vcmp.ge.s32.totalorder %v840, 0
        %vm849 = vcmp.lt.s32.totalorder %v833, 64
        %vm850 = vcmp.lt.s32.totalorder %v834, 64
        %vm851 = vcmp.lt.s32.totalorder %v835, 64
        %vm852 = vcmp.lt.s32.totalorder %v836, 64
        %vm853 = vcmp.lt.s32.totalorder %v837, 64
        %vm854 = vcmp.lt.s32.totalorder %v838, 64
        %vm855 = vcmp.lt.s32.totalorder %v839, 64
        %vm856 = vcmp.lt.s32.totalorder %v840, 64
        %vm857 = vmand %vm841, %vm849
        %vm858 = vmand %vm842, %vm850
        %vm859 = vmand %vm843, %vm851
        %vm860 = vmand %vm844, %vm852
        %vm861 = vmand %vm845, %vm853
        %vm862 = vmand %vm846, %vm854
        %vm863 = vmand %vm847, %vm855
        %vm864 = vmand %vm848, %vm856
        %v865 = vsel %vm857, 1, 0
        %v866 = vsel %vm858, 1, 0
        %v867 = vsel %vm859, 1, 0
        %v868 = vsel %vm860, 1, 0
        %v869 = vsel %vm861, 1, 0
        %v870 = vsel %vm862, 1, 0
        %v871 = vsel %vm863, 1, 0
        %v872 = vsel %vm864, 1, 0
        %v873 = vcvt.s32.f32 %v865
        %v874 = vcvt.s32.f32 %v866
        %v875 = vcvt.s32.f32 %v867
        %v876 = vcvt.s32.f32 %v868
        %v877 = vcvt.s32.f32 %v869
        %v878 = vcvt.s32.f32 %v870
        %v879 = vcvt.s32.f32 %v871
        %v880 = vcvt.s32.f32 %v872
        %v881 = vadd.s32 %v777, 4294967295
        %v882 = vadd.s32 %v778, 4294967295
        %v883 = vadd.s32 %v779, 4294967295
        %v884 = vadd.s32 %v780, 4294967295
        %v885 = vadd.s32 %v781, 4294967295
        %v886 = vadd.s32 %v782, 4294967295
        %v887 = vadd.s32 %v783, 4294967295
        %v888 = vadd.s32 %v784, 4294967295
        %vm889 = vcmp.ge.s32.totalorder %v881, 0
        %vm890 = vcmp.ge.s32.totalorder %v882, 0
        %vm891 = vcmp.ge.s32.totalorder %v883, 0
        %vm892 = vcmp.ge.s32.totalorder %v884, 0
        %vm893 = vcmp.ge.s32.totalorder %v885, 0
        %vm894 = vcmp.ge.s32.totalorder %v886, 0
        %vm895 = vcmp.ge.s32.totalorder %v887, 0
        %vm896 = vcmp.ge.s32.totalorder %v888, 0
        %vm897 = vcmp.lt.s32.totalorder %v881, 64
        %vm898 = vcmp.lt.s32.totalorder %v882, 64
        %vm899 = vcmp.lt.s32.totalorder %v883, 64
        %vm900 = vcmp.lt.s32.totalorder %v884, 64
        %vm901 = vcmp.lt.s32.totalorder %v885, 64
        %vm902 = vcmp.lt.s32.totalorder %v886, 64
        %vm903 = vcmp.lt.s32.totalorder %v887, 64
        %vm904 = vcmp.lt.s32.totalorder %v888, 64
        %vm905 = vmand %vm889, %vm897
        %vm906 = vmand %vm890, %vm898
        %vm907 = vmand %vm891, %vm899
        %vm908 = vmand %vm892, %vm900
        %vm909 = vmand %vm893, %vm901
        %vm910 = vmand %vm894, %vm902
        %vm911 = vmand %vm895, %vm903
        %vm912 = vmand %vm896, %vm904
        %v913 = vsel %vm905, 1, 0
        %v914 = vsel %vm906, 1, 0
        %v915 = vsel %vm907, 1, 0
        %v916 = vsel %vm908, 1, 0
        %v917 = vsel %vm909, 1, 0
        %v918 = vsel %vm910, 1, 0
        %v919 = vsel %vm911, 1, 0
        %v920 = vsel %vm912, 1, 0
        %v921 = vcvt.s32.f32 %v913
        %v922 = vcvt.s32.f32 %v914
        %v923 = vcvt.s32.f32 %v915
        %v924 = vcvt.s32.f32 %v916
        %v925 = vcvt.s32.f32 %v917
        %v926 = vcvt.s32.f32 %v918
        %v927 = vcvt.s32.f32 %v919
        %v928 = vcvt.s32.f32 %v920
        %v929 = vadd.s32 %v777, 1
        %v930 = vadd.s32 %v778, 1
        %v931 = vadd.s32 %v779, 1
        %v932 = vadd.s32 %v780, 1
        %v933 = vadd.s32 %v781, 1
        %v934 = vadd.s32 %v782, 1
        %v935 = vadd.s32 %v783, 1
        %v936 = vadd.s32 %v784, 1
        %vm937 = vcmp.ge.s32.totalorder %v929, 0
        %vm938 = vcmp.ge.s32.totalorder %v930, 0
        %vm939 = vcmp.ge.s32.totalorder %v931, 0
        %vm940 = vcmp.ge.s32.totalorder %v932, 0
        %vm941 = vcmp.ge.s32.totalorder %v933, 0
        %vm942 = vcmp.ge.s32.totalorder %v934, 0
        %vm943 = vcmp.ge.s32.totalorder %v935, 0
        %vm944 = vcmp.ge.s32.totalorder %v936, 0
        %vm945 = vcmp.lt.s32.totalorder %v929, 64
        %vm946 = vcmp.lt.s32.totalorder %v930, 64
        %vm947 = vcmp.lt.s32.totalorder %v931, 64
        %vm948 = vcmp.lt.s32.totalorder %v932, 64
        %vm949 = vcmp.lt.s32.totalorder %v933, 64
        %vm950 = vcmp.lt.s32.totalorder %v934, 64
        %vm951 = vcmp.lt.s32.totalorder %v935, 64
        %vm952 = vcmp.lt.s32.totalorder %v936, 64
        %vm953 = vmand %vm937, %vm945
        %vm954 = vmand %vm938, %vm946
        %vm955 = vmand %vm939, %vm947
        %vm956 = vmand %vm940, %vm948
        %vm957 = vmand %vm941, %vm949
        %vm958 = vmand %vm942, %vm950
        %vm959 = vmand %vm943, %vm951
        %vm960 = vmand %vm944, %vm952
        %v961 = vsel %vm953, 1, 0
        %v962 = vsel %vm954, 1, 0
        %v963 = vsel %vm955, 1, 0
        %v964 = vsel %vm956, 1, 0
        %v965 = vsel %vm957, 1, 0
        %v966 = vsel %vm958, 1, 0
        %v967 = vsel %vm959, 1, 0
        %v968 = vsel %vm960, 1, 0
        %v969 = vcvt.s32.f32 %v961
        %v970 = vcvt.s32.f32 %v962
        %v971 = vcvt.s32.f32 %v963
        %v972 = vcvt.s32.f32 %v964
        %v973 = vcvt.s32.f32 %v965
        %v974 = vcvt.s32.f32 %v966
        %v975 = vcvt.s32.f32 %v967
        %v976 = vcvt.s32.f32 %v968
        %v977 = vadd.s32 %v777, 2
        %v978 = vadd.s32 %v778, 2
        %v979 = vadd.s32 %v779, 2
        %v980 = vadd.s32 %v780, 2
        %v981 = vadd.s32 %v781, 2
        %v982 = vadd.s32 %v782, 2
        %v983 = vadd.s32 %v783, 2
        %v984 = vadd.s32 %v784, 2
        %vm985 = vcmp.ge.s32.totalorder %v977, 0
        %vm986 = vcmp.ge.s32.totalorder %v978, 0
        %vm987 = vcmp.ge.s32.totalorder %v979, 0
        %vm988 = vcmp.ge.s32.totalorder %v980, 0
        %vm989 = vcmp.ge.s32.totalorder %v981, 0
        %vm990 = vcmp.ge.s32.totalorder %v982, 0
        %vm991 = vcmp.ge.s32.totalorder %v983, 0
        %vm992 = vcmp.ge.s32.totalorder %v984, 0
        %vm993 = vcmp.lt.s32.totalorder %v977, 64
        %vm994 = vcmp.lt.s32.totalorder %v978, 64
        %vm995 = vcmp.lt.s32.totalorder %v979, 64
        %vm996 = vcmp.lt.s32.totalorder %v980, 64
        %vm997 = vcmp.lt.s32.totalorder %v981, 64
        %vm998 = vcmp.lt.s32.totalorder %v982, 64
        %vm999 = vcmp.lt.s32.totalorder %v983, 64
        %vm1000 = vcmp.lt.s32.totalorder %v984, 64
        %vm1001 = vmand %vm985, %vm993
        %vm1002 = vmand %vm986, %vm994
        %vm1003 = vmand %vm987, %vm995
        %vm1004 = vmand %vm988, %vm996
        %vm1005 = vmand %vm989, %vm997
        %vm1006 = vmand %vm990, %vm998
        %vm1007 = vmand %vm991, %vm999
        %vm1008 = vmand %vm992, %vm1000
        %v1009 = vsel %vm1001, 1, 0
        %v1010 = vsel %vm1002, 1, 0
        %v1011 = vsel %vm1003, 1, 0
        %v1012 = vsel %vm1004, 1, 0
        %v1013 = vsel %vm1005, 1, 0
        %v1014 = vsel %vm1006, 1, 0
        %v1015 = vsel %vm1007, 1, 0
        %v1016 = vsel %vm1008, 1, 0
        %v1017 = vcvt.s32.f32 %v1009
        %v1018 = vcvt.s32.f32 %v1010
        %v1019 = vcvt.s32.f32 %v1011
        %v1020 = vcvt.s32.f32 %v1012
        %v1021 = vcvt.s32.f32 %v1013
        %v1022 = vcvt.s32.f32 %v1014
        %v1023 = vcvt.s32.f32 %v1015
        %v1024 = vcvt.s32.f32 %v1016
        %v1025 = vadd.s32 %v777, 3
        %v1026 = vadd.s32 %v778, 3
        %v1027 = vadd.s32 %v779, 3
        %v1028 = vadd.s32 %v780, 3
        %v1029 = vadd.s32 %v781, 3
        %v1030 = vadd.s32 %v782, 3
        %v1031 = vadd.s32 %v783, 3
        %v1032 = vadd.s32 %v784, 3
        %vm1033 = vcmp.ge.s32.totalorder %v1025, 0
        %vm1034 = vcmp.ge.s32.totalorder %v1026, 0
        %vm1035 = vcmp.ge.s32.totalorder %v1027, 0
        %vm1036 = vcmp.ge.s32.totalorder %v1028, 0
        %vm1037 = vcmp.ge.s32.totalorder %v1029, 0
        %vm1038 = vcmp.ge.s32.totalorder %v1030, 0
        %vm1039 = vcmp.ge.s32.totalorder %v1031, 0
        %vm1040 = vcmp.ge.s32.totalorder %v1032, 0
        %vm1041 = vcmp.lt.s32.totalorder %v1025, 64
        %vm1042 = vcmp.lt.s32.totalorder %v1026, 64
        %vm1043 = vcmp.lt.s32.totalorder %v1027, 64
        %vm1044 = vcmp.lt.s32.totalorder %v1028, 64
        %vm1045 = vcmp.lt.s32.totalorder %v1029, 64
        %vm1046 = vcmp.lt.s32.totalorder %v1030, 64
        %vm1047 = vcmp.lt.s32.totalorder %v1031, 64
        %vm1048 = vcmp.lt.s32.totalorder %v1032, 64
        %vm1049 = vmand %vm1033, %vm1041
        %vm1050 = vmand %vm1034, %vm1042
        %vm1051 = vmand %vm1035, %vm1043
        %vm1052 = vmand %vm1036, %vm1044
        %vm1053 = vmand %vm1037, %vm1045
        %vm1054 = vmand %vm1038, %vm1046
        %vm1055 = vmand %vm1039, %vm1047
        %vm1056 = vmand %vm1040, %vm1048
        %v1057 = vsel %vm1049, 1, 0
        %v1058 = vsel %vm1050, 1, 0
        %v1059 = vsel %vm1051, 1, 0
        %v1060 = vsel %vm1052, 1, 0
        %v1061 = vsel %vm1053, 1, 0
        %v1062 = vsel %vm1054, 1, 0
        %v1063 = vsel %vm1055, 1, 0
        %v1064 = vsel %vm1056, 1, 0
        %v1065 = vcvt.s32.f32 %v1057
        %v1066 = vcvt.s32.f32 %v1058
        %v1067 = vcvt.s32.f32 %v1059
        %v1068 = vcvt.s32.f32 %v1060
        %v1069 = vcvt.s32.f32 %v1061
        %v1070 = vcvt.s32.f32 %v1062
        %v1071 = vcvt.s32.f32 %v1063
        %v1072 = vcvt.s32.f32 %v1064
        %v1073 = vld [vmem:[%s5 + $0x3] sm:$0x1]
        %v1074 = vlaneseq
        %v1075 = vshrl.u32 %v1074, 7
        %v1076 = vsub.s32 0, %v1075
        %v1077 = vrot.slane %v1073, %v1076
        %v1078 = vmul.f32 %v768, %v1077
        %v1079 = vmul.f32 %v769, %v1077
        %v1080 = vmul.f32 %v770, %v1077
        %v1081 = vmul.f32 %v771, %v1077
        %v1082 = vmul.f32 %v772, %v1077
        %v1083 = vmul.f32 %v773, %v1077
        %v1084 = vmul.f32 %v774, %v1077
        %v1085 = vmul.f32 %v775, %v1077
        %v1086 = vrot.slane %v768, 5
        %v1087 = vrot.slane %v769, 5
        %v1088 = vrot.slane %v770, 5
        %v1089 = vrot.slane %v771, 5
        %v1090 = vrot.slane %v772, 5
        %v1091 = vrot.slane %v773, 5
        %v1092 = vrot.slane %v774, 5
        %v1093 = vrot.slane %v775, 5
        %vm1094 = vcmp.lt.s32.totalorder %v777, 3
        %v1095 = vsel %vm1094, %v1092, %v1093
        %v1096 = vsel %vm1094, %v1091, %v1092
        %v1097 = vsel %vm1094, %v1090, %v1091
        %v1098 = vsel %vm1094, %v1089, %v1090
        %v1099 = vsel %vm1094, %v1088, %v1089
        %v1100 = vsel %vm1094, %v1087, %v1088
        %v1101 = vsel %vm1094, %v1086, %v1087
        %v1102 = vsel %vm1094, %v1093, %v1086
        %v1103 = vmul.f32 %v1102, %v825
        %v1104 = vmul.f32 %v1101, %v826
        %v1105 = vmul.f32 %v1100, %v827
        %v1106 = vmul.f32 %v1099, %v828
        %v1107 = vmul.f32 %v1098, %v829
        %v1108 = vmul.f32 %v1097, %v830
        %v1109 = vmul.f32 %v1096, %v831
        %v1110 = vmul.f32 %v1095, %v832
        %v1111 = vld [vmem:[%s5] sm:$0x1]
        %v1112 = vlaneseq
        %v1113 = vshrl.u32 %v1112, 7
        %v1114 = vsub.s32 0, %v1113
        %v1115 = vrot.slane %v1111, %v1114
        %v1116 = vmul.f32 %v1103, %v1115
        %v1117 = vmul.f32 %v1104, %v1115
        %v1118 = vmul.f32 %v1105, %v1115
        %v1119 = vmul.f32 %v1106, %v1115
        %v1120 = vmul.f32 %v1107, %v1115
        %v1121 = vmul.f32 %v1108, %v1115
        %v1122 = vmul.f32 %v1109, %v1115
        %v1123 = vmul.f32 %v1110, %v1115
        %v1124 = vadd.f32 %v1078, %v1116
        %v1125 = vadd.f32 %v1079, %v1117
        %v1126 = vadd.f32 %v1080, %v1118
        %v1127 = vadd.f32 %v1081, %v1119
        %v1128 = vadd.f32 %v1082, %v1120
        %v1129 = vadd.f32 %v1083, %v1121
        %v1130 = vadd.f32 %v1084, %v1122
        %v1131 = vadd.f32 %v1085, %v1123
        %v1132 = vrot.slane %v768, 6
        %v1133 = vrot.slane %v769, 6
        %v1134 = vrot.slane %v770, 6
        %v1135 = vrot.slane %v771, 6
        %v1136 = vrot.slane %v772, 6
        %v1137 = vrot.slane %v773, 6
        %v1138 = vrot.slane %v774, 6
        %v1139 = vrot.slane %v775, 6
        %vm1140 = vcmp.lt.s32.totalorder %v777, 2
        %v1141 = vsel %vm1140, %v1138, %v1139
        %v1142 = vsel %vm1140, %v1137, %v1138
        %v1143 = vsel %vm1140, %v1136, %v1137
        %v1144 = vsel %vm1140, %v1135, %v1136
        %v1145 = vsel %vm1140, %v1134, %v1135
        %v1146 = vsel %vm1140, %v1133, %v1134
        %v1147 = vsel %vm1140, %v1132, %v1133
        %v1148 = vsel %vm1140, %v1139, %v1132
        %v1149 = vmul.f32 %v1148, %v873
        %v1150 = vmul.f32 %v1147, %v874
        %v1151 = vmul.f32 %v1146, %v875
        %v1152 = vmul.f32 %v1145, %v876
        %v1153 = vmul.f32 %v1144, %v877
        %v1154 = vmul.f32 %v1143, %v878
        %v1155 = vmul.f32 %v1142, %v879
        %v1156 = vmul.f32 %v1141, %v880
        %v1157 = vld [vmem:[%s5 + $0x1] sm:$0x1]
        %v1158 = vlaneseq
        %v1159 = vshrl.u32 %v1158, 7
        %v1160 = vsub.s32 0, %v1159
        %v1161 = vrot.slane %v1157, %v1160
        %v1162 = vmul.f32 %v1149, %v1161
        %v1163 = vmul.f32 %v1150, %v1161
        %v1164 = vmul.f32 %v1151, %v1161
        %v1165 = vmul.f32 %v1152, %v1161
        %v1166 = vmul.f32 %v1153, %v1161
        %v1167 = vmul.f32 %v1154, %v1161
        %v1168 = vmul.f32 %v1155, %v1161
        %v1169 = vmul.f32 %v1156, %v1161
        %v1170 = vadd.f32 %v1124, %v1162
        %v1171 = vadd.f32 %v1125, %v1163
        %v1172 = vadd.f32 %v1126, %v1164
        %v1173 = vadd.f32 %v1127, %v1165
        %v1174 = vadd.f32 %v1128, %v1166
        %v1175 = vadd.f32 %v1129, %v1167
        %v1176 = vadd.f32 %v1130, %v1168
        %v1177 = vadd.f32 %v1131, %v1169
        %v1178 = vrot.slane %v768, 7
        %v1179 = vrot.slane %v769, 7
        %v1180 = vrot.slane %v770, 7
        %v1181 = vrot.slane %v771, 7
        %v1182 = vrot.slane %v772, 7
        %v1183 = vrot.slane %v773, 7
        %v1184 = vrot.slane %v774, 7
        %v1185 = vrot.slane %v775, 7
        %vm1186 = vcmp.lt.s32.totalorder %v777, 1
        %v1187 = vsel %vm1186, %v1184, %v1185
        %v1188 = vsel %vm1186, %v1183, %v1184
        %v1189 = vsel %vm1186, %v1182, %v1183
        %v1190 = vsel %vm1186, %v1181, %v1182
        %v1191 = vsel %vm1186, %v1180, %v1181
        %v1192 = vsel %vm1186, %v1179, %v1180
        %v1193 = vsel %vm1186, %v1178, %v1179
        %v1194 = vsel %vm1186, %v1185, %v1178
        %v1195 = vmul.f32 %v1194, %v921
        %v1196 = vmul.f32 %v1193, %v922
        %v1197 = vmul.f32 %v1192, %v923
        %v1198 = vmul.f32 %v1191, %v924
        %v1199 = vmul.f32 %v1190, %v925
        %v1200 = vmul.f32 %v1189, %v926
        %v1201 = vmul.f32 %v1188, %v927
        %v1202 = vmul.f32 %v1187, %v928
        %v1203 = vld [vmem:[%s5 + $0x2] sm:$0x1]
        %v1204 = vlaneseq
        %v1205 = vshrl.u32 %v1204, 7
        %v1206 = vsub.s32 0, %v1205
        %v1207 = vrot.slane %v1203, %v1206
        %v1208 = vmul.f32 %v1195, %v1207
        %v1209 = vmul.f32 %v1196, %v1207
        %v1210 = vmul.f32 %v1197, %v1207
        %v1211 = vmul.f32 %v1198, %v1207
        %v1212 = vmul.f32 %v1199, %v1207
        %v1213 = vmul.f32 %v1200, %v1207
        %v1214 = vmul.f32 %v1201, %v1207
        %v1215 = vmul.f32 %v1202, %v1207
        %v1216 = vadd.f32 %v1170, %v1208
        %v1217 = vadd.f32 %v1171, %v1209
        %v1218 = vadd.f32 %v1172, %v1210
        %v1219 = vadd.f32 %v1173, %v1211
        %v1220 = vadd.f32 %v1174, %v1212
        %v1221 = vadd.f32 %v1175, %v1213
        %v1222 = vadd.f32 %v1176, %v1214
        %v1223 = vadd.f32 %v1177, %v1215
        %v1224 = vrot.slane %v768, 1
        %v1225 = vrot.slane %v769, 1
        %v1226 = vrot.slane %v770, 1
        %v1227 = vrot.slane %v771, 1
        %v1228 = vrot.slane %v772, 1
        %v1229 = vrot.slane %v773, 1
        %v1230 = vrot.slane %v774, 1
        %v1231 = vrot.slane %v775, 1
        %vm1232 = vcmp.lt.s32.totalorder %v777, 7
        %v1233 = vsel %vm1232, %v1230, %v1231
        %v1234 = vsel %vm1232, %v1229, %v1230
        %v1235 = vsel %vm1232, %v1228, %v1229
        %v1236 = vsel %vm1232, %v1227, %v1228
        %v1237 = vsel %vm1232, %v1226, %v1227
        %v1238 = vsel %vm1232, %v1225, %v1226
        %v1239 = vsel %vm1232, %v1224, %v1225
        %v1240 = vsel %vm1232, %v1231, %v1224
        %v1241 = vmul.f32 %v1239, %v969
        %v1242 = vmul.f32 %v1238, %v970
        %v1243 = vmul.f32 %v1237, %v971
        %v1244 = vmul.f32 %v1236, %v972
        %v1245 = vmul.f32 %v1235, %v973
        %v1246 = vmul.f32 %v1234, %v974
        %v1247 = vmul.f32 %v1233, %v975
        %v1248 = vmul.f32 %v1240, %v976
        %v1249 = vld [vmem:[%s5 + $0x4] sm:$0x1]
        %v1250 = vlaneseq
        %v1251 = vshrl.u32 %v1250, 7
        %v1252 = vsub.s32 0, %v1251
        %v1253 = vrot.slane %v1249, %v1252
        %v1254 = vmul.f32 %v1241, %v1253
        %v1255 = vmul.f32 %v1242, %v1253
        %v1256 = vmul.f32 %v1243, %v1253
        %v1257 = vmul.f32 %v1244, %v1253
        %v1258 = vmul.f32 %v1245, %v1253
        %v1259 = vmul.f32 %v1246, %v1253
        %v1260 = vmul.f32 %v1247, %v1253
        %v1261 = vmul.f32 %v1248, %v1253
        %v1262 = vadd.f32 %v1216, %v1254
        %v1263 = vadd.f32 %v1217, %v1255
        %v1264 = vadd.f32 %v1218, %v1256
        %v1265 = vadd.f32 %v1219, %v1257
        %v1266 = vadd.f32 %v1220, %v1258
        %v1267 = vadd.f32 %v1221, %v1259
        %v1268 = vadd.f32 %v1222, %v1260
        %v1269 = vadd.f32 %v1223, %v1261
        %v1270 = vrot.slane %v768, 2
        %v1271 = vrot.slane %v769, 2
        %v1272 = vrot.slane %v770, 2
        %v1273 = vrot.slane %v771, 2
        %v1274 = vrot.slane %v772, 2
        %v1275 = vrot.slane %v773, 2
        %v1276 = vrot.slane %v774, 2
        %v1277 = vrot.slane %v775, 2
        %vm1278 = vcmp.lt.s32.totalorder %v777, 6
        %v1279 = vsel %vm1278, %v1276, %v1277
        %v1280 = vsel %vm1278, %v1275, %v1276
        %v1281 = vsel %vm1278, %v1274, %v1275
        %v1282 = vsel %vm1278, %v1273, %v1274
        %v1283 = vsel %vm1278, %v1272, %v1273
        %v1284 = vsel %vm1278, %v1271, %v1272
        %v1285 = vsel %vm1278, %v1270, %v1271
        %v1286 = vsel %vm1278, %v1277, %v1270
        %v1287 = vmul.f32 %v1285, %v1017
        %v1288 = vmul.f32 %v1284, %v1018
        %v1289 = vmul.f32 %v1283, %v1019
        %v1290 = vmul.f32 %v1282, %v1020
        %v1291 = vmul.f32 %v1281, %v1021
        %v1292 = vmul.f32 %v1280, %v1022
        %v1293 = vmul.f32 %v1279, %v1023
        %v1294 = vmul.f32 %v1286, %v1024
        %v1295 = vld [vmem:[%s5 + $0x5] sm:$0x1]
        %v1296 = vlaneseq
        %v1297 = vshrl.u32 %v1296, 7
        %v1298 = vsub.s32 0, %v1297
        %v1299 = vrot.slane %v1295, %v1298
        %v1300 = vmul.f32 %v1287, %v1299
        %v1301 = vmul.f32 %v1288, %v1299
        %v1302 = vmul.f32 %v1289, %v1299
        %v1303 = vmul.f32 %v1290, %v1299
        %v1304 = vmul.f32 %v1291, %v1299
        %v1305 = vmul.f32 %v1292, %v1299
        %v1306 = vmul.f32 %v1293, %v1299
        %v1307 = vmul.f32 %v1294, %v1299
        %v1308 = vadd.f32 %v1262, %v1300
        %v1309 = vadd.f32 %v1263, %v1301
        %v1310 = vadd.f32 %v1264, %v1302
        %v1311 = vadd.f32 %v1265, %v1303
        %v1312 = vadd.f32 %v1266, %v1304
        %v1313 = vadd.f32 %v1267, %v1305
        %v1314 = vadd.f32 %v1268, %v1306
        %v1315 = vadd.f32 %v1269, %v1307
        %v1316 = vrot.slane %v768, 3
        %v1317 = vrot.slane %v769, 3
        %v1318 = vrot.slane %v770, 3
        %v1319 = vrot.slane %v771, 3
        %v1320 = vrot.slane %v772, 3
        %v1321 = vrot.slane %v773, 3
        %v1322 = vrot.slane %v774, 3
        %v1323 = vrot.slane %v775, 3
        %vm1324 = vcmp.lt.s32.totalorder %v777, 5
        %v1325 = vsel %vm1324, %v1322, %v1323
        %v1326 = vsel %vm1324, %v1321, %v1322
        %v1327 = vsel %vm1324, %v1320, %v1321
        %v1328 = vsel %vm1324, %v1319, %v1320
        %v1329 = vsel %vm1324, %v1318, %v1319
        %v1330 = vsel %vm1324, %v1317, %v1318
        %v1331 = vsel %vm1324, %v1316, %v1317
        %v1332 = vsel %vm1324, %v1323, %v1316
        %v1333 = vmul.f32 %v1331, %v1065
        %v1334 = vmul.f32 %v1330, %v1066
        %v1335 = vmul.f32 %v1329, %v1067
        %v1336 = vmul.f32 %v1328, %v1068
        %v1337 = vmul.f32 %v1327, %v1069
        %v1338 = vmul.f32 %v1326, %v1070
        %v1339 = vmul.f32 %v1325, %v1071
        %v1340 = vmul.f32 %v1332, %v1072
        %v1341 = vld [vmem:[%s5 + $0x6] sm:$0x1]
        %v1342 = vlaneseq
        %v1343 = vshrl.u32 %v1342, 7
        %v1344 = vsub.s32 0, %v1343
        %v1345 = vrot.slane %v1341, %v1344
        %v1346 = vmul.f32 %v1333, %v1345
        %v1347 = vmul.f32 %v1334, %v1345
        %v1348 = vmul.f32 %v1335, %v1345
        %v1349 = vmul.f32 %v1336, %v1345
        %v1350 = vmul.f32 %v1337, %v1345
        %v1351 = vmul.f32 %v1338, %v1345
        %v1352 = vmul.f32 %v1339, %v1345
        %v1353 = vmul.f32 %v1340, %v1345
        %v1354 = vadd.f32 %v1308, %v1346
        %v1355 = vadd.f32 %v1309, %v1347
        %v1356 = vadd.f32 %v1310, %v1348
        %v1357 = vadd.f32 %v1311, %v1349
        %v1358 = vadd.f32 %v1312, %v1350
        %v1359 = vadd.f32 %v1313, %v1351
        %v1360 = vadd.f32 %v1314, %v1352
        %v1361 = vadd.f32 %v1315, %v1353
        %v1362 = vld [vmem:[%s6] sm:$0x1]
        %v1364 = vlaneseq
        %v1365 = vshrl.u32 %v1364, 7
        %v1366 = vsub.s32 0, %v1365
        %v1367 = vrot.slane %v1362, %v1366
        %v1369 = vadd.f32 %v1354, %v1367
        %v1370 = vadd.f32 %v1355, %v1367
        %v1371 = vadd.f32 %v1356, %v1367
        %v1372 = vadd.f32 %v1357, %v1367
        %v1373 = vadd.f32 %v1358, %v1367
        %v1374 = vadd.f32 %v1359, %v1367
        %v1375 = vadd.f32 %v1360, %v1367
        %v1376 = vadd.f32 %v1361, %v1367
        %v1377 = vld [vmem:[%s7] sm:$0x1]
        %v1378 = vld [vmem:[%s8] sm:$0x1]
        %v1379 = vsel %vm642, %v1369, 0.0
        %1380 = vadd.xlane.f32.xlu0 %v1379
        %v1381 = vpop.xlane.xlu0 %1380
        %v1382 = vsel %vm642, %v1370, 0.0
        %1383 = vadd.xlane.f32.xlu0 %v1382
        %v1384 = vpop.xlane.xlu0 %1383
        %v1385 = vsel %vm642, %v1371, 0.0
        %1386 = vadd.xlane.f32.xlu0 %v1385
        %v1387 = vpop.xlane.xlu0 %1386
        %v1388 = vsel %vm642, %v1372, 0.0
        %1389 = vadd.xlane.f32.xlu0 %v1388
        %v1390 = vpop.xlane.xlu0 %1389
        %v1391 = vsel %vm642, %v1373, 0.0
        %1392 = vadd.xlane.f32.xlu0 %v1391
        %v1393 = vpop.xlane.xlu0 %1392
        %v1394 = vsel %vm642, %v1374, 0.0
        %1395 = vadd.xlane.f32.xlu0 %v1394
        %v1396 = vpop.xlane.xlu0 %1395
        %v1397 = vsel %vm642, %v1375, 0.0
        %1398 = vadd.xlane.f32.xlu0 %v1397
        %v1399 = vpop.xlane.xlu0 %1398
        %v1400 = vsel %vm642, %v1376, 0.0
        %1401 = vadd.xlane.f32.xlu0 %v1400
        %v1402 = vpop.xlane.xlu0 %1401
        %v1403 = vmul.f32 %v1381, %v667
        %v1404 = vmul.f32 %v1384, %v667
        %v1405 = vmul.f32 %v1387, %v667
        %v1406 = vmul.f32 %v1390, %v667
        %v1407 = vmul.f32 %v1393, %v667
        %v1408 = vmul.f32 %v1396, %v667
        %v1409 = vmul.f32 %v1399, %v667
        %v1410 = vmul.f32 %v1402, %v667
        %v1411 = vsub.f32 %v1369, %v1403
        %v1412 = vsub.f32 %v1370, %v1404
        %v1413 = vsub.f32 %v1371, %v1405
        %v1414 = vsub.f32 %v1372, %v1406
        %v1415 = vsub.f32 %v1373, %v1407
        %v1416 = vsub.f32 %v1374, %v1408
        %v1417 = vsub.f32 %v1375, %v1409
        %v1418 = vsub.f32 %v1376, %v1410
        %v1419 = vmul.f32 %v1411, %v1411
        %v1420 = vmul.f32 %v1412, %v1412
        %v1421 = vmul.f32 %v1413, %v1413
        %v1422 = vmul.f32 %v1414, %v1414
        %v1423 = vmul.f32 %v1415, %v1415
        %v1424 = vmul.f32 %v1416, %v1416
        %v1425 = vmul.f32 %v1417, %v1417
        %v1426 = vmul.f32 %v1418, %v1418
        %v1427 = vsel %vm642, %v1419, 0.0
        %1428 = vadd.xlane.f32.xlu0 %v1427
        %v1429 = vpop.xlane.xlu0 %1428
        %v1430 = vsel %vm642, %v1420, 0.0
        %1431 = vadd.xlane.f32.xlu0 %v1430
        %v1432 = vpop.xlane.xlu0 %1431
        %v1433 = vsel %vm642, %v1421, 0.0
        %1434 = vadd.xlane.f32.xlu0 %v1433
        %v1435 = vpop.xlane.xlu0 %1434
        %v1436 = vsel %vm642, %v1422, 0.0
        %1437 = vadd.xlane.f32.xlu0 %v1436
        %v1438 = vpop.xlane.xlu0 %1437
        %v1439 = vsel %vm642, %v1423, 0.0
        %1440 = vadd.xlane.f32.xlu0 %v1439
        %v1441 = vpop.xlane.xlu0 %1440
        %v1442 = vsel %vm642, %v1424, 0.0
        %1443 = vadd.xlane.f32.xlu0 %v1442
        %v1444 = vpop.xlane.xlu0 %1443
        %v1445 = vsel %vm642, %v1425, 0.0
        %1446 = vadd.xlane.f32.xlu0 %v1445
        %v1447 = vpop.xlane.xlu0 %1446
        %v1448 = vsel %vm642, %v1426, 0.0
        %1449 = vadd.xlane.f32.xlu0 %v1448
        %v1450 = vpop.xlane.xlu0 %1449
        %v1451 = vmul.f32 %v1429, %v667
        %v1452 = vmul.f32 %v1432, %v667
        %v1453 = vmul.f32 %v1435, %v667
        %v1454 = vmul.f32 %v1438, %v667
        %v1455 = vmul.f32 %v1441, %v667
        %v1456 = vmul.f32 %v1444, %v667
        %v1457 = vmul.f32 %v1447, %v667
        %v1458 = vmul.f32 %v1450, %v667
        %v1459 = vadd.f32 %v1451, 1e-05
        %v1460 = vadd.f32 %v1452, 1e-05
        %v1461 = vadd.f32 %v1453, 1e-05
        %v1462 = vadd.f32 %v1454, 1e-05
        %v1463 = vadd.f32 %v1455, 1e-05
        %v1464 = vadd.f32 %v1456, 1e-05
        %v1465 = vadd.f32 %v1457, 1e-05
        %v1466 = vadd.f32 %v1458, 1e-05
        %v1467 = vrsqrt.pop %v1459
        %v1468 = vrsqrt.pop %v1460
        %v1469 = vrsqrt.pop %v1461
        %v1470 = vrsqrt.pop %v1462
        %v1471 = vrsqrt.pop %v1463
        %v1472 = vrsqrt.pop %v1464
        %v1473 = vrsqrt.pop %v1465
        %v1474 = vrsqrt.pop %v1466
        %v1475 = vmul.f32 %v1411, %v1467
        %v1476 = vmul.f32 %v1412, %v1468
        %v1477 = vmul.f32 %v1413, %v1469
        %v1478 = vmul.f32 %v1414, %v1470
        %v1479 = vmul.f32 %v1415, %v1471
        %v1480 = vmul.f32 %v1416, %v1472
        %v1481 = vmul.f32 %v1417, %v1473
        %v1482 = vmul.f32 %v1418, %v1474
        %v1484 = vlaneseq
        %v1485 = vshrl.u32 %v1484, 7
        %v1486 = vsub.s32 0, %v1485
        %v1487 = vrot.slane %v1377, %v1486
        %v1489 = vmul.f32 %v1475, %v1487
        %v1490 = vmul.f32 %v1476, %v1487
        %v1491 = vmul.f32 %v1477, %v1487
        %v1492 = vmul.f32 %v1478, %v1487
        %v1493 = vmul.f32 %v1479, %v1487
        %v1494 = vmul.f32 %v1480, %v1487
        %v1495 = vmul.f32 %v1481, %v1487
        %v1496 = vmul.f32 %v1482, %v1487
        %v1498 = vlaneseq
        %v1499 = vshrl.u32 %v1498, 7
        %v1500 = vsub.s32 0, %v1499
        %v1501 = vrot.slane %v1378, %v1500
        %v1503 = vadd.f32 %v1489, %v1501
        %v1504 = vadd.f32 %v1490, %v1501
        %v1505 = vadd.f32 %v1491, %v1501
        %v1506 = vadd.f32 %v1492, %v1501
        %v1507 = vadd.f32 %v1493, %v1501
        %v1508 = vadd.f32 %v1494, %v1501
        %v1509 = vadd.f32 %v1495, %v1501
        %v1510 = vadd.f32 %v1496, %v1501
        %v1511 = vpack.c.bf16 %v1504, %v1503
        %v1512 = vpack.c.bf16 %v1506, %v1505
        %v1513 = vpack.c.bf16 %v1508, %v1507
        %v1514 = vpack.c.bf16 %v1510, %v1509
        %v1515 = vld [vmem:[%s9] sm:$0xf]
        %v1516 = vld [vmem:[%s9 + $0x4] sm:$0xf]
        %v1517 = vld [vmem:[%s9 + $0x8] sm:$0xf]
        %v1518 = vld [vmem:[%s9 + $0xc] sm:$0xf]
        %v1519 = vld [vmem:[%s10] sm:$0x1]
        %v1521 = vlaneseq
        %v1522 = vshrl.u32 %v1521, 7
        %v1523 = vsub.s32 0, %v1522
        %v1524 = vrot.slane %v1519, %v1523
        %v1530 = vunpack.c.l.b16 %v1515
        %v1531 = vunpack.c.l.b16 %v1516
        %v1532 = vunpack.c.l.b16 %v1517
        %v1533 = vunpack.c.l.b16 %v1518
        %v1534 = vpack.c.b16 %v1531, %v1530
        %v1535 = vpack.c.b16 %v1533, %v1532
        %v1539 = vsel %vm642, %v1511, 0
        %v1542 = vsel %vm642, %v1512, 0
        %v1545 = vsel %vm642, %v1513, 0
        %v1548 = vsel %vm642, %v1514, 0
        %1550 = vmatprep.subr.bf16.mxu0 0
        %1551 = vmatpush1.bf16.msra.mxu0 0
        %1552 = vmatprep.subr.bf16.mxu0 0
        %1553 = vmatpush1.bf16.msra.mxu0 0
        %1554 = vmatprep.subr.bf16.mxu0 0
        %1555 = vmatpush1.bf16.msra.mxu0 0
        %1556 = vmatprep.subr.bf16.mxu0 0
        %1557 = vmatpush1.bf16.msra.mxu0 0
        %1558 = vmatprep.subr.bf16.mxu0 0
        %1559 = vmatpush1.bf16.msra.mxu0 0
        %1560 = vmatprep.subr.bf16.mxu0 0
        %1561 = vmatpush1.bf16.msra.mxu0 0
        %1562 = vmatprep.subr.bf16.mxu0 0
        %1563 = vmatpush1.bf16.msra.mxu0 %v1535
        %1564 = vmatprep.subr.bf16.mxu0 0
        %1565 = vmatpush1.bf16.msra.mxu0 %v1534
        %1566 = vmatprep.subr.bf16.mxu0 0
        %1567 = vmatpush2.bf16.msra.mxu0 0
        %1568 = vmatprep.subr.bf16.mxu0 0
        %1569 = vmatpush2.bf16.msra.mxu0 0
        %1570 = vmatprep.subr.bf16.mxu0 0
        %1571 = vmatpush2.bf16.msra.mxu0 0
        %1572 = vmatprep.subr.bf16.mxu0 0
        %1573 = vmatpush2.bf16.msra.mxu0 0
        %1574 = vmatprep.subr.bf16.mxu0 0
        %1575 = vmatpush2.bf16.msra.mxu0 0
        %1576 = vmatprep.subr.bf16.mxu0 0
        %1577 = vmatpush2.bf16.msra.mxu0 0
        %1578 = vmatprep.subr.bf16.mxu0 0
        %1579 = vmatpush2.bf16.msra.mxu0 0
        %1580 = vmatprep.subr.bf16.mxu0 0
        %1581 = vmatpush2.bf16.msra.mxu0 0
        %1582 = vmatprep.mubr.bf16.mxu0 0
        %1583 = vmatmul.mubr.bf16.gmra.mxu0 %v1539
        %v1584 = vpop.f32.mrf.mxu0
        %v1585 = vadd.f32 %v1524, %v1584
        %v1586 = vpop.f32.mrf.mxu0
        %v1587 = vpop.f32.mrf.mxu0
        %v1588 = vadd.f32 %v1524, %v1587
        %v1589 = vpop.f32.mrf.mxu0
        %1590 = vmatprep.mubr.bf16.mxu0 0
        %1591 = vmatmul.mubr.bf16.gmra.mxu0 %v1542
        %v1592 = vpop.f32.mrf.mxu0
        %v1593 = vadd.f32 %v1524, %v1592
        %v1594 = vpop.f32.mrf.mxu0
        %v1595 = vpop.f32.mrf.mxu0
        %v1596 = vadd.f32 %v1524, %v1595
        %v1597 = vpop.f32.mrf.mxu0
        %1598 = vmatprep.mubr.bf16.mxu0 0
        %1599 = vmatmul.mubr.bf16.gmra.mxu0 %v1545
        %v1600 = vpop.f32.mrf.mxu0
        %v1601 = vadd.f32 %v1524, %v1600
        %v1602 = vpop.f32.mrf.mxu0
        %v1603 = vpop.f32.mrf.mxu0
        %v1604 = vadd.f32 %v1524, %v1603
        %v1605 = vpop.f32.mrf.mxu0
        %1606 = vmatprep.mubr.bf16.mxu0 0
        %1607 = vmatmul.mubr.bf16.gmra.mxu0 %v1548
        %v1608 = vpop.f32.mrf.mxu0
        %v1609 = vadd.f32 %v1524, %v1608
        %v1610 = vpop.f32.mrf.mxu0
        %v1611 = vpop.f32.mrf.mxu0
        %v1612 = vadd.f32 %v1524, %v1611
        %v1613 = vpop.f32.mrf.mxu0
        %1614 = vdwg.mxu0
        %v1615 = vmul.f32 %v1585, 0.5
        %v1616 = vmul.f32 %v1588, 0.5
        %v1617 = vmul.f32 %v1593, 0.5
        %v1618 = vmul.f32 %v1596, 0.5
        %v1619 = vmul.f32 %v1601, 0.5
        %v1620 = vmul.f32 %v1604, 0.5
        %v1621 = vmul.f32 %v1609, 0.5
        %v1622 = vmul.f32 %v1612, 0.5
        %v1623 = vmul.f32 %v1585, 0.70710677
        %v1624 = vmul.f32 %v1588, 0.70710677
        %v1625 = vmul.f32 %v1593, 0.70710677
        %v1626 = vmul.f32 %v1596, 0.70710677
        %v1627 = vmul.f32 %v1601, 0.70710677
        %v1628 = vmul.f32 %v1604, 0.70710677
        %v1629 = vmul.f32 %v1609, 0.70710677
        %v1630 = vmul.f32 %v1612, 0.70710677
        %v1631 = verf.f32.pop %v1623
        %v1632 = verf.f32.pop %v1624
        %v1633 = verf.f32.pop %v1625
        %v1634 = verf.f32.pop %v1626
        %v1635 = verf.f32.pop %v1627
        %v1636 = verf.f32.pop %v1628
        %v1637 = verf.f32.pop %v1629
        %v1638 = verf.f32.pop %v1630
        %v1639 = vadd.f32 %v1631, 1.0
        %v1640 = vadd.f32 %v1632, 1.0
        %v1641 = vadd.f32 %v1633, 1.0
        %v1642 = vadd.f32 %v1634, 1.0
        %v1643 = vadd.f32 %v1635, 1.0
        %v1644 = vadd.f32 %v1636, 1.0
        %v1645 = vadd.f32 %v1637, 1.0
        %v1646 = vadd.f32 %v1638, 1.0
        %v1647 = vmul.f32 %v1615, %v1639
        %v1648 = vmul.f32 %v1616, %v1640
        %v1649 = vmul.f32 %v1617, %v1641
        %v1650 = vmul.f32 %v1618, %v1642
        %v1651 = vmul.f32 %v1619, %v1643
        %v1652 = vmul.f32 %v1620, %v1644
        %v1653 = vmul.f32 %v1621, %v1645
        %v1654 = vmul.f32 %v1622, %v1646
        %v1655 = vpack.c.bf16 %v1648, %v1647
        %v1656 = vpack.c.bf16 %v1650, %v1649
        %v1657 = vpack.c.bf16 %v1652, %v1651
        %v1658 = vpack.c.bf16 %v1654, %v1653
        %v1659 = vld [vmem:[#allocation2] sm:$0xf]
        %v1660 = vld [vmem:[#allocation2 + $0x4] sm:$0xf]
        %v1661 = vld [vmem:[#allocation2 + $0x8] sm:$0xf]
        %v1662 = vld [vmem:[#allocation2 + $0xc] sm:$0xf]
        %v1663 = vld [vmem:[#allocation2 + $0x10] sm:$0xf]
        %v1664 = vld [vmem:[#allocation2 + $0x14] sm:$0xf]
        %v1665 = vld [vmem:[#allocation2 + $0x18] sm:$0xf]
        %v1666 = vld [vmem:[#allocation2 + $0x1c] sm:$0xf]
        %v1667 = vld [vmem:[#allocation2 + $0x20] sm:$0xf]
        %v1668 = vld [vmem:[#allocation2 + $0x24] sm:$0xf]
        %v1669 = vld [vmem:[#allocation2 + $0x28] sm:$0xf]
        %v1670 = vld [vmem:[#allocation2 + $0x2c] sm:$0xf]
        %v1671 = vld [vmem:[#allocation2 + $0x30] sm:$0xf]
        %v1672 = vld [vmem:[#allocation2 + $0x34] sm:$0xf]
        %v1673 = vld [vmem:[#allocation2 + $0x38] sm:$0xf]
        %v1674 = vld [vmem:[#allocation2 + $0x3c] sm:$0xf]
        %v1675 = vld [vmem:[%s12] sm:$0x1]
        %v1677 = vlaneseq
        %v1678 = vshrl.u32 %v1677, 7
        %v1679 = vsub.s32 0, %v1678
        %v1680 = vrot.slane %v1675, %v1679
        %v1698 = vunpack.c.l.b16 %v1659
        %v1699 = vunpack.c.l.b16 %v1660
        %v1700 = vunpack.c.l.b16 %v1661
        %v1701 = vunpack.c.l.b16 %v1662
        %v1702 = vunpack.c.l.b16 %v1663
        %v1703 = vunpack.c.l.b16 %v1664
        %v1704 = vunpack.c.l.b16 %v1665
        %v1705 = vunpack.c.l.b16 %v1666
        %v1706 = vunpack.c.l.b16 %v1667
        %v1707 = vunpack.c.l.b16 %v1668
        %v1708 = vunpack.c.l.b16 %v1669
        %v1709 = vunpack.c.l.b16 %v1670
        %v1710 = vunpack.c.l.b16 %v1671
        %v1711 = vunpack.c.l.b16 %v1672
        %v1712 = vunpack.c.l.b16 %v1673
        %v1713 = vunpack.c.l.b16 %v1674
        %v1714 = vpack.c.b16 %v1699, %v1698
        %v1715 = vpack.c.b16 %v1701, %v1700
        %v1716 = vpack.c.b16 %v1703, %v1702
        %v1717 = vpack.c.b16 %v1705, %v1704
        %v1718 = vpack.c.b16 %v1707, %v1706
        %v1719 = vpack.c.b16 %v1709, %v1708
        %v1720 = vpack.c.b16 %v1711, %v1710
        %v1721 = vpack.c.b16 %v1713, %v1712
        %1730 = vmatprep.subr.bf16.mxu0 0
        %1731 = vmatpush1.bf16.msra.mxu0 %v1721
        %1732 = vmatprep.subr.bf16.mxu0 0
        %1733 = vmatpush1.bf16.msra.mxu0 %v1720
        %1734 = vmatprep.subr.bf16.mxu0 0
        %1735 = vmatpush1.bf16.msra.mxu0 %v1719
        %1736 = vmatprep.subr.bf16.mxu0 0
        %1737 = vmatpush1.bf16.msra.mxu0 %v1718
        %1738 = vmatprep.subr.bf16.mxu0 0
        %1739 = vmatpush1.bf16.msra.mxu0 %v1717
        %1740 = vmatprep.subr.bf16.mxu0 0
        %1741 = vmatpush1.bf16.msra.mxu0 %v1716
        %1742 = vmatprep.subr.bf16.mxu0 0
        %1743 = vmatpush1.bf16.msra.mxu0 %v1715
        %1744 = vmatprep.subr.bf16.mxu0 0
        %1745 = vmatpush1.bf16.msra.mxu0 %v1714
        %1746 = vmatprep.subr.bf16.mxu0 0
        %1747 = vmatpush2.bf16.msra.mxu0 0
        %1748 = vmatprep.subr.bf16.mxu0 0
        %1749 = vmatpush2.bf16.msra.mxu0 0
        %1750 = vmatprep.subr.bf16.mxu0 0
        %1751 = vmatpush2.bf16.msra.mxu0 0
        %1752 = vmatprep.subr.bf16.mxu0 0
        %1753 = vmatpush2.bf16.msra.mxu0 0
        %1754 = vmatprep.subr.bf16.mxu0 0
        %1755 = vmatpush2.bf16.msra.mxu0 0
        %1756 = vmatprep.subr.bf16.mxu0 0
        %1757 = vmatpush2.bf16.msra.mxu0 0
        %1758 = vmatprep.subr.bf16.mxu0 0
        %1759 = vmatpush2.bf16.msra.mxu0 0
        %1760 = vmatprep.subr.bf16.mxu0 0
        %1761 = vmatpush2.bf16.msra.mxu0 0
        %1762 = vmatprep.mubr.bf16.mxu0 0
        %1763 = vmatmul.mubr.bf16.gmra.mxu0 %v1655
        %v1764 = vpop.f32.mrf.mxu0
        %v1765 = vadd.f32 %v1680, %v1764
        %v1766 = vpop.f32.mrf.mxu0
        %v1767 = vpop.f32.mrf.mxu0
        %v1768 = vadd.f32 %v1680, %v1767
        %v1769 = vpop.f32.mrf.mxu0
        %1770 = vmatprep.mubr.bf16.mxu0 0
        %1771 = vmatmul.mubr.bf16.gmra.mxu0 %v1656
        %v1772 = vpop.f32.mrf.mxu0
        %v1773 = vadd.f32 %v1680, %v1772
        %v1774 = vpop.f32.mrf.mxu0
        %v1775 = vpop.f32.mrf.mxu0
        %v1776 = vadd.f32 %v1680, %v1775
        %v1777 = vpop.f32.mrf.mxu0
        %1778 = vmatprep.mubr.bf16.mxu0 0
        %1779 = vmatmul.mubr.bf16.gmra.mxu0 %v1657
        %v1780 = vpop.f32.mrf.mxu0
        %v1781 = vadd.f32 %v1680, %v1780
        %v1782 = vpop.f32.mrf.mxu0
        %v1783 = vpop.f32.mrf.mxu0
        %v1784 = vadd.f32 %v1680, %v1783
        %v1785 = vpop.f32.mrf.mxu0
        %1786 = vmatprep.mubr.bf16.mxu0 0
        %1787 = vmatmul.mubr.bf16.gmra.mxu0 %v1658
        %v1788 = vpop.f32.mrf.mxu0
        %v1789 = vadd.f32 %v1680, %v1788
        %v1790 = vpop.f32.mrf.mxu0
        %v1791 = vpop.f32.mrf.mxu0
        %v1792 = vadd.f32 %v1680, %v1791
        %v1793 = vpop.f32.mrf.mxu0
        %1794 = vdwg.mxu0
        %v1795 = vld [vmem:[%s13] sm:$0x1]
        %v1797 = vlaneseq
        %v1798 = vshrl.u32 %v1797, 7
        %v1799 = vsub.s32 0, %v1798
        %v1800 = vrot.slane %v1795, %v1799
        %v1802 = vmul.f32 %v1800, %v1765
        %v1803 = vmul.f32 %v1800, %v1768
        %v1804 = vmul.f32 %v1800, %v1773
        %v1805 = vmul.f32 %v1800, %v1776
        %v1806 = vmul.f32 %v1800, %v1781
        %v1807 = vmul.f32 %v1800, %v1784
        %v1808 = vmul.f32 %v1800, %v1789
        %v1809 = vmul.f32 %v1800, %v1792
        %v1810 = vadd.f32 %v768, %v1802
        %v1811 = vadd.f32 %v769, %v1803
        %v1812 = vadd.f32 %v770, %v1804
        %v1813 = vadd.f32 %v771, %v1805
        %v1814 = vadd.f32 %v772, %v1806
        %v1815 = vadd.f32 %v773, %v1807
        %v1816 = vadd.f32 %v774, %v1808
        %v1817 = vadd.f32 %v775, %v1809
        %v1818 = vld [vmem:[%s14] sm:$0x1]
        %v1819 = vld [vmem:[%s15] sm:$0x1]
        %v1820 = vsel %vm642, %v1810, 0.0
        %1821 = vadd.xlane.f32.xlu0 %v1820
        %v1822 = vpop.xlane.xlu0 %1821
        %v1823 = vsel %vm642, %v1811, 0.0
        %1824 = vadd.xlane.f32.xlu0 %v1823
        %v1825 = vpop.xlane.xlu0 %1824
        %v1826 = vsel %vm642, %v1812, 0.0
        %1827 = vadd.xlane.f32.xlu0 %v1826
        %v1828 = vpop.xlane.xlu0 %1827
        %v1829 = vsel %vm642, %v1813, 0.0
        %1830 = vadd.xlane.f32.xlu0 %v1829
        %v1831 = vpop.xlane.xlu0 %1830
        %v1832 = vsel %vm642, %v1814, 0.0
        %1833 = vadd.xlane.f32.xlu0 %v1832
        %v1834 = vpop.xlane.xlu0 %1833
        %v1835 = vsel %vm642, %v1815, 0.0
        %1836 = vadd.xlane.f32.xlu0 %v1835
        %v1837 = vpop.xlane.xlu0 %1836
        %v1838 = vsel %vm642, %v1816, 0.0
        %1839 = vadd.xlane.f32.xlu0 %v1838
        %v1840 = vpop.xlane.xlu0 %1839
        %v1841 = vsel %vm642, %v1817, 0.0
        %1842 = vadd.xlane.f32.xlu0 %v1841
        %v1843 = vpop.xlane.xlu0 %1842
        %v1844 = vmul.f32 %v1822, %v667
        %v1845 = vmul.f32 %v1825, %v667
        %v1846 = vmul.f32 %v1828, %v667
        %v1847 = vmul.f32 %v1831, %v667
        %v1848 = vmul.f32 %v1834, %v667
        %v1849 = vmul.f32 %v1837, %v667
        %v1850 = vmul.f32 %v1840, %v667
        %v1851 = vmul.f32 %v1843, %v667
        %v1852 = vsub.f32 %v1810, %v1844
        %v1853 = vsub.f32 %v1811, %v1845
        %v1854 = vsub.f32 %v1812, %v1846
        %v1855 = vsub.f32 %v1813, %v1847
        %v1856 = vsub.f32 %v1814, %v1848
        %v1857 = vsub.f32 %v1815, %v1849
        %v1858 = vsub.f32 %v1816, %v1850
        %v1859 = vsub.f32 %v1817, %v1851
        %v1860 = vmul.f32 %v1852, %v1852
        %v1861 = vmul.f32 %v1853, %v1853
        %v1862 = vmul.f32 %v1854, %v1854
        %v1863 = vmul.f32 %v1855, %v1855
        %v1864 = vmul.f32 %v1856, %v1856
        %v1865 = vmul.f32 %v1857, %v1857
        %v1866 = vmul.f32 %v1858, %v1858
        %v1867 = vmul.f32 %v1859, %v1859
        %v1868 = vsel %vm642, %v1860, 0.0
        %1869 = vadd.xlane.f32.xlu0 %v1868
        %v1870 = vpop.xlane.xlu0 %1869
        %v1871 = vsel %vm642, %v1861, 0.0
        %1872 = vadd.xlane.f32.xlu0 %v1871
        %v1873 = vpop.xlane.xlu0 %1872
        %v1874 = vsel %vm642, %v1862, 0.0
        %1875 = vadd.xlane.f32.xlu0 %v1874
        %v1876 = vpop.xlane.xlu0 %1875
        %v1877 = vsel %vm642, %v1863, 0.0
        %1878 = vadd.xlane.f32.xlu0 %v1877
        %v1879 = vpop.xlane.xlu0 %1878
        %v1880 = vsel %vm642, %v1864, 0.0
        %1881 = vadd.xlane.f32.xlu0 %v1880
        %v1882 = vpop.xlane.xlu0 %1881
        %v1883 = vsel %vm642, %v1865, 0.0
        %1884 = vadd.xlane.f32.xlu0 %v1883
        %v1885 = vpop.xlane.xlu0 %1884
        %v1886 = vsel %vm642, %v1866, 0.0
        %1887 = vadd.xlane.f32.xlu0 %v1886
        %v1888 = vpop.xlane.xlu0 %1887
        %v1889 = vsel %vm642, %v1867, 0.0
        %1890 = vadd.xlane.f32.xlu0 %v1889
        %v1891 = vpop.xlane.xlu0 %1890
        %v1892 = vmul.f32 %v1870, %v667
        %v1893 = vmul.f32 %v1873, %v667
        %v1894 = vmul.f32 %v1876, %v667
        %v1895 = vmul.f32 %v1879, %v667
        %v1896 = vmul.f32 %v1882, %v667
        %v1897 = vmul.f32 %v1885, %v667
        %v1898 = vmul.f32 %v1888, %v667
        %v1899 = vmul.f32 %v1891, %v667
        %v1900 = vadd.f32 %v1892, 1e-05
        %v1901 = vadd.f32 %v1893, 1e-05
        %v1902 = vadd.f32 %v1894, 1e-05
        %v1903 = vadd.f32 %v1895, 1e-05
        %v1904 = vadd.f32 %v1896, 1e-05
        %v1905 = vadd.f32 %v1897, 1e-05
        %v1906 = vadd.f32 %v1898, 1e-05
        %v1907 = vadd.f32 %v1899, 1e-05
        %v1908 = vrsqrt.pop %v1900
        %v1909 = vrsqrt.pop %v1901
        %v1910 = vrsqrt.pop %v1902
        %v1911 = vrsqrt.pop %v1903
        %v1912 = vrsqrt.pop %v1904
        %v1913 = vrsqrt.pop %v1905
        %v1914 = vrsqrt.pop %v1906
        %v1915 = vrsqrt.pop %v1907
        %v1916 = vmul.f32 %v1852, %v1908
        %v1917 = vmul.f32 %v1853, %v1909
        %v1918 = vmul.f32 %v1854, %v1910
        %v1919 = vmul.f32 %v1855, %v1911
        %v1920 = vmul.f32 %v1856, %v1912
        %v1921 = vmul.f32 %v1857, %v1913
        %v1922 = vmul.f32 %v1858, %v1914
        %v1923 = vmul.f32 %v1859, %v1915
        %v1925 = vlaneseq
        %v1926 = vshrl.u32 %v1925, 7
        %v1927 = vsub.s32 0, %v1926
        %v1928 = vrot.slane %v1818, %v1927
        %v1930 = vmul.f32 %v1916, %v1928
        %v1931 = vmul.f32 %v1917, %v1928
        %v1932 = vmul.f32 %v1918, %v1928
        %v1933 = vmul.f32 %v1919, %v1928
        %v1934 = vmul.f32 %v1920, %v1928
        %v1935 = vmul.f32 %v1921, %v1928
        %v1936 = vmul.f32 %v1922, %v1928
        %v1937 = vmul.f32 %v1923, %v1928
        %v1939 = vlaneseq
        %v1940 = vshrl.u32 %v1939, 7
        %v1941 = vsub.s32 0, %v1940
        %v1942 = vrot.slane %v1819, %v1941
        %v1944 = vadd.f32 %v1930, %v1942
        %v1945 = vadd.f32 %v1931, %v1942
        %v1946 = vadd.f32 %v1932, %v1942
        %v1947 = vadd.f32 %v1933, %v1942
        %v1948 = vadd.f32 %v1934, %v1942
        %v1949 = vadd.f32 %v1935, %v1942
        %v1950 = vadd.f32 %v1936, %v1942
        %v1951 = vadd.f32 %v1937, %v1942
        %1952 = vst.msk [vmem:[%s536] sm:$0xff] %vm642, %v1944
        %1953 = vst.msk [vmem:[%s536 + $0x8] sm:$0xff] %vm642, %v1945
        %1954 = vst.msk [vmem:[%s536 + $0x10] sm:$0xff] %vm642, %v1946
        %1955 = vst.msk [vmem:[%s536 + $0x18] sm:$0xff] %vm642, %v1947
        %1956 = vst.msk [vmem:[%s536 + $0x20] sm:$0xff] %vm642, %v1948
        %1957 = vst.msk [vmem:[%s536 + $0x28] sm:$0xff] %vm642, %v1949
        %1958 = vst.msk [vmem:[%s536 + $0x30] sm:$0xff] %vm642, %v1950
        %1959 = vst.msk [vmem:[%s536 + $0x38] sm:$0xff] %vm642, %v1951
        %p1960 = scmp.lt.s32.totalorder %s28, 1
        %s1961 = scalar_select %p1960, %s28, 1
        %s1962 = smul.addr %s1961, 8
        %s1963 = smul.addr %s1962, 8
        %s1964 = scalar_lea.vmem %s16, %s1963
        // Predicated region
        $region89: #{convnext1d_forward.4} parent=83 // pred_check
          %p1965 = pneg %p387
        $region90: #{convnext1d_forward.4} parent=83 // pred_check_branch
          %1967 = sbr.rel (%p1965) target = $region92
        $region91: #{convnext1d_forward.4} parent=83 // pred_region
          _
        $region92: #{convnext1d_forward.4} parent=83 // pred_fallthru
          _
      $region84: #{convnext1d_forward.4} parent=5 // pred_fallthru
        _
      %p1968 = scmp.le.s32.totalorder 2, %s23
      // Predicated region
      $region93: #{convnext1d_forward.4} parent=5 // pred_check
        %p1969 = pneg %p1968
      $region94: #{convnext1d_forward.4} parent=5 // pred_check_branch
        %1971 = sbr.rel (%p1969) target = $region96
      $region95: #{convnext1d_forward.4} parent=5 // pred_region
        %s1972 = ssub.s32 %s23, 2
        // Predicated region
        $region97: #{convnext1d_forward.4} parent=95 // pred_check
          %p1973 = pneg %p393
        $region98: #{convnext1d_forward.4} parent=95 // pred_check_branch
          %1975 = sbr.rel (%p1973) target = $region100
        $region99: #{convnext1d_forward.4} parent=95 // pred_region
          %p1976 = scmp.lt.s32.totalorder %s29, 1
          %s1977 = scalar_select %p1976, %s29, 1
          %s1978 = smul.addr %s1977, 8
          %s1979 = smul.addr %s1978, 8
          %s1980 = scalar_lea.vmem %s16, %s1979
        $region100: #{convnext1d_forward.4} parent=95 // pred_fallthru
          _
      $region96: #{convnext1d_forward.4} parent=5 // pred_fallthru
        _
    $region6: #{convnext1d_forward.4} parent=1 // loop_footer
      %s27 = sadd.s32 1, %s23
    $region7: #{convnext1d_forward.4} parent=1 // loop_footer_branch
      %22 = sbr.rel target = $region3
    $region8: #{convnext1d_forward.4} parent=1 // loop_exit
      _
    %1981 = vsyncpa [#allocation3], 1
    %s1982 = scalar_lea.sflag [#allocation3], 1
    %1983 = vsyncpa %s1982, 1

// kernel: convnext1d_forward.6
$region0: #{convnext1d_forward.6}
  #allocation0 [shape = 'u32[]', space=smem, size = 0x4, offset = 0x4, fixed_abs, tag = 'smem constant byte address 0x4 - core index']
  #allocation1 [shape = 'u32[144,128]{1,0:T(1,128)}', space=vmem, size = 0x12000, scoped, tag = 'internal scratch']
  %s0 = inlined_call_operand.vmem [shape: f32[2,16,128], index: 0, kind: input, shape index: {}]
  %s1 = inlined_call_operand.hbm [shape: bf16[128,128], index: 1, kind: input, shape index: {}]
  %s2 = inlined_call_operand.vmem [shape: f32[1,128], index: 2, kind: input, shape index: {}, may-alias: {2,13}]
  %s3 = inlined_call_operand.hbm [shape: f32[2,7,128], index: 3, kind: input, shape index: {}]
  %s4 = inlined_call_operand.vmem [shape: f32[2,128], index: 4, kind: input, shape index: {}, may-alias: {4,6,10}]
  %s5 = inlined_call_operand.vmem [shape: f32[2,128], index: 5, kind: input, shape index: {}]
  %s6 = inlined_call_operand.vmem [shape: f32[2,128], index: 6, kind: input, shape index: {}, may-alias: {4,6,10}]
  %s7 = inlined_call_operand.hbm [shape: bf16[2,128,512], index: 7, kind: input, shape index: {}]
  %s8 = inlined_call_operand.vmem [shape: f32[2,512], index: 8, kind: input, shape index: {}]
  %s9 = inlined_call_operand.hbm [shape: bf16[2,512,128], index: 9, kind: input, shape index: {}]
  %s10 = inlined_call_operand.vmem [shape: f32[2,128], index: 10, kind: input, shape index: {}, may-alias: {4,6,10}]
  %s11 = inlined_call_operand.vmem [shape: f32[2,128], index: 11, kind: input, shape index: {}]
  %s12 = inlined_call_operand.vmem [shape: f32[1,128], index: 12, kind: input, shape index: {}]
  %s13 = inlined_call_operand.vmem [shape: f32[1,128], index: 13, kind: input, shape index: {}, may-alias: {2,13}]
  %s14 = inlined_call_operand.vmem [shape: f32[2,16,128], index: 14, kind: output, shape index: {}]
  %s15 = sld [smem:[#allocation0]]
  $region105: #{convnext1d_forward.6} parent=0
    _
  %s17 = ssub.s32 1, %s15
  %s18 = scalar_select 0, %s17, %s15
  $region1: #{convnext1d_forward.6} parent=0
    #allocation2 [shape = 'u8[32768]{0}', space=vmem, size = 0x8000, scoped, tag = 'input window, operand 1, single buffered']
    #allocation3 [shape = 's32[2]{0}', space=sflag, size = 0x8, scoped, tag = 'scoped memory for convnext1d_forward.6']
    #allocation4 [shape = 'u8[8192]{0}', space=vmem, size = 0x2000, scoped, tag = 'input window, operand 3, single buffered']
    #allocation5 [shape = 's32[1]{0}', space=sflag, size = 0x4, scoped, tag = 'scoped memory for convnext1d_forward.6']
    #allocation6 [shape = 'u8[262144]{0}', space=vmem, size = 0x40000, scoped, tag = 'input window, operand 7, single buffered']
    #allocation7 [shape = 'u8[262144]{0}', space=vmem, size = 0x40000, scoped, tag = 'input window, operand 9, single buffered']
    #allocation8 [shape = 's32[1]{0}', space=sflag, size = 0x4, scoped, tag = 'scoped memory for convnext1d_forward.6']
    %19 = vsyncpa [#allocation3], 0
    %20 = vsyncpa [#allocation5], 0
    %21 = vsyncpa [#allocation8], 0
    loop: start=0, step=1, limit=4
    $region2: #{convnext1d_forward.6} parent=1 // loop_pre_header
      _
    $region3: #{convnext1d_forward.6} parent=1 // loop_header
      %s23 = sphi 0, %s27
      %p24 = scmp.ge.s32.totalorder %s23, 4
      %s33 = sphi 0, %s35
      %s36 = sphi 0, %s33
      %s37 = sphi 0, %s36
      %s53 = sphi 0, %s37
      %s57 = sphi 0, %s57
      %s59 = sphi 0, %s57
      %s60 = sphi 0, %s59
      %s74 = sphi 0, %s60
      %s78 = sphi 0, %s78
      %s80 = sphi 0, %s78
      %s81 = sphi 0, %s80
      %s95 = sphi 0, %s81
      %s99 = sphi 0, %s99
      %s101 = sphi 0, %s99
      %s102 = sphi 0, %s101
      %s116 = sphi 0, %s102
      %s120 = sphi 0, %s120
      %s122 = sphi 0, %s120
      %s123 = sphi 0, %s122
      %s137 = sphi 0, %s123
      %s141 = sphi 0, %s141
      %s143 = sphi 0, %s141
      %s144 = sphi 0, %s143
      %s158 = sphi 0, %s144
      %s162 = sphi 0, %s162
      %s164 = sphi 0, %s162
      %s165 = sphi 0, %s164
      %s179 = sphi 0, %s165
      %s183 = sphi 0, %s183
      %s185 = sphi 0, %s183
      %s186 = sphi 0, %s185
      %s200 = sphi 0, %s186
      %s204 = sphi 0, %s204
      %s206 = sphi 0, %s204
      %s207 = sphi 0, %s206
      %s221 = sphi 0, %s207
      %s225 = sphi 0, %s225
      %s227 = sphi 0, %s225
      %s228 = sphi 0, %s227
      %s242 = sphi 0, %s228
      %s246 = sphi 0, %s246
      %s248 = sphi 0, %s246
      %s249 = sphi 0, %s248
      %s263 = sphi 0, %s249
      %s267 = sphi 0, %s267
      %s269 = sphi 0, %s267
      %s270 = sphi 0, %s269
      %s284 = sphi 0, %s270
      %s288 = sphi 0, %s288
      %s290 = sphi 0, %s288
      %s291 = sphi 0, %s290
      %s305 = sphi 0, %s291
      %s309 = sphi 0, %s309
      %s311 = sphi 0, %s309
      %s312 = sphi 0, %s311
      %s326 = sphi 0, %s312
      %s332 = sphi 0, %s334
      %s335 = sphi 0, %s332
      %s336 = sphi 0, %s335
      %s352 = sphi 0, %s336
    $region4: #{convnext1d_forward.6} parent=1 // loop_header_branch
      %26 = sbr.rel (%p24) target = $region8
    $region5: #{convnext1d_forward.6} parent=1 // loop_body
      %s28 = ssub.s32 %s23, 1
      %s29 = ssub.s32 %s23, 2
      %s30 = sadd.s32 %s23, 1
      %s31 = ssub.s32 %s23, %s30
      %p32 = scmp.eq.s32.totalorder %s31, 0
      %s34 = sadd.s32 %s33, 1
      %s35 = scalar_select %p32, %s33, %s34
      %p38 = pneg %p32
      %p39 = scmp.eq.s32.totalorder %s23, 1
      %p40 = por %p38, %p39
      %p41 = scmp.ne.s32.totalorder %s33, %s36
      %p42 = scmp.eq.s32.totalorder %s23, 0
      %p43 = por %p41, %p42
      %p44 = scmp.ne.s32.totalorder %s33, %s36
      %p45 = scmp.eq.s32.totalorder %s28, 1
      %p46 = por %p44, %p45
      %p47 = scmp.ne.s32.totalorder %s36, %s37
      %p48 = scmp.eq.s32.totalorder %s28, 0
      %p49 = por %p47, %p48
      %p50 = scmp.ne.s32.totalorder %s36, %s37
      %p51 = scmp.eq.s32.totalorder %s29, 1
      %p52 = por %p50, %p51
      %p54 = scmp.ne.s32.totalorder %s37, %s53
      %p55 = scmp.eq.s32.totalorder %s29, 0
      %p56 = por %p54, %p55
      %s58 = sadd.s32 %s57, 1
      %p61 = scmp.eq.s32.totalorder %s23, 1
      %p62 = scmp.ne.s32.totalorder %s57, %s59
      %p63 = scmp.eq.s32.totalorder %s23, 0
      %p64 = por %p62, %p63
      %p65 = scmp.ne.s32.totalorder %s57, %s59
      %p66 = scmp.eq.s32.totalorder %s28, 1
      %p67 = por %p65, %p66
      %p68 = scmp.ne.s32.totalorder %s59, %s60
      %p69 = scmp.eq.s32.totalorder %s28, 0
      %p70 = por %p68, %p69
      %p71 = scmp.ne.s32.totalorder %s59, %s60
      %p72 = scmp.eq.s32.totalorder %s29, 1
      %p73 = por %p71, %p72
      %p75 = scmp.ne.s32.totalorder %s60, %s74
      %p76 = scmp.eq.s32.totalorder %s29, 0
      %p77 = por %p75, %p76
      %s79 = sadd.s32 %s78, 1
      %p82 = scmp.eq.s32.totalorder %s23, 1
      %p83 = scmp.ne.s32.totalorder %s78, %s80
      %p84 = scmp.eq.s32.totalorder %s23, 0
      %p85 = por %p83, %p84
      %p86 = scmp.ne.s32.totalorder %s78, %s80
      %p87 = scmp.eq.s32.totalorder %s28, 1
      %p88 = por %p86, %p87
      %p89 = scmp.ne.s32.totalorder %s80, %s81
      %p90 = scmp.eq.s32.totalorder %s28, 0
      %p91 = por %p89, %p90
      %p92 = scmp.ne.s32.totalorder %s80, %s81
      %p93 = scmp.eq.s32.totalorder %s29, 1
      %p94 = por %p92, %p93
      %p96 = scmp.ne.s32.totalorder %s81, %s95
      %p97 = scmp.eq.s32.totalorder %s29, 0
      %p98 = por %p96, %p97
      %s100 = sadd.s32 %s99, 1
      %p103 = scmp.eq.s32.totalorder %s23, 1
      %p104 = scmp.ne.s32.totalorder %s99, %s101
      %p105 = scmp.eq.s32.totalorder %s23, 0
      %p106 = por %p104, %p105
      %p107 = scmp.ne.s32.totalorder %s99, %s101
      %p108 = scmp.eq.s32.totalorder %s28, 1
      %p109 = por %p107, %p108
      %p110 = scmp.ne.s32.totalorder %s101, %s102
      %p111 = scmp.eq.s32.totalorder %s28, 0
      %p112 = por %p110, %p111
      %p113 = scmp.ne.s32.totalorder %s101, %s102
      %p114 = scmp.eq.s32.totalorder %s29, 1
      %p115 = por %p113, %p114
      %p117 = scmp.ne.s32.totalorder %s102, %s116
      %p118 = scmp.eq.s32.totalorder %s29, 0
      %p119 = por %p117, %p118
      %s121 = sadd.s32 %s120, 1
      %p124 = scmp.eq.s32.totalorder %s23, 1
      %p125 = scmp.ne.s32.totalorder %s120, %s122
      %p126 = scmp.eq.s32.totalorder %s23, 0
      %p127 = por %p125, %p126
      %p128 = scmp.ne.s32.totalorder %s120, %s122
      %p129 = scmp.eq.s32.totalorder %s28, 1
      %p130 = por %p128, %p129
      %p131 = scmp.ne.s32.totalorder %s122, %s123
      %p132 = scmp.eq.s32.totalorder %s28, 0
      %p133 = por %p131, %p132
      %p134 = scmp.ne.s32.totalorder %s122, %s123
      %p135 = scmp.eq.s32.totalorder %s29, 1
      %p136 = por %p134, %p135
      %p138 = scmp.ne.s32.totalorder %s123, %s137
      %p139 = scmp.eq.s32.totalorder %s29, 0
      %p140 = por %p138, %p139
      %s142 = sadd.s32 %s141, 1
      %p145 = scmp.eq.s32.totalorder %s23, 1
      %p146 = scmp.ne.s32.totalorder %s141, %s143
      %p147 = scmp.eq.s32.totalorder %s23, 0
      %p148 = por %p146, %p147
      %p149 = scmp.ne.s32.totalorder %s141, %s143
      %p150 = scmp.eq.s32.totalorder %s28, 1
      %p151 = por %p149, %p150
      %p152 = scmp.ne.s32.totalorder %s143, %s144
      %p153 = scmp.eq.s32.totalorder %s28, 0
      %p154 = por %p152, %p153
      %p155 = scmp.ne.s32.totalorder %s143, %s144
      %p156 = scmp.eq.s32.totalorder %s29, 1
      %p157 = por %p155, %p156
      %p159 = scmp.ne.s32.totalorder %s144, %s158
      %p160 = scmp.eq.s32.totalorder %s29, 0
      %p161 = por %p159, %p160
      %s163 = sadd.s32 %s162, 1
      %p166 = scmp.eq.s32.totalorder %s23, 1
      %p167 = scmp.ne.s32.totalorder %s162, %s164
      %p168 = scmp.eq.s32.totalorder %s23, 0
      %p169 = por %p167, %p168
      %p170 = scmp.ne.s32.totalorder %s162, %s164
      %p171 = scmp.eq.s32.totalorder %s28, 1
      %p172 = por %p170, %p171
      %p173 = scmp.ne.s32.totalorder %s164, %s165
      %p174 = scmp.eq.s32.totalorder %s28, 0
      %p175 = por %p173, %p174
      %p176 = scmp.ne.s32.totalorder %s164, %s165
      %p177 = scmp.eq.s32.totalorder %s29, 1
      %p178 = por %p176, %p177
      %p180 = scmp.ne.s32.totalorder %s165, %s179
      %p181 = scmp.eq.s32.totalorder %s29, 0
      %p182 = por %p180, %p181
      %s184 = sadd.s32 %s183, 1
      %p187 = scmp.eq.s32.totalorder %s23, 1
      %p188 = scmp.ne.s32.totalorder %s183, %s185
      %p189 = scmp.eq.s32.totalorder %s23, 0
      %p190 = por %p188, %p189
      %p191 = scmp.ne.s32.totalorder %s183, %s185
      %p192 = scmp.eq.s32.totalorder %s28, 1
      %p193 = por %p191, %p192
      %p194 = scmp.ne.s32.totalorder %s185, %s186
      %p195 = scmp.eq.s32.totalorder %s28, 0
      %p196 = por %p194, %p195
      %p197 = scmp.ne.s32.totalorder %s185, %s186
      %p198 = scmp.eq.s32.totalorder %s29, 1
      %p199 = por %p197, %p198
      %p201 = scmp.ne.s32.totalorder %s186, %s200
      %p202 = scmp.eq.s32.totalorder %s29, 0
      %p203 = por %p201, %p202
      %s205 = sadd.s32 %s204, 1
      %p208 = scmp.eq.s32.totalorder %s23, 1
      %p209 = scmp.ne.s32.totalorder %s204, %s206
      %p210 = scmp.eq.s32.totalorder %s23, 0
      %p211 = por %p209, %p210
      %p212 = scmp.ne.s32.totalorder %s204, %s206
      %p213 = scmp.eq.s32.totalorder %s28, 1
      %p214 = por %p212, %p213
      %p215 = scmp.ne.s32.totalorder %s206, %s207
      %p216 = scmp.eq.s32.totalorder %s28, 0
      %p217 = por %p215, %p216
      %p218 = scmp.ne.s32.totalorder %s206, %s207
      %p219 = scmp.eq.s32.totalorder %s29, 1
      %p220 = por %p218, %p219
      %p222 = scmp.ne.s32.totalorder %s207, %s221
      %p223 = scmp.eq.s32.totalorder %s29, 0
      %p224 = por %p222, %p223
      %s226 = sadd.s32 %s225, 1
      %p229 = scmp.eq.s32.totalorder %s23, 1
      %p230 = scmp.ne.s32.totalorder %s225, %s227
      %p231 = scmp.eq.s32.totalorder %s23, 0
      %p232 = por %p230, %p231
      %p233 = scmp.ne.s32.totalorder %s225, %s227
      %p234 = scmp.eq.s32.totalorder %s28, 1
      %p235 = por %p233, %p234
      %p236 = scmp.ne.s32.totalorder %s227, %s228
      %p237 = scmp.eq.s32.totalorder %s28, 0
      %p238 = por %p236, %p237
      %p239 = scmp.ne.s32.totalorder %s227, %s228
      %p240 = scmp.eq.s32.totalorder %s29, 1
      %p241 = por %p239, %p240
      %p243 = scmp.ne.s32.totalorder %s228, %s242
      %p244 = scmp.eq.s32.totalorder %s29, 0
      %p245 = por %p243, %p244
      %s247 = sadd.s32 %s246, 1
      %p250 = scmp.eq.s32.totalorder %s23, 1
      %p251 = scmp.ne.s32.totalorder %s246, %s248
      %p252 = scmp.eq.s32.totalorder %s23, 0
      %p253 = por %p251, %p252
      %p254 = scmp.ne.s32.totalorder %s246, %s248
      %p255 = scmp.eq.s32.totalorder %s28, 1
      %p256 = por %p254, %p255
      %p257 = scmp.ne.s32.totalorder %s248, %s249
      %p258 = scmp.eq.s32.totalorder %s28, 0
      %p259 = por %p257, %p258
      %p260 = scmp.ne.s32.totalorder %s248, %s249
      %p261 = scmp.eq.s32.totalorder %s29, 1
      %p262 = por %p260, %p261
      %p264 = scmp.ne.s32.totalorder %s249, %s263
      %p265 = scmp.eq.s32.totalorder %s29, 0
      %p266 = por %p264, %p265
      %s268 = sadd.s32 %s267, 1
      %p271 = scmp.eq.s32.totalorder %s23, 1
      %p272 = scmp.ne.s32.totalorder %s267, %s269
      %p273 = scmp.eq.s32.totalorder %s23, 0
      %p274 = por %p272, %p273
      %p275 = scmp.ne.s32.totalorder %s267, %s269
      %p276 = scmp.eq.s32.totalorder %s28, 1
      %p277 = por %p275, %p276
      %p278 = scmp.ne.s32.totalorder %s269, %s270
      %p279 = scmp.eq.s32.totalorder %s28, 0
      %p280 = por %p278, %p279
      %p281 = scmp.ne.s32.totalorder %s269, %s270
      %p282 = scmp.eq.s32.totalorder %s29, 1
      %p283 = por %p281, %p282
      %p285 = scmp.ne.s32.totalorder %s270, %s284
      %p286 = scmp.eq.s32.totalorder %s29, 0
      %p287 = por %p285, %p286
      %s289 = sadd.s32 %s288, 1
      %p292 = scmp.eq.s32.totalorder %s23, 1
      %p293 = scmp.ne.s32.totalorder %s288, %s290
      %p294 = scmp.eq.s32.totalorder %s23, 0
      %p295 = por %p293, %p294
      %p296 = scmp.ne.s32.totalorder %s288, %s290
      %p297 = scmp.eq.s32.totalorder %s28, 1
      %p298 = por %p296, %p297
      %p299 = scmp.ne.s32.totalorder %s290, %s291
      %p300 = scmp.eq.s32.totalorder %s28, 0
      %p301 = por %p299, %p300
      %p302 = scmp.ne.s32.totalorder %s290, %s291
      %p303 = scmp.eq.s32.totalorder %s29, 1
      %p304 = por %p302, %p303
      %p306 = scmp.ne.s32.totalorder %s291, %s305
      %p307 = scmp.eq.s32.totalorder %s29, 0
      %p308 = por %p306, %p307
      %s310 = sadd.s32 %s309, 1
      %p313 = scmp.eq.s32.totalorder %s23, 1
      %p314 = scmp.ne.s32.totalorder %s309, %s311
      %p315 = scmp.eq.s32.totalorder %s23, 0
      %p316 = por %p314, %p315
      %p317 = scmp.ne.s32.totalorder %s309, %s311
      %p318 = scmp.eq.s32.totalorder %s28, 1
      %p319 = por %p317, %p318
      %p320 = scmp.ne.s32.totalorder %s311, %s312
      %p321 = scmp.eq.s32.totalorder %s28, 0
      %p322 = por %p320, %p321
      %p323 = scmp.ne.s32.totalorder %s311, %s312
      %p324 = scmp.eq.s32.totalorder %s29, 1
      %p325 = por %p323, %p324
      %p327 = scmp.ne.s32.totalorder %s312, %s326
      %p328 = scmp.eq.s32.totalorder %s29, 0
      %p329 = por %p327, %p328
      %s330 = ssub.s32 %s23, %s30
      %p331 = scmp.eq.s32.totalorder %s330, 0
      %s333 = sadd.s32 %s332, 1
      %s334 = scalar_select %p331, %s332, %s333
      %p337 = pneg %p331
      %p338 = scmp.eq.s32.totalorder %s23, 1
      %p339 = por %p337, %p338
      %p340 = scmp.ne.s32.totalorder %s332, %s335
      %p341 = scmp.eq.s32.totalorder %s23, 0
      %p342 = por %p340, %p341
      %p343 = scmp.ne.s32.totalorder %s332, %s335
      %p344 = scmp.eq.s32.totalorder %s28, 1
      %p345 = por %p343, %p344
      %p346 = scmp.ne.s32.totalorder %s335, %s336
      %p347 = scmp.eq.s32.totalorder %s28, 0
      %p348 = por %p346, %p347
      %p349 = scmp.ne.s32.totalorder %s335, %s336
      %p350 = scmp.eq.s32.totalorder %s29, 1
      %p351 = por %p349, %p350
      %p353 = scmp.ne.s32.totalorder %s336, %s352
      %p354 = scmp.eq.s32.totalorder %s29, 0
      %p355 = por %p353, %p354
      %p356 = scmp.le.s32.totalorder 1, %s23
      %p357 = scmp.lt.s32.totalorder %s23, 3
      %p358 = pnand %p356, %p357
      %p359 = pneg %p358
      // Predicated region
      $region9: #{convnext1d_forward.6} parent=5 // pred_check
        _
      $region10: #{convnext1d_forward.6} parent=5 // pred_check_branch
        %361 = sbr.rel (%p358) target = $region12
      $region11: #{convnext1d_forward.6} parent=5 // pred_region
        %s362 = ssub.s32 %s23, 1
        // Predicated region
        $region13: #{convnext1d_forward.6} parent=11 // pred_check
          %p363 = pneg %p70
        $region14: #{convnext1d_forward.6} parent=11 // pred_check_branch
          %365 = sbr.rel (%p363) target = $region16
        $region15: #{convnext1d_forward.6} parent=11 // pred_region
          %s367 = ssub.s32 1024, 1024
          %368 = vsyncadd [#allocation3], %s367
          %s369 = sshll.u32 [#allocation2], 4
          %s370 = int_to_ptr.vmem [resolvable:$true] %s369
          %375 = dma.hbm_to_vmem [thread:$0]  %s1, 1024, %s370, [#allocation3], 64, 64, 4
        $region16: #{convnext1d_forward.6} parent=11 // pred_fallthru
          _
        // Predicated region
        $region17: #{convnext1d_forward.6} parent=11 // pred_check
          %p376 = pneg %p91
        $region18: #{convnext1d_forward.6} parent=11 // pred_check_branch
          %378 = sbr.rel (%p376) target = $region20
        $region19: #{convnext1d_forward.6} parent=11 // pred_region
          _
        $region20: #{convnext1d_forward.6} parent=11 // pred_fallthru
          _
        // Predicated region
        $region21: #{convnext1d_forward.6} parent=11 // pred_check
          %p379 = pneg %p112
        $region22: #{convnext1d_forward.6} parent=11 // pred_check_branch
          %381 = sbr.rel (%p379) target = $region24
        $region23: #{convnext1d_forward.6} parent=11 // pred_region
          %s383 = ssub.s32 256, 256
          %384 = vsyncadd [#allocation5], %s383
          %s385 = sshll.u32 [#allocation4], 4
          %s386 = int_to_ptr.vmem [resolvable:$true] %s385
          %391 = dma.hbm_to_vmem [thread:$0]  %s3, 256, %s386, [#allocation5], 128, 128, 8
        $region24: #{convnext1d_forward.6} parent=11 // pred_fallthru
          _
        // Predicated region
        $region25: #{convnext1d_forward.6} parent=11 // pred_check
          %p392 = pneg %p133
        $region26: #{convnext1d_forward.6} parent=11 // pred_check_branch
          %394 = sbr.rel (%p392) target = $region28
        $region27: #{convnext1d_forward.6} parent=11 // pred_region
          _
        $region28: #{convnext1d_forward.6} parent=11 // pred_fallthru
          _
        // Predicated region
        $region29: #{convnext1d_forward.6} parent=11 // pred_check
          %p395 = pneg %p154
        $region30: #{convnext1d_forward.6} parent=11 // pred_check_branch
          %397 = sbr.rel (%p395) target = $region32
        $region31: #{convnext1d_forward.6} parent=11 // pred_region
          _
        $region32: #{convnext1d_forward.6} parent=11 // pred_fallthru
          _
        // Predicated region
        $region33: #{convnext1d_forward.6} parent=11 // pred_check
          %p398 = pneg %p175
        $region34: #{convnext1d_forward.6} parent=11 // pred_check_branch
          %400 = sbr.rel (%p398) target = $region36
        $region35: #{convnext1d_forward.6} parent=11 // pred_region
          _
        $region36: #{convnext1d_forward.6} parent=11 // pred_fallthru
          _
        // Predicated region
        $region37: #{convnext1d_forward.6} parent=11 // pred_check
          %p401 = pneg %p196
        $region38: #{convnext1d_forward.6} parent=11 // pred_check_branch
          %403 = sbr.rel (%p401) target = $region40
        $region39: #{convnext1d_forward.6} parent=11 // pred_region
          %s405 = ssub.s32 8192, 8192
          %406 = vsyncadd [#allocation5], %s405
          %s407 = sshll.u32 [#allocation6], 4
          %s408 = int_to_ptr.vmem [resolvable:$true] %s407
          %413 = dma.hbm_to_vmem [thread:$0]  %s7, 8192, %s408, [#allocation5], 256, 256, 16
        $region40: #{convnext1d_forward.6} parent=11 // pred_fallthru
          _
        // Predicated region
        $region41: #{convnext1d_forward.6} parent=11 // pred_check
          %p414 = pneg %p217
        $region42: #{convnext1d_forward.6} parent=11 // pred_check_branch
          %416 = sbr.rel (%p414) target = $region44
        $region43: #{convnext1d_forward.6} parent=11 // pred_region
          _
        $region44: #{convnext1d_forward.6} parent=11 // pred_fallthru
          _
        // Predicated region
        $region45: #{convnext1d_forward.6} parent=11 // pred_check
          %p417 = pneg %p238
        $region46: #{convnext1d_forward.6} parent=11 // pred_check_branch
          %419 = sbr.rel (%p417) target = $region48
        $region47: #{convnext1d_forward.6} parent=11 // pred_region
          %s421 = ssub.s32 8192, 8192
          %422 = vsyncadd [#allocation8], %s421
          %s423 = sshll.u32 [#allocation7], 4
          %s424 = int_to_ptr.vmem [resolvable:$true] %s423
          %429 = dma.hbm_to_vmem [thread:$0]  %s9, 8192, %s424, [#allocation8], 64, 64, 4
        $region48: #{convnext1d_forward.6} parent=11 // pred_fallthru
          _
        // Predicated region
        $region49: #{convnext1d_forward.6} parent=11 // pred_check
          %p430 = pneg %p259
        $region50: #{convnext1d_forward.6} parent=11 // pred_check_branch
          %432 = sbr.rel (%p430) target = $region52
        $region51: #{convnext1d_forward.6} parent=11 // pred_region
          _
        $region52: #{convnext1d_forward.6} parent=11 // pred_fallthru
          _
        // Predicated region
        $region53: #{convnext1d_forward.6} parent=11 // pred_check
          %p433 = pneg %p280
        $region54: #{convnext1d_forward.6} parent=11 // pred_check_branch
          %435 = sbr.rel (%p433) target = $region56
        $region55: #{convnext1d_forward.6} parent=11 // pred_region
          _
        $region56: #{convnext1d_forward.6} parent=11 // pred_fallthru
          _
        // Predicated region
        $region57: #{convnext1d_forward.6} parent=11 // pred_check
          %p436 = pneg %p301
        $region58: #{convnext1d_forward.6} parent=11 // pred_check_branch
          %438 = sbr.rel (%p436) target = $region60
        $region59: #{convnext1d_forward.6} parent=11 // pred_region
          _
        $region60: #{convnext1d_forward.6} parent=11 // pred_fallthru
          _
        // Predicated region
        $region61: #{convnext1d_forward.6} parent=11 // pred_check
          %p439 = pneg %p322
        $region62: #{convnext1d_forward.6} parent=11 // pred_check_branch
          %441 = sbr.rel (%p439) target = $region64
        $region63: #{convnext1d_forward.6} parent=11 // pred_region
          _
        $region64: #{convnext1d_forward.6} parent=11 // pred_fallthru
          _
      $region12: #{convnext1d_forward.6} parent=5 // pred_fallthru
        _
      %p442 = scmp.lt.s32.totalorder %s23, 2
      // Predicated region
      $region65: #{convnext1d_forward.6} parent=5 // pred_check
        %p443 = pneg %p442
      $region66: #{convnext1d_forward.6} parent=5 // pred_check_branch
        %445 = sbr.rel (%p443) target = $region68
      $region67: #{convnext1d_forward.6} parent=5 // pred_region
        // Predicated region
        $region69: #{convnext1d_forward.6} parent=67 // pred_check
          %p446 = pneg %p43
        $region70: #{convnext1d_forward.6} parent=67 // pred_check_branch
          %448 = sbr.rel (%p446) target = $region72
        $region71: #{convnext1d_forward.6} parent=67 // pred_region
          %p449 = scmp.lt.s32.totalorder %s23, 1
          %s450 = scalar_select %p449, %s23, 1
          %s451 = smul.addr %s450, 2
          %s452 = smul.addr %s451, 8
          %s453 = scalar_lea.vmem %s0, %s452
        $region72: #{convnext1d_forward.6} parent=67 // pred_fallthru
          _
      $region68: #{convnext1d_forward.6} parent=5 // pred_fallthru
        _
      %p454 = scmp.le.s32.totalorder 1, %s23
      %p455 = scmp.lt.s32.totalorder %s23, 3
      %p456 = pnand %p454, %p455
      %p457 = pneg %p456
      // Predicated region
      $region73: #{convnext1d_forward.6} parent=5 // pred_check
        _
      $region74: #{convnext1d_forward.6} parent=5 // pred_check_branch
        %459 = sbr.rel (%p456) target = $region76
      $region75: #{convnext1d_forward.6} parent=5 // pred_region
        %s460 = ssub.s32 %s23, 1
        // Predicated region
        $region77: #{convnext1d_forward.6} parent=75 // pred_check
          %p461 = pneg %p70
        $region78: #{convnext1d_forward.6} parent=75 // pred_check_branch
          %463 = sbr.rel (%p461) target = $region80
        $region79: #{convnext1d_forward.6} parent=75 // pred_region
          %464 = dma.done [#allocation3], 1024
        $region80: #{convnext1d_forward.6} parent=75 // pred_fallthru
          _
        // Predicated region
        $region81: #{convnext1d_forward.6} parent=75 // pred_check
          %p465 = pneg %p112
        $region82: #{convnext1d_forward.6} parent=75 // pred_check_branch
          %467 = sbr.rel (%p465) target = $region84
        $region83: #{convnext1d_forward.6} parent=75 // pred_region
          %468 = dma.done [#allocation5], 256
        $region84: #{convnext1d_forward.6} parent=75 // pred_fallthru
          _
        // Predicated region
        $region85: #{convnext1d_forward.6} parent=75 // pred_check
          %p469 = pneg %p196
        $region86: #{convnext1d_forward.6} parent=75 // pred_check_branch
          %471 = sbr.rel (%p469) target = $region88
        $region87: #{convnext1d_forward.6} parent=75 // pred_region
          %472 = dma.done [#allocation5], 8192
        $region88: #{convnext1d_forward.6} parent=75 // pred_fallthru
          _
        // Predicated region
        $region89: #{convnext1d_forward.6} parent=75 // pred_check
          %p473 = pneg %p238
        $region90: #{convnext1d_forward.6} parent=75 // pred_check_branch
          %475 = sbr.rel (%p473) target = $region92
        $region91: #{convnext1d_forward.6} parent=75 // pred_region
          %476 = dma.done [#allocation8], 8192
        $region92: #{convnext1d_forward.6} parent=75 // pred_fallthru
          _
        %p477 = scmp.lt.s32.totalorder %s28, 1
        %s478 = scalar_select %p477, %s28, 1
        %s479 = smul.addr %s478, 2
        %s480 = smul.addr %s479, 8
        %s481 = scalar_lea.vmem %s0, %s480
        %p482 = pneg %p49
        %p483 = pneg %p46
        %p484 = pneg %p70
        %p485 = pneg %p67
        %p486 = pneg %p91
        %p487 = pneg %p88
        %p488 = pneg %p112
        %p489 = pneg %p109
        %p490 = pneg %p133
        %p491 = pneg %p130
        %p492 = pneg %p154
        %p493 = pneg %p151
        %p494 = pneg %p175
        %p495 = pneg %p172
        %p496 = pneg %p196
        %p497 = pneg %p193
        %p498 = pneg %p217
        %p499 = pneg %p214
        %p500 = pneg %p238
        %p501 = pneg %p235
        %p502 = pneg %p259
        %p503 = pneg %p256
        %p504 = pneg %p280
        %p505 = pneg %p277
        %p506 = pneg %p301
        %p507 = pneg %p298
        %p508 = pneg %p322
        %p509 = pneg %p319
        %p510 = pneg %p348
        %p511 = pneg %p345
        %p512 = scmp.lt.s32.totalorder %s28, 1
        %s513 = scalar_select %p512, %s28, 1
        %s514 = smul.addr %s513, 2
        %s515 = smul.addr %s514, 8
        %s516 = scalar_lea.vmem %s14, %s515
        %p517 = scmp.lt.s32.totalorder %s28, 1
        %s518 = scalar_select %p517, %s28, 1
        %s519 = smul.addr %s518, 2
        %s520 = smul.addr %s519, 8
        %s521 = scalar_lea.vmem %s0, %s520
        %p522 = scmp.lt.s32.totalorder %s28, 1
        %s523 = scalar_select %p522, %s28, 1
        %s524 = smul.addr %s523, 2
        %s525 = smul.addr %s524, 8
        %s526 = scalar_lea.vmem %s14, %s525
        %v528 = vld [vmem:[%s521] sm:$0xff]
        %v529 = vld [vmem:[%s521 + $0x8] sm:$0xff]
        %v530 = vpack.c.bf16 %v529, %v528
        %v531 = vld [vmem:[#allocation2] sm:$0xf]
        %v532 = vld [vmem:[#allocation2 + $0x4] sm:$0xf]
        %v533 = vld [vmem:[#allocation2 + $0x8] sm:$0xf]
        %v534 = vld [vmem:[#allocation2 + $0xc] sm:$0xf]
        %v535 = vld [vmem:[#allocation2 + $0x10] sm:$0xf]
        %v536 = vld [vmem:[#allocation2 + $0x14] sm:$0xf]
        %v537 = vld [vmem:[#allocation2 + $0x18] sm:$0xf]
        %v538 = vld [vmem:[#allocation2 + $0x1c] sm:$0xf]
        %v539 = vld [vmem:[#allocation2 + $0x20] sm:$0xf]
        %v540 = vld [vmem:[#allocation2 + $0x24] sm:$0xf]
        %v541 = vld [vmem:[#allocation2 + $0x28] sm:$0xf]
        %v542 = vld [vmem:[#allocation2 + $0x2c] sm:$0xf]
        %v543 = vld [vmem:[#allocation2 + $0x30] sm:$0xf]
        %v544 = vld [vmem:[#allocation2 + $0x34] sm:$0xf]
        %v545 = vld [vmem:[#allocation2 + $0x38] sm:$0xf]
        %v546 = vld [vmem:[#allocation2 + $0x3c] sm:$0xf]
        %v547 = vld [vmem:[%s2] sm:$0x1]
        %v549 = vlaneseq
        %v550 = vshrl.u32 %v549, 7
        %v551 = vsub.s32 0, %v550
        %v552 = vrot.slane %v547, %v551
        %v570 = vunpack.c.l.b16 %v531
        %v571 = vunpack.c.l.b16 %v532
        %v572 = vunpack.c.l.b16 %v533
        %v573 = vunpack.c.l.b16 %v534
        %v574 = vunpack.c.l.b16 %v535
        %v575 = vunpack.c.l.b16 %v536
        %v576 = vunpack.c.l.b16 %v537
        %v577 = vunpack.c.l.b16 %v538
        %v578 = vunpack.c.l.b16 %v539
        %v579 = vunpack.c.l.b16 %v540
        %v580 = vunpack.c.l.b16 %v541
        %v581 = vunpack.c.l.b16 %v542
        %v582 = vunpack.c.l.b16 %v543
        %v583 = vunpack.c.l.b16 %v544
        %v584 = vunpack.c.l.b16 %v545
        %v585 = vunpack.c.l.b16 %v546
        %v586 = vpack.c.b16 %v571, %v570
        %v587 = vpack.c.b16 %v573, %v572
        %v588 = vpack.c.b16 %v575, %v574
        %v589 = vpack.c.b16 %v577, %v576
        %v590 = vpack.c.b16 %v579, %v578
        %v591 = vpack.c.b16 %v581, %v580
        %v592 = vpack.c.b16 %v583, %v582
        %v593 = vpack.c.b16 %v585, %v584
        %602 = vmatprep.subr.bf16.mxu0 0
        %603 = vmatpush1.bf16.msra.mxu0 %v593
        %604 = vmatprep.subr.bf16.mxu0 0
        %605 = vmatpush1.bf16.msra.mxu0 %v592
        %606 = vmatprep.subr.bf16.mxu0 0
        %607 = vmatpush1.bf16.msra.mxu0 %v591
        %608 = vmatprep.subr.bf16.mxu0 0
        %609 = vmatpush1.bf16.msra.mxu0 %v590
        %610 = vmatprep.subr.bf16.mxu0 0
        %611 = vmatpush1.bf16.msra.mxu0 %v589
        %612 = vmatprep.subr.bf16.mxu0 0
        %613 = vmatpush1.bf16.msra.mxu0 %v588
        %614 = vmatprep.subr.bf16.mxu0 0
        %615 = vmatpush1.bf16.msra.mxu0 %v587
        %616 = vmatprep.subr.bf16.mxu0 0
        %617 = vmatpush1.bf16.msra.mxu0 %v586
        %618 = vmatprep.subr.bf16.mxu0 0
        %619 = vmatpush2.bf16.msra.mxu0 0
        %620 = vmatprep.subr.bf16.mxu0 0
        %621 = vmatpush2.bf16.msra.mxu0 0
        %622 = vmatprep.subr.bf16.mxu0 0
        %623 = vmatpush2.bf16.msra.mxu0 0
        %624 = vmatprep.subr.bf16.mxu0 0
        %625 = vmatpush2.bf16.msra.mxu0 0
        %626 = vmatprep.subr.bf16.mxu0 0
        %627 = vmatpush2.bf16.msra.mxu0 0
        %628 = vmatprep.subr.bf16.mxu0 0
        %629 = vmatpush2.bf16.msra.mxu0 0
        %630 = vmatprep.subr.bf16.mxu0 0
        %631 = vmatpush2.bf16.msra.mxu0 0
        %632 = vmatprep.subr.bf16.mxu0 0
        %633 = vmatpush2.bf16.msra.mxu0 0
        %634 = vmatprep.mubr.bf16.mxu0 0
        %635 = vmatmul.mubr.bf16.gmra.mxu0 %v530
        %v636 = vpop.f32.mrf.mxu0
        %v637 = vadd.f32 %v552, %v636
        %v638 = vpop.f32.mrf.mxu0
        %v639 = vpop.f32.mrf.mxu0
        %v640 = vadd.f32 %v552, %v639
        %v641 = vpop.f32.mrf.mxu0
        %642 = vdwg.mxu0
        %v643 = vlaneseq
        %v644 = vshrl.u32 %v643, 7
        %v645 = vadd.s32 %v644, 8
        %v646 = vadd.s32 %v644, 4294967293
        %v647 = vadd.s32 %v645, 4294967293
        %vm648 = vcmp.ge.s32.totalorder %v646, 0
        %vm649 = vcmp.ge.s32.totalorder %v647, 0
        %vm650 = vcmp.lt.s32.totalorder %v646, 16
        %vm651 = vcmp.lt.s32.totalorder %v647, 16
        %vm652 = vmand %vm648, %vm650
        %vm653 = vmand %vm649, %vm651
        %v654 = vsel %vm652, 1, 0
        %v655 = vsel %vm653, 1, 0
        %v656 = vcvt.s32.f32 %v654
        %v657 = vcvt.s32.f32 %v655
        %v658 = vadd.s32 %v644, 4294967294
        %v659 = vadd.s32 %v645, 4294967294
        %vm660 = vcmp.ge.s32.totalorder %v658, 0
        %vm661 = vcmp.ge.s32.totalorder %v659, 0
        %vm662 = vcmp.lt.s32.totalorder %v658, 16
        %vm663 = vcmp.lt.s32.totalorder %v659, 16
        %vm664 = vmand %vm660, %vm662
        %vm665 = vmand %vm661, %vm663
        %v666 = vsel %vm664, 1, 0
        %v667 = vsel %vm665, 1, 0
        %v668 = vcvt.s32.f32 %v666
        %v669 = vcvt.s32.f32 %v667
        %v670 = vadd.s32 %v644, 4294967295
        %v671 = vadd.s32 %v645, 4294967295
        %vm672 = vcmp.ge.s32.totalorder %v670, 0
        %vm673 = vcmp.ge.s32.totalorder %v671, 0
        %vm674 = vcmp.lt.s32.totalorder %v670, 16
        %vm675 = vcmp.lt.s32.totalorder %v671, 16
        %vm676 = vmand %vm672, %vm674
        %vm677 = vmand %vm673, %vm675
        %v678 = vsel %vm676, 1, 0
        %v679 = vsel %vm677, 1, 0
        %v680 = vcvt.s32.f32 %v678
        %v681 = vcvt.s32.f32 %v679
        %v682 = vadd.s32 %v644, 1
        %v683 = vadd.s32 %v645, 1
        %vm684 = vcmp.ge.s32.totalorder %v682, 0
        %vm685 = vcmp.ge.s32.totalorder %v683, 0
        %vm686 = vcmp.lt.s32.totalorder %v682, 16
        %vm687 = vcmp.lt.s32.totalorder %v683, 16
        %vm688 = vmand %vm684, %vm686
        %vm689 = vmand %vm685, %vm687
        %v690 = vsel %vm688, 1, 0
        %v691 = vsel %vm689, 1, 0
        %v692 = vcvt.s32.f32 %v690
        %v693 = vcvt.s32.f32 %v691
        %v694 = vadd.s32 %v644, 2
        %v695 = vadd.s32 %v645, 2
        %vm696 = vcmp.ge.s32.totalorder %v694, 0
        %vm697 = vcmp.ge.s32.totalorder %v695, 0
        %vm698 = vcmp.lt.s32.totalorder %v694, 16
        %vm699 = vcmp.lt.s32.totalorder %v695, 16
        %vm700 = vmand %vm696, %vm698
        %vm701 = vmand %vm697, %vm699
        %v702 = vsel %vm700, 1, 0
        %v703 = vsel %vm701, 1, 0
        %v704 = vcvt.s32.f32 %v702
        %v705 = vcvt.s32.f32 %v703
        %v706 = vadd.s32 %v644, 3
        %v707 = vadd.s32 %v645, 3
        %vm708 = vcmp.ge.s32.totalorder %v706, 0
        %vm709 = vcmp.ge.s32.totalorder %v707, 0
        %vm710 = vcmp.lt.s32.totalorder %v706, 16
        %vm711 = vcmp.lt.s32.totalorder %v707, 16
        %vm712 = vmand %vm708, %vm710
        %vm713 = vmand %vm709, %vm711
        %v714 = vsel %vm712, 1, 0
        %v715 = vsel %vm713, 1, 0
        %v716 = vcvt.s32.f32 %v714
        %v717 = vcvt.s32.f32 %v715
        %v718 = vld [vmem:[#allocation4 + $0x3] sm:$0x1]
        %v719 = vlaneseq
        %v720 = vshrl.u32 %v719, 7
        %v721 = vsub.s32 0, %v720
        %v722 = vrot.slane %v718, %v721
        %v723 = vmul.f32 %v637, %v722
        %v724 = vmul.f32 %v640, %v722
        %v725 = vrot.slane %v637, 5
        %v726 = vrot.slane %v640, 5
        %vm727 = vcmp.lt.s32.totalorder %v644, 3
        %v728 = vsel %vm727, %v725, %v726
        %v729 = vsel %vm727, %v726, %v725
        %v730 = vmul.f32 %v729, %v656
        %v731 = vmul.f32 %v728, %v657
        %v732 = vld [vmem:[#allocation4] sm:$0x1]
        %v733 = vlaneseq
        %v734 = vshrl.u32 %v733, 7
        %v735 = vsub.s32 0, %v734
        %v736 = vrot.slane %v732, %v735
        %v737 = vmul.f32 %v730, %v736
        %v738 = vmul.f32 %v731, %v736
        %v739 = vadd.f32 %v723, %v737
        %v740 = vadd.f32 %v724, %v738
        %v741 = vrot.slane %v637, 6
        %v742 = vrot.slane %v640, 6
        %vm743 = vcmp.lt.s32.totalorder %v644, 2
        %v744 = vsel %vm743, %v741, %v742
        %v745 = vsel %vm743, %v742, %v741
        %v746 = vmul.f32 %v745, %v668
        %v747 = vmul.f32 %v744, %v669
        %v748 = vld [vmem:[#allocation4 + $0x1] sm:$0x1]
        %v749 = vlaneseq
        %v750 = vshrl.u32 %v749, 7
        %v751 = vsub.s32 0, %v750
        %v752 = vrot.slane %v748, %v751
        %v753 = vmul.f32 %v746, %v752
        %v754 = vmul.f32 %v747, %v752
        %v755 = vadd.f32 %v739, %v753
        %v756 = vadd.f32 %v740, %v754
        %v757 = vrot.slane %v637, 7
        %v758 = vrot.slane %v640, 7
        %vm759 = vcmp.lt.s32.totalorder %v644, 1
        %v760 = vsel %vm759, %v757, %v758
        %v761 = vsel %vm759, %v758, %v757
        %v762 = vmul.f32 %v761, %v680
        %v763 = vmul.f32 %v760, %v681
        %v764 = vld [vmem:[#allocation4 + $0x2] sm:$0x1]
        %v765 = vlaneseq
        %v766 = vshrl.u32 %v765, 7
        %v767 = vsub.s32 0, %v766
        %v768 = vrot.slane %v764, %v767
        %v769 = vmul.f32 %v762, %v768
        %v770 = vmul.f32 %v763, %v768
        %v771 = vadd.f32 %v755, %v769
        %v772 = vadd.f32 %v756, %v770
        %v773 = vrot.slane %v637, 1
        %v774 = vrot.slane %v640, 1
        %vm775 = vcmp.lt.s32.totalorder %v644, 7
        %v776 = vsel %vm775, %v773, %v774
        %v777 = vsel %vm775, %v774, %v773
        %v778 = vmul.f32 %v776, %v692
        %v779 = vmul.f32 %v777, %v693
        %v780 = vld [vmem:[#allocation4 + $0x4] sm:$0x1]
        %v781 = vlaneseq
        %v782 = vshrl.u32 %v781, 7
        %v783 = vsub.s32 0, %v782
        %v784 = vrot.slane %v780, %v783
        %v785 = vmul.f32 %v778, %v784
        %v786 = vmul.f32 %v779, %v784
        %v787 = vadd.f32 %v771, %v785
        %v788 = vadd.f32 %v772, %v786
        %v789 = vrot.slane %v637, 2
        %v790 = vrot.slane %v640, 2
        %vm791 = vcmp.lt.s32.totalorder %v644, 6
        %v792 = vsel %vm791, %v789, %v790
        %v793 = vsel %vm791, %v790, %v789
        %v794 = vmul.f32 %v792, %v704
        %v795 = vmul.f32 %v793, %v705
        %v796 = vld [vmem:[#allocation4 + $0x5] sm:$0x1]
        %v797 = vlaneseq
        %v798 = vshrl.u32 %v797, 7
        %v799 = vsub.s32 0, %v798
        %v800 = vrot.slane %v796, %v799
        %v801 = vmul.f32 %v794, %v800
        %v802 = vmul.f32 %v795, %v800
        %v803 = vadd.f32 %v787, %v801
        %v804 = vadd.f32 %v788, %v802
        %v805 = vrot.slane %v637, 3
        %v806 = vrot.slane %v640, 3
        %vm807 = vcmp.lt.s32.totalorder %v644, 5
        %v808 = vsel %vm807, %v805, %v806
        %v809 = vsel %vm807, %v806, %v805
        %v810 = vmul.f32 %v808, %v716
        %v811 = vmul.f32 %v809, %v717
        %v812 = vld [vmem:[#allocation4 + $0x6] sm:$0x1]
        %v813 = vlaneseq
        %v814 = vshrl.u32 %v813, 7
        %v815 = vsub.s32 0, %v814
        %v816 = vrot.slane %v812, %v815
        %v817 = vmul.f32 %v810, %v816
        %v818 = vmul.f32 %v811, %v816
        %v819 = vadd.f32 %v803, %v817
        %v820 = vadd.f32 %v804, %v818
        %v821 = vld [vmem:[%s4] sm:$0x1]
        %v822 = vlaneseq
        %v823 = vshrl.u32 %v822, 7
        %v824 = vsub.s32 0, %v823
        %v825 = vrot.slane %v821, %v824
        %v826 = vadd.f32 %v819, %v825
        %v827 = vadd.f32 %v820, %v825
        %v828 = vld [vmem:[%s5] sm:$0x1]
        %v829 = vld [vmem:[%s6] sm:$0x1]
        %830 = vadd.xlane.f32.xlu0 %v826
        %v831 = vpop.xlane.xlu0 %830
        %832 = vadd.xlane.f32.xlu0 %v827
        %v833 = vpop.xlane.xlu0 %832
        %v834 = vrcp.pop 128.0
        %v835 = vmul.f32 %v831, %v834
        %v836 = vmul.f32 %v833, %v834
        %v837 = vsub.f32 %v826, %v835
        %v838 = vsub.f32 %v827, %v836
        %v839 = vmul.f32 %v837, %v837
        %v840 = vmul.f32 %v838, %v838
        %841 = vadd.xlane.f32.xlu0 %v839
        %v842 = vpop.xlane.xlu0 %841
        %843 = vadd.xlane.f32.xlu0 %v840
        %v844 = vpop.xlane.xlu0 %843
        %v845 = vmul.f32 %v842, %v834
        %v846 = vmul.f32 %v844, %v834
        %v847 = vadd.f32 %v845, 1e-05
        %v848 = vadd.f32 %v846, 1e-05
        %v849 = vrsqrt.pop %v847
        %v850 = vrsqrt.pop %v848
        %v851 = vmul.f32 %v837, %v849
        %v852 = vmul.f32 %v838, %v850
        %v853 = vlaneseq
        %v854 = vshrl.u32 %v853, 7
        %v855 = vsub.s32 0, %v854
        %v856 = vrot.slane %v828, %v855
        %v857 = vmul.f32 %v851, %v856
        %v858 = vmul.f32 %v852, %v856
        %v859 = vlaneseq
        %v860 = vshrl.u32 %v859, 7
        %v861 = vsub.s32 0, %v860
        %v862 = vrot.slane %v829, %v861
        %v863 = vadd.f32 %v857, %v862
        %v864 = vadd.f32 %v858, %v862
        %v865 = vpack.c.bf16 %v864, %v863
        %v866 = vld [vmem:[#allocation6] sm:$0xff]
        %v867 = vld [vmem:[#allocation6 + $0x8] sm:$0xff]
        %v868 = vld [vmem:[#allocation6 + $0x10] sm:$0xff]
        %v869 = vld [vmem:[#allocation6 + $0x18] sm:$0xff]
        %v870 = vld [vmem:[#allocation6 + $0x20] sm:$0xff]
        %v871 = vld [vmem:[#allocation6 + $0x28] sm:$0xff]
        %v872 = vld [vmem:[#allocation6 + $0x30] sm:$0xff]
        %v873 = vld [vmem:[#allocation6 + $0x38] sm:$0xff]
        %v874 = vld [vmem:[#allocation6 + $0x40] sm:$0xff]
        %v875 = vld [vmem:[#allocation6 + $0x48] sm:$0xff]
        %v876 = vld [vmem:[#allocation6 + $0x50] sm:$0xff]
        %v877 = vld [vmem:[#allocation6 + $0x58] sm:$0xff]
        %v878 = vld [vmem:[#allocation6 + $0x60] sm:$0xff]
        %v879 = vld [vmem:[#allocation6 + $0x68] sm:$0xff]
        %v880 = vld [vmem:[#allocation6 + $0x70] sm:$0xff]
        %v881 = vld [vmem:[#allocation6 + $0x78] sm:$0xff]
        %v882 = vld [vmem:[#allocation6 + $0x80] sm:$0xff]
        %v883 = vld [vmem:[#allocation6 + $0x88] sm:$0xff]
        %v884 = vld [vmem:[#allocation6 + $0x90] sm:$0xff]
        %v885 = vld [vmem:[#allocation6 + $0x98] sm:$0xff]
        %v886 = vld [vmem:[#allocation6 + $0xa0] sm:$0xff]
        %v887 = vld [vmem:[#allocation6 + $0xa8] sm:$0xff]
        %v888 = vld [vmem:[#allocation6 + $0xb0] sm:$0xff]
        %v889 = vld [vmem:[#allocation6 + $0xb8] sm:$0xff]
        %v890 = vld [vmem:[#allocation6 + $0xc0] sm:$0xff]
        %v891 = vld [vmem:[#allocation6 + $0xc8] sm:$0xff]
        %v892 = vld [vmem:[#allocation6 + $0xd0] sm:$0xff]
        %v893 = vld [vmem:[#allocation6 + $0xd8] sm:$0xff]
        %v894 = vld [vmem:[#allocation6 + $0xe0] sm:$0xff]
        %v895 = vld [vmem:[#allocation6 + $0xe8] sm:$0xff]
        %v896 = vld [vmem:[#allocation6 + $0xf0] sm:$0xff]
        %v897 = vld [vmem:[#allocation6 + $0xf8] sm:$0xff]
        %v898 = vld [vmem:[%s8] ss:$2 sm:$0xf]
        %v900 = vlaneseq
        %v901 = vshrl.u32 %v900, 7
        %v902 = vsub.s32 0, %v901
        %v903 = vrot.slane %v898, %v902
        %v904 = vlaneseq
        %v905 = vshrl.u32 %v904, 7
        %v906 = vsub.s32 1, %v905
        %v907 = vrot.slane %v898, %v906
        %v908 = vlaneseq
        %v909 = vshrl.u32 %v908, 7
        %v910 = vsub.s32 2, %v909
        %v911 = vrot.slane %v898, %v910
        %v912 = vlaneseq
        %v913 = vshrl.u32 %v912, 7
        %v914 = vsub.s32 3, %v913
        %v915 = vrot.slane %v898, %v914
        %v952 = vunpack.c.l.b16 %v866
        %v953 = vunpack.c.h.b16 %v866
        %v954 = vunpack.c.l.b16 %v867
        %v955 = vunpack.c.h.b16 %v867
        %v956 = vunpack.c.l.b16 %v868
        %v957 = vunpack.c.h.b16 %v868
        %v958 = vunpack.c.l.b16 %v869
        %v959 = vunpack.c.h.b16 %v869
        %v960 = vunpack.c.l.b16 %v870
        %v961 = vunpack.c.h.b16 %v870
        %v962 = vunpack.c.l.b16 %v871
        %v963 = vunpack.c.h.b16 %v871
        %v964 = vunpack.c.l.b16 %v872
        %v965 = vunpack.c.h.b16 %v872
        %v966 = vunpack.c.l.b16 %v873
        %v967 = vunpack.c.h.b16 %v873
        %v968 = vunpack.c.l.b16 %v874
        %v969 = vunpack.c.h.b16 %v874
        %v970 = vunpack.c.l.b16 %v875
        %v971 = vunpack.c.h.b16 %v875
        %v972 = vunpack.c.l.b16 %v876
        %v973 = vunpack.c.h.b16 %v876
        %v974 = vunpack.c.l.b16 %v877
        %v975 = vunpack.c.h.b16 %v877
        %v976 = vunpack.c.l.b16 %v878
        %v977 = vunpack.c.h.b16 %v878
        %v978 = vunpack.c.l.b16 %v879
        %v979 = vunpack.c.h.b16 %v879
        %v980 = vunpack.c.l.b16 %v880
        %v981 = vunpack.c.h.b16 %v880
        %v982 = vunpack.c.l.b16 %v881
        %v983 = vunpack.c.h.b16 %v881
        %v984 = vunpack.c.l.b16 %v882
        %v985 = vunpack.c.h.b16 %v882
        %v986 = vunpack.c.l.b16 %v883
        %v987 = vunpack.c.h.b16 %v883
        %v988 = vunpack.c.l.b16 %v884
        %v989 = vunpack.c.h.b16 %v884
        %v990 = vunpack.c.l.b16 %v885
        %v991 = vunpack.c.h.b16 %v885
        %v992 = vunpack.c.l.b16 %v886
        %v993 = vunpack.c.h.b16 %v886
        %v994 = vunpack.c.l.b16 %v887
        %v995 = vunpack.c.h.b16 %v887
        %v996 = vunpack.c.l.b16 %v888
        %v997 = vunpack.c.h.b16 %v888
        %v998 = vunpack.c.l.b16 %v889
        %v999 = vunpack.c.h.b16 %v889
        %v1000 = vunpack.c.l.b16 %v890
        %v1001 = vunpack.c.h.b16 %v890
        %v1002 = vunpack.c.l.b16 %v891
        %v1003 = vunpack.c.h.b16 %v891
        %v1004 = vunpack.c.l.b16 %v892
        %v1005 = vunpack.c.h.b16 %v892
        %v1006 = vunpack.c.l.b16 %v893
        %v1007 = vunpack.c.h.b16 %v893
        %v1008 = vunpack.c.l.b16 %v894
        %v1009 = vunpack.c.h.b16 %v894
        %v1010 = vunpack.c.l.b16 %v895
        %v1011 = vunpack.c.h.b16 %v895
        %v1012 = vunpack.c.l.b16 %v896
        %v1013 = vunpack.c.h.b16 %v896
        %v1014 = vunpack.c.l.b16 %v897
        %v1015 = vunpack.c.h.b16 %v897
        %v1016 = vpack.c.b16 %v956, %v952
        %v1017 = vpack.c.b16 %v957, %v953
        %v1018 = vpack.c.b16 %v958, %v954
        %v1019 = vpack.c.b16 %v959, %v955
        %v1020 = vpack.c.b16 %v964, %v960
        %v1021 = vpack.c.b16 %v965, %v961
        %v1022 = vpack.c.b16 %v966, %v962
        %v1023 = vpack.c.b16 %v967, %v963
        %v1024 = vpack.c.b16 %v972, %v968
        %v1025 = vpack.c.b16 %v973, %v969
        %v1026 = vpack.c.b16 %v974, %v970
        %v1027 = vpack.c.b16 %v975, %v971
        %v1028 = vpack.c.b16 %v980, %v976
        %v1029 = vpack.c.b16 %v981, %v977
        %v1030 = vpack.c.b16 %v982, %v978
        %v1031 = vpack.c.b16 %v983, %v979
        %v1032 = vpack.c.b16 %v988, %v984
        %v1033 = vpack.c.b16 %v989, %v985
        %v1034 = vpack.c.b16 %v990, %v986
        %v1035 = vpack.c.b16 %v991, %v987
        %v1036 = vpack.c.b16 %v996, %v992
        %v1037 = vpack.c.b16 %v997, %v993
        %v1038 = vpack.c.b16 %v998, %v994
        %v1039 = vpack.c.b16 %v999, %v995
        %v1040 = vpack.c.b16 %v1004, %v1000
        %v1041 = vpack.c.b16 %v1005, %v1001
        %v1042 = vpack.c.b16 %v1006, %v1002
        %v1043 = vpack.c.b16 %v1007, %v1003
        %v1044 = vpack.c.b16 %v1012, %v1008
        %v1045 = vpack.c.b16 %v1013, %v1009
        %v1046 = vpack.c.b16 %v1014, %v1010
        %v1047 = vpack.c.b16 %v1015, %v1011
        %1080 = vmatprep.subr.bf16.mxu0 %v1045
        %1081 = vmatpush1.bf16.msra.mxu0 %v1044
        %1082 = vmatprep.subr.bf16.mxu0 %v1041
        %1083 = vmatpush1.bf16.msra.mxu0 %v1040
        %1084 = vmatprep.subr.bf16.mxu0 %v1037
        %1085 = vmatpush1.bf16.msra.mxu0 %v1036
        %1086 = vmatprep.subr.bf16.mxu0 %v1033
        %1087 = vmatpush1.bf16.msra.mxu0 %v1032
        %1088 = vmatprep.subr.bf16.mxu0 %v1029
        %1089 = vmatpush1.bf16.msra.mxu0 %v1028
        %1090 = vmatprep.subr.bf16.mxu0 %v1025
        %1091 = vmatpush1.bf16.msra.mxu0 %v1024
        %1092 = vmatprep.subr.bf16.mxu0 %v1021
        %1093 = vmatpush1.bf16.msra.mxu0 %v1020
        %1094 = vmatprep.subr.bf16.mxu0 %v1017
        %1095 = vmatpush1.bf16.msra.mxu0 %v1016
        %1096 = vmatprep.subr.bf16.mxu0 0
        %1097 = vmatpush2.bf16.msra.mxu0 0
        %1098 = vmatprep.subr.bf16.mxu0 0
        %1099 = vmatpush2.bf16.msra.mxu0 0
        %1100 = vmatprep.subr.bf16.mxu0 0
        %1101 = vmatpush2.bf16.msra.mxu0 0
        %1102 = vmatprep.subr.bf16.mxu0 0
        %1103 = vmatpush2.bf16.msra.mxu0 0
        %1104 = vmatprep.subr.bf16.mxu0 0
        %1105 = vmatpush2.bf16.msra.mxu0 0
        %1106 = vmatprep.subr.bf16.mxu0 0
        %1107 = vmatpush2.bf16.msra.mxu0 0
        %1108 = vmatprep.subr.bf16.mxu0 0
        %1109 = vmatpush2.bf16.msra.mxu0 0
        %1110 = vmatprep.subr.bf16.mxu0 0
        %1111 = vmatpush2.bf16.msra.mxu0 0
        %1112 = vmatprep.mubr.bf16.mxu0 0
        %1113 = vmatmul.mubr.bf16.gmra.mxu0 %v865
        %v1114 = vpop.f32.mrf.mxu0
        %v1115 = vadd.f32 %v903, %v1114
        %v1116 = vpop.f32.mrf.mxu0
        %v1117 = vadd.f32 %v907, %v1116
        %v1118 = vpop.f32.mrf.mxu0
        %v1119 = vadd.f32 %v903, %v1118
        %v1120 = vpop.f32.mrf.mxu0
        %v1121 = vadd.f32 %v907, %v1120
        %1122 = vdwg.mxu0
        %1123 = vmatprep.subr.bf16.mxu0 %v1047
        %1124 = vmatpush1.bf16.msra.mxu0 %v1046
        %1125 = vmatprep.subr.bf16.mxu0 %v1043
        %1126 = vmatpush1.bf16.msra.mxu0 %v1042
        %1127 = vmatprep.subr.bf16.mxu0 %v1039
        %1128 = vmatpush1.bf16.msra.mxu0 %v1038
        %1129 = vmatprep.subr.bf16.mxu0 %v1035
        %1130 = vmatpush1.bf16.msra.mxu0 %v1034
        %1131 = vmatprep.subr.bf16.mxu0 %v1031
        %1132 = vmatpush1.bf16.msra.mxu0 %v1030
        %1133 = vmatprep.subr.bf16.mxu0 %v1027
        %1134 = vmatpush1.bf16.msra.mxu0 %v1026
        %1135 = vmatprep.subr.bf16.mxu0 %v1023
        %1136 = vmatpush1.bf16.msra.mxu0 %v1022
        %1137 = vmatprep.subr.bf16.mxu0 %v1019
        %1138 = vmatpush1.bf16.msra.mxu0 %v1018
        %1139 = vmatprep.subr.bf16.mxu0 0
        %1140 = vmatpush2.bf16.msra.mxu0 0
        %1141 = vmatprep.subr.bf16.mxu0 0
        %1142 = vmatpush2.bf16.msra.mxu0 0
        %1143 = vmatprep.subr.bf16.mxu0 0
        %1144 = vmatpush2.bf16.msra.mxu0 0
        %1145 = vmatprep.subr.bf16.mxu0 0
        %1146 = vmatpush2.bf16.msra.mxu0 0
        %1147 = vmatprep.subr.bf16.mxu0 0
        %1148 = vmatpush2.bf16.msra.mxu0 0
        %1149 = vmatprep.subr.bf16.mxu0 0
        %1150 = vmatpush2.bf16.msra.mxu0 0
        %1151 = vmatprep.subr.bf16.mxu0 0
        %1152 = vmatpush2.bf16.msra.mxu0 0
        %1153 = vmatprep.subr.bf16.mxu0 0
        %1154 = vmatpush2.bf16.msra.mxu0 0
        %1155 = vmatprep.mubr.bf16.mxu0 0
        %1156 = vmatmul.mubr.bf16.gmra.mxu0 %v865
        %v1157 = vpop.f32.mrf.mxu0
        %v1158 = vadd.f32 %v911, %v1157
        %v1159 = vpop.f32.mrf.mxu0
        %v1160 = vadd.f32 %v915, %v1159
        %v1161 = vpop.f32.mrf.mxu0
        %v1162 = vadd.f32 %v911, %v1161
        %v1163 = vpop.f32.mrf.mxu0
        %v1164 = vadd.f32 %v915, %v1163
        %1165 = vdwg.mxu0
        %v1166 = vmul.f32 %v1115, 0.5
        %v1167 = vmul.f32 %v1117, 0.5
        %v1168 = vmul.f32 %v1158, 0.5
        %v1169 = vmul.f32 %v1160, 0.5
        %v1170 = vmul.f32 %v1119, 0.5
        %v1171 = vmul.f32 %v1121, 0.5
        %v1172 = vmul.f32 %v1162, 0.5
        %v1173 = vmul.f32 %v1164, 0.5
        %v1174 = vmul.f32 %v1115, 0.70710677
        %v1175 = vmul.f32 %v1117, 0.70710677
        %v1176 = vmul.f32 %v1158, 0.70710677
        %v1177 = vmul.f32 %v1160, 0.70710677
        %v1178 = vmul.f32 %v1119, 0.70710677
        %v1179 = vmul.f32 %v1121, 0.70710677
        %v1180 = vmul.f32 %v1162, 0.70710677
        %v1181 = vmul.f32 %v1164, 0.70710677
        %v1182 = verf.f32.pop %v1174
        %v1183 = verf.f32.pop %v1175
        %v1184 = verf.f32.pop %v1176
        %v1185 = verf.f32.pop %v1177
        %v1186 = verf.f32.pop %v1178
        %v1187 = verf.f32.pop %v1179
        %v1188 = verf.f32.pop %v1180
        %v1189 = verf.f32.pop %v1181
        %v1190 = vadd.f32 %v1182, 1.0
        %v1191 = vadd.f32 %v1183, 1.0
        %v1192 = vadd.f32 %v1184, 1.0
        %v1193 = vadd.f32 %v1185, 1.0
        %v1194 = vadd.f32 %v1186, 1.0
        %v1195 = vadd.f32 %v1187, 1.0
        %v1196 = vadd.f32 %v1188, 1.0
        %v1197 = vadd.f32 %v1189, 1.0
        %v1198 = vmul.f32 %v1166, %v1190
        %v1199 = vmul.f32 %v1167, %v1191
        %v1200 = vmul.f32 %v1168, %v1192
        %v1201 = vmul.f32 %v1169, %v1193
        %v1202 = vmul.f32 %v1170, %v1194
        %v1203 = vmul.f32 %v1171, %v1195
        %v1204 = vmul.f32 %v1172, %v1196
        %v1205 = vmul.f32 %v1173, %v1197
        %v1206 = vpack.c.bf16 %v1202, %v1198
        %v1207 = vpack.c.bf16 %v1203, %v1199
        %v1208 = vpack.c.bf16 %v1204, %v1200
        %v1209 = vpack.c.bf16 %v1205, %v1201
        %v1210 = vld [vmem:[#allocation7] sm:$0xf]
        %v1211 = vld [vmem:[#allocation7 + $0x4] sm:$0xf]
        %v1212 = vld [vmem:[#allocation7 + $0x8] sm:$0xf]
        %v1213 = vld [vmem:[#allocation7 + $0xc] sm:$0xf]
        %v1214 = vld [vmem:[#allocation7 + $0x10] sm:$0xf]
        %v1215 = vld [vmem:[#allocation7 + $0x14] sm:$0xf]
        %v1216 = vld [vmem:[#allocation7 + $0x18] sm:$0xf]
        %v1217 = vld [vmem:[#allocation7 + $0x1c] sm:$0xf]
        %v1218 = vld [vmem:[#allocation7 + $0x20] sm:$0xf]
        %v1219 = vld [vmem:[#allocation7 + $0x24] sm:$0xf]
        %v1220 = vld [vmem:[#allocation7 + $0x28] sm:$0xf]
        %v1221 = vld [vmem:[#allocation7 + $0x2c] sm:$0xf]
        %v1222 = vld [vmem:[#allocation7 + $0x30] sm:$0xf]
        %v1223 = vld [vmem:[#allocation7 + $0x34] sm:$0xf]
        %v1224 = vld [vmem:[#allocation7 + $0x38] sm:$0xf]
        %v1225 = vld [vmem:[#allocation7 + $0x3c] sm:$0xf]
        %v1226 = vld [vmem:[#allocation7 + $0x40] sm:$0xf]
        %v1227 = vld [vmem:[#allocation7 + $0x44] sm:$0xf]
        %v1228 = vld [vmem:[#allocation7 + $0x48] sm:$0xf]
        %v1229 = vld [vmem:[#allocation7 + $0x4c] sm:$0xf]
        %v1230 = vld [vmem:[#allocation7 + $0x50] sm:$0xf]
        %v1231 = vld [vmem:[#allocation7 + $0x54] sm:$0xf]
        %v1232 = vld [vmem:[#allocation7 + $0x58] sm:$0xf]
        %v1233 = vld [vmem:[#allocation7 + $0x5c] sm:$0xf]
        %v1234 = vld [vmem:[#allocation7 + $0x60] sm:$0xf]
        %v1235 = vld [vmem:[#allocation7 + $0x64] sm:$0xf]
        %v1236 = vld [vmem:[#allocation7 + $0x68] sm:$0xf]
        %v1237 = vld [vmem:[#allocation7 + $0x6c] sm:$0xf]
        %v1238 = vld [vmem:[#allocation7 + $0x70] sm:$0xf]
        %v1239 = vld [vmem:[#allocation7 + $0x74] sm:$0xf]
        %v1240 = vld [vmem:[#allocation7 + $0x78] sm:$0xf]
        %v1241 = vld [vmem:[#allocation7 + $0x7c] sm:$0xf]
        %v1242 = vld [vmem:[#allocation7 + $0x80] sm:$0xf]
        %v1243 = vld [vmem:[#allocation7 + $0x84] sm:$0xf]
        %v1244 = vld [vmem:[#allocation7 + $0x88] sm:$0xf]
        %v1245 = vld [vmem:[#allocation7 + $0x8c] sm:$0xf]
        %v1246 = vld [vmem:[#allocation7 + $0x90] sm:$0xf]
        %v1247 = vld [vmem:[#allocation7 + $0x94] sm:$0xf]
        %v1248 = vld [vmem:[#allocation7 + $0x98] sm:$0xf]
        %v1249 = vld [vmem:[#allocation7 + $0x9c] sm:$0xf]
        %v1250 = vld [vmem:[#allocation7 + $0xa0] sm:$0xf]
        %v1251 = vld [vmem:[#allocation7 + $0xa4] sm:$0xf]
        %v1252 = vld [vmem:[#allocation7 + $0xa8] sm:$0xf]
        %v1253 = vld [vmem:[#allocation7 + $0xac] sm:$0xf]
        %v1254 = vld [vmem:[#allocation7 + $0xb0] sm:$0xf]
        %v1255 = vld [vmem:[#allocation7 + $0xb4] sm:$0xf]
        %v1256 = vld [vmem:[#allocation7 + $0xb8] sm:$0xf]
        %v1257 = vld [vmem:[#allocation7 + $0xbc] sm:$0xf]
        %v1258 = vld [vmem:[#allocation7 + $0xc0] sm:$0xf]
        %v1259 = vld [vmem:[#allocation7 + $0xc4] sm:$0xf]
        %v1260 = vld [vmem:[#allocation7 + $0xc8] sm:$0xf]
        %v1261 = vld [vmem:[#allocation7 + $0xcc] sm:$0xf]
        %v1262 = vld [vmem:[#allocation7 + $0xd0] sm:$0xf]
        %v1263 = vld [vmem:[#allocation7 + $0xd4] sm:$0xf]
        %v1264 = vld [vmem:[#allocation7 + $0xd8] sm:$0xf]
        %v1265 = vld [vmem:[#allocation7 + $0xdc] sm:$0xf]
        %v1266 = vld [vmem:[#allocation7 + $0xe0] sm:$0xf]
        %v1267 = vld [vmem:[#allocation7 + $0xe4] sm:$0xf]
        %v1268 = vld [vmem:[#allocation7 + $0xe8] sm:$0xf]
        %v1269 = vld [vmem:[#allocation7 + $0xec] sm:$0xf]
        %v1270 = vld [vmem:[#allocation7 + $0xf0] sm:$0xf]
        %v1271 = vld [vmem:[#allocation7 + $0xf4] sm:$0xf]
        %v1272 = vld [vmem:[#allocation7 + $0xf8] sm:$0xf]
        %v1273 = vld [vmem:[#allocation7 + $0xfc] sm:$0xf]
        %v1274 = vld [vmem:[%s10] sm:$0x1]
        %v1275 = vlaneseq
        %v1276 = vshrl.u32 %v1275, 7
        %v1277 = vsub.s32 0, %v1276
        %v1278 = vrot.slane %v1274, %v1277
        %v1343 = vunpack.c.l.b16 %v1210
        %v1344 = vunpack.c.l.b16 %v1211
        %v1345 = vunpack.c.l.b16 %v1212
        %v1346 = vunpack.c.l.b16 %v1213
        %v1347 = vunpack.c.l.b16 %v1214
        %v1348 = vunpack.c.l.b16 %v1215
        %v1349 = vunpack.c.l.b16 %v1216
        %v1350 = vunpack.c.l.b16 %v1217
        %v1351 = vunpack.c.l.b16 %v1218
        %v1352 = vunpack.c.l.b16 %v1219
        %v1353 = vunpack.c.l.b16 %v1220
        %v1354 = vunpack.c.l.b16 %v1221
        %v1355 = vunpack.c.l.b16 %v1222
        %v1356 = vunpack.c.l.b16 %v1223
        %v1357 = vunpack.c.l.b16 %v1224
        %v1358 = vunpack.c.l.b16 %v1225
        %v1359 = vunpack.c.l.b16 %v1226
        %v1360 = vunpack.c.l.b16 %v1227
        %v1361 = vunpack.c.l.b16 %v1228
        %v1362 = vunpack.c.l.b16 %v1229
        %v1363 = vunpack.c.l.b16 %v1230
        %v1364 = vunpack.c.l.b16 %v1231
        %v1365 = vunpack.c.l.b16 %v1232
        %v1366 = vunpack.c.l.b16 %v1233
        %v1367 = vunpack.c.l.b16 %v1234
        %v1368 = vunpack.c.l.b16 %v1235
        %v1369 = vunpack.c.l.b16 %v1236
        %v1370 = vunpack.c.l.b16 %v1237
        %v1371 = vunpack.c.l.b16 %v1238
        %v1372 = vunpack.c.l.b16 %v1239
        %v1373 = vunpack.c.l.b16 %v1240
        %v1374 = vunpack.c.l.b16 %v1241
        %v1375 = vunpack.c.l.b16 %v1242
        %v1376 = vunpack.c.l.b16 %v1243
        %v1377 = vunpack.c.l.b16 %v1244
        %v1378 = vunpack.c.l.b16 %v1245
        %v1379 = vunpack.c.l.b16 %v1246
        %v1380 = vunpack.c.l.b16 %v1247
        %v1381 = vunpack.c.l.b16 %v1248
        %v1382 = vunpack.c.l.b16 %v1249
        %v1383 = vunpack.c.l.b16 %v1250
        %v1384 = vunpack.c.l.b16 %v1251
        %v1385 = vunpack.c.l.b16 %v1252
        %v1386 = vunpack.c.l.b16 %v1253
        %v1387 = vunpack.c.l.b16 %v1254
        %v1388 = vunpack.c.l.b16 %v1255
        %v1389 = vunpack.c.l.b16 %v1256
        %v1390 = vunpack.c.l.b16 %v1257
        %v1391 = vunpack.c.l.b16 %v1258
        %v1392 = vunpack.c.l.b16 %v1259
        %v1393 = vunpack.c.l.b16 %v1260
        %v1394 = vunpack.c.l.b16 %v1261
        %v1395 = vunpack.c.l.b16 %v1262
        %v1396 = vunpack.c.l.b16 %v1263
        %v1397 = vunpack.c.l.b16 %v1264
        %v1398 = vunpack.c.l.b16 %v1265
        %v1399 = vunpack.c.l.b16 %v1266
        %v1400 = vunpack.c.l.b16 %v1267
        %v1401 = vunpack.c.l.b16 %v1268
        %v1402 = vunpack.c.l.b16 %v1269
        %v1403 = vunpack.c.l.b16 %v1270
        %v1404 = vunpack.c.l.b16 %v1271
        %v1405 = vunpack.c.l.b16 %v1272
        %v1406 = vunpack.c.l.b16 %v1273
        %v1407 = vpack.c.b16 %v1344, %v1343
        %v1408 = vpack.c.b16 %v1346, %v1345
        %v1409 = vpack.c.b16 %v1348, %v1347
        %v1410 = vpack.c.b16 %v1350, %v1349
        %v1411 = vpack.c.b16 %v1352, %v1351
        %v1412 = vpack.c.b16 %v1354, %v1353
        %v1413 = vpack.c.b16 %v1356, %v1355
        %v1414 = vpack.c.b16 %v1358, %v1357
        %v1415 = vpack.c.b16 %v1360, %v1359
        %v1416 = vpack.c.b16 %v1362, %v1361
        %v1417 = vpack.c.b16 %v1364, %v1363
        %v1418 = vpack.c.b16 %v1366, %v1365
        %v1419 = vpack.c.b16 %v1368, %v1367
        %v1420 = vpack.c.b16 %v1370, %v1369
        %v1421 = vpack.c.b16 %v1372, %v1371
        %v1422 = vpack.c.b16 %v1374, %v1373
        %v1423 = vpack.c.b16 %v1376, %v1375
        %v1424 = vpack.c.b16 %v1378, %v1377
        %v1425 = vpack.c.b16 %v1380, %v1379
        %v1426 = vpack.c.b16 %v1382, %v1381
        %v1427 = vpack.c.b16 %v1384, %v1383
        %v1428 = vpack.c.b16 %v1386, %v1385
        %v1429 = vpack.c.b16 %v1388, %v1387
        %v1430 = vpack.c.b16 %v1390, %v1389
        %v1431 = vpack.c.b16 %v1392, %v1391
        %v1432 = vpack.c.b16 %v1394, %v1393
        %v1433 = vpack.c.b16 %v1396, %v1395
        %v1434 = vpack.c.b16 %v1398, %v1397
        %v1435 = vpack.c.b16 %v1400, %v1399
        %v1436 = vpack.c.b16 %v1402, %v1401
        %v1437 = vpack.c.b16 %v1404, %v1403
        %v1438 = vpack.c.b16 %v1406, %v1405
        %1471 = vmatprep.subr.bf16.mxu0 0
        %1472 = vmatpush1.bf16.msra.mxu0 %v1414
        %1473 = vmatprep.subr.bf16.mxu0 0
        %1474 = vmatpush1.bf16.msra.mxu0 %v1413
        %1475 = vmatprep.subr.bf16.mxu0 0
        %1476 = vmatpush1.bf16.msra.mxu0 %v1412
        %1477 = vmatprep.subr.bf16.mxu0 0
        %1478 = vmatpush1.bf16.msra.mxu0 %v1411
        %1479 = vmatprep.subr.bf16.mxu0 0
        %1480 = vmatpush1.bf16.msra.mxu0 %v1410
        %1481 = vmatprep.subr.bf16.mxu0 0
        %1482 = vmatpush1.bf16.msra.mxu0 %v1409
        %1483 = vmatprep.subr.bf16.mxu0 0
        %1484 = vmatpush1.bf16.msra.mxu0 %v1408
        %1485 = vmatprep.subr.bf16.mxu0 0
        %1486 = vmatpush1.bf16.msra.mxu0 %v1407
        %1487 = vmatprep.subr.bf16.mxu0 0
        %1488 = vmatpush2.bf16.msra.mxu0 %v1422
        %1489 = vmatprep.subr.bf16.mxu0 0
        %1490 = vmatpush2.bf16.msra.mxu0 %v1421
        %1491 = vmatprep.subr.bf16.mxu0 0
        %1492 = vmatpush2.bf16.msra.mxu0 %v1420
        %1493 = vmatprep.subr.bf16.mxu0 0
        %1494 = vmatpush2.bf16.msra.mxu0 %v1419
        %1495 = vmatprep.subr.bf16.mxu0 0
        %1496 = vmatpush2.bf16.msra.mxu0 %v1418
        %1497 = vmatprep.subr.bf16.mxu0 0
        %1498 = vmatpush2.bf16.msra.mxu0 %v1417
        %1499 = vmatprep.subr.bf16.mxu0 0
        %1500 = vmatpush2.bf16.msra.mxu0 %v1416
        %1501 = vmatprep.subr.bf16.mxu0 0
        %1502 = vmatpush2.bf16.msra.mxu0 %v1415
        %1503 = vmatprep.mubr.bf16.mxu0 %v1207
        %1504 = vmatmul.mubr.bf16.gmra.mxu0 %v1206
        %v1505 = vpop.f32.mrf.mxu0
        %v1506 = vadd.f32 %v1278, %v1505
        %v1507 = vpop.f32.mrf.mxu0
        %v1508 = vpop.f32.mrf.mxu0
        %v1509 = vadd.f32 %v1278, %v1508
        %v1510 = vpop.f32.mrf.mxu0
        %1511 = vdwg.mxu0
        %1512 = vmatprep.subr.bf16.mxu0 0
        %1513 = vmatpush1.bf16.msra.mxu0 %v1430
        %1514 = vmatprep.subr.bf16.mxu0 0
        %1515 = vmatpush1.bf16.msra.mxu0 %v1429
        %1516 = vmatprep.subr.bf16.mxu0 0
        %1517 = vmatpush1.bf16.msra.mxu0 %v1428
        %1518 = vmatprep.subr.bf16.mxu0 0
        %1519 = vmatpush1.bf16.msra.mxu0 %v1427
        %1520 = vmatprep.subr.bf16.mxu0 0
        %1521 = vmatpush1.bf16.msra.mxu0 %v1426
        %1522 = vmatprep.subr.bf16.mxu0 0
        %1523 = vmatpush1.bf16.msra.mxu0 %v1425
        %1524 = vmatprep.subr.bf16.mxu0 0
        %1525 = vmatpush1.bf16.msra.mxu0 %v1424
        %1526 = vmatprep.subr.bf16.mxu0 0
        %1527 = vmatpush1.bf16.msra.mxu0 %v1423
        %1528 = vmatprep.subr.bf16.mxu0 0
        %1529 = vmatpush2.bf16.msra.mxu0 %v1438
        %1530 = vmatprep.subr.bf16.mxu0 0
        %1531 = vmatpush2.bf16.msra.mxu0 %v1437
        %1532 = vmatprep.subr.bf16.mxu0 0
        %1533 = vmatpush2.bf16.msra.mxu0 %v1436
        %1534 = vmatprep.subr.bf16.mxu0 0
        %1535 = vmatpush2.bf16.msra.mxu0 %v1435
        %1536 = vmatprep.subr.bf16.mxu0 0
        %1537 = vmatpush2.bf16.msra.mxu0 %v1434
        %1538 = vmatprep.subr.bf16.mxu0 0
        %1539 = vmatpush2.bf16.msra.mxu0 %v1433
        %1540 = vmatprep.subr.bf16.mxu0 0
        %1541 = vmatpush2.bf16.msra.mxu0 %v1432
        %1542 = vmatprep.subr.bf16.mxu0 0
        %1543 = vmatpush2.bf16.msra.mxu0 %v1431
        %1544 = vmatprep.mubr.bf16.mxu0 %v1209
        %1545 = vmatmul.mubr.bf16.gmra.mxu0 %v1208
        %v1546 = vpop.f32.mrf.mxu0
        %v1547 = vadd.f32 %v1506, %v1546
        %v1548 = vpop.f32.mrf.mxu0
        %v1549 = vpop.f32.mrf.mxu0
        %v1550 = vadd.f32 %v1509, %v1549
        %v1551 = vpop.f32.mrf.mxu0
        %1552 = vdwg.mxu0
        %v1553 = vld [vmem:[%s11] sm:$0x1]
        %v1554 = vlaneseq
        %v1555 = vshrl.u32 %v1554, 7
        %v1556 = vsub.s32 0, %v1555
        %v1557 = vrot.slane %v1553, %v1556
        %v1558 = vmul.f32 %v1557, %v1547
        %v1559 = vmul.f32 %v1557, %v1550
        %v1560 = vadd.f32 %v637, %v1558
        %v1561 = vadd.f32 %v640, %v1559
        %s1562 = scalar_lea.vmem [#allocation4], 8
        %v1563 = vld [vmem:[%s1562 + $0x3] sm:$0x1]
        %v1564 = vlaneseq
        %v1565 = vshrl.u32 %v1564, 7
        %v1566 = vsub.s32 0, %v1565
        %v1567 = vrot.slane %v1563, %v1566
        %v1568 = vmul.f32 %v1560, %v1567
        %v1569 = vmul.f32 %v1561, %v1567
        %v1570 = vrot.slane %v1560, 5
        %v1571 = vrot.slane %v1561, 5
        %v1572 = vsel %vm727, %v1570, %v1571
        %v1573 = vsel %vm727, %v1571, %v1570
        %v1574 = vmul.f32 %v1573, %v656
        %v1575 = vmul.f32 %v1572, %v657
        %v1576 = vld [vmem:[%s1562] sm:$0x1]
        %v1577 = vlaneseq
        %v1578 = vshrl.u32 %v1577, 7
        %v1579 = vsub.s32 0, %v1578
        %v1580 = vrot.slane %v1576, %v1579
        %v1581 = vmul.f32 %v1574, %v1580
        %v1582 = vmul.f32 %v1575, %v1580
        %v1583 = vadd.f32 %v1568, %v1581
        %v1584 = vadd.f32 %v1569, %v1582
        %v1585 = vrot.slane %v1560, 6
        %v1586 = vrot.slane %v1561, 6
        %v1587 = vsel %vm743, %v1585, %v1586
        %v1588 = vsel %vm743, %v1586, %v1585
        %v1589 = vmul.f32 %v1588, %v668
        %v1590 = vmul.f32 %v1587, %v669
        %v1591 = vld [vmem:[%s1562 + $0x1] sm:$0x1]
        %v1592 = vlaneseq
        %v1593 = vshrl.u32 %v1592, 7
        %v1594 = vsub.s32 0, %v1593
        %v1595 = vrot.slane %v1591, %v1594
        %v1596 = vmul.f32 %v1589, %v1595
        %v1597 = vmul.f32 %v1590, %v1595
        %v1598 = vadd.f32 %v1583, %v1596
        %v1599 = vadd.f32 %v1584, %v1597
        %v1600 = vrot.slane %v1560, 7
        %v1601 = vrot.slane %v1561, 7
        %v1602 = vsel %vm759, %v1600, %v1601
        %v1603 = vsel %vm759, %v1601, %v1600
        %v1604 = vmul.f32 %v1603, %v680
        %v1605 = vmul.f32 %v1602, %v681
        %v1606 = vld [vmem:[%s1562 + $0x2] sm:$0x1]
        %v1607 = vlaneseq
        %v1608 = vshrl.u32 %v1607, 7
        %v1609 = vsub.s32 0, %v1608
        %v1610 = vrot.slane %v1606, %v1609
        %v1611 = vmul.f32 %v1604, %v1610
        %v1612 = vmul.f32 %v1605, %v1610
        %v1613 = vadd.f32 %v1598, %v1611
        %v1614 = vadd.f32 %v1599, %v1612
        %v1615 = vrot.slane %v1560, 1
        %v1616 = vrot.slane %v1561, 1
        %v1617 = vsel %vm775, %v1615, %v1616
        %v1618 = vsel %vm775, %v1616, %v1615
        %v1619 = vmul.f32 %v1617, %v692
        %v1620 = vmul.f32 %v1618, %v693
        %v1621 = vld [vmem:[%s1562 + $0x4] sm:$0x1]
        %v1622 = vlaneseq
        %v1623 = vshrl.u32 %v1622, 7
        %v1624 = vsub.s32 0, %v1623
        %v1625 = vrot.slane %v1621, %v1624
        %v1626 = vmul.f32 %v1619, %v1625
        %v1627 = vmul.f32 %v1620, %v1625
        %v1628 = vadd.f32 %v1613, %v1626
        %v1629 = vadd.f32 %v1614, %v1627
        %v1630 = vrot.slane %v1560, 2
        %v1631 = vrot.slane %v1561, 2
        %v1632 = vsel %vm791, %v1630, %v1631
        %v1633 = vsel %vm791, %v1631, %v1630
        %v1634 = vmul.f32 %v1632, %v704
        %v1635 = vmul.f32 %v1633, %v705
        %v1636 = vld [vmem:[%s1562 + $0x5] sm:$0x1]
        %v1637 = vlaneseq
        %v1638 = vshrl.u32 %v1637, 7
        %v1639 = vsub.s32 0, %v1638
        %v1640 = vrot.slane %v1636, %v1639
        %v1641 = vmul.f32 %v1634, %v1640
        %v1642 = vmul.f32 %v1635, %v1640
        %v1643 = vadd.f32 %v1628, %v1641
        %v1644 = vadd.f32 %v1629, %v1642
        %v1645 = vrot.slane %v1560, 3
        %v1646 = vrot.slane %v1561, 3
        %v1647 = vsel %vm807, %v1645, %v1646
        %v1648 = vsel %vm807, %v1646, %v1645
        %v1649 = vmul.f32 %v1647, %v716
        %v1650 = vmul.f32 %v1648, %v717
        %v1651 = vld [vmem:[%s1562 + $0x6] sm:$0x1]
        %v1652 = vlaneseq
        %v1653 = vshrl.u32 %v1652, 7
        %v1654 = vsub.s32 0, %v1653
        %v1655 = vrot.slane %v1651, %v1654
        %v1656 = vmul.f32 %v1649, %v1655
        %v1657 = vmul.f32 %v1650, %v1655
        %v1658 = vadd.f32 %v1643, %v1656
        %v1659 = vadd.f32 %v1644, %v1657
        %v1660 = vld [vmem:[%s4 + $0x1] sm:$0x1]
        %v1661 = vlaneseq
        %v1662 = vshrl.u32 %v1661, 7
        %v1663 = vsub.s32 0, %v1662
        %v1664 = vrot.slane %v1660, %v1663
        %v1665 = vadd.f32 %v1658, %v1664
        %v1666 = vadd.f32 %v1659, %v1664
        %v1667 = vld [vmem:[%s5 + $0x1] sm:$0x1]
        %v1668 = vld [vmem:[%s6 + $0x1] sm:$0x1]
        %1669 = vadd.xlane.f32.xlu0 %v1665
        %v1670 = vpop.xlane.xlu0 %1669
        %1671 = vadd.xlane.f32.xlu0 %v1666
        %v1672 = vpop.xlane.xlu0 %1671
        %v1673 = vmul.f32 %v1670, %v834
        %v1674 = vmul.f32 %v1672, %v834
        %v1675 = vsub.f32 %v1665, %v1673
        %v1676 = vsub.f32 %v1666, %v1674
        %v1677 = vmul.f32 %v1675, %v1675
        %v1678 = vmul.f32 %v1676, %v1676
        %1679 = vadd.xlane.f32.xlu0 %v1677
        %v1680 = vpop.xlane.xlu0 %1679
        %1681 = vadd.xlane.f32.xlu0 %v1678
        %v1682 = vpop.xlane.xlu0 %1681
        %v1683 = vmul.f32 %v1680, %v834
        %v1684 = vmul.f32 %v1682, %v834
        %v1685 = vadd.f32 %v1683, 1e-05
        %v1686 = vadd.f32 %v1684, 1e-05
        %v1687 = vrsqrt.pop %v1685
        %v1688 = vrsqrt.pop %v1686
        %v1689 = vmul.f32 %v1675, %v1687
        %v1690 = vmul.f32 %v1676, %v1688
        %v1691 = vlaneseq
        %v1692 = vshrl.u32 %v1691, 7
        %v1693 = vsub.s32 0, %v1692
        %v1694 = vrot.slane %v1667, %v1693
        %v1695 = vmul.f32 %v1689, %v1694
        %v1696 = vmul.f32 %v1690, %v1694
        %v1697 = vlaneseq
        %v1698 = vshrl.u32 %v1697, 7
        %v1699 = vsub.s32 0, %v1698
        %v1700 = vrot.slane %v1668, %v1699
        %v1701 = vadd.f32 %v1695, %v1700
        %v1702 = vadd.f32 %v1696, %v1700
        %v1703 = vpack.c.bf16 %v1702, %v1701
        %s1704 = scalar_lea.vmem [#allocation6], 256
        %v1705 = vld [vmem:[%s1704] sm:$0xff]
        %v1706 = vld [vmem:[%s1704 + $0x8] sm:$0xff]
        %v1707 = vld [vmem:[%s1704 + $0x10] sm:$0xff]
        %v1708 = vld [vmem:[%s1704 + $0x18] sm:$0xff]
        %v1709 = vld [vmem:[%s1704 + $0x20] sm:$0xff]
        %v1710 = vld [vmem:[%s1704 + $0x28] sm:$0xff]
        %v1711 = vld [vmem:[%s1704 + $0x30] sm:$0xff]
        %v1712 = vld [vmem:[%s1704 + $0x38] sm:$0xff]
        %v1713 = vld [vmem:[%s1704 + $0x40] sm:$0xff]
        %v1714 = vld [vmem:[%s1704 + $0x48] sm:$0xff]
        %v1715 = vld [vmem:[%s1704 + $0x50] sm:$0xff]
        %v1716 = vld [vmem:[%s1704 + $0x58] sm:$0xff]
        %v1717 = vld [vmem:[%s1704 + $0x60] sm:$0xff]
        %v1718 = vld [vmem:[%s1704 + $0x68] sm:$0xff]
        %v1719 = vld [vmem:[%s1704 + $0x70] sm:$0xff]
        %v1720 = vld [vmem:[%s1704 + $0x78] sm:$0xff]
        %v1721 = vld [vmem:[%s1704 + $0x80] sm:$0xff]
        %v1722 = vld [vmem:[%s1704 + $0x88] sm:$0xff]
        %v1723 = vld [vmem:[%s1704 + $0x90] sm:$0xff]
        %v1724 = vld [vmem:[%s1704 + $0x98] sm:$0xff]
        %v1725 = vld [vmem:[%s1704 + $0xa0] sm:$0xff]
        %v1726 = vld [vmem:[%s1704 + $0xa8] sm:$0xff]
        %v1727 = vld [vmem:[%s1704 + $0xb0] sm:$0xff]
        %v1728 = vld [vmem:[%s1704 + $0xb8] sm:$0xff]
        %v1729 = vld [vmem:[%s1704 + $0xc0] sm:$0xff]
        %v1730 = vld [vmem:[%s1704 + $0xc8] sm:$0xff]
        %v1731 = vld [vmem:[%s1704 + $0xd0] sm:$0xff]
        %v1732 = vld [vmem:[%s1704 + $0xd8] sm:$0xff]
        %v1733 = vld [vmem:[%s1704 + $0xe0] sm:$0xff]
        %v1734 = vld [vmem:[%s1704 + $0xe8] sm:$0xff]
        %v1735 = vld [vmem:[%s1704 + $0xf0] sm:$0xff]
        %v1736 = vld [vmem:[%s1704 + $0xf8] sm:$0xff]
        %s1737 = scalar_lea.vmem %s8, 1
        %v1738 = vld [vmem:[%s1737] ss:$2 sm:$0xf]
        %v1740 = vlaneseq
        %v1741 = vshrl.u32 %v1740, 7
        %v1742 = vsub.s32 0, %v1741
        %v1743 = vrot.slane %v1738, %v1742
        %v1744 = vlaneseq
        %v1745 = vshrl.u32 %v1744, 7
        %v1746 = vsub.s32 1, %v1745
        %v1747 = vrot.slane %v1738, %v1746
        %v1748 = vlaneseq
        %v1749 = vshrl.u32 %v1748, 7
        %v1750 = vsub.s32 2, %v1749
        %v1751 = vrot.slane %v1738, %v1750
        %v1752 = vlaneseq
        %v1753 = vshrl.u32 %v1752, 7
        %v1754 = vsub.s32 3, %v1753
        %v1755 = vrot.slane %v1738, %v1754
        %v1792 = vunpack.c.l.b16 %v1705
        %v1793 = vunpack.c.h.b16 %v1705
        %v1794 = vunpack.c.l.b16 %v1706
        %v1795 = vunpack.c.h.b16 %v1706
        %v1796 = vunpack.c.l.b16 %v1707
        %v1797 = vunpack.c.h.b16 %v1707
        %v1798 = vunpack.c.l.b16 %v1708
        %v1799 = vunpack.c.h.b16 %v1708
        %v1800 = vunpack.c.l.b16 %v1709
        %v1801 = vunpack.c.h.b16 %v1709
        %v1802 = vunpack.c.l.b16 %v1710
        %v1803 = vunpack.c.h.b16 %v1710
        %v1804 = vunpack.c.l.b16 %v1711
        %v1805 = vunpack.c.h.b16 %v1711
        %v1806 = vunpack.c.l.b16 %v1712
        %v1807 = vunpack.c.h.b16 %v1712
        %v1808 = vunpack.c.l.b16 %v1713
        %v1809 = vunpack.c.h.b16 %v1713
        %v1810 = vunpack.c.l.b16 %v1714
        %v1811 = vunpack.c.h.b16 %v1714
        %v1812 = vunpack.c.l.b16 %v1715
        %v1813 = vunpack.c.h.b16 %v1715
        %v1814 = vunpack.c.l.b16 %v1716
        %v1815 = vunpack.c.h.b16 %v1716
        %v1816 = vunpack.c.l.b16 %v1717
        %v1817 = vunpack.c.h.b16 %v1717
        %v1818 = vunpack.c.l.b16 %v1718
        %v1819 = vunpack.c.h.b16 %v1718
        %v1820 = vunpack.c.l.b16 %v1719
        %v1821 = vunpack.c.h.b16 %v1719
        %v1822 = vunpack.c.l.b16 %v1720
        %v1823 = vunpack.c.h.b16 %v1720
        %v1824 = vunpack.c.l.b16 %v1721
        %v1825 = vunpack.c.h.b16 %v1721
        %v1826 = vunpack.c.l.b16 %v1722
        %v1827 = vunpack.c.h.b16 %v1722
        %v1828 = vunpack.c.l.b16 %v1723
        %v1829 = vunpack.c.h.b16 %v1723
        %v1830 = vunpack.c.l.b16 %v1724
        %v1831 = vunpack.c.h.b16 %v1724
        %v1832 = vunpack.c.l.b16 %v1725
        %v1833 = vunpack.c.h.b16 %v1725
        %v1834 = vunpack.c.l.b16 %v1726
        %v1835 = vunpack.c.h.b16 %v1726
        %v1836 = vunpack.c.l.b16 %v1727
        %v1837 = vunpack.c.h.b16 %v1727
        %v1838 = vunpack.c.l.b16 %v1728
        %v1839 = vunpack.c.h.b16 %v1728
        %v1840 = vunpack.c.l.b16 %v1729
        %v1841 = vunpack.c.h.b16 %v1729
        %v1842 = vunpack.c.l.b16 %v1730
        %v1843 = vunpack.c.h.b16 %v1730
        %v1844 = vunpack.c.l.b16 %v1731
        %v1845 = vunpack.c.h.b16 %v1731
        %v1846 = vunpack.c.l.b16 %v1732
        %v1847 = vunpack.c.h.b16 %v1732
        %v1848 = vunpack.c.l.b16 %v1733
        %v1849 = vunpack.c.h.b16 %v1733
        %v1850 = vunpack.c.l.b16 %v1734
        %v1851 = vunpack.c.h.b16 %v1734
        %v1852 = vunpack.c.l.b16 %v1735
        %v1853 = vunpack.c.h.b16 %v1735
        %v1854 = vunpack.c.l.b16 %v1736
        %v1855 = vunpack.c.h.b16 %v1736
        %v1856 = vpack.c.b16 %v1796, %v1792
        %v1857 = vpack.c.b16 %v1797, %v1793
        %v1858 = vpack.c.b16 %v1798, %v1794
        %v1859 = vpack.c.b16 %v1799, %v1795
        %v1860 = vpack.c.b16 %v1804, %v1800
        %v1861 = vpack.c.b16 %v1805, %v1801
        %v1862 = vpack.c.b16 %v1806, %v1802
        %v1863 = vpack.c.b16 %v1807, %v1803
        %v1864 = vpack.c.b16 %v1812, %v1808
        %v1865 = vpack.c.b16 %v1813, %v1809
        %v1866 = vpack.c.b16 %v1814, %v1810
        %v1867 = vpack.c.b16 %v1815, %v1811
        %v1868 = vpack.c.b16 %v1820, %v1816
        %v1869 = vpack.c.b16 %v1821, %v1817
        %v1870 = vpack.c.b16 %v1822, %v1818
        %v1871 = vpack.c.b16 %v1823, %v1819
        %v1872 = vpack.c.b16 %v1828, %v1824
        %v1873 = vpack.c.b16 %v1829, %v1825
        %v1874 = vpack.c.b16 %v1830, %v1826
        %v1875 = vpack.c.b16 %v1831, %v1827
        %v1876 = vpack.c.b16 %v1836, %v1832
        %v1877 = vpack.c.b16 %v1837, %v1833
        %v1878 = vpack.c.b16 %v1838, %v1834
        %v1879 = vpack.c.b16 %v1839, %v1835
        %v1880 = vpack.c.b16 %v1844, %v1840
        %v1881 = vpack.c.b16 %v1845, %v1841
        %v1882 = vpack.c.b16 %v1846, %v1842
        %v1883 = vpack.c.b16 %v1847, %v1843
        %v1884 = vpack.c.b16 %v1852, %v1848
        %v1885 = vpack.c.b16 %v1853, %v1849
        %v1886 = vpack.c.b16 %v1854, %v1850
        %v1887 = vpack.c.b16 %v1855, %v1851
        %1920 = vmatprep.subr.bf16.mxu0 %v1885
        %1921 = vmatpush1.bf16.msra.mxu0 %v1884
        %1922 = vmatprep.subr.bf16.mxu0 %v1881
        %1923 = vmatpush1.bf16.msra.mxu0 %v1880
        %1924 = vmatprep.subr.bf16.mxu0 %v1877
        %1925 = vmatpush1.bf16.msra.mxu0 %v1876
        %1926 = vmatprep.subr.bf16.mxu0 %v1873
        %1927 = vmatpush1.bf16.msra.mxu0 %v1872
        %1928 = vmatprep.subr.bf16.mxu0 %v1869
        %1929 = vmatpush1.bf16.msra.mxu0 %v1868
        %1930 = vmatprep.subr.bf16.mxu0 %v1865
        %1931 = vmatpush1.bf16.msra.mxu0 %v1864
        %1932 = vmatprep.subr.bf16.mxu0 %v1861
        %1933 = vmatpush1.bf16.msra.mxu0 %v1860
        %1934 = vmatprep.subr.bf16.mxu0 %v1857
        %1935 = vmatpush1.bf16.msra.mxu0 %v1856
        %1936 = vmatprep.subr.bf16.mxu0 0
        %1937 = vmatpush2.bf16.msra.mxu0 0
        %1938 = vmatprep.subr.bf16.mxu0 0
        %1939 = vmatpush2.bf16.msra.mxu0 0
        %1940 = vmatprep.subr.bf16.mxu0 0
        %1941 = vmatpush2.bf16.msra.mxu0 0
        %1942 = vmatprep.subr.bf16.mxu0 0
        %1943 = vmatpush2.bf16.msra.mxu0 0
        %1944 = vmatprep.subr.bf16.mxu0 0
        %1945 = vmatpush2.bf16.msra.mxu0 0
        %1946 = vmatprep.subr.bf16.mxu0 0
        %1947 = vmatpush2.bf16.msra.mxu0 0
        %1948 = vmatprep.subr.bf16.mxu0 0
        %1949 = vmatpush2.bf16.msra.mxu0 0
        %1950 = vmatprep.subr.bf16.mxu0 0
        %1951 = vmatpush2.bf16.msra.mxu0 0
        %1952 = vmatprep.mubr.bf16.mxu0 0
        %1953 = vmatmul.mubr.bf16.gmra.mxu0 %v1703
        %v1954 = vpop.f32.mrf.mxu0
        %v1955 = vadd.f32 %v1743, %v1954
        %v1956 = vpop.f32.mrf.mxu0
        %v1957 = vadd.f32 %v1747, %v1956
        %v1958 = vpop.f32.mrf.mxu0
        %v1959 = vadd.f32 %v1743, %v1958
        %v1960 = vpop.f32.mrf.mxu0
        %v1961 = vadd.f32 %v1747, %v1960
        %1962 = vdwg.mxu0
        %1963 = vmatprep.subr.bf16.mxu0 %v1887
        %1964 = vmatpush1.bf16.msra.mxu0 %v1886
        %1965 = vmatprep.subr.bf16.mxu0 %v1883
        %1966 = vmatpush1.bf16.msra.mxu0 %v1882
        %1967 = vmatprep.subr.bf16.mxu0 %v1879
        %1968 = vmatpush1.bf16.msra.mxu0 %v1878
        %1969 = vmatprep.subr.bf16.mxu0 %v1875
        %1970 = vmatpush1.bf16.msra.mxu0 %v1874
        %1971 = vmatprep.subr.bf16.mxu0 %v1871
        %1972 = vmatpush1.bf16.msra.mxu0 %v1870
        %1973 = vmatprep.subr.bf16.mxu0 %v1867
        %1974 = vmatpush1.bf16.msra.mxu0 %v1866
        %1975 = vmatprep.subr.bf16.mxu0 %v1863
        %1976 = vmatpush1.bf16.msra.mxu0 %v1862
        %1977 = vmatprep.subr.bf16.mxu0 %v1859
        %1978 = vmatpush1.bf16.msra.mxu0 %v1858
        %1979 = vmatprep.subr.bf16.mxu0 0
        %1980 = vmatpush2.bf16.msra.mxu0 0
        %1981 = vmatprep.subr.bf16.mxu0 0
        %1982 = vmatpush2.bf16.msra.mxu0 0
        %1983 = vmatprep.subr.bf16.mxu0 0
        %1984 = vmatpush2.bf16.msra.mxu0 0
        %1985 = vmatprep.subr.bf16.mxu0 0
        %1986 = vmatpush2.bf16.msra.mxu0 0
        %1987 = vmatprep.subr.bf16.mxu0 0
        %1988 = vmatpush2.bf16.msra.mxu0 0
        %1989 = vmatprep.subr.bf16.mxu0 0
        %1990 = vmatpush2.bf16.msra.mxu0 0
        %1991 = vmatprep.subr.bf16.mxu0 0
        %1992 = vmatpush2.bf16.msra.mxu0 0
        %1993 = vmatprep.subr.bf16.mxu0 0
        %1994 = vmatpush2.bf16.msra.mxu0 0
        %1995 = vmatprep.mubr.bf16.mxu0 0
        %1996 = vmatmul.mubr.bf16.gmra.mxu0 %v1703
        %v1997 = vpop.f32.mrf.mxu0
        %v1998 = vadd.f32 %v1751, %v1997
        %v1999 = vpop.f32.mrf.mxu0
        %v2000 = vadd.f32 %v1755, %v1999
        %v2001 = vpop.f32.mrf.mxu0
        %v2002 = vadd.f32 %v1751, %v2001
        %v2003 = vpop.f32.mrf.mxu0
        %v2004 = vadd.f32 %v1755, %v2003
        %2005 = vdwg.mxu0
        %v2006 = vmul.f32 %v1955, 0.5
        %v2007 = vmul.f32 %v1957, 0.5
        %v2008 = vmul.f32 %v1998, 0.5
        %v2009 = vmul.f32 %v2000, 0.5
        %v2010 = vmul.f32 %v1959, 0.5
        %v2011 = vmul.f32 %v1961, 0.5
        %v2012 = vmul.f32 %v2002, 0.5
        %v2013 = vmul.f32 %v2004, 0.5
        %v2014 = vmul.f32 %v1955, 0.70710677
        %v2015 = vmul.f32 %v1957, 0.70710677
        %v2016 = vmul.f32 %v1998, 0.70710677
        %v2017 = vmul.f32 %v2000, 0.70710677
        %v2018 = vmul.f32 %v1959, 0.70710677
        %v2019 = vmul.f32 %v1961, 0.70710677
        %v2020 = vmul.f32 %v2002, 0.70710677
        %v2021 = vmul.f32 %v2004, 0.70710677
        %v2022 = verf.f32.pop %v2014
        %v2023 = verf.f32.pop %v2015
        %v2024 = verf.f32.pop %v2016
        %v2025 = verf.f32.pop %v2017
        %v2026 = verf.f32.pop %v2018
        %v2027 = verf.f32.pop %v2019
        %v2028 = verf.f32.pop %v2020
        %v2029 = verf.f32.pop %v2021
        %v2030 = vadd.f32 %v2022, 1.0
        %v2031 = vadd.f32 %v2023, 1.0
        %v2032 = vadd.f32 %v2024, 1.0
        %v2033 = vadd.f32 %v2025, 1.0
        %v2034 = vadd.f32 %v2026, 1.0
        %v2035 = vadd.f32 %v2027, 1.0
        %v2036 = vadd.f32 %v2028, 1.0
        %v2037 = vadd.f32 %v2029, 1.0
        %v2038 = vmul.f32 %v2006, %v2030
        %v2039 = vmul.f32 %v2007, %v2031
        %v2040 = vmul.f32 %v2008, %v2032
        %v2041 = vmul.f32 %v2009, %v2033
        %v2042 = vmul.f32 %v2010, %v2034
        %v2043 = vmul.f32 %v2011, %v2035
        %v2044 = vmul.f32 %v2012, %v2036
        %v2045 = vmul.f32 %v2013, %v2037
        %v2046 = vpack.c.bf16 %v2042, %v2038
        %v2047 = vpack.c.bf16 %v2043, %v2039
        %v2048 = vpack.c.bf16 %v2044, %v2040
        %v2049 = vpack.c.bf16 %v2045, %v2041
        %s2050 = scalar_lea.vmem [#allocation7], 256
        %v2051 = vld [vmem:[%s2050] sm:$0xf]
        %v2052 = vld [vmem:[%s2050 + $0x4] sm:$0xf]
        %v2053 = vld [vmem:[%s2050 + $0x8] sm:$0xf]
        %v2054 = vld [vmem:[%s2050 + $0xc] sm:$0xf]
        %v2055 = vld [vmem:[%s2050 + $0x10] sm:$0xf]
        %v2056 = vld [vmem:[%s2050 + $0x14] sm:$0xf]
        %v2057 = vld [vmem:[%s2050 + $0x18] sm:$0xf]
        %v2058 = vld [vmem:[%s2050 + $0x1c] sm:$0xf]
        %v2059 = vld [vmem:[%s2050 + $0x20] sm:$0xf]
        %v2060 = vld [vmem:[%s2050 + $0x24] sm:$0xf]
        %v2061 = vld [vmem:[%s2050 + $0x28] sm:$0xf]
        %v2062 = vld [vmem:[%s2050 + $0x2c] sm:$0xf]
        %v2063 = vld [vmem:[%s2050 + $0x30] sm:$0xf]
        %v2064 = vld [vmem:[%s2050 + $0x34] sm:$0xf]
        %v2065 = vld [vmem:[%s2050 + $0x38] sm:$0xf]
        %v2066 = vld [vmem:[%s2050 + $0x3c] sm:$0xf]
        %v2067 = vld [vmem:[%s2050 + $0x40] sm:$0xf]
        %v2068 = vld [vmem:[%s2050 + $0x44] sm:$0xf]
        %v2069 = vld [vmem:[%s2050 + $0x48] sm:$0xf]
        %v2070 = vld [vmem:[%s2050 + $0x4c] sm:$0xf]
        %v2071 = vld [vmem:[%s2050 + $0x50] sm:$0xf]
        %v2072 = vld [vmem:[%s2050 + $0x54] sm:$0xf]
        %v2073 = vld [vmem:[%s2050 + $0x58] sm:$0xf]
        %v2074 = vld [vmem:[%s2050 + $0x5c] sm:$0xf]
        %v2075 = vld [vmem:[%s2050 + $0x60] sm:$0xf]
        %v2076 = vld [vmem:[%s2050 + $0x64] sm:$0xf]
        %v2077 = vld [vmem:[%s2050 + $0x68] sm:$0xf]
        %v2078 = vld [vmem:[%s2050 + $0x6c] sm:$0xf]
        %v2079 = vld [vmem:[%s2050 + $0x70] sm:$0xf]
        %v2080 = vld [vmem:[%s2050 + $0x74] sm:$0xf]
        %v2081 = vld [vmem:[%s2050 + $0x78] sm:$0xf]
        %v2082 = vld [vmem:[%s2050 + $0x7c] sm:$0xf]
        %v2083 = vld [vmem:[%s2050 + $0x80] sm:$0xf]
        %v2084 = vld [vmem:[%s2050 + $0x84] sm:$0xf]
        %v2085 = vld [vmem:[%s2050 + $0x88] sm:$0xf]
        %v2086 = vld [vmem:[%s2050 + $0x8c] sm:$0xf]
        %v2087 = vld [vmem:[%s2050 + $0x90] sm:$0xf]
        %v2088 = vld [vmem:[%s2050 + $0x94] sm:$0xf]
        %v2089 = vld [vmem:[%s2050 + $0x98] sm:$0xf]
        %v2090 = vld [vmem:[%s2050 + $0x9c] sm:$0xf]
        %v2091 = vld [vmem:[%s2050 + $0xa0] sm:$0xf]
        %v2092 = vld [vmem:[%s2050 + $0xa4] sm:$0xf]
        %v2093 = vld [vmem:[%s2050 + $0xa8] sm:$0xf]
        %v2094 = vld [vmem:[%s2050 + $0xac] sm:$0xf]
        %v2095 = vld [vmem:[%s2050 + $0xb0] sm:$0xf]
        %v2096 = vld [vmem:[%s2050 + $0xb4] sm:$0xf]
        %v2097 = vld [vmem:[%s2050 + $0xb8] sm:$0xf]
        %v2098 = vld [vmem:[%s2050 + $0xbc] sm:$0xf]
        %v2099 = vld [vmem:[%s2050 + $0xc0] sm:$0xf]
        %v2100 = vld [vmem:[%s2050 + $0xc4] sm:$0xf]
        %v2101 = vld [vmem:[%s2050 + $0xc8] sm:$0xf]
        %v2102 = vld [vmem:[%s2050 + $0xcc] sm:$0xf]
        %v2103 = vld [vmem:[%s2050 + $0xd0] sm:$0xf]
        %v2104 = vld [vmem:[%s2050 + $0xd4] sm:$0xf]
        %v2105 = vld [vmem:[%s2050 + $0xd8] sm:$0xf]
        %v2106 = vld [vmem:[%s2050 + $0xdc] sm:$0xf]
        %v2107 = vld [vmem:[%s2050 + $0xe0] sm:$0xf]
        %v2108 = vld [vmem:[%s2050 + $0xe4] sm:$0xf]
        %v2109 = vld [vmem:[%s2050 + $0xe8] sm:$0xf]
        %v2110 = vld [vmem:[%s2050 + $0xec] sm:$0xf]
        %v2111 = vld [vmem:[%s2050 + $0xf0] sm:$0xf]
        %v2112 = vld [vmem:[%s2050 + $0xf4] sm:$0xf]
        %v2113 = vld [vmem:[%s2050 + $0xf8] sm:$0xf]
        %v2114 = vld [vmem:[%s2050 + $0xfc] sm:$0xf]
        %v2115 = vld [vmem:[%s10 + $0x1] sm:$0x1]
        %v2116 = vlaneseq
        %v2117 = vshrl.u32 %v2116, 7
        %v2118 = vsub.s32 0, %v2117
        %v2119 = vrot.slane %v2115, %v2118
        %v2184 = vunpack.c.l.b16 %v2051
        %v2185 = vunpack.c.l.b16 %v2052
        %v2186 = vunpack.c.l.b16 %v2053
        %v2187 = vunpack.c.l.b16 %v2054
        %v2188 = vunpack.c.l.b16 %v2055
        %v2189 = vunpack.c.l.b16 %v2056
        %v2190 = vunpack.c.l.b16 %v2057
        %v2191 = vunpack.c.l.b16 %v2058
        %v2192 = vunpack.c.l.b16 %v2059
        %v2193 = vunpack.c.l.b16 %v2060
        %v2194 = vunpack.c.l.b16 %v2061
        %v2195 = vunpack.c.l.b16 %v2062
        %v2196 = vunpack.c.l.b16 %v2063
        %v2197 = vunpack.c.l.b16 %v2064
        %v2198 = vunpack.c.l.b16 %v2065
        %v2199 = vunpack.c.l.b16 %v2066
        %v2200 = vunpack.c.l.b16 %v2067
        %v2201 = vunpack.c.l.b16 %v2068
        %v2202 = vunpack.c.l.b16 %v2069
        %v2203 = vunpack.c.l.b16 %v2070
        %v2204 = vunpack.c.l.b16 %v2071
        %v2205 = vunpack.c.l.b16 %v2072
        %v2206 = vunpack.c.l.b16 %v2073
        %v2207 = vunpack.c.l.b16 %v2074
        %v2208 = vunpack.c.l.b16 %v2075
        %v2209 = vunpack.c.l.b16 %v2076
        %v2210 = vunpack.c.l.b16 %v2077
        %v2211 = vunpack.c.l.b16 %v2078
        %v2212 = vunpack.c.l.b16 %v2079
        %v2213 = vunpack.c.l.b16 %v2080
        %v2214 = vunpack.c.l.b16 %v2081
        %v2215 = vunpack.c.l.b16 %v2082
        %v2216 = vunpack.c.l.b16 %v2083
        %v2217 = vunpack.c.l.b16 %v2084
        %v2218 = vunpack.c.l.b16 %v2085
        %v2219 = vunpack.c.l.b16 %v2086
        %v2220 = vunpack.c.l.b16 %v2087
        %v2221 = vunpack.c.l.b16 %v2088
        %v2222 = vunpack.c.l.b16 %v2089
        %v2223 = vunpack.c.l.b16 %v2090
        %v2224 = vunpack.c.l.b16 %v2091
        %v2225 = vunpack.c.l.b16 %v2092
        %v2226 = vunpack.c.l.b16 %v2093
        %v2227 = vunpack.c.l.b16 %v2094
        %v2228 = vunpack.c.l.b16 %v2095
        %v2229 = vunpack.c.l.b16 %v2096
        %v2230 = vunpack.c.l.b16 %v2097
        %v2231 = vunpack.c.l.b16 %v2098
        %v2232 = vunpack.c.l.b16 %v2099
        %v2233 = vunpack.c.l.b16 %v2100
        %v2234 = vunpack.c.l.b16 %v2101
        %v2235 = vunpack.c.l.b16 %v2102
        %v2236 = vunpack.c.l.b16 %v2103
        %v2237 = vunpack.c.l.b16 %v2104
        %v2238 = vunpack.c.l.b16 %v2105
        %v2239 = vunpack.c.l.b16 %v2106
        %v2240 = vunpack.c.l.b16 %v2107
        %v2241 = vunpack.c.l.b16 %v2108
        %v2242 = vunpack.c.l.b16 %v2109
        %v2243 = vunpack.c.l.b16 %v2110
        %v2244 = vunpack.c.l.b16 %v2111
        %v2245 = vunpack.c.l.b16 %v2112
        %v2246 = vunpack.c.l.b16 %v2113
        %v2247 = vunpack.c.l.b16 %v2114
        %v2248 = vpack.c.b16 %v2185, %v2184
        %v2249 = vpack.c.b16 %v2187, %v2186
        %v2250 = vpack.c.b16 %v2189, %v2188
        %v2251 = vpack.c.b16 %v2191, %v2190
        %v2252 = vpack.c.b16 %v2193, %v2192
        %v2253 = vpack.c.b16 %v2195, %v2194
        %v2254 = vpack.c.b16 %v2197, %v2196
        %v2255 = vpack.c.b16 %v2199, %v2198
        %v2256 = vpack.c.b16 %v2201, %v2200
        %v2257 = vpack.c.b16 %v2203, %v2202
        %v2258 = vpack.c.b16 %v2205, %v2204
        %v2259 = vpack.c.b16 %v2207, %v2206
        %v2260 = vpack.c.b16 %v2209, %v2208
        %v2261 = vpack.c.b16 %v2211, %v2210
        %v2262 = vpack.c.b16 %v2213, %v2212
        %v2263 = vpack.c.b16 %v2215, %v2214
        %v2264 = vpack.c.b16 %v2217, %v2216
        %v2265 = vpack.c.b16 %v2219, %v2218
        %v2266 = vpack.c.b16 %v2221, %v2220
        %v2267 = vpack.c.b16 %v2223, %v2222
        %v2268 = vpack.c.b16 %v2225, %v2224
        %v2269 = vpack.c.b16 %v2227, %v2226
        %v2270 = vpack.c.b16 %v2229, %v2228
        %v2271 = vpack.c.b16 %v2231, %v2230
        %v2272 = vpack.c.b16 %v2233, %v2232
        %v2273 = vpack.c.b16 %v2235, %v2234
        %v2274 = vpack.c.b16 %v2237, %v2236
        %v2275 = vpack.c.b16 %v2239, %v2238
        %v2276 = vpack.c.b16 %v2241, %v2240
        %v2277 = vpack.c.b16 %v2243, %v2242
        %v2278 = vpack.c.b16 %v2245, %v2244
        %v2279 = vpack.c.b16 %v2247, %v2246
        %2312 = vmatprep.subr.bf16.mxu0 0
        %2313 = vmatpush1.bf16.msra.mxu0 %v2255
        %2314 = vmatprep.subr.bf16.mxu0 0
        %2315 = vmatpush1.bf16.msra.mxu0 %v2254
        %2316 = vmatprep.subr.bf16.mxu0 0
        %2317 = vmatpush1.bf16.msra.mxu0 %v2253
        %2318 = vmatprep.subr.bf16.mxu0 0
        %2319 = vmatpush1.bf16.msra.mxu0 %v2252
        %2320 = vmatprep.subr.bf16.mxu0 0
        %2321 = vmatpush1.bf16.msra.mxu0 %v2251
        %2322 = vmatprep.subr.bf16.mxu0 0
        %2323 = vmatpush1.bf16.msra.mxu0 %v2250
        %2324 = vmatprep.subr.bf16.mxu0 0
        %2325 = vmatpush1.bf16.msra.mxu0 %v2249
        %2326 = vmatprep.subr.bf16.mxu0 0
        %2327 = vmatpush1.bf16.msra.mxu0 %v2248
        %2328 = vmatprep.subr.bf16.mxu0 0
        %2329 = vmatpush2.bf16.msra.mxu0 %v2263
        %2330 = vmatprep.subr.bf16.mxu0 0
        %2331 = vmatpush2.bf16.msra.mxu0 %v2262
        %2332 = vmatprep.subr.bf16.mxu0 0
        %2333 = vmatpush2.bf16.msra.mxu0 %v2261
        %2334 = vmatprep.subr.bf16.mxu0 0
        %2335 = vmatpush2.bf16.msra.mxu0 %v2260
        %2336 = vmatprep.subr.bf16.mxu0 0
        %2337 = vmatpush2.bf16.msra.mxu0 %v2259
        %2338 = vmatprep.subr.bf16.mxu0 0
        %2339 = vmatpush2.bf16.msra.mxu0 %v2258
        %2340 = vmatprep.subr.bf16.mxu0 0
        %2341 = vmatpush2.bf16.msra.mxu0 %v2257
        %2342 = vmatprep.subr.bf16.mxu0 0
        %2343 = vmatpush2.bf16.msra.mxu0 %v2256
        %2344 = vmatprep.mubr.bf16.mxu0 %v2047
        %2345 = vmatmul.mubr.bf16.gmra.mxu0 %v2046
        %v2346 = vpop.f32.mrf.mxu0
        %v2347 = vadd.f32 %v2119, %v2346
        %v2348 = vpop.f32.mrf.mxu0
        %v2349 = vpop.f32.mrf.mxu0
        %v2350 = vadd.f32 %v2119, %v2349
        %v2351 = vpop.f32.mrf.mxu0
        %2352 = vdwg.mxu0
        %2353 = vmatprep.subr.bf16.mxu0 0
        %2354 = vmatpush1.bf16.msra.mxu0 %v2271
        %2355 = vmatprep.subr.bf16.mxu0 0
        %2356 = vmatpush1.bf16.msra.mxu0 %v2270
        %2357 = vmatprep.subr.bf16.mxu0 0
        %2358 = vmatpush1.bf16.msra.mxu0 %v2269
        %2359 = vmatprep.subr.bf16.mxu0 0
        %2360 = vmatpush1.bf16.msra.mxu0 %v2268
        %2361 = vmatprep.subr.bf16.mxu0 0
        %2362 = vmatpush1.bf16.msra.mxu0 %v2267
        %2363 = vmatprep.subr.bf16.mxu0 0
        %2364 = vmatpush1.bf16.msra.mxu0 %v2266
        %2365 = vmatprep.subr.bf16.mxu0 0
        %2366 = vmatpush1.bf16.msra.mxu0 %v2265
        %2367 = vmatprep.subr.bf16.mxu0 0
        %2368 = vmatpush1.bf16.msra.mxu0 %v2264
        %2369 = vmatprep.subr.bf16.mxu0 0
        %2370 = vmatpush2.bf16.msra.mxu0 %v2279
        %2371 = vmatprep.subr.bf16.mxu0 0
        %2372 = vmatpush2.bf16.msra.mxu0 %v2278
        %2373 = vmatprep.subr.bf16.mxu0 0
        %2374 = vmatpush2.bf16.msra.mxu0 %v2277
        %2375 = vmatprep.subr.bf16.mxu0 0
        %2376 = vmatpush2.bf16.msra.mxu0 %v2276
        %2377 = vmatprep.subr.bf16.mxu0 0
        %2378 = vmatpush2.bf16.msra.mxu0 %v2275
        %2379 = vmatprep.subr.bf16.mxu0 0
        %2380 = vmatpush2.bf16.msra.mxu0 %v2274
        %2381 = vmatprep.subr.bf16.mxu0 0
        %2382 = vmatpush2.bf16.msra.mxu0 %v2273
        %2383 = vmatprep.subr.bf16.mxu0 0
        %2384 = vmatpush2.bf16.msra.mxu0 %v2272
        %2385 = vmatprep.mubr.bf16.mxu0 %v2049
        %2386 = vmatmul.mubr.bf16.gmra.mxu0 %v2048
        %v2387 = vpop.f32.mrf.mxu0
        %v2388 = vadd.f32 %v2347, %v2387
        %v2389 = vpop.f32.mrf.mxu0
        %v2390 = vpop.f32.mrf.mxu0
        %v2391 = vadd.f32 %v2350, %v2390
        %v2392 = vpop.f32.mrf.mxu0
        %2393 = vdwg.mxu0
        %v2394 = vld [vmem:[%s11 + $0x1] sm:$0x1]
        %v2395 = vlaneseq
        %v2396 = vshrl.u32 %v2395, 7
        %v2397 = vsub.s32 0, %v2396
        %v2398 = vrot.slane %v2394, %v2397
        %v2399 = vmul.f32 %v2398, %v2388
        %v2400 = vmul.f32 %v2398, %v2391
        %v2401 = vadd.f32 %v1560, %v2399
        %v2402 = vadd.f32 %v1561, %v2400
        %v2403 = vld [vmem:[%s12] sm:$0x1]
        %v2404 = vld [vmem:[%s13] sm:$0x1]
        %2405 = vadd.xlane.f32.xlu0 %v2401
        %v2406 = vpop.xlane.xlu0 %2405
        %2407 = vadd.xlane.f32.xlu0 %v2402
        %v2408 = vpop.xlane.xlu0 %2407
        %v2409 = vmul.f32 %v2406, %v834
        %v2410 = vmul.f32 %v2408, %v834
        %v2411 = vsub.f32 %v2401, %v2409
        %v2412 = vsub.f32 %v2402, %v2410
        %v2413 = vmul.f32 %v2411, %v2411
        %v2414 = vmul.f32 %v2412, %v2412
        %2415 = vadd.xlane.f32.xlu0 %v2413
        %v2416 = vpop.xlane.xlu0 %2415
        %2417 = vadd.xlane.f32.xlu0 %v2414
        %v2418 = vpop.xlane.xlu0 %2417
        %v2419 = vmul.f32 %v2416, %v834
        %v2420 = vmul.f32 %v2418, %v834
        %v2421 = vadd.f32 %v2419, 1e-05
        %v2422 = vadd.f32 %v2420, 1e-05
        %v2423 = vrsqrt.pop %v2421
        %v2424 = vrsqrt.pop %v2422
        %v2425 = vmul.f32 %v2411, %v2423
        %v2426 = vmul.f32 %v2412, %v2424
        %v2428 = vlaneseq
        %v2429 = vshrl.u32 %v2428, 7
        %v2430 = vsub.s32 0, %v2429
        %v2431 = vrot.slane %v2403, %v2430
        %v2433 = vmul.f32 %v2425, %v2431
        %v2434 = vmul.f32 %v2426, %v2431
        %v2436 = vlaneseq
        %v2437 = vshrl.u32 %v2436, 7
        %v2438 = vsub.s32 0, %v2437
        %v2439 = vrot.slane %v2404, %v2438
        %v2441 = vadd.f32 %v2433, %v2439
        %v2442 = vadd.f32 %v2434, %v2439
        %2443 = vst [vmem:[%s526] sm:$0xff] %v2441
        %2444 = vst [vmem:[%s526 + $0x8] sm:$0xff] %v2442
        %p2445 = scmp.lt.s32.totalorder %s28, 1
        %s2446 = scalar_select %p2445, %s28, 1
        %s2447 = smul.addr %s2446, 2
        %s2448 = smul.addr %s2447, 8
        %s2449 = scalar_lea.vmem %s14, %s2448
        // Predicated region
        $region93: #{convnext1d_forward.6} parent=75 // pred_check
          %p2450 = pneg %p345
        $region94: #{convnext1d_forward.6} parent=75 // pred_check_branch
          %2452 = sbr.rel (%p2450) target = $region96
        $region95: #{convnext1d_forward.6} parent=75 // pred_region
          _
        $region96: #{convnext1d_forward.6} parent=75 // pred_fallthru
          _
      $region76: #{convnext1d_forward.6} parent=5 // pred_fallthru
        _
      %p2453 = scmp.le.s32.totalorder 2, %s23
      // Predicated region
      $region97: #{convnext1d_forward.6} parent=5 // pred_check
        %p2454 = pneg %p2453
      $region98: #{convnext1d_forward.6} parent=5 // pred_check_branch
        %2456 = sbr.rel (%p2454) target = $region100
      $region99: #{convnext1d_forward.6} parent=5 // pred_region
        %s2457 = ssub.s32 %s23, 2
        // Predicated region
        $region101: #{convnext1d_forward.6} parent=99 // pred_check
          %p2458 = pneg %p351
        $region102: #{convnext1d_forward.6} parent=99 // pred_check_branch
          %2460 = sbr.rel (%p2458) target = $region104
        $region103: #{convnext1d_forward.6} parent=99 // pred_region
          %p2461 = scmp.lt.s32.totalorder %s29, 1
          %s2462 = scalar_select %p2461, %s29, 1
          %s2463 = smul.addr %s2462, 2
          %s2464 = smul.addr %s2463, 8
          %s2465 = scalar_lea.vmem %s14, %s2464
        $region104: #{convnext1d_forward.6} parent=99 // pred_fallthru
          _
      $region100: #{convnext1d_forward.6} parent=5 // pred_fallthru
        _
    $region6: #{convnext1d_forward.6} parent=1 // loop_footer
      %s27 = sadd.s32 1, %s23
    $region7: #{convnext1d_forward.6} parent=1 // loop_footer_branch
      %22 = sbr.rel target = $region3
    $region8: #{convnext1d_forward.6} parent=1 // loop_exit
      _
    %2466 = vsyncpa [#allocation3], 1
    %s2467 = scalar_lea.sflag [#allocation3], 1
    %2468 = vsyncpa %s2467, 1
    %2469 = vsyncpa [#allocation5], 1
    %2470 = vsyncpa [#allocation8], 1

// kernel: convnext1d_forward.7
$region0: #{convnext1d_forward.7}
  #allocation0 [shape = 'u32[]', space=smem, size = 0x4, offset = 0x4, fixed_abs, tag = 'smem constant byte address 0x4 - core index']
  #allocation1 [shape = 'u32[144,128]{1,0:T(1,128)}', space=vmem, size = 0x12000, scoped, tag = 'internal scratch']
  %s0 = inlined_call_operand.vmem [shape: f32[2,8,256], index: 0, kind: input, shape index: {}]
  %s1 = inlined_call_operand.vmem [shape: bf16[256,256], index: 1, kind: input, shape index: {}]
  %s2 = inlined_call_operand.vmem [shape: f32[1,256], index: 2, kind: input, shape index: {}, may-alias: {2,4,6,10,13}]
  %s3 = inlined_call_operand.hbm [shape: f32[1,7,256], index: 3, kind: input, shape index: {}]
  %s4 = inlined_call_operand.vmem [shape: f32[1,256], index: 4, kind: input, shape index: {}, may-alias: {2,4,6,10,13}]
  %s5 = inlined_call_operand.vmem [shape: f32[1,256], index: 5, kind: input, shape index: {}, may-alias: {5,12}]
  %s6 = inlined_call_operand.vmem [shape: f32[1,256], index: 6, kind: input, shape index: {}, may-alias: {2,4,6,10,13}]
  %s7 = inlined_call_operand.vmem [shape: bf16[1,256,1024], index: 7, kind: input, shape index: {}]
  %s8 = inlined_call_operand.vmem [shape: f32[1,1024], index: 8, kind: input, shape index: {}]
  %s9 = inlined_call_operand.vmem [shape: bf16[1,1024,256], index: 9, kind: input, shape index: {}]
  %s10 = inlined_call_operand.vmem [shape: f32[1,256], index: 10, kind: input, shape index: {}, may-alias: {2,4,6,10,13}]
  %s11 = inlined_call_operand.vmem [shape: f32[1,256], index: 11, kind: input, shape index: {}]
  %s12 = inlined_call_operand.vmem [shape: f32[1,256], index: 12, kind: input, shape index: {}, may-alias: {5,12}]
  %s13 = inlined_call_operand.vmem [shape: f32[1,256], index: 13, kind: input, shape index: {}, may-alias: {2,4,6,10,13}]
  %s14 = inlined_call_operand.vmem [shape: f32[2,1,256], index: 14, kind: output, shape index: {}]
  %s15 = sld [smem:[#allocation0]]
  $region93: #{convnext1d_forward.7} parent=0
    _
  %s17 = ssub.s32 1, %s15
  %s18 = scalar_select 0, %s17, %s15
  $region1: #{convnext1d_forward.7} parent=0
    #allocation2 [shape = 'u8[8192]{0}', space=vmem, size = 0x2000, scoped, tag = 'input window, operand 3, single buffered']
    #allocation3 [shape = 's32[2]{0}', space=sflag, size = 0x8, scoped, tag = 'scoped memory for convnext1d_forward.7']
    %19 = vsyncpa [#allocation3], 0
    loop: start=0, step=1, limit=4
    $region2: #{convnext1d_forward.7} parent=1 // loop_pre_header
      _
    $region3: #{convnext1d_forward.7} parent=1 // loop_header
      %s21 = sphi 0, %s25
      %p22 = scmp.ge.s32.totalorder %s21, 4
      %s31 = sphi 0, %s33
      %s34 = sphi 0, %s31
      %s35 = sphi 0, %s34
      %s51 = sphi 0, %s35
      %s55 = sphi 0, %s55
      %s57 = sphi 0, %s55
      %s58 = sphi 0, %s57
      %s72 = sphi 0, %s58
      %s76 = sphi 0, %s76
      %s78 = sphi 0, %s76
      %s79 = sphi 0, %s78
      %s93 = sphi 0, %s79
      %s97 = sphi 0, %s97
      %s99 = sphi 0, %s97
      %s100 = sphi 0, %s99
      %s114 = sphi 0, %s100
      %s118 = sphi 0, %s118
      %s120 = sphi 0, %s118
      %s121 = sphi 0, %s120
      %s135 = sphi 0, %s121
      %s139 = sphi 0, %s139
      %s141 = sphi 0, %s139
      %s142 = sphi 0, %s141
      %s156 = sphi 0, %s142
      %s160 = sphi 0, %s160
      %s162 = sphi 0, %s160
      %s163 = sphi 0, %s162
      %s177 = sphi 0, %s163
      %s181 = sphi 0, %s181
      %s183 = sphi 0, %s181
      %s184 = sphi 0, %s183
      %s198 = sphi 0, %s184
      %s202 = sphi 0, %s202
      %s204 = sphi 0, %s202
      %s205 = sphi 0, %s204
      %s219 = sphi 0, %s205
      %s223 = sphi 0, %s223
      %s225 = sphi 0, %s223
      %s226 = sphi 0, %s225
      %s240 = sphi 0, %s226
      %s244 = sphi 0, %s244
      %s246 = sphi 0, %s244
      %s247 = sphi 0, %s246
      %s261 = sphi 0, %s247
      %s265 = sphi 0, %s265
      %s267 = sphi 0, %s265
      %s268 = sphi 0, %s267
      %s282 = sphi 0, %s268
      %s286 = sphi 0, %s286
      %s288 = sphi 0, %s286
      %s289 = sphi 0, %s288
      %s303 = sphi 0, %s289
      %s307 = sphi 0, %s307
      %s309 = sphi 0, %s307
      %s310 = sphi 0, %s309
      %s324 = sphi 0, %s310
      %s330 = sphi 0, %s332
      %s333 = sphi 0, %s330
      %s334 = sphi 0, %s333
      %s350 = sphi 0, %s334
    $region4: #{convnext1d_forward.7} parent=1 // loop_header_branch
      %24 = sbr.rel (%p22) target = $region8
    $region5: #{convnext1d_forward.7} parent=1 // loop_body
      %s26 = ssub.s32 %s21, 1
      %s27 = ssub.s32 %s21, 2
      %s28 = sadd.s32 %s21, 1
      %s29 = ssub.s32 %s21, %s28
      %p30 = scmp.eq.s32.totalorder %s29, 0
      %s32 = sadd.s32 %s31, 1
      %s33 = scalar_select %p30, %s31, %s32
      %p36 = pneg %p30
      %p37 = scmp.eq.s32.totalorder %s21, 1
      %p38 = por %p36, %p37
      %p39 = scmp.ne.s32.totalorder %s31, %s34
      %p40 = scmp.eq.s32.totalorder %s21, 0
      %p41 = por %p39, %p40
      %p42 = scmp.ne.s32.totalorder %s31, %s34
      %p43 = scmp.eq.s32.totalorder %s26, 1
      %p44 = por %p42, %p43
      %p45 = scmp.ne.s32.totalorder %s34, %s35
      %p46 = scmp.eq.s32.totalorder %s26, 0
      %p47 = por %p45, %p46
      %p48 = scmp.ne.s32.totalorder %s34, %s35
      %p49 = scmp.eq.s32.totalorder %s27, 1
      %p50 = por %p48, %p49
      %p52 = scmp.ne.s32.totalorder %s35, %s51
      %p53 = scmp.eq.s32.totalorder %s27, 0
      %p54 = por %p52, %p53
      %s56 = sadd.s32 %s55, 1
      %p59 = scmp.eq.s32.totalorder %s21, 1
      %p60 = scmp.ne.s32.totalorder %s55, %s57
      %p61 = scmp.eq.s32.totalorder %s21, 0
      %p62 = por %p60, %p61
      %p63 = scmp.ne.s32.totalorder %s55, %s57
      %p64 = scmp.eq.s32.totalorder %s26, 1
      %p65 = por %p63, %p64
      %p66 = scmp.ne.s32.totalorder %s57, %s58
      %p67 = scmp.eq.s32.totalorder %s26, 0
      %p68 = por %p66, %p67
      %p69 = scmp.ne.s32.totalorder %s57, %s58
      %p70 = scmp.eq.s32.totalorder %s27, 1
      %p71 = por %p69, %p70
      %p73 = scmp.ne.s32.totalorder %s58, %s72
      %p74 = scmp.eq.s32.totalorder %s27, 0
      %p75 = por %p73, %p74
      %s77 = sadd.s32 %s76, 1
      %p80 = scmp.eq.s32.totalorder %s21, 1
      %p81 = scmp.ne.s32.totalorder %s76, %s78
      %p82 = scmp.eq.s32.totalorder %s21, 0
      %p83 = por %p81, %p82
      %p84 = scmp.ne.s32.totalorder %s76, %s78
      %p85 = scmp.eq.s32.totalorder %s26, 1
      %p86 = por %p84, %p85
      %p87 = scmp.ne.s32.totalorder %s78, %s79
      %p88 = scmp.eq.s32.totalorder %s26, 0
      %p89 = por %p87, %p88
      %p90 = scmp.ne.s32.totalorder %s78, %s79
      %p91 = scmp.eq.s32.totalorder %s27, 1
      %p92 = por %p90, %p91
      %p94 = scmp.ne.s32.totalorder %s79, %s93
      %p95 = scmp.eq.s32.totalorder %s27, 0
      %p96 = por %p94, %p95
      %s98 = sadd.s32 %s97, 1
      %p101 = scmp.eq.s32.totalorder %s21, 1
      %p102 = scmp.ne.s32.totalorder %s97, %s99
      %p103 = scmp.eq.s32.totalorder %s21, 0
      %p104 = por %p102, %p103
      %p105 = scmp.ne.s32.totalorder %s97, %s99
      %p106 = scmp.eq.s32.totalorder %s26, 1
      %p107 = por %p105, %p106
      %p108 = scmp.ne.s32.totalorder %s99, %s100
      %p109 = scmp.eq.s32.totalorder %s26, 0
      %p110 = por %p108, %p109
      %p111 = scmp.ne.s32.totalorder %s99, %s100
      %p112 = scmp.eq.s32.totalorder %s27, 1
      %p113 = por %p111, %p112
      %p115 = scmp.ne.s32.totalorder %s100, %s114
      %p116 = scmp.eq.s32.totalorder %s27, 0
      %p117 = por %p115, %p116
      %s119 = sadd.s32 %s118, 1
      %p122 = scmp.eq.s32.totalorder %s21, 1
      %p123 = scmp.ne.s32.totalorder %s118, %s120
      %p124 = scmp.eq.s32.totalorder %s21, 0
      %p125 = por %p123, %p124
      %p126 = scmp.ne.s32.totalorder %s118, %s120
      %p127 = scmp.eq.s32.totalorder %s26, 1
      %p128 = por %p126, %p127
      %p129 = scmp.ne.s32.totalorder %s120, %s121
      %p130 = scmp.eq.s32.totalorder %s26, 0
      %p131 = por %p129, %p130
      %p132 = scmp.ne.s32.totalorder %s120, %s121
      %p133 = scmp.eq.s32.totalorder %s27, 1
      %p134 = por %p132, %p133
      %p136 = scmp.ne.s32.totalorder %s121, %s135
      %p137 = scmp.eq.s32.totalorder %s27, 0
      %p138 = por %p136, %p137
      %s140 = sadd.s32 %s139, 1
      %p143 = scmp.eq.s32.totalorder %s21, 1
      %p144 = scmp.ne.s32.totalorder %s139, %s141
      %p145 = scmp.eq.s32.totalorder %s21, 0
      %p146 = por %p144, %p145
      %p147 = scmp.ne.s32.totalorder %s139, %s141
      %p148 = scmp.eq.s32.totalorder %s26, 1
      %p149 = por %p147, %p148
      %p150 = scmp.ne.s32.totalorder %s141, %s142
      %p151 = scmp.eq.s32.totalorder %s26, 0
      %p152 = por %p150, %p151
      %p153 = scmp.ne.s32.totalorder %s141, %s142
      %p154 = scmp.eq.s32.totalorder %s27, 1
      %p155 = por %p153, %p154
      %p157 = scmp.ne.s32.totalorder %s142, %s156
      %p158 = scmp.eq.s32.totalorder %s27, 0
      %p159 = por %p157, %p158
      %s161 = sadd.s32 %s160, 1
      %p164 = scmp.eq.s32.totalorder %s21, 1
      %p165 = scmp.ne.s32.totalorder %s160, %s162
      %p166 = scmp.eq.s32.totalorder %s21, 0
      %p167 = por %p165, %p166
      %p168 = scmp.ne.s32.totalorder %s160, %s162
      %p169 = scmp.eq.s32.totalorder %s26, 1
      %p170 = por %p168, %p169
      %p171 = scmp.ne.s32.totalorder %s162, %s163
      %p172 = scmp.eq.s32.totalorder %s26, 0
      %p173 = por %p171, %p172
      %p174 = scmp.ne.s32.totalorder %s162, %s163
      %p175 = scmp.eq.s32.totalorder %s27, 1
      %p176 = por %p174, %p175
      %p178 = scmp.ne.s32.totalorder %s163, %s177
      %p179 = scmp.eq.s32.totalorder %s27, 0
      %p180 = por %p178, %p179
      %s182 = sadd.s32 %s181, 1
      %p185 = scmp.eq.s32.totalorder %s21, 1
      %p186 = scmp.ne.s32.totalorder %s181, %s183
      %p187 = scmp.eq.s32.totalorder %s21, 0
      %p188 = por %p186, %p187
      %p189 = scmp.ne.s32.totalorder %s181, %s183
      %p190 = scmp.eq.s32.totalorder %s26, 1
      %p191 = por %p189, %p190
      %p192 = scmp.ne.s32.totalorder %s183, %s184
      %p193 = scmp.eq.s32.totalorder %s26, 0
      %p194 = por %p192, %p193
      %p195 = scmp.ne.s32.totalorder %s183, %s184
      %p196 = scmp.eq.s32.totalorder %s27, 1
      %p197 = por %p195, %p196
      %p199 = scmp.ne.s32.totalorder %s184, %s198
      %p200 = scmp.eq.s32.totalorder %s27, 0
      %p201 = por %p199, %p200
      %s203 = sadd.s32 %s202, 1
      %p206 = scmp.eq.s32.totalorder %s21, 1
      %p207 = scmp.ne.s32.totalorder %s202, %s204
      %p208 = scmp.eq.s32.totalorder %s21, 0
      %p209 = por %p207, %p208
      %p210 = scmp.ne.s32.totalorder %s202, %s204
      %p211 = scmp.eq.s32.totalorder %s26, 1
      %p212 = por %p210, %p211
      %p213 = scmp.ne.s32.totalorder %s204, %s205
      %p214 = scmp.eq.s32.totalorder %s26, 0
      %p215 = por %p213, %p214
      %p216 = scmp.ne.s32.totalorder %s204, %s205
      %p217 = scmp.eq.s32.totalorder %s27, 1
      %p218 = por %p216, %p217
      %p220 = scmp.ne.s32.totalorder %s205, %s219
      %p221 = scmp.eq.s32.totalorder %s27, 0
      %p222 = por %p220, %p221
      %s224 = sadd.s32 %s223, 1
      %p227 = scmp.eq.s32.totalorder %s21, 1
      %p228 = scmp.ne.s32.totalorder %s223, %s225
      %p229 = scmp.eq.s32.totalorder %s21, 0
      %p230 = por %p228, %p229
      %p231 = scmp.ne.s32.totalorder %s223, %s225
      %p232 = scmp.eq.s32.totalorder %s26, 1
      %p233 = por %p231, %p232
      %p234 = scmp.ne.s32.totalorder %s225, %s226
      %p235 = scmp.eq.s32.totalorder %s26, 0
      %p236 = por %p234, %p235
      %p237 = scmp.ne.s32.totalorder %s225, %s226
      %p238 = scmp.eq.s32.totalorder %s27, 1
      %p239 = por %p237, %p238
      %p241 = scmp.ne.s32.totalorder %s226, %s240
      %p242 = scmp.eq.s32.totalorder %s27, 0
      %p243 = por %p241, %p242
      %s245 = sadd.s32 %s244, 1
      %p248 = scmp.eq.s32.totalorder %s21, 1
      %p249 = scmp.ne.s32.totalorder %s244, %s246
      %p250 = scmp.eq.s32.totalorder %s21, 0
      %p251 = por %p249, %p250
      %p252 = scmp.ne.s32.totalorder %s244, %s246
      %p253 = scmp.eq.s32.totalorder %s26, 1
      %p254 = por %p252, %p253
      %p255 = scmp.ne.s32.totalorder %s246, %s247
      %p256 = scmp.eq.s32.totalorder %s26, 0
      %p257 = por %p255, %p256
      %p258 = scmp.ne.s32.totalorder %s246, %s247
      %p259 = scmp.eq.s32.totalorder %s27, 1
      %p260 = por %p258, %p259
      %p262 = scmp.ne.s32.totalorder %s247, %s261
      %p263 = scmp.eq.s32.totalorder %s27, 0
      %p264 = por %p262, %p263
      %s266 = sadd.s32 %s265, 1
      %p269 = scmp.eq.s32.totalorder %s21, 1
      %p270 = scmp.ne.s32.totalorder %s265, %s267
      %p271 = scmp.eq.s32.totalorder %s21, 0
      %p272 = por %p270, %p271
      %p273 = scmp.ne.s32.totalorder %s265, %s267
      %p274 = scmp.eq.s32.totalorder %s26, 1
      %p275 = por %p273, %p274
      %p276 = scmp.ne.s32.totalorder %s267, %s268
      %p277 = scmp.eq.s32.totalorder %s26, 0
      %p278 = por %p276, %p277
      %p279 = scmp.ne.s32.totalorder %s267, %s268
      %p280 = scmp.eq.s32.totalorder %s27, 1
      %p281 = por %p279, %p280
      %p283 = scmp.ne.s32.totalorder %s268, %s282
      %p284 = scmp.eq.s32.totalorder %s27, 0
      %p285 = por %p283, %p284
      %s287 = sadd.s32 %s286, 1
      %p290 = scmp.eq.s32.totalorder %s21, 1
      %p291 = scmp.ne.s32.totalorder %s286, %s288
      %p292 = scmp.eq.s32.totalorder %s21, 0
      %p293 = por %p291, %p292
      %p294 = scmp.ne.s32.totalorder %s286, %s288
      %p295 = scmp.eq.s32.totalorder %s26, 1
      %p296 = por %p294, %p295
      %p297 = scmp.ne.s32.totalorder %s288, %s289
      %p298 = scmp.eq.s32.totalorder %s26, 0
      %p299 = por %p297, %p298
      %p300 = scmp.ne.s32.totalorder %s288, %s289
      %p301 = scmp.eq.s32.totalorder %s27, 1
      %p302 = por %p300, %p301
      %p304 = scmp.ne.s32.totalorder %s289, %s303
      %p305 = scmp.eq.s32.totalorder %s27, 0
      %p306 = por %p304, %p305
      %s308 = sadd.s32 %s307, 1
      %p311 = scmp.eq.s32.totalorder %s21, 1
      %p312 = scmp.ne.s32.totalorder %s307, %s309
      %p313 = scmp.eq.s32.totalorder %s21, 0
      %p314 = por %p312, %p313
      %p315 = scmp.ne.s32.totalorder %s307, %s309
      %p316 = scmp.eq.s32.totalorder %s26, 1
      %p317 = por %p315, %p316
      %p318 = scmp.ne.s32.totalorder %s309, %s310
      %p319 = scmp.eq.s32.totalorder %s26, 0
      %p320 = por %p318, %p319
      %p321 = scmp.ne.s32.totalorder %s309, %s310
      %p322 = scmp.eq.s32.totalorder %s27, 1
      %p323 = por %p321, %p322
      %p325 = scmp.ne.s32.totalorder %s310, %s324
      %p326 = scmp.eq.s32.totalorder %s27, 0
      %p327 = por %p325, %p326
      %s328 = ssub.s32 %s21, %s28
      %p329 = scmp.eq.s32.totalorder %s328, 0
      %s331 = sadd.s32 %s330, 1
      %s332 = scalar_select %p329, %s330, %s331
      %p335 = pneg %p329
      %p336 = scmp.eq.s32.totalorder %s21, 1
      %p337 = por %p335, %p336
      %p338 = scmp.ne.s32.totalorder %s330, %s333
      %p339 = scmp.eq.s32.totalorder %s21, 0
      %p340 = por %p338, %p339
      %p341 = scmp.ne.s32.totalorder %s330, %s333
      %p342 = scmp.eq.s32.totalorder %s26, 1
      %p343 = por %p341, %p342
      %p344 = scmp.ne.s32.totalorder %s333, %s334
      %p345 = scmp.eq.s32.totalorder %s26, 0
      %p346 = por %p344, %p345
      %p347 = scmp.ne.s32.totalorder %s333, %s334
      %p348 = scmp.eq.s32.totalorder %s27, 1
      %p349 = por %p347, %p348
      %p351 = scmp.ne.s32.totalorder %s334, %s350
      %p352 = scmp.eq.s32.totalorder %s27, 0
      %p353 = por %p351, %p352
      %p354 = scmp.le.s32.totalorder 1, %s21
      %p355 = scmp.lt.s32.totalorder %s21, 3
      %p356 = pnand %p354, %p355
      %p357 = pneg %p356
      // Predicated region
      $region9: #{convnext1d_forward.7} parent=5 // pred_check
        _
      $region10: #{convnext1d_forward.7} parent=5 // pred_check_branch
        %359 = sbr.rel (%p356) target = $region12
      $region11: #{convnext1d_forward.7} parent=5 // pred_region
        %s360 = ssub.s32 %s21, 1
        // Predicated region
        $region13: #{convnext1d_forward.7} parent=11 // pred_check
          %p361 = pneg %p68
        $region14: #{convnext1d_forward.7} parent=11 // pred_check_branch
          %363 = sbr.rel (%p361) target = $region16
        $region15: #{convnext1d_forward.7} parent=11 // pred_region
          _
        $region16: #{convnext1d_forward.7} parent=11 // pred_fallthru
          _
        // Predicated region
        $region17: #{convnext1d_forward.7} parent=11 // pred_check
          %p364 = pneg %p89
        $region18: #{convnext1d_forward.7} parent=11 // pred_check_branch
          %366 = sbr.rel (%p364) target = $region20
        $region19: #{convnext1d_forward.7} parent=11 // pred_region
          _
        $region20: #{convnext1d_forward.7} parent=11 // pred_fallthru
          _
        // Predicated region
        $region21: #{convnext1d_forward.7} parent=11 // pred_check
          %p367 = pneg %p110
        $region22: #{convnext1d_forward.7} parent=11 // pred_check_branch
          %369 = sbr.rel (%p367) target = $region24
        $region23: #{convnext1d_forward.7} parent=11 // pred_region
          %s371 = ssub.s32 256, 256
          %372 = vsyncadd [#allocation3], %s371
          %s374 = sshll.u32 [#allocation2], 4
          %s375 = int_to_ptr.vmem [resolvable:$true] %s374
          %377 = dma.hbm_to_vmem [thread:$0]  %s3, 256, %s375, [#allocation3]
        $region24: #{convnext1d_forward.7} parent=11 // pred_fallthru
          _
        // Predicated region
        $region25: #{convnext1d_forward.7} parent=11 // pred_check
          %p378 = pneg %p131
        $region26: #{convnext1d_forward.7} parent=11 // pred_check_branch
          %380 = sbr.rel (%p378) target = $region28
        $region27: #{convnext1d_forward.7} parent=11 // pred_region
          _
        $region28: #{convnext1d_forward.7} parent=11 // pred_fallthru
          _
        // Predicated region
        $region29: #{convnext1d_forward.7} parent=11 // pred_check
          %p381 = pneg %p152
        $region30: #{convnext1d_forward.7} parent=11 // pred_check_branch
          %383 = sbr.rel (%p381) target = $region32
        $region31: #{convnext1d_forward.7} parent=11 // pred_region
          _
        $region32: #{convnext1d_forward.7} parent=11 // pred_fallthru
          _
        // Predicated region
        $region33: #{convnext1d_forward.7} parent=11 // pred_check
          %p384 = pneg %p173
        $region34: #{convnext1d_forward.7} parent=11 // pred_check_branch
          %386 = sbr.rel (%p384) target = $region36
        $region35: #{convnext1d_forward.7} parent=11 // pred_region
          _
        $region36: #{convnext1d_forward.7} parent=11 // pred_fallthru
          _
        // Predicated region
        $region37: #{convnext1d_forward.7} parent=11 // pred_check
          %p387 = pneg %p194
        $region38: #{convnext1d_forward.7} parent=11 // pred_check_branch
          %389 = sbr.rel (%p387) target = $region40
        $region39: #{convnext1d_forward.7} parent=11 // pred_region
          _
        $region40: #{convnext1d_forward.7} parent=11 // pred_fallthru
          _
        // Predicated region
        $region41: #{convnext1d_forward.7} parent=11 // pred_check
          %p390 = pneg %p215
        $region42: #{convnext1d_forward.7} parent=11 // pred_check_branch
          %392 = sbr.rel (%p390) target = $region44
        $region43: #{convnext1d_forward.7} parent=11 // pred_region
          _
        $region44: #{convnext1d_forward.7} parent=11 // pred_fallthru
          _
        // Predicated region
        $region45: #{convnext1d_forward.7} parent=11 // pred_check
          %p393 = pneg %p236
        $region46: #{convnext1d_forward.7} parent=11 // pred_check_branch
          %395 = sbr.rel (%p393) target = $region48
        $region47: #{convnext1d_forward.7} parent=11 // pred_region
          _
        $region48: #{convnext1d_forward.7} parent=11 // pred_fallthru
          _
        // Predicated region
        $region49: #{convnext1d_forward.7} parent=11 // pred_check
          %p396 = pneg %p257
        $region50: #{convnext1d_forward.7} parent=11 // pred_check_branch
          %398 = sbr.rel (%p396) target = $region52
        $region51: #{convnext1d_forward.7} parent=11 // pred_region
          _
        $region52: #{convnext1d_forward.7} parent=11 // pred_fallthru
          _
        // Predicated region
        $region53: #{convnext1d_forward.7} parent=11 // pred_check
          %p399 = pneg %p278
        $region54: #{convnext1d_forward.7} parent=11 // pred_check_branch
          %401 = sbr.rel (%p399) target = $region56
        $region55: #{convnext1d_forward.7} parent=11 // pred_region
          _
        $region56: #{convnext1d_forward.7} parent=11 // pred_fallthru
          _
        // Predicated region
        $region57: #{convnext1d_forward.7} parent=11 // pred_check
          %p402 = pneg %p299
        $region58: #{convnext1d_forward.7} parent=11 // pred_check_branch
          %404 = sbr.rel (%p402) target = $region60
        $region59: #{convnext1d_forward.7} parent=11 // pred_region
          _
        $region60: #{convnext1d_forward.7} parent=11 // pred_fallthru
          _
        // Predicated region
        $region61: #{convnext1d_forward.7} parent=11 // pred_check
          %p405 = pneg %p320
        $region62: #{convnext1d_forward.7} parent=11 // pred_check_branch
          %407 = sbr.rel (%p405) target = $region64
        $region63: #{convnext1d_forward.7} parent=11 // pred_region
          _
        $region64: #{convnext1d_forward.7} parent=11 // pred_fallthru
          _
      $region12: #{convnext1d_forward.7} parent=5 // pred_fallthru
        _
      %p408 = scmp.lt.s32.totalorder %s21, 2
      // Predicated region
      $region65: #{convnext1d_forward.7} parent=5 // pred_check
        %p409 = pneg %p408
      $region66: #{convnext1d_forward.7} parent=5 // pred_check_branch
        %411 = sbr.rel (%p409) target = $region68
      $region67: #{convnext1d_forward.7} parent=5 // pred_region
        // Predicated region
        $region69: #{convnext1d_forward.7} parent=67 // pred_check
          %p412 = pneg %p41
        $region70: #{convnext1d_forward.7} parent=67 // pred_check_branch
          %414 = sbr.rel (%p412) target = $region72
        $region71: #{convnext1d_forward.7} parent=67 // pred_region
          %p415 = scmp.lt.s32.totalorder %s21, 1
          %s416 = scalar_select %p415, %s21, 1
          %s417 = smul.addr %s416, 2
          %s418 = smul.addr %s417, 8
          %s419 = scalar_lea.vmem %s0, %s418
        $region72: #{convnext1d_forward.7} parent=67 // pred_fallthru
          _
      $region68: #{convnext1d_forward.7} parent=5 // pred_fallthru
        _
      %p420 = scmp.le.s32.totalorder 1, %s21
      %p421 = scmp.lt.s32.totalorder %s21, 3
      %p422 = pnand %p420, %p421
      %p423 = pneg %p422
      // Predicated region
      $region73: #{convnext1d_forward.7} parent=5 // pred_check
        _
      $region74: #{convnext1d_forward.7} parent=5 // pred_check_branch
        %425 = sbr.rel (%p422) target = $region76
      $region75: #{convnext1d_forward.7} parent=5 // pred_region
        %s426 = ssub.s32 %s21, 1
        // Predicated region
        $region77: #{convnext1d_forward.7} parent=75 // pred_check
          %p427 = pneg %p110
        $region78: #{convnext1d_forward.7} parent=75 // pred_check_branch
          %429 = sbr.rel (%p427) target = $region80
        $region79: #{convnext1d_forward.7} parent=75 // pred_region
          %430 = dma.done [#allocation3], 256
        $region80: #{convnext1d_forward.7} parent=75 // pred_fallthru
          _
        %p431 = scmp.lt.s32.totalorder %s26, 1
        %s432 = scalar_select %p431, %s26, 1
        %s433 = smul.addr %s432, 2
        %s434 = smul.addr %s433, 8
        %s435 = scalar_lea.vmem %s0, %s434
        %p436 = pneg %p47
        %p437 = pneg %p44
        %p438 = pneg %p68
        %p439 = pneg %p65
        %p440 = pneg %p89
        %p441 = pneg %p86
        %p442 = pneg %p110
        %p443 = pneg %p107
        %p444 = pneg %p131
        %p445 = pneg %p128
        %p446 = pneg %p152
        %p447 = pneg %p149
        %p448 = pneg %p173
        %p449 = pneg %p170
        %p450 = pneg %p194
        %p451 = pneg %p191
        %p452 = pneg %p215
        %p453 = pneg %p212
        %p454 = pneg %p236
        %p455 = pneg %p233
        %p456 = pneg %p257
        %p457 = pneg %p254
        %p458 = pneg %p278
        %p459 = pneg %p275
        %p460 = pneg %p299
        %p461 = pneg %p296
        %p462 = pneg %p320
        %p463 = pneg %p317
        %p464 = pneg %p346
        %p465 = pneg %p343
        %p466 = scmp.lt.s32.totalorder %s26, 1
        %s467 = scalar_select %p466, %s26, 1
        %s468 = smul.addr %s467, 2
        %s469 = scalar_lea.vmem %s14, %s468
        %p470 = scmp.lt.s32.totalorder %s26, 1
        %s471 = scalar_select %p470, %s26, 1
        %s472 = smul.addr %s471, 2
        %s473 = smul.addr %s472, 8
        %s474 = scalar_lea.vmem %s0, %s473
        %p475 = scmp.lt.s32.totalorder %s26, 1
        %s476 = scalar_select %p475, %s26, 1
        %s477 = smul.addr %s476, 2
        %s478 = scalar_lea.vmem %s14, %s477
        %v479 = vld [vmem:[%s474] sm:$0xff]
        %v480 = vld [vmem:[%s474 + $0x8] sm:$0xff]
        %v481 = vpack.c.bf16 %v479, %v479
        %v482 = vpack.c.bf16 %v480, %v480
        %v483 = vld [vmem:[%s1] sm:$0xff]
        %v484 = vld [vmem:[%s1 + $0x8] sm:$0xff]
        %v485 = vld [vmem:[%s1 + $0x10] sm:$0xff]
        %v486 = vld [vmem:[%s1 + $0x18] sm:$0xff]
        %v487 = vld [vmem:[%s1 + $0x20] sm:$0xff]
        %v488 = vld [vmem:[%s1 + $0x28] sm:$0xff]
        %v489 = vld [vmem:[%s1 + $0x30] sm:$0xff]
        %v490 = vld [vmem:[%s1 + $0x38] sm:$0xff]
        %v491 = vld [vmem:[%s1 + $0x40] sm:$0xff]
        %v492 = vld [vmem:[%s1 + $0x48] sm:$0xff]
        %v493 = vld [vmem:[%s1 + $0x50] sm:$0xff]
        %v494 = vld [vmem:[%s1 + $0x58] sm:$0xff]
        %v495 = vld [vmem:[%s1 + $0x60] sm:$0xff]
        %v496 = vld [vmem:[%s1 + $0x68] sm:$0xff]
        %v497 = vld [vmem:[%s1 + $0x70] sm:$0xff]
        %v498 = vld [vmem:[%s1 + $0x78] sm:$0xff]
        %v499 = vld [vmem:[%s1 + $0x80] sm:$0xff]
        %v500 = vld [vmem:[%s1 + $0x88] sm:$0xff]
        %v501 = vld [vmem:[%s1 + $0x90] sm:$0xff]
        %v502 = vld [vmem:[%s1 + $0x98] sm:$0xff]
        %v503 = vld [vmem:[%s1 + $0xa0] sm:$0xff]
        %v504 = vld [vmem:[%s1 + $0xa8] sm:$0xff]
        %v505 = vld [vmem:[%s1 + $0xb0] sm:$0xff]
        %v506 = vld [vmem:[%s1 + $0xb8] sm:$0xff]
        %v507 = vld [vmem:[%s1 + $0xc0] sm:$0xff]
        %v508 = vld [vmem:[%s1 + $0xc8] sm:$0xff]
        %v509 = vld [vmem:[%s1 + $0xd0] sm:$0xff]
        %v510 = vld [vmem:[%s1 + $0xd8] sm:$0xff]
        %v511 = vld [vmem:[%s1 + $0xe0] sm:$0xff]
        %v512 = vld [vmem:[%s1 + $0xe8] sm:$0xff]
        %v513 = vld [vmem:[%s1 + $0xf0] sm:$0xff]
        %v514 = vld [vmem:[%s1 + $0xf8] sm:$0xff]
        %v515 = vld [vmem:[%s2] sm:$0x3]
        %v517 = vlaneseq
        %v518 = vshrl.u32 %v517, 7
        %v519 = vsub.s32 0, %v518
        %v520 = vrot.slane %v515, %v519
        %v521 = vlaneseq
        %v522 = vshrl.u32 %v521, 7
        %v523 = vsub.s32 1, %v522
        %v524 = vrot.slane %v515, %v523
        %v559 = vunpack.c.l.b16 %v483
        %v560 = vunpack.c.h.b16 %v483
        %v561 = vunpack.c.l.b16 %v484
        %v562 = vunpack.c.h.b16 %v484
        %v563 = vunpack.c.l.b16 %v485
        %v564 = vunpack.c.h.b16 %v485
        %v565 = vunpack.c.l.b16 %v486
        %v566 = vunpack.c.h.b16 %v486
        %v567 = vunpack.c.l.b16 %v487
        %v568 = vunpack.c.h.b16 %v487
        %v569 = vunpack.c.l.b16 %v488
        %v570 = vunpack.c.h.b16 %v488
        %v571 = vunpack.c.l.b16 %v489
        %v572 = vunpack.c.h.b16 %v489
        %v573 = vunpack.c.l.b16 %v490
        %v574 = vunpack.c.h.b16 %v490
        %v575 = vunpack.c.l.b16 %v491
        %v576 = vunpack.c.h.b16 %v491
        %v577 = vunpack.c.l.b16 %v492
        %v578 = vunpack.c.h.b16 %v492
        %v579 = vunpack.c.l.b16 %v493
        %v580 = vunpack.c.h.b16 %v493
        %v581 = vunpack.c.l.b16 %v494
        %v582 = vunpack.c.h.b16 %v494
        %v583 = vunpack.c.l.b16 %v495
        %v584 = vunpack.c.h.b16 %v495
        %v585 = vunpack.c.l.b16 %v496
        %v586 = vunpack.c.h.b16 %v496
        %v587 = vunpack.c.l.b16 %v497
        %v588 = vunpack.c.h.b16 %v497
        %v589 = vunpack.c.l.b16 %v498
        %v590 = vunpack.c.h.b16 %v498
        %v591 = vunpack.c.l.b16 %v499
        %v592 = vunpack.c.h.b16 %v499
        %v593 = vunpack.c.l.b16 %v500
        %v594 = vunpack.c.h.b16 %v500
        %v595 = vunpack.c.l.b16 %v501
        %v596 = vunpack.c.h.b16 %v501
        %v597 = vunpack.c.l.b16 %v502
        %v598 = vunpack.c.h.b16 %v502
        %v599 = vunpack.c.l.b16 %v503
        %v600 = vunpack.c.h.b16 %v503
        %v601 = vunpack.c.l.b16 %v504
        %v602 = vunpack.c.h.b16 %v504
        %v603 = vunpack.c.l.b16 %v505
        %v604 = vunpack.c.h.b16 %v505
        %v605 = vunpack.c.l.b16 %v506
        %v606 = vunpack.c.h.b16 %v506
        %v607 = vunpack.c.l.b16 %v507
        %v608 = vunpack.c.h.b16 %v507
        %v609 = vunpack.c.l.b16 %v508
        %v610 = vunpack.c.h.b16 %v508
        %v611 = vunpack.c.l.b16 %v509
        %v612 = vunpack.c.h.b16 %v509
        %v613 = vunpack.c.l.b16 %v510
        %v614 = vunpack.c.h.b16 %v510
        %v615 = vunpack.c.l.b16 %v511
        %v616 = vunpack.c.h.b16 %v511
        %v617 = vunpack.c.l.b16 %v512
        %v618 = vunpack.c.h.b16 %v512
        %v619 = vunpack.c.l.b16 %v513
        %v620 = vunpack.c.h.b16 %v513
        %v621 = vunpack.c.l.b16 %v514
        %v622 = vunpack.c.h.b16 %v514
        %v623 = vpack.c.b16 %v561, %v559
        %v624 = vpack.c.b16 %v562, %v560
        %v625 = vpack.c.b16 %v565, %v563
        %v626 = vpack.c.b16 %v566, %v564
        %v627 = vpack.c.b16 %v569, %v567
        %v628 = vpack.c.b16 %v570, %v568
        %v629 = vpack.c.b16 %v573, %v571
        %v630 = vpack.c.b16 %v574, %v572
        %v631 = vpack.c.b16 %v577, %v575
        %v632 = vpack.c.b16 %v578, %v576
        %v633 = vpack.c.b16 %v581, %v579
        %v634 = vpack.c.b16 %v582, %v580
        %v635 = vpack.c.b16 %v585, %v583
        %v636 = vpack.c.b16 %v586, %v584
        %v637 = vpack.c.b16 %v589, %v587
        %v638 = vpack.c.b16 %v590, %v588
        %v639 = vpack.c.b16 %v593, %v591
        %v640 = vpack.c.b16 %v594, %v592
        %v641 = vpack.c.b16 %v597, %v595
        %v642 = vpack.c.b16 %v598, %v596
        %v643 = vpack.c.b16 %v601, %v599
        %v644 = vpack.c.b16 %v602, %v600
        %v645 = vpack.c.b16 %v605, %v603
        %v646 = vpack.c.b16 %v606, %v604
        %v647 = vpack.c.b16 %v609, %v607
        %v648 = vpack.c.b16 %v610, %v608
        %v649 = vpack.c.b16 %v613, %v611
        %v650 = vpack.c.b16 %v614, %v612
        %v651 = vpack.c.b16 %v617, %v615
        %v652 = vpack.c.b16 %v618, %v616
        %v653 = vpack.c.b16 %v621, %v619
        %v654 = vpack.c.b16 %v622, %v620
        %687 = vmatprep.subr.bf16.mxu0 %v638
        %688 = vmatpush1.bf16.msra.mxu0 %v637
        %689 = vmatprep.subr.bf16.mxu0 %v636
        %690 = vmatpush1.bf16.msra.mxu0 %v635
        %691 = vmatprep.subr.bf16.mxu0 %v634
        %692 = vmatpush1.bf16.msra.mxu0 %v633
        %693 = vmatprep.subr.bf16.mxu0 %v632
        %694 = vmatpush1.bf16.msra.mxu0 %v631
        %695 = vmatprep.subr.bf16.mxu0 %v630
        %696 = vmatpush1.bf16.msra.mxu0 %v629
        %697 = vmatprep.subr.bf16.mxu0 %v628
        %698 = vmatpush1.bf16.msra.mxu0 %v627
        %699 = vmatprep.subr.bf16.mxu0 %v626
        %700 = vmatpush1.bf16.msra.mxu0 %v625
        %701 = vmatprep.subr.bf16.mxu0 %v624
        %702 = vmatpush1.bf16.msra.mxu0 %v623
        %703 = vmatprep.subr.bf16.mxu0 %v654
        %704 = vmatpush2.bf16.msra.mxu0 %v653
        %705 = vmatprep.subr.bf16.mxu0 %v652
        %706 = vmatpush2.bf16.msra.mxu0 %v651
        %707 = vmatprep.subr.bf16.mxu0 %v650
        %708 = vmatpush2.bf16.msra.mxu0 %v649
        %709 = vmatprep.subr.bf16.mxu0 %v648
        %710 = vmatpush2.bf16.msra.mxu0 %v647
        %711 = vmatprep.subr.bf16.mxu0 %v646
        %712 = vmatpush2.bf16.msra.mxu0 %v645
        %713 = vmatprep.subr.bf16.mxu0 %v644
        %714 = vmatpush2.bf16.msra.mxu0 %v643
        %715 = vmatprep.subr.bf16.mxu0 %v642
        %716 = vmatpush2.bf16.msra.mxu0 %v641
        %717 = vmatprep.subr.bf16.mxu0 %v640
        %718 = vmatpush2.bf16.msra.mxu0 %v639
        %719 = vmatprep.mubr.bf16.mxu0 %v482
        %720 = vmatmul.mubr.bf16.gmra.mxu0 %v481
        %v721 = vpop.f32.mrf.mxu0
        %v722 = vadd.f32 %v520, %v721
        %v723 = vpop.f32.mrf.mxu0
        %v724 = vadd.f32 %v524, %v723
        %v725 = vpop.f32.mrf.mxu0
        %v726 = vpop.f32.mrf.mxu0
        %727 = vdwg.mxu0
        %v728 = vlaneseq
        %v729 = vshrl.u32 %v728, 7
        %v730 = vadd.s32 %v729, 4294967293
        %vm731 = vcmp.ge.s32.totalorder %v730, 0
        %vm732 = vcmp.lt.s32.totalorder %v730, 8
        %vm733 = vmand %vm731, %vm732
        %v734 = vsel %vm733, 1, 0
        %v735 = vcvt.s32.f32 %v734
        %v736 = vadd.s32 %v729, 4294967294
        %vm737 = vcmp.ge.s32.totalorder %v736, 0
        %vm738 = vcmp.lt.s32.totalorder %v736, 8
        %vm739 = vmand %vm737, %vm738
        %v740 = vsel %vm739, 1, 0
        %v741 = vcvt.s32.f32 %v740
        %v742 = vadd.s32 %v729, 4294967295
        %vm743 = vcmp.ge.s32.totalorder %v742, 0
        %vm744 = vcmp.lt.s32.totalorder %v742, 8
        %vm745 = vmand %vm743, %vm744
        %v746 = vsel %vm745, 1, 0
        %v747 = vcvt.s32.f32 %v746
        %v748 = vadd.s32 %v729, 1
        %vm749 = vcmp.ge.s32.totalorder %v748, 0
        %vm750 = vcmp.lt.s32.totalorder %v748, 8
        %vm751 = vmand %vm749, %vm750
        %v752 = vsel %vm751, 1, 0
        %v753 = vcvt.s32.f32 %v752
        %v754 = vadd.s32 %v729, 2
        %vm755 = vcmp.ge.s32.totalorder %v754, 0
        %vm756 = vcmp.lt.s32.totalorder %v754, 8
        %vm757 = vmand %vm755, %vm756
        %v758 = vsel %vm757, 1, 0
        %v759 = vcvt.s32.f32 %v758
        %v760 = vadd.s32 %v729, 3
        %vm761 = vcmp.ge.s32.totalorder %v760, 0
        %vm762 = vcmp.lt.s32.totalorder %v760, 8
        %vm763 = vmand %vm761, %vm762
        %v764 = vsel %vm763, 1, 0
        %v765 = vcvt.s32.f32 %v764
        %s766 = scalar_lea.vmem [#allocation2], 3
        %v767 = vld [vmem:[%s766] ss:$8 sm:$0x3]
        %v769 = vlaneseq
        %v770 = vshrl.u32 %v769, 7
        %v771 = vsub.s32 0, %v770
        %v772 = vrot.slane %v767, %v771
        %v773 = vlaneseq
        %v774 = vshrl.u32 %v773, 7
        %v775 = vsub.s32 1, %v774
        %v776 = vrot.slane %v767, %v775
        %v779 = vmul.f32 %v722, %v772
        %v780 = vmul.f32 %v724, %v776
        %v781 = vrot.slane %v722, 5
        %v782 = vrot.slane %v724, 5
        %v783 = vmul.f32 %v781, %v735
        %v784 = vmul.f32 %v782, %v735
        %v785 = vld [vmem:[#allocation2] ss:$8 sm:$0x3]
        %v787 = vlaneseq
        %v788 = vshrl.u32 %v787, 7
        %v789 = vsub.s32 0, %v788
        %v790 = vrot.slane %v785, %v789
        %v791 = vlaneseq
        %v792 = vshrl.u32 %v791, 7
        %v793 = vsub.s32 1, %v792
        %v794 = vrot.slane %v785, %v793
        %v797 = vmul.f32 %v783, %v790
        %v798 = vmul.f32 %v784, %v794
        %v799 = vadd.f32 %v779, %v797
        %v800 = vadd.f32 %v780, %v798
        %v801 = vrot.slane %v722, 6
        %v802 = vrot.slane %v724, 6
        %v803 = vmul.f32 %v801, %v741
        %v804 = vmul.f32 %v802, %v741
        %s805 = scalar_lea.vmem [#allocation2], 1
        %v806 = vld [vmem:[%s805] ss:$8 sm:$0x3]
        %v808 = vlaneseq
        %v809 = vshrl.u32 %v808, 7
        %v810 = vsub.s32 0, %v809
        %v811 = vrot.slane %v806, %v810
        %v812 = vlaneseq
        %v813 = vshrl.u32 %v812, 7
        %v814 = vsub.s32 1, %v813
        %v815 = vrot.slane %v806, %v814
        %v818 = vmul.f32 %v803, %v811
        %v819 = vmul.f32 %v804, %v815
        %v820 = vadd.f32 %v799, %v818
        %v821 = vadd.f32 %v800, %v819
        %v822 = vrot.slane %v722, 7
        %v823 = vrot.slane %v724, 7
        %v824 = vmul.f32 %v822, %v747
        %v825 = vmul.f32 %v823, %v747
        %s826 = scalar_lea.vmem [#allocation2], 2
        %v827 = vld [vmem:[%s826] ss:$8 sm:$0x3]
        %v829 = vlaneseq
        %v830 = vshrl.u32 %v829, 7
        %v831 = vsub.s32 0, %v830
        %v832 = vrot.slane %v827, %v831
        %v833 = vlaneseq
        %v834 = vshrl.u32 %v833, 7
        %v835 = vsub.s32 1, %v834
        %v836 = vrot.slane %v827, %v835
        %v839 = vmul.f32 %v824, %v832
        %v840 = vmul.f32 %v825, %v836
        %v841 = vadd.f32 %v820, %v839
        %v842 = vadd.f32 %v821, %v840
        %v843 = vrot.slane %v722, 1
        %v844 = vrot.slane %v724, 1
        %v845 = vmul.f32 %v843, %v753
        %v846 = vmul.f32 %v844, %v753
        %s847 = scalar_lea.vmem [#allocation2], 4
        %v848 = vld [vmem:[%s847] ss:$8 sm:$0x3]
        %v850 = vlaneseq
        %v851 = vshrl.u32 %v850, 7
        %v852 = vsub.s32 0, %v851
        %v853 = vrot.slane %v848, %v852
        %v854 = vlaneseq
        %v855 = vshrl.u32 %v854, 7
        %v856 = vsub.s32 1, %v855
        %v857 = vrot.slane %v848, %v856
        %v860 = vmul.f32 %v845, %v853
        %v861 = vmul.f32 %v846, %v857
        %v862 = vadd.f32 %v841, %v860
        %v863 = vadd.f32 %v842, %v861
        %v864 = vrot.slane %v722, 2
        %v865 = vrot.slane %v724, 2
        %v866 = vmul.f32 %v864, %v759
        %v867 = vmul.f32 %v865, %v759
        %s868 = scalar_lea.vmem [#allocation2], 5
        %v869 = vld [vmem:[%s868] ss:$8 sm:$0x3]
        %v871 = vlaneseq
        %v872 = vshrl.u32 %v871, 7
        %v873 = vsub.s32 0, %v872
        %v874 = vrot.slane %v869, %v873
        %v875 = vlaneseq
        %v876 = vshrl.u32 %v875, 7
        %v877 = vsub.s32 1, %v876
        %v878 = vrot.slane %v869, %v877
        %v881 = vmul.f32 %v866, %v874
        %v882 = vmul.f32 %v867, %v878
        %v883 = vadd.f32 %v862, %v881
        %v884 = vadd.f32 %v863, %v882
        %v885 = vrot.slane %v722, 3
        %v886 = vrot.slane %v724, 3
        %v887 = vmul.f32 %v885, %v765
        %v888 = vmul.f32 %v886, %v765
        %s889 = scalar_lea.vmem [#allocation2], 6
        %v890 = vld [vmem:[%s889] ss:$8 sm:$0x3]
        %v892 = vlaneseq
        %v893 = vshrl.u32 %v892, 7
        %v894 = vsub.s32 0, %v893
        %v895 = vrot.slane %v890, %v894
        %v896 = vlaneseq
        %v897 = vshrl.u32 %v896, 7
        %v898 = vsub.s32 1, %v897
        %v899 = vrot.slane %v890, %v898
        %v902 = vmul.f32 %v887, %v895
        %v903 = vmul.f32 %v888, %v899
        %v904 = vadd.f32 %v883, %v902
        %v905 = vadd.f32 %v884, %v903
        %v906 = vld [vmem:[%s4] sm:$0x3]
        %v908 = vlaneseq
        %v909 = vshrl.u32 %v908, 7
        %v910 = vsub.s32 0, %v909
        %v911 = vrot.slane %v906, %v910
        %v912 = vlaneseq
        %v913 = vshrl.u32 %v912, 7
        %v914 = vsub.s32 1, %v913
        %v915 = vrot.slane %v906, %v914
        %v918 = vadd.f32 %v904, %v911
        %v919 = vadd.f32 %v905, %v915
        %v920 = vld [vmem:[%s5] sm:$0x3]
        %v921 = vld [vmem:[%s6] sm:$0x3]
        %v922 = vadd.f32 %v918, %v919
        %923 = vadd.xlane.f32.xlu0 %v922
        %v924 = vpop.xlane.xlu0 %923
        %v925 = vrcp.pop 256.0
        %v926 = vmul.f32 %v924, %v925
        %v927 = vsub.f32 %v918, %v926
        %v928 = vsub.f32 %v919, %v926
        %v929 = vmul.f32 %v927, %v927
        %v930 = vmul.f32 %v928, %v928
        %v931 = vadd.f32 %v929, %v930
        %932 = vadd.xlane.f32.xlu0 %v931
        %v933 = vpop.xlane.xlu0 %932
        %v934 = vmul.f32 %v933, %v925
        %v935 = vadd.f32 %v934, 1e-05
        %v936 = vrsqrt.pop %v935
        %v937 = vmul.f32 %v927, %v936
        %v938 = vmul.f32 %v928, %v936
        %v940 = vlaneseq
        %v941 = vshrl.u32 %v940, 7
        %v942 = vsub.s32 0, %v941
        %v943 = vrot.slane %v920, %v942
        %v944 = vlaneseq
        %v945 = vshrl.u32 %v944, 7
        %v946 = vsub.s32 1, %v945
        %v947 = vrot.slane %v920, %v946
        %v950 = vmul.f32 %v937, %v943
        %v951 = vmul.f32 %v938, %v947
        %v953 = vlaneseq
        %v954 = vshrl.u32 %v953, 7
        %v955 = vsub.s32 0, %v954
        %v956 = vrot.slane %v921, %v955
        %v957 = vlaneseq
        %v958 = vshrl.u32 %v957, 7
        %v959 = vsub.s32 1, %v958
        %v960 = vrot.slane %v921, %v959
        %v963 = vadd.f32 %v950, %v956
        %v964 = vadd.f32 %v951, %v960
        %v965 = vpack.c.bf16 %v963, %v963
        %v966 = vpack.c.bf16 %v964, %v964
        %v967 = vld [vmem:[%s7] sm:$0xff]
        %v968 = vld [vmem:[%s7 + $0x8] sm:$0xff]
        %v969 = vld [vmem:[%s7 + $0x10] sm:$0xff]
        %v970 = vld [vmem:[%s7 + $0x18] sm:$0xff]
        %v971 = vld [vmem:[%s7 + $0x20] sm:$0xff]
        %v972 = vld [vmem:[%s7 + $0x28] sm:$0xff]
        %v973 = vld [vmem:[%s7 + $0x30] sm:$0xff]
        %v974 = vld [vmem:[%s7 + $0x38] sm:$0xff]
        %v975 = vld [vmem:[%s7 + $0x40] sm:$0xff]
        %v976 = vld [vmem:[%s7 + $0x48] sm:$0xff]
        %v977 = vld [vmem:[%s7 + $0x50] sm:$0xff]
        %v978 = vld [vmem:[%s7 + $0x58] sm:$0xff]
        %v979 = vld [vmem:[%s7 + $0x60] sm:$0xff]
        %v980 = vld [vmem:[%s7 + $0x68] sm:$0xff]
        %v981 = vld [vmem:[%s7 + $0x70] sm:$0xff]
        %v982 = vld [vmem:[%s7 + $0x78] sm:$0xff]
        %v983 = vld [vmem:[%s7 + $0x80] sm:$0xff]
        %v984 = vld [vmem:[%s7 + $0x88] sm:$0xff]
        %v985 = vld [vmem:[%s7 + $0x90] sm:$0xff]
        %v986 = vld [vmem:[%s7 + $0x98] sm:$0xff]
        %v987 = vld [vmem:[%s7 + $0xa0] sm:$0xff]
        %v988 = vld [vmem:[%s7 + $0xa8] sm:$0xff]
        %v989 = vld [vmem:[%s7 + $0xb0] sm:$0xff]
        %v990 = vld [vmem:[%s7 + $0xb8] sm:$0xff]
        %v991 = vld [vmem:[%s7 + $0xc0] sm:$0xff]
        %v992 = vld [vmem:[%s7 + $0xc8] sm:$0xff]
        %v993 = vld [vmem:[%s7 + $0xd0] sm:$0xff]
        %v994 = vld [vmem:[%s7 + $0xd8] sm:$0xff]
        %v995 = vld [vmem:[%s7 + $0xe0] sm:$0xff]
        %v996 = vld [vmem:[%s7 + $0xe8] sm:$0xff]
        %v997 = vld [vmem:[%s7 + $0xf0] sm:$0xff]
        %v998 = vld [vmem:[%s7 + $0xf8] sm:$0xff]
        %v999 = vld [vmem:[%s7 + $0x100] sm:$0xff]
        %v1000 = vld [vmem:[%s7 + $0x108] sm:$0xff]
        %v1001 = vld [vmem:[%s7 + $0x110] sm:$0xff]
        %v1002 = vld [vmem:[%s7 + $0x118] sm:$0xff]
        %v1003 = vld [vmem:[%s7 + $0x120] sm:$0xff]
        %v1004 = vld [vmem:[%s7 + $0x128] sm:$0xff]
        %v1005 = vld [vmem:[%s7 + $0x130] sm:$0xff]
        %v1006 = vld [vmem:[%s7 + $0x138] sm:$0xff]
        %v1007 = vld [vmem:[%s7 + $0x140] sm:$0xff]
        %v1008 = vld [vmem:[%s7 + $0x148] sm:$0xff]
        %v1009 = vld [vmem:[%s7 + $0x150] sm:$0xff]
        %v1010 = vld [vmem:[%s7 + $0x158] sm:$0xff]
        %v1011 = vld [vmem:[%s7 + $0x160] sm:$0xff]
        %v1012 = vld [vmem:[%s7 + $0x168] sm:$0xff]
        %v1013 = vld [vmem:[%s7 + $0x170] sm:$0xff]
        %v1014 = vld [vmem:[%s7 + $0x178] sm:$0xff]
        %v1015 = vld [vmem:[%s7 + $0x180] sm:$0xff]
        %v1016 = vld [vmem:[%s7 + $0x188] sm:$0xff]
        %v1017 = vld [vmem:[%s7 + $0x190] sm:$0xff]
        %v1018 = vld [vmem:[%s7 + $0x198] sm:$0xff]
        %v1019 = vld [vmem:[%s7 + $0x1a0] sm:$0xff]
        %v1020 = vld [vmem:[%s7 + $0x1a8] sm:$0xff]
        %v1021 = vld [vmem:[%s7 + $0x1b0] sm:$0xff]
        %v1022 = vld [vmem:[%s7 + $0x1b8] sm:$0xff]
        %v1023 = vld [vmem:[%s7 + $0x1c0] sm:$0xff]
        %v1024 = vld [vmem:[%s7 + $0x1c8] sm:$0xff]
        %v1025 = vld [vmem:[%s7 + $0x1d0] sm:$0xff]
        %v1026 = vld [vmem:[%s7 + $0x1d8] sm:$0xff]
        %v1027 = vld [vmem:[%s7 + $0x1e0] sm:$0xff]
        %v1028 = vld [vmem:[%s7 + $0x1e8] sm:$0xff]
        %v1029 = vld [vmem:[%s7 + $0x1f0] sm:$0xff]
        %v1030 = vld [vmem:[%s7 + $0x1f8] sm:$0xff]
        %v1031 = vld [vmem:[%s7 + $0x200] sm:$0xff]
        %v1032 = vld [vmem:[%s7 + $0x208] sm:$0xff]
        %v1033 = vld [vmem:[%s7 + $0x210] sm:$0xff]
        %v1034 = vld [vmem:[%s7 + $0x218] sm:$0xff]
        %v1035 = vld [vmem:[%s7 + $0x220] sm:$0xff]
        %v1036 = vld [vmem:[%s7 + $0x228] sm:$0xff]
        %v1037 = vld [vmem:[%s7 + $0x230] sm:$0xff]
        %v1038 = vld [vmem:[%s7 + $0x238] sm:$0xff]
        %v1039 = vld [vmem:[%s7 + $0x240] sm:$0xff]
        %v1040 = vld [vmem:[%s7 + $0x248] sm:$0xff]
        %v1041 = vld [vmem:[%s7 + $0x250] sm:$0xff]
        %v1042 = vld [vmem:[%s7 + $0x258] sm:$0xff]
        %v1043 = vld [vmem:[%s7 + $0x260] sm:$0xff]
        %v1044 = vld [vmem:[%s7 + $0x268] sm:$0xff]
        %v1045 = vld [vmem:[%s7 + $0x270] sm:$0xff]
        %v1046 = vld [vmem:[%s7 + $0x278] sm:$0xff]
        %v1047 = vld [vmem:[%s7 + $0x280] sm:$0xff]
        %v1048 = vld [vmem:[%s7 + $0x288] sm:$0xff]
        %v1049 = vld [vmem:[%s7 + $0x290] sm:$0xff]
        %v1050 = vld [vmem:[%s7 + $0x298] sm:$0xff]
        %v1051 = vld [vmem:[%s7 + $0x2a0] sm:$0xff]
        %v1052 = vld [vmem:[%s7 + $0x2a8] sm:$0xff]
        %v1053 = vld [vmem:[%s7 + $0x2b0] sm:$0xff]
        %v1054 = vld [vmem:[%s7 + $0x2b8] sm:$0xff]
        %v1055 = vld [vmem:[%s7 + $0x2c0] sm:$0xff]
        %v1056 = vld [vmem:[%s7 + $0x2c8] sm:$0xff]
        %v1057 = vld [vmem:[%s7 + $0x2d0] sm:$0xff]
        %v1058 = vld [vmem:[%s7 + $0x2d8] sm:$0xff]
        %v1059 = vld [vmem:[%s7 + $0x2e0] sm:$0xff]
        %v1060 = vld [vmem:[%s7 + $0x2e8] sm:$0xff]
        %v1061 = vld [vmem:[%s7 + $0x2f0] sm:$0xff]
        %v1062 = vld [vmem:[%s7 + $0x2f8] sm:$0xff]
        %v1063 = vld [vmem:[%s7 + $0x300] sm:$0xff]
        %v1064 = vld [vmem:[%s7 + $0x308] sm:$0xff]
        %v1065 = vld [vmem:[%s7 + $0x310] sm:$0xff]
        %v1066 = vld [vmem:[%s7 + $0x318] sm:$0xff]
        %v1067 = vld [vmem:[%s7 + $0x320] sm:$0xff]
        %v1068 = vld [vmem:[%s7 + $0x328] sm:$0xff]
        %v1069 = vld [vmem:[%s7 + $0x330] sm:$0xff]
        %v1070 = vld [vmem:[%s7 + $0x338] sm:$0xff]
        %v1071 = vld [vmem:[%s7 + $0x340] sm:$0xff]
        %v1072 = vld [vmem:[%s7 + $0x348] sm:$0xff]
        %v1073 = vld [vmem:[%s7 + $0x350] sm:$0xff]
        %v1074 = vld [vmem:[%s7 + $0x358] sm:$0xff]
        %v1075 = vld [vmem:[%s7 + $0x360] sm:$0xff]
        %v1076 = vld [vmem:[%s7 + $0x368] sm:$0xff]
        %v1077 = vld [vmem:[%s7 + $0x370] sm:$0xff]
        %v1078 = vld [vmem:[%s7 + $0x378] sm:$0xff]
        %v1079 = vld [vmem:[%s7 + $0x380] sm:$0xff]
        %v1080 = vld [vmem:[%s7 + $0x388] sm:$0xff]
        %v1081 = vld [vmem:[%s7 + $0x390] sm:$0xff]
        %v1082 = vld [vmem:[%s7 + $0x398] sm:$0xff]
        %v1083 = vld [vmem:[%s7 + $0x3a0] sm:$0xff]
        %v1084 = vld [vmem:[%s7 + $0x3a8] sm:$0xff]
        %v1085 = vld [vmem:[%s7 + $0x3b0] sm:$0xff]
        %v1086 = vld [vmem:[%s7 + $0x3b8] sm:$0xff]
        %v1087 = vld [vmem:[%s7 + $0x3c0] sm:$0xff]
        %v1088 = vld [vmem:[%s7 + $0x3c8] sm:$0xff]
        %v1089 = vld [vmem:[%s7 + $0x3d0] sm:$0xff]
        %v1090 = vld [vmem:[%s7 + $0x3d8] sm:$0xff]
        %v1091 = vld [vmem:[%s7 + $0x3e0] sm:$0xff]
        %v1092 = vld [vmem:[%s7 + $0x3e8] sm:$0xff]
        %v1093 = vld [vmem:[%s7 + $0x3f0] sm:$0xff]
        %v1094 = vld [vmem:[%s7 + $0x3f8] sm:$0xff]
        %v1095 = vld [vmem:[%s8] sm:$0xff]
        %v1097 = vlaneseq
        %v1098 = vshrl.u32 %v1097, 7
        %v1099 = vsub.s32 0, %v1098
        %v1100 = vrot.slane %v1095, %v1099
        %v1101 = vlaneseq
        %v1102 = vshrl.u32 %v1101, 7
        %v1103 = vsub.s32 1, %v1102
        %v1104 = vrot.slane %v1095, %v1103
        %v1105 = vlaneseq
        %v1106 = vshrl.u32 %v1105, 7
        %v1107 = vsub.s32 2, %v1106
        %v1108 = vrot.slane %v1095, %v1107
        %v1109 = vlaneseq
        %v1110 = vshrl.u32 %v1109, 7
        %v1111 = vsub.s32 3, %v1110
        %v1112 = vrot.slane %v1095, %v1111
        %v1113 = vlaneseq
        %v1114 = vshrl.u32 %v1113, 7
        %v1115 = vsub.s32 4, %v1114
        %v1116 = vrot.slane %v1095, %v1115
        %v1117 = vlaneseq
        %v1118 = vshrl.u32 %v1117, 7
        %v1119 = vsub.s32 5, %v1118
        %v1120 = vrot.slane %v1095, %v1119
        %v1121 = vlaneseq
        %v1122 = vshrl.u32 %v1121, 7
        %v1123 = vsub.s32 6, %v1122
        %v1124 = vrot.slane %v1095, %v1123
        %v1125 = vlaneseq
        %v1126 = vshrl.u32 %v1125, 7
        %v1127 = vsub.s32 7, %v1126
        %v1128 = vrot.slane %v1095, %v1127
        %v1265 = vunpack.c.l.b16 %v967
        %v1266 = vunpack.c.h.b16 %v967
        %v1267 = vunpack.c.l.b16 %v968
        %v1268 = vunpack.c.h.b16 %v968
        %v1269 = vunpack.c.l.b16 %v969
        %v1270 = vunpack.c.h.b16 %v969
        %v1271 = vunpack.c.l.b16 %v970
        %v1272 = vunpack.c.h.b16 %v970
        %v1273 = vunpack.c.l.b16 %v971
        %v1274 = vunpack.c.h.b16 %v971
        %v1275 = vunpack.c.l.b16 %v972
        %v1276 = vunpack.c.h.b16 %v972
        %v1277 = vunpack.c.l.b16 %v973
        %v1278 = vunpack.c.h.b16 %v973
        %v1279 = vunpack.c.l.b16 %v974
        %v1280 = vunpack.c.h.b16 %v974
        %v1281 = vunpack.c.l.b16 %v975
        %v1282 = vunpack.c.h.b16 %v975
        %v1283 = vunpack.c.l.b16 %v976
        %v1284 = vunpack.c.h.b16 %v976
        %v1285 = vunpack.c.l.b16 %v977
        %v1286 = vunpack.c.h.b16 %v977
        %v1287 = vunpack.c.l.b16 %v978
        %v1288 = vunpack.c.h.b16 %v978
        %v1289 = vunpack.c.l.b16 %v979
        %v1290 = vunpack.c.h.b16 %v979
        %v1291 = vunpack.c.l.b16 %v980
        %v1292 = vunpack.c.h.b16 %v980
        %v1293 = vunpack.c.l.b16 %v981
        %v1294 = vunpack.c.h.b16 %v981
        %v1295 = vunpack.c.l.b16 %v982
        %v1296 = vunpack.c.h.b16 %v982
        %v1297 = vunpack.c.l.b16 %v983
        %v1298 = vunpack.c.h.b16 %v983
        %v1299 = vunpack.c.l.b16 %v984
        %v1300 = vunpack.c.h.b16 %v984
        %v1301 = vunpack.c.l.b16 %v985
        %v1302 = vunpack.c.h.b16 %v985
        %v1303 = vunpack.c.l.b16 %v986
        %v1304 = vunpack.c.h.b16 %v986
        %v1305 = vunpack.c.l.b16 %v987
        %v1306 = vunpack.c.h.b16 %v987
        %v1307 = vunpack.c.l.b16 %v988
        %v1308 = vunpack.c.h.b16 %v988
        %v1309 = vunpack.c.l.b16 %v989
        %v1310 = vunpack.c.h.b16 %v989
        %v1311 = vunpack.c.l.b16 %v990
        %v1312 = vunpack.c.h.b16 %v990
        %v1313 = vunpack.c.l.b16 %v991
        %v1314 = vunpack.c.h.b16 %v991
        %v1315 = vunpack.c.l.b16 %v992
        %v1316 = vunpack.c.h.b16 %v992
        %v1317 = vunpack.c.l.b16 %v993
        %v1318 = vunpack.c.h.b16 %v993
        %v1319 = vunpack.c.l.b16 %v994
        %v1320 = vunpack.c.h.b16 %v994
        %v1321 = vunpack.c.l.b16 %v995
        %v1322 = vunpack.c.h.b16 %v995
        %v1323 = vunpack.c.l.b16 %v996
        %v1324 = vunpack.c.h.b16 %v996
        %v1325 = vunpack.c.l.b16 %v997
        %v1326 = vunpack.c.h.b16 %v997
        %v1327 = vunpack.c.l.b16 %v998
        %v1328 = vunpack.c.h.b16 %v998
        %v1329 = vunpack.c.l.b16 %v999
        %v1330 = vunpack.c.h.b16 %v999
        %v1331 = vunpack.c.l.b16 %v1000
        %v1332 = vunpack.c.h.b16 %v1000
        %v1333 = vunpack.c.l.b16 %v1001
        %v1334 = vunpack.c.h.b16 %v1001
        %v1335 = vunpack.c.l.b16 %v1002
        %v1336 = vunpack.c.h.b16 %v1002
        %v1337 = vunpack.c.l.b16 %v1003
        %v1338 = vunpack.c.h.b16 %v1003
        %v1339 = vunpack.c.l.b16 %v1004
        %v1340 = vunpack.c.h.b16 %v1004
        %v1341 = vunpack.c.l.b16 %v1005
        %v1342 = vunpack.c.h.b16 %v1005
        %v1343 = vunpack.c.l.b16 %v1006
        %v1344 = vunpack.c.h.b16 %v1006
        %v1345 = vunpack.c.l.b16 %v1007
        %v1346 = vunpack.c.h.b16 %v1007
        %v1347 = vunpack.c.l.b16 %v1008
        %v1348 = vunpack.c.h.b16 %v1008
        %v1349 = vunpack.c.l.b16 %v1009
        %v1350 = vunpack.c.h.b16 %v1009
        %v1351 = vunpack.c.l.b16 %v1010
        %v1352 = vunpack.c.h.b16 %v1010
        %v1353 = vunpack.c.l.b16 %v1011
        %v1354 = vunpack.c.h.b16 %v1011
        %v1355 = vunpack.c.l.b16 %v1012
        %v1356 = vunpack.c.h.b16 %v1012
        %v1357 = vunpack.c.l.b16 %v1013
        %v1358 = vunpack.c.h.b16 %v1013
        %v1359 = vunpack.c.l.b16 %v1014
        %v1360 = vunpack.c.h.b16 %v1014
        %v1361 = vunpack.c.l.b16 %v1015
        %v1362 = vunpack.c.h.b16 %v1015
        %v1363 = vunpack.c.l.b16 %v1016
        %v1364 = vunpack.c.h.b16 %v1016
        %v1365 = vunpack.c.l.b16 %v1017
        %v1366 = vunpack.c.h.b16 %v1017
        %v1367 = vunpack.c.l.b16 %v1018
        %v1368 = vunpack.c.h.b16 %v1018
        %v1369 = vunpack.c.l.b16 %v1019
        %v1370 = vunpack.c.h.b16 %v1019
        %v1371 = vunpack.c.l.b16 %v1020
        %v1372 = vunpack.c.h.b16 %v1020
        %v1373 = vunpack.c.l.b16 %v1021
        %v1374 = vunpack.c.h.b16 %v1021
        %v1375 = vunpack.c.l.b16 %v1022
        %v1376 = vunpack.c.h.b16 %v1022
        %v1377 = vunpack.c.l.b16 %v1023
        %v1378 = vunpack.c.h.b16 %v1023
        %v1379 = vunpack.c.l.b16 %v1024
        %v1380 = vunpack.c.h.b16 %v1024
        %v1381 = vunpack.c.l.b16 %v1025
        %v1382 = vunpack.c.h.b16 %v1025
        %v1383 = vunpack.c.l.b16 %v1026
        %v1384 = vunpack.c.h.b16 %v1026
        %v1385 = vunpack.c.l.b16 %v1027
        %v1386 = vunpack.c.h.b16 %v1027
        %v1387 = vunpack.c.l.b16 %v1028
        %v1388 = vunpack.c.h.b16 %v1028
        %v1389 = vunpack.c.l.b16 %v1029
        %v1390 = vunpack.c.h.b16 %v1029
        %v1391 = vunpack.c.l.b16 %v1030
        %v1392 = vunpack.c.h.b16 %v1030
        %v1393 = vunpack.c.l.b16 %v1031
        %v1394 = vunpack.c.h.b16 %v1031
        %v1395 = vunpack.c.l.b16 %v1032
        %v1396 = vunpack.c.h.b16 %v1032
        %v1397 = vunpack.c.l.b16 %v1033
        %v1398 = vunpack.c.h.b16 %v1033
        %v1399 = vunpack.c.l.b16 %v1034
        %v1400 = vunpack.c.h.b16 %v1034
        %v1401 = vunpack.c.l.b16 %v1035
        %v1402 = vunpack.c.h.b16 %v1035
        %v1403 = vunpack.c.l.b16 %v1036
        %v1404 = vunpack.c.h.b16 %v1036
        %v1405 = vunpack.c.l.b16 %v1037
        %v1406 = vunpack.c.h.b16 %v1037
        %v1407 = vunpack.c.l.b16 %v1038
        %v1408 = vunpack.c.h.b16 %v1038
        %v1409 = vunpack.c.l.b16 %v1039
        %v1410 = vunpack.c.h.b16 %v1039
        %v1411 = vunpack.c.l.b16 %v1040
        %v1412 = vunpack.c.h.b16 %v1040
        %v1413 = vunpack.c.l.b16 %v1041
        %v1414 = vunpack.c.h.b16 %v1041
        %v1415 = vunpack.c.l.b16 %v1042
        %v1416 = vunpack.c.h.b16 %v1042
        %v1417 = vunpack.c.l.b16 %v1043
        %v1418 = vunpack.c.h.b16 %v1043
        %v1419 = vunpack.c.l.b16 %v1044
        %v1420 = vunpack.c.h.b16 %v1044
        %v1421 = vunpack.c.l.b16 %v1045
        %v1422 = vunpack.c.h.b16 %v1045
        %v1423 = vunpack.c.l.b16 %v1046
        %v1424 = vunpack.c.h.b16 %v1046
        %v1425 = vunpack.c.l.b16 %v1047
        %v1426 = vunpack.c.h.b16 %v1047
        %v1427 = vunpack.c.l.b16 %v1048
        %v1428 = vunpack.c.h.b16 %v1048
        %v1429 = vunpack.c.l.b16 %v1049
        %v1430 = vunpack.c.h.b16 %v1049
        %v1431 = vunpack.c.l.b16 %v1050
        %v1432 = vunpack.c.h.b16 %v1050
        %v1433 = vunpack.c.l.b16 %v1051
        %v1434 = vunpack.c.h.b16 %v1051
        %v1435 = vunpack.c.l.b16 %v1052
        %v1436 = vunpack.c.h.b16 %v1052
        %v1437 = vunpack.c.l.b16 %v1053
        %v1438 = vunpack.c.h.b16 %v1053
        %v1439 = vunpack.c.l.b16 %v1054
        %v1440 = vunpack.c.h.b16 %v1054
        %v1441 = vunpack.c.l.b16 %v1055
        %v1442 = vunpack.c.h.b16 %v1055
        %v1443 = vunpack.c.l.b16 %v1056
        %v1444 = vunpack.c.h.b16 %v1056
        %v1445 = vunpack.c.l.b16 %v1057
        %v1446 = vunpack.c.h.b16 %v1057
        %v1447 = vunpack.c.l.b16 %v1058
        %v1448 = vunpack.c.h.b16 %v1058
        %v1449 = vunpack.c.l.b16 %v1059
        %v1450 = vunpack.c.h.b16 %v1059
        %v1451 = vunpack.c.l.b16 %v1060
        %v1452 = vunpack.c.h.b16 %v1060
        %v1453 = vunpack.c.l.b16 %v1061
        %v1454 = vunpack.c.h.b16 %v1061
        %v1455 = vunpack.c.l.b16 %v1062
        %v1456 = vunpack.c.h.b16 %v1062
        %v1457 = vunpack.c.l.b16 %v1063
        %v1458 = vunpack.c.h.b16 %v1063
        %v1459 = vunpack.c.l.b16 %v1064
        %v1460 = vunpack.c.h.b16 %v1064
        %v1461 = vunpack.c.l.b16 %v1065
        %v1462 = vunpack.c.h.b16 %v1065
        %v1463 = vunpack.c.l.b16 %v1066
        %v1464 = vunpack.c.h.b16 %v1066
        %v1465 = vunpack.c.l.b16 %v1067
        %v1466 = vunpack.c.h.b16 %v1067
        %v1467 = vunpack.c.l.b16 %v1068
        %v1468 = vunpack.c.h.b16 %v1068
        %v1469 = vunpack.c.l.b16 %v1069
        %v1470 = vunpack.c.h.b16 %v1069
        %v1471 = vunpack.c.l.b16 %v1070
        %v1472 = vunpack.c.h.b16 %v1070
        %v1473 = vunpack.c.l.b16 %v1071
        %v1474 = vunpack.c.h.b16 %v1071
        %v1475 = vunpack.c.l.b16 %v1072
        %v1476 = vunpack.c.h.b16 %v1072
        %v1477 = vunpack.c.l.b16 %v1073
        %v1478 = vunpack.c.h.b16 %v1073
        %v1479 = vunpack.c.l.b16 %v1074
        %v1480 = vunpack.c.h.b16 %v1074
        %v1481 = vunpack.c.l.b16 %v1075
        %v1482 = vunpack.c.h.b16 %v1075
        %v1483 = vunpack.c.l.b16 %v1076
        %v1484 = vunpack.c.h.b16 %v1076
        %v1485 = vunpack.c.l.b16 %v1077
        %v1486 = vunpack.c.h.b16 %v1077
        %v1487 = vunpack.c.l.b16 %v1078
        %v1488 = vunpack.c.h.b16 %v1078
        %v1489 = vunpack.c.l.b16 %v1079
        %v1490 = vunpack.c.h.b16 %v1079
        %v1491 = vunpack.c.l.b16 %v1080
        %v1492 = vunpack.c.h.b16 %v1080
        %v1493 = vunpack.c.l.b16 %v1081
        %v1494 = vunpack.c.h.b16 %v1081
        %v1495 = vunpack.c.l.b16 %v1082
        %v1496 = vunpack.c.h.b16 %v1082
        %v1497 = vunpack.c.l.b16 %v1083
        %v1498 = vunpack.c.h.b16 %v1083
        %v1499 = vunpack.c.l.b16 %v1084
        %v1500 = vunpack.c.h.b16 %v1084
        %v1501 = vunpack.c.l.b16 %v1085
        %v1502 = vunpack.c.h.b16 %v1085
        %v1503 = vunpack.c.l.b16 %v1086
        %v1504 = vunpack.c.h.b16 %v1086
        %v1505 = vunpack.c.l.b16 %v1087
        %v1506 = vunpack.c.h.b16 %v1087
        %v1507 = vunpack.c.l.b16 %v1088
        %v1508 = vunpack.c.h.b16 %v1088
        %v1509 = vunpack.c.l.b16 %v1089
        %v1510 = vunpack.c.h.b16 %v1089
        %v1511 = vunpack.c.l.b16 %v1090
        %v1512 = vunpack.c.h.b16 %v1090
        %v1513 = vunpack.c.l.b16 %v1091
        %v1514 = vunpack.c.h.b16 %v1091
        %v1515 = vunpack.c.l.b16 %v1092
        %v1516 = vunpack.c.h.b16 %v1092
        %v1517 = vunpack.c.l.b16 %v1093
        %v1518 = vunpack.c.h.b16 %v1093
        %v1519 = vunpack.c.l.b16 %v1094
        %v1520 = vunpack.c.h.b16 %v1094
        %v1521 = vpack.c.b16 %v1273, %v1265
        %v1522 = vpack.c.b16 %v1274, %v1266
        %v1523 = vpack.c.b16 %v1275, %v1267
        %v1524 = vpack.c.b16 %v1276, %v1268
        %v1525 = vpack.c.b16 %v1277, %v1269
        %v1526 = vpack.c.b16 %v1278, %v1270
        %v1527 = vpack.c.b16 %v1279, %v1271
        %v1528 = vpack.c.b16 %v1280, %v1272
        %v1529 = vpack.c.b16 %v1289, %v1281
        %v1530 = vpack.c.b16 %v1290, %v1282
        %v1531 = vpack.c.b16 %v1291, %v1283
        %v1532 = vpack.c.b16 %v1292, %v1284
        %v1533 = vpack.c.b16 %v1293, %v1285
        %v1534 = vpack.c.b16 %v1294, %v1286
        %v1535 = vpack.c.b16 %v1295, %v1287
        %v1536 = vpack.c.b16 %v1296, %v1288
        %v1537 = vpack.c.b16 %v1305, %v1297
        %v1538 = vpack.c.b16 %v1306, %v1298
        %v1539 = vpack.c.b16 %v1307, %v1299
        %v1540 = vpack.c.b16 %v1308, %v1300
        %v1541 = vpack.c.b16 %v1309, %v1301
        %v1542 = vpack.c.b16 %v1310, %v1302
        %v1543 = vpack.c.b16 %v1311, %v1303
        %v1544 = vpack.c.b16 %v1312, %v1304
        %v1545 = vpack.c.b16 %v1321, %v1313
        %v1546 = vpack.c.b16 %v1322, %v1314
        %v1547 = vpack.c.b16 %v1323, %v1315
        %v1548 = vpack.c.b16 %v1324, %v1316
        %v1549 = vpack.c.b16 %v1325, %v1317
        %v1550 = vpack.c.b16 %v1326, %v1318
        %v1551 = vpack.c.b16 %v1327, %v1319
        %v1552 = vpack.c.b16 %v1328, %v1320
        %v1553 = vpack.c.b16 %v1337, %v1329
        %v1554 = vpack.c.b16 %v1338, %v1330
        %v1555 = vpack.c.b16 %v1339, %v1331
        %v1556 = vpack.c.b16 %v1340, %v1332
        %v1557 = vpack.c.b16 %v1341, %v1333
        %v1558 = vpack.c.b16 %v1342, %v1334
        %v1559 = vpack.c.b16 %v1343, %v1335
        %v1560 = vpack.c.b16 %v1344, %v1336
        %v1561 = vpack.c.b16 %v1353, %v1345
        %v1562 = vpack.c.b16 %v1354, %v1346
        %v1563 = vpack.c.b16 %v1355, %v1347
        %v1564 = vpack.c.b16 %v1356, %v1348
        %v1565 = vpack.c.b16 %v1357, %v1349
        %v1566 = vpack.c.b16 %v1358, %v1350
        %v1567 = vpack.c.b16 %v1359, %v1351
        %v1568 = vpack.c.b16 %v1360, %v1352
        %v1569 = vpack.c.b16 %v1369, %v1361
        %v1570 = vpack.c.b16 %v1370, %v1362
        %v1571 = vpack.c.b16 %v1371, %v1363
        %v1572 = vpack.c.b16 %v1372, %v1364
        %v1573 = vpack.c.b16 %v1373, %v1365
        %v1574 = vpack.c.b16 %v1374, %v1366
        %v1575 = vpack.c.b16 %v1375, %v1367
        %v1576 = vpack.c.b16 %v1376, %v1368
        %v1577 = vpack.c.b16 %v1385, %v1377
        %v1578 = vpack.c.b16 %v1386, %v1378
        %v1579 = vpack.c.b16 %v1387, %v1379
        %v1580 = vpack.c.b16 %v1388, %v1380
        %v1581 = vpack.c.b16 %v1389, %v1381
        %v1582 = vpack.c.b16 %v1390, %v1382
        %v1583 = vpack.c.b16 %v1391, %v1383
        %v1584 = vpack.c.b16 %v1392, %v1384
        %v1585 = vpack.c.b16 %v1401, %v1393
        %v1586 = vpack.c.b16 %v1402, %v1394
        %v1587 = vpack.c.b16 %v1403, %v1395
        %v1588 = vpack.c.b16 %v1404, %v1396
        %v1589 = vpack.c.b16 %v1405, %v1397
        %v1590 = vpack.c.b16 %v1406, %v1398
        %v1591 = vpack.c.b16 %v1407, %v1399
        %v1592 = vpack.c.b16 %v1408, %v1400
        %v1593 = vpack.c.b16 %v1417, %v1409
        %v1594 = vpack.c.b16 %v1418, %v1410
        %v1595 = vpack.c.b16 %v1419, %v1411
        %v1596 = vpack.c.b16 %v1420, %v1412
        %v1597 = vpack.c.b16 %v1421, %v1413
        %v1598 = vpack.c.b16 %v1422, %v1414
        %v1599 = vpack.c.b16 %v1423, %v1415
        %v1600 = vpack.c.b16 %v1424, %v1416
        %v1601 = vpack.c.b16 %v1433, %v1425
        %v1602 = vpack.c.b16 %v1434, %v1426
        %v1603 = vpack.c.b16 %v1435, %v1427
        %v1604 = vpack.c.b16 %v1436, %v1428
        %v1605 = vpack.c.b16 %v1437, %v1429
        %v1606 = vpack.c.b16 %v1438, %v1430
        %v1607 = vpack.c.b16 %v1439, %v1431
        %v1608 = vpack.c.b16 %v1440, %v1432
        %v1609 = vpack.c.b16 %v1449, %v1441
        %v1610 = vpack.c.b16 %v1450, %v1442
        %v1611 = vpack.c.b16 %v1451, %v1443
        %v1612 = vpack.c.b16 %v1452, %v1444
        %v1613 = vpack.c.b16 %v1453, %v1445
        %v1614 = vpack.c.b16 %v1454, %v1446
        %v1615 = vpack.c.b16 %v1455, %v1447
        %v1616 = vpack.c.b16 %v1456, %v1448
        %v1617 = vpack.c.b16 %v1465, %v1457
        %v1618 = vpack.c.b16 %v1466, %v1458
        %v1619 = vpack.c.b16 %v1467, %v1459
        %v1620 = vpack.c.b16 %v1468, %v1460
        %v1621 = vpack.c.b16 %v1469, %v1461
        %v1622 = vpack.c.b16 %v1470, %v1462
        %v1623 = vpack.c.b16 %v1471, %v1463
        %v1624 = vpack.c.b16 %v1472, %v1464
        %v1625 = vpack.c.b16 %v1481, %v1473
        %v1626 = vpack.c.b16 %v1482, %v1474
        %v1627 = vpack.c.b16 %v1483, %v1475
        %v1628 = vpack.c.b16 %v1484, %v1476
        %v1629 = vpack.c.b16 %v1485, %v1477
        %v1630 = vpack.c.b16 %v1486, %v1478
        %v1631 = vpack.c.b16 %v1487, %v1479
        %v1632 = vpack.c.b16 %v1488, %v1480
        %v1633 = vpack.c.b16 %v1497, %v1489
        %v1634 = vpack.c.b16 %v1498, %v1490
        %v1635 = vpack.c.b16 %v1499, %v1491
        %v1636 = vpack.c.b16 %v1500, %v1492
        %v1637 = vpack.c.b16 %v1501, %v1493
        %v1638 = vpack.c.b16 %v1502, %v1494
        %v1639 = vpack.c.b16 %v1503, %v1495
        %v1640 = vpack.c.b16 %v1504, %v1496
        %v1641 = vpack.c.b16 %v1513, %v1505
        %v1642 = vpack.c.b16 %v1514, %v1506
        %v1643 = vpack.c.b16 %v1515, %v1507
        %v1644 = vpack.c.b16 %v1516, %v1508
        %v1645 = vpack.c.b16 %v1517, %v1509
        %v1646 = vpack.c.b16 %v1518, %v1510
        %v1647 = vpack.c.b16 %v1519, %v1511
        %v1648 = vpack.c.b16 %v1520, %v1512
        %1777 = vmatprep.subr.bf16.mxu0 %v1578
        %1778 = vmatpush1.bf16.msra.mxu0 %v1577
        %1779 = vmatprep.subr.bf16.mxu0 %v1570
        %1780 = vmatpush1.bf16.msra.mxu0 %v1569
        %1781 = vmatprep.subr.bf16.mxu0 %v1562
        %1782 = vmatpush1.bf16.msra.mxu0 %v1561
        %1783 = vmatprep.subr.bf16.mxu0 %v1554
        %1784 = vmatpush1.bf16.msra.mxu0 %v1553
        %1785 = vmatprep.subr.bf16.mxu0 %v1546
        %1786 = vmatpush1.bf16.msra.mxu0 %v1545
        %1787 = vmatprep.subr.bf16.mxu0 %v1538
        %1788 = vmatpush1.bf16.msra.mxu0 %v1537
        %1789 = vmatprep.subr.bf16.mxu0 %v1530
        %1790 = vmatpush1.bf16.msra.mxu0 %v1529
        %1791 = vmatprep.subr.bf16.mxu0 %v1522
        %1792 = vmatpush1.bf16.msra.mxu0 %v1521
        %1793 = vmatprep.subr.bf16.mxu0 %v1642
        %1794 = vmatpush2.bf16.msra.mxu0 %v1641
        %1795 = vmatprep.subr.bf16.mxu0 %v1634
        %1796 = vmatpush2.bf16.msra.mxu0 %v1633
        %1797 = vmatprep.subr.bf16.mxu0 %v1626
        %1798 = vmatpush2.bf16.msra.mxu0 %v1625
        %1799 = vmatprep.subr.bf16.mxu0 %v1618
        %1800 = vmatpush2.bf16.msra.mxu0 %v1617
        %1801 = vmatprep.subr.bf16.mxu0 %v1610
        %1802 = vmatpush2.bf16.msra.mxu0 %v1609
        %1803 = vmatprep.subr.bf16.mxu0 %v1602
        %1804 = vmatpush2.bf16.msra.mxu0 %v1601
        %1805 = vmatprep.subr.bf16.mxu0 %v1594
        %1806 = vmatpush2.bf16.msra.mxu0 %v1593
        %1807 = vmatprep.subr.bf16.mxu0 %v1586
        %1808 = vmatpush2.bf16.msra.mxu0 %v1585
        %1809 = vmatprep.mubr.bf16.mxu0 %v966
        %1810 = vmatmul.mubr.bf16.gmra.mxu0 %v965
        %v1811 = vpop.f32.mrf.mxu0
        %v1812 = vadd.f32 %v1100, %v1811
        %v1813 = vpop.f32.mrf.mxu0
        %v1814 = vadd.f32 %v1104, %v1813
        %v1815 = vpop.f32.mrf.mxu0
        %v1816 = vpop.f32.mrf.mxu0
        %1817 = vdwg.mxu0
        %1818 = vmatprep.subr.bf16.mxu0 %v1580
        %1819 = vmatpush1.bf16.msra.mxu0 %v1579
        %1820 = vmatprep.subr.bf16.mxu0 %v1572
        %1821 = vmatpush1.bf16.msra.mxu0 %v1571
        %1822 = vmatprep.subr.bf16.mxu0 %v1564
        %1823 = vmatpush1.bf16.msra.mxu0 %v1563
        %1824 = vmatprep.subr.bf16.mxu0 %v1556
        %1825 = vmatpush1.bf16.msra.mxu0 %v1555
        %1826 = vmatprep.subr.bf16.mxu0 %v1548
        %1827 = vmatpush1.bf16.msra.mxu0 %v1547
        %1828 = vmatprep.subr.bf16.mxu0 %v1540
        %1829 = vmatpush1.bf16.msra.mxu0 %v1539
        %1830 = vmatprep.subr.bf16.mxu0 %v1532
        %1831 = vmatpush1.bf16.msra.mxu0 %v1531
        %1832 = vmatprep.subr.bf16.mxu0 %v1524
        %1833 = vmatpush1.bf16.msra.mxu0 %v1523
        %1834 = vmatprep.subr.bf16.mxu0 %v1644
        %1835 = vmatpush2.bf16.msra.mxu0 %v1643
        %1836 = vmatprep.subr.bf16.mxu0 %v1636
        %1837 = vmatpush2.bf16.msra.mxu0 %v1635
        %1838 = vmatprep.subr.bf16.mxu0 %v1628
        %1839 = vmatpush2.bf16.msra.mxu0 %v1627
        %1840 = vmatprep.subr.bf16.mxu0 %v1620
        %1841 = vmatpush2.bf16.msra.mxu0 %v1619
        %1842 = vmatprep.subr.bf16.mxu0 %v1612
        %1843 = vmatpush2.bf16.msra.mxu0 %v1611
        %1844 = vmatprep.subr.bf16.mxu0 %v1604
        %1845 = vmatpush2.bf16.msra.mxu0 %v1603
        %1846 = vmatprep.subr.bf16.mxu0 %v1596
        %1847 = vmatpush2.bf16.msra.mxu0 %v1595
        %1848 = vmatprep.subr.bf16.mxu0 %v1588
        %1849 = vmatpush2.bf16.msra.mxu0 %v1587
        %1850 = vmatprep.mubr.bf16.mxu0 %v966
        %1851 = vmatmul.mubr.bf16.gmra.mxu0 %v965
        %v1852 = vpop.f32.mrf.mxu0
        %v1853 = vadd.f32 %v1108, %v1852
        %v1854 = vpop.f32.mrf.mxu0
        %v1855 = vadd.f32 %v1112, %v1854
        %v1856 = vpop.f32.mrf.mxu0
        %v1857 = vpop.f32.mrf.mxu0
        %1858 = vdwg.mxu0
        %1859 = vmatprep.subr.bf16.mxu0 %v1582
        %1860 = vmatpush1.bf16.msra.mxu0 %v1581
        %1861 = vmatprep.subr.bf16.mxu0 %v1574
        %1862 = vmatpush1.bf16.msra.mxu0 %v1573
        %1863 = vmatprep.subr.bf16.mxu0 %v1566
        %1864 = vmatpush1.bf16.msra.mxu0 %v1565
        %1865 = vmatprep.subr.bf16.mxu0 %v1558
        %1866 = vmatpush1.bf16.msra.mxu0 %v1557
        %1867 = vmatprep.subr.bf16.mxu0 %v1550
        %1868 = vmatpush1.bf16.msra.mxu0 %v1549
        %1869 = vmatprep.subr.bf16.mxu0 %v1542
        %1870 = vmatpush1.bf16.msra.mxu0 %v1541
        %1871 = vmatprep.subr.bf16.mxu0 %v1534
        %1872 = vmatpush1.bf16.msra.mxu0 %v1533
        %1873 = vmatprep.subr.bf16.mxu0 %v1526
        %1874 = vmatpush1.bf16.msra.mxu0 %v1525
        %1875 = vmatprep.subr.bf16.mxu0 %v1646
        %1876 = vmatpush2.bf16.msra.mxu0 %v1645
        %1877 = vmatprep.subr.bf16.mxu0 %v1638
        %1878 = vmatpush2.bf16.msra.mxu0 %v1637
        %1879 = vmatprep.subr.bf16.mxu0 %v1630
        %1880 = vmatpush2.bf16.msra.mxu0 %v1629
        %1881 = vmatprep.subr.bf16.mxu0 %v1622
        %1882 = vmatpush2.bf16.msra.mxu0 %v1621
        %1883 = vmatprep.subr.bf16.mxu0 %v1614
        %1884 = vmatpush2.bf16.msra.mxu0 %v1613
        %1885 = vmatprep.subr.bf16.mxu0 %v1606
        %1886 = vmatpush2.bf16.msra.mxu0 %v1605
        %1887 = vmatprep.subr.bf16.mxu0 %v1598
        %1888 = vmatpush2.bf16.msra.mxu0 %v1597
        %1889 = vmatprep.subr.bf16.mxu0 %v1590
        %1890 = vmatpush2.bf16.msra.mxu0 %v1589
        %1891 = vmatprep.mubr.bf16.mxu0 %v966
        %1892 = vmatmul.mubr.bf16.gmra.mxu0 %v965
        %v1893 = vpop.f32.mrf.mxu0
        %v1894 = vadd.f32 %v1116, %v1893
        %v1895 = vpop.f32.mrf.mxu0
        %v1896 = vadd.f32 %v1120, %v1895
        %v1897 = vpop.f32.mrf.mxu0
        %v1898 = vpop.f32.mrf.mxu0
        %1899 = vdwg.mxu0
        %1900 = vmatprep.subr.bf16.mxu0 %v1584
        %1901 = vmatpush1.bf16.msra.mxu0 %v1583
        %1902 = vmatprep.subr.bf16.mxu0 %v1576
        %1903 = vmatpush1.bf16.msra.mxu0 %v1575
        %1904 = vmatprep.subr.bf16.mxu0 %v1568
        %1905 = vmatpush1.bf16.msra.mxu0 %v1567
        %1906 = vmatprep.subr.bf16.mxu0 %v1560
        %1907 = vmatpush1.bf16.msra.mxu0 %v1559
        %1908 = vmatprep.subr.bf16.mxu0 %v1552
        %1909 = vmatpush1.bf16.msra.mxu0 %v1551
        %1910 = vmatprep.subr.bf16.mxu0 %v1544
        %1911 = vmatpush1.bf16.msra.mxu0 %v1543
        %1912 = vmatprep.subr.bf16.mxu0 %v1536
        %1913 = vmatpush1.bf16.msra.mxu0 %v1535
        %1914 = vmatprep.subr.bf16.mxu0 %v1528
        %1915 = vmatpush1.bf16.msra.mxu0 %v1527
        %1916 = vmatprep.subr.bf16.mxu0 %v1648
        %1917 = vmatpush2.bf16.msra.mxu0 %v1647
        %1918 = vmatprep.subr.bf16.mxu0 %v1640
        %1919 = vmatpush2.bf16.msra.mxu0 %v1639
        %1920 = vmatprep.subr.bf16.mxu0 %v1632
        %1921 = vmatpush2.bf16.msra.mxu0 %v1631
        %1922 = vmatprep.subr.bf16.mxu0 %v1624
        %1923 = vmatpush2.bf16.msra.mxu0 %v1623
        %1924 = vmatprep.subr.bf16.mxu0 %v1616
        %1925 = vmatpush2.bf16.msra.mxu0 %v1615
        %1926 = vmatprep.subr.bf16.mxu0 %v1608
        %1927 = vmatpush2.bf16.msra.mxu0 %v1607
        %1928 = vmatprep.subr.bf16.mxu0 %v1600
        %1929 = vmatpush2.bf16.msra.mxu0 %v1599
        %1930 = vmatprep.subr.bf16.mxu0 %v1592
        %1931 = vmatpush2.bf16.msra.mxu0 %v1591
        %1932 = vmatprep.mubr.bf16.mxu0 %v966
        %1933 = vmatmul.mubr.bf16.gmra.mxu0 %v965
        %v1934 = vpop.f32.mrf.mxu0
        %v1935 = vadd.f32 %v1124, %v1934
        %v1936 = vpop.f32.mrf.mxu0
        %v1937 = vadd.f32 %v1128, %v1936
        %v1938 = vpop.f32.mrf.mxu0
        %v1939 = vpop.f32.mrf.mxu0
        %1940 = vdwg.mxu0
        %v1941 = vmul.f32 %v1812, 0.5
        %v1942 = vmul.f32 %v1814, 0.5
        %v1943 = vmul.f32 %v1853, 0.5
        %v1944 = vmul.f32 %v1855, 0.5
        %v1945 = vmul.f32 %v1894, 0.5
        %v1946 = vmul.f32 %v1896, 0.5
        %v1947 = vmul.f32 %v1935, 0.5
        %v1948 = vmul.f32 %v1937, 0.5
        %v1949 = vmul.f32 %v1812, 0.70710677
        %v1950 = vmul.f32 %v1814, 0.70710677
        %v1951 = vmul.f32 %v1853, 0.70710677
        %v1952 = vmul.f32 %v1855, 0.70710677
        %v1953 = vmul.f32 %v1894, 0.70710677
        %v1954 = vmul.f32 %v1896, 0.70710677
        %v1955 = vmul.f32 %v1935, 0.70710677
        %v1956 = vmul.f32 %v1937, 0.70710677
        %v1957 = verf.f32.pop %v1949
        %v1958 = verf.f32.pop %v1950
        %v1959 = verf.f32.pop %v1951
        %v1960 = verf.f32.pop %v1952
        %v1961 = verf.f32.pop %v1953
        %v1962 = verf.f32.pop %v1954
        %v1963 = verf.f32.pop %v1955
        %v1964 = verf.f32.pop %v1956
        %v1965 = vadd.f32 %v1957, 1.0
        %v1966 = vadd.f32 %v1958, 1.0
        %v1967 = vadd.f32 %v1959, 1.0
        %v1968 = vadd.f32 %v1960, 1.0
        %v1969 = vadd.f32 %v1961, 1.0
        %v1970 = vadd.f32 %v1962, 1.0
        %v1971 = vadd.f32 %v1963, 1.0
        %v1972 = vadd.f32 %v1964, 1.0
        %v1973 = vmul.f32 %v1941, %v1965
        %v1974 = vmul.f32 %v1942, %v1966
        %v1975 = vmul.f32 %v1943, %v1967
        %v1976 = vmul.f32 %v1944, %v1968
        %v1977 = vmul.f32 %v1945, %v1969
        %v1978 = vmul.f32 %v1946, %v1970
        %v1979 = vmul.f32 %v1947, %v1971
        %v1980 = vmul.f32 %v1948, %v1972
        %v1981 = vpack.c.bf16 %v1973, %v1973
        %v1982 = vpack.c.bf16 %v1974, %v1974
        %v1983 = vpack.c.bf16 %v1975, %v1975
        %v1984 = vpack.c.bf16 %v1976, %v1976
        %v1985 = vpack.c.bf16 %v1977, %v1977
        %v1986 = vpack.c.bf16 %v1978, %v1978
        %v1987 = vpack.c.bf16 %v1979, %v1979
        %v1988 = vpack.c.bf16 %v1980, %v1980
        %v1989 = vld [vmem:[%s9] sm:$0xff]
        %v1990 = vld [vmem:[%s9 + $0x8] sm:$0xff]
        %v1991 = vld [vmem:[%s9 + $0x10] sm:$0xff]
        %v1992 = vld [vmem:[%s9 + $0x18] sm:$0xff]
        %v1993 = vld [vmem:[%s9 + $0x20] sm:$0xff]
        %v1994 = vld [vmem:[%s9 + $0x28] sm:$0xff]
        %v1995 = vld [vmem:[%s9 + $0x30] sm:$0xff]
        %v1996 = vld [vmem:[%s9 + $0x38] sm:$0xff]
        %v1997 = vld [vmem:[%s9 + $0x40] sm:$0xff]
        %v1998 = vld [vmem:[%s9 + $0x48] sm:$0xff]
        %v1999 = vld [vmem:[%s9 + $0x50] sm:$0xff]
        %v2000 = vld [vmem:[%s9 + $0x58] sm:$0xff]
        %v2001 = vld [vmem:[%s9 + $0x60] sm:$0xff]
        %v2002 = vld [vmem:[%s9 + $0x68] sm:$0xff]
        %v2003 = vld [vmem:[%s9 + $0x70] sm:$0xff]
        %v2004 = vld [vmem:[%s9 + $0x78] sm:$0xff]
        %v2005 = vld [vmem:[%s9 + $0x80] sm:$0xff]
        %v2006 = vld [vmem:[%s9 + $0x88] sm:$0xff]
        %v2007 = vld [vmem:[%s9 + $0x90] sm:$0xff]
        %v2008 = vld [vmem:[%s9 + $0x98] sm:$0xff]
        %v2009 = vld [vmem:[%s9 + $0xa0] sm:$0xff]
        %v2010 = vld [vmem:[%s9 + $0xa8] sm:$0xff]
        %v2011 = vld [vmem:[%s9 + $0xb0] sm:$0xff]
        %v2012 = vld [vmem:[%s9 + $0xb8] sm:$0xff]
        %v2013 = vld [vmem:[%s9 + $0xc0] sm:$0xff]
        %v2014 = vld [vmem:[%s9 + $0xc8] sm:$0xff]
        %v2015 = vld [vmem:[%s9 + $0xd0] sm:$0xff]
        %v2016 = vld [vmem:[%s9 + $0xd8] sm:$0xff]
        %v2017 = vld [vmem:[%s9 + $0xe0] sm:$0xff]
        %v2018 = vld [vmem:[%s9 + $0xe8] sm:$0xff]
        %v2019 = vld [vmem:[%s9 + $0xf0] sm:$0xff]
        %v2020 = vld [vmem:[%s9 + $0xf8] sm:$0xff]
        %v2021 = vld [vmem:[%s9 + $0x100] sm:$0xff]
        %v2022 = vld [vmem:[%s9 + $0x108] sm:$0xff]
        %v2023 = vld [vmem:[%s9 + $0x110] sm:$0xff]
        %v2024 = vld [vmem:[%s9 + $0x118] sm:$0xff]
        %v2025 = vld [vmem:[%s9 + $0x120] sm:$0xff]
        %v2026 = vld [vmem:[%s9 + $0x128] sm:$0xff]
        %v2027 = vld [vmem:[%s9 + $0x130] sm:$0xff]
        %v2028 = vld [vmem:[%s9 + $0x138] sm:$0xff]
        %v2029 = vld [vmem:[%s9 + $0x140] sm:$0xff]
        %v2030 = vld [vmem:[%s9 + $0x148] sm:$0xff]
        %v2031 = vld [vmem:[%s9 + $0x150] sm:$0xff]
        %v2032 = vld [vmem:[%s9 + $0x158] sm:$0xff]
        %v2033 = vld [vmem:[%s9 + $0x160] sm:$0xff]
        %v2034 = vld [vmem:[%s9 + $0x168] sm:$0xff]
        %v2035 = vld [vmem:[%s9 + $0x170] sm:$0xff]
        %v2036 = vld [vmem:[%s9 + $0x178] sm:$0xff]
        %v2037 = vld [vmem:[%s9 + $0x180] sm:$0xff]
        %v2038 = vld [vmem:[%s9 + $0x188] sm:$0xff]
        %v2039 = vld [vmem:[%s9 + $0x190] sm:$0xff]
        %v2040 = vld [vmem:[%s9 + $0x198] sm:$0xff]
        %v2041 = vld [vmem:[%s9 + $0x1a0] sm:$0xff]
        %v2042 = vld [vmem:[%s9 + $0x1a8] sm:$0xff]
        %v2043 = vld [vmem:[%s9 + $0x1b0] sm:$0xff]
        %v2044 = vld [vmem:[%s9 + $0x1b8] sm:$0xff]
        %v2045 = vld [vmem:[%s9 + $0x1c0] sm:$0xff]
        %v2046 = vld [vmem:[%s9 + $0x1c8] sm:$0xff]
        %v2047 = vld [vmem:[%s9 + $0x1d0] sm:$0xff]
        %v2048 = vld [vmem:[%s9 + $0x1d8] sm:$0xff]
        %v2049 = vld [vmem:[%s9 + $0x1e0] sm:$0xff]
        %v2050 = vld [vmem:[%s9 + $0x1e8] sm:$0xff]
        %v2051 = vld [vmem:[%s9 + $0x1f0] sm:$0xff]
        %v2052 = vld [vmem:[%s9 + $0x1f8] sm:$0xff]
        %v2053 = vld [vmem:[%s9 + $0x200] sm:$0xff]
        %v2054 = vld [vmem:[%s9 + $0x208] sm:$0xff]
        %v2055 = vld [vmem:[%s9 + $0x210] sm:$0xff]
        %v2056 = vld [vmem:[%s9 + $0x218] sm:$0xff]
        %v2057 = vld [vmem:[%s9 + $0x220] sm:$0xff]
        %v2058 = vld [vmem:[%s9 + $0x228] sm:$0xff]
        %v2059 = vld [vmem:[%s9 + $0x230] sm:$0xff]
        %v2060 = vld [vmem:[%s9 + $0x238] sm:$0xff]
        %v2061 = vld [vmem:[%s9 + $0x240] sm:$0xff]
        %v2062 = vld [vmem:[%s9 + $0x248] sm:$0xff]
        %v2063 = vld [vmem:[%s9 + $0x250] sm:$0xff]
        %v2064 = vld [vmem:[%s9 + $0x258] sm:$0xff]
        %v2065 = vld [vmem:[%s9 + $0x260] sm:$0xff]
        %v2066 = vld [vmem:[%s9 + $0x268] sm:$0xff]
        %v2067 = vld [vmem:[%s9 + $0x270] sm:$0xff]
        %v2068 = vld [vmem:[%s9 + $0x278] sm:$0xff]
        %v2069 = vld [vmem:[%s9 + $0x280] sm:$0xff]
        %v2070 = vld [vmem:[%s9 + $0x288] sm:$0xff]
        %v2071 = vld [vmem:[%s9 + $0x290] sm:$0xff]
        %v2072 = vld [vmem:[%s9 + $0x298] sm:$0xff]
        %v2073 = vld [vmem:[%s9 + $0x2a0] sm:$0xff]
        %v2074 = vld [vmem:[%s9 + $0x2a8] sm:$0xff]
        %v2075 = vld [vmem:[%s9 + $0x2b0] sm:$0xff]
        %v2076 = vld [vmem:[%s9 + $0x2b8] sm:$0xff]
        %v2077 = vld [vmem:[%s9 + $0x2c0] sm:$0xff]
        %v2078 = vld [vmem:[%s9 + $0x2c8] sm:$0xff]
        %v2079 = vld [vmem:[%s9 + $0x2d0] sm:$0xff]
        %v2080 = vld [vmem:[%s9 + $0x2d8] sm:$0xff]
        %v2081 = vld [vmem:[%s9 + $0x2e0] sm:$0xff]
        %v2082 = vld [vmem:[%s9 + $0x2e8] sm:$0xff]
        %v2083 = vld [vmem:[%s9 + $0x2f0] sm:$0xff]
        %v2084 = vld [vmem:[%s9 + $0x2f8] sm:$0xff]
        %v2085 = vld [vmem:[%s9 + $0x300] sm:$0xff]
        %v2086 = vld [vmem:[%s9 + $0x308] sm:$0xff]
        %v2087 = vld [vmem:[%s9 + $0x310] sm:$0xff]
        %v2088 = vld [vmem:[%s9 + $0x318] sm:$0xff]
        %v2089 = vld [vmem:[%s9 + $0x320] sm:$0xff]
        %v2090 = vld [vmem:[%s9 + $0x328] sm:$0xff]
        %v2091 = vld [vmem:[%s9 + $0x330] sm:$0xff]
        %v2092 = vld [vmem:[%s9 + $0x338] sm:$0xff]
        %v2093 = vld [vmem:[%s9 + $0x340] sm:$0xff]
        %v2094 = vld [vmem:[%s9 + $0x348] sm:$0xff]
        %v2095 = vld [vmem:[%s9 + $0x350] sm:$0xff]
        %v2096 = vld [vmem:[%s9 + $0x358] sm:$0xff]
        %v2097 = vld [vmem:[%s9 + $0x360] sm:$0xff]
        %v2098 = vld [vmem:[%s9 + $0x368] sm:$0xff]
        %v2099 = vld [vmem:[%s9 + $0x370] sm:$0xff]
        %v2100 = vld [vmem:[%s9 + $0x378] sm:$0xff]
        %v2101 = vld [vmem:[%s9 + $0x380] sm:$0xff]
        %v2102 = vld [vmem:[%s9 + $0x388] sm:$0xff]
        %v2103 = vld [vmem:[%s9 + $0x390] sm:$0xff]
        %v2104 = vld [vmem:[%s9 + $0x398] sm:$0xff]
        %v2105 = vld [vmem:[%s9 + $0x3a0] sm:$0xff]
        %v2106 = vld [vmem:[%s9 + $0x3a8] sm:$0xff]
        %v2107 = vld [vmem:[%s9 + $0x3b0] sm:$0xff]
        %v2108 = vld [vmem:[%s9 + $0x3b8] sm:$0xff]
        %v2109 = vld [vmem:[%s9 + $0x3c0] sm:$0xff]
        %v2110 = vld [vmem:[%s9 + $0x3c8] sm:$0xff]
        %v2111 = vld [vmem:[%s9 + $0x3d0] sm:$0xff]
        %v2112 = vld [vmem:[%s9 + $0x3d8] sm:$0xff]
        %v2113 = vld [vmem:[%s9 + $0x3e0] sm:$0xff]
        %v2114 = vld [vmem:[%s9 + $0x3e8] sm:$0xff]
        %v2115 = vld [vmem:[%s9 + $0x3f0] sm:$0xff]
        %v2116 = vld [vmem:[%s9 + $0x3f8] sm:$0xff]
        %v2117 = vld [vmem:[%s10] sm:$0x3]
        %v2119 = vlaneseq
        %v2120 = vshrl.u32 %v2119, 7
        %v2121 = vsub.s32 0, %v2120
        %v2122 = vrot.slane %v2117, %v2121
        %v2123 = vlaneseq
        %v2124 = vshrl.u32 %v2123, 7
        %v2125 = vsub.s32 1, %v2124
        %v2126 = vrot.slane %v2117, %v2125
        %v2257 = vunpack.c.l.b16 %v1989
        %v2258 = vunpack.c.h.b16 %v1989
        %v2259 = vunpack.c.l.b16 %v1990
        %v2260 = vunpack.c.h.b16 %v1990
        %v2261 = vunpack.c.l.b16 %v1991
        %v2262 = vunpack.c.h.b16 %v1991
        %v2263 = vunpack.c.l.b16 %v1992
        %v2264 = vunpack.c.h.b16 %v1992
        %v2265 = vunpack.c.l.b16 %v1993
        %v2266 = vunpack.c.h.b16 %v1993
        %v2267 = vunpack.c.l.b16 %v1994
        %v2268 = vunpack.c.h.b16 %v1994
        %v2269 = vunpack.c.l.b16 %v1995
        %v2270 = vunpack.c.h.b16 %v1995
        %v2271 = vunpack.c.l.b16 %v1996
        %v2272 = vunpack.c.h.b16 %v1996
        %v2273 = vunpack.c.l.b16 %v1997
        %v2274 = vunpack.c.h.b16 %v1997
        %v2275 = vunpack.c.l.b16 %v1998
        %v2276 = vunpack.c.h.b16 %v1998
        %v2277 = vunpack.c.l.b16 %v1999
        %v2278 = vunpack.c.h.b16 %v1999
        %v2279 = vunpack.c.l.b16 %v2000
        %v2280 = vunpack.c.h.b16 %v2000
        %v2281 = vunpack.c.l.b16 %v2001
        %v2282 = vunpack.c.h.b16 %v2001
        %v2283 = vunpack.c.l.b16 %v2002
        %v2284 = vunpack.c.h.b16 %v2002
        %v2285 = vunpack.c.l.b16 %v2003
        %v2286 = vunpack.c.h.b16 %v2003
        %v2287 = vunpack.c.l.b16 %v2004
        %v2288 = vunpack.c.h.b16 %v2004
        %v2289 = vunpack.c.l.b16 %v2005
        %v2290 = vunpack.c.h.b16 %v2005
        %v2291 = vunpack.c.l.b16 %v2006
        %v2292 = vunpack.c.h.b16 %v2006
        %v2293 = vunpack.c.l.b16 %v2007
        %v2294 = vunpack.c.h.b16 %v2007
        %v2295 = vunpack.c.l.b16 %v2008
        %v2296 = vunpack.c.h.b16 %v2008
        %v2297 = vunpack.c.l.b16 %v2009
        %v2298 = vunpack.c.h.b16 %v2009
        %v2299 = vunpack.c.l.b16 %v2010
        %v2300 = vunpack.c.h.b16 %v2010
        %v2301 = vunpack.c.l.b16 %v2011
        %v2302 = vunpack.c.h.b16 %v2011
        %v2303 = vunpack.c.l.b16 %v2012
        %v2304 = vunpack.c.h.b16 %v2012
        %v2305 = vunpack.c.l.b16 %v2013
        %v2306 = vunpack.c.h.b16 %v2013
        %v2307 = vunpack.c.l.b16 %v2014
        %v2308 = vunpack.c.h.b16 %v2014
        %v2309 = vunpack.c.l.b16 %v2015
        %v2310 = vunpack.c.h.b16 %v2015
        %v2311 = vunpack.c.l.b16 %v2016
        %v2312 = vunpack.c.h.b16 %v2016
        %v2313 = vunpack.c.l.b16 %v2017
        %v2314 = vunpack.c.h.b16 %v2017
        %v2315 = vunpack.c.l.b16 %v2018
        %v2316 = vunpack.c.h.b16 %v2018
        %v2317 = vunpack.c.l.b16 %v2019
        %v2318 = vunpack.c.h.b16 %v2019
        %v2319 = vunpack.c.l.b16 %v2020
        %v2320 = vunpack.c.h.b16 %v2020
        %v2321 = vunpack.c.l.b16 %v2021
        %v2322 = vunpack.c.h.b16 %v2021
        %v2323 = vunpack.c.l.b16 %v2022
        %v2324 = vunpack.c.h.b16 %v2022
        %v2325 = vunpack.c.l.b16 %v2023
        %v2326 = vunpack.c.h.b16 %v2023
        %v2327 = vunpack.c.l.b16 %v2024
        %v2328 = vunpack.c.h.b16 %v2024
        %v2329 = vunpack.c.l.b16 %v2025
        %v2330 = vunpack.c.h.b16 %v2025
        %v2331 = vunpack.c.l.b16 %v2026
        %v2332 = vunpack.c.h.b16 %v2026
        %v2333 = vunpack.c.l.b16 %v2027
        %v2334 = vunpack.c.h.b16 %v2027
        %v2335 = vunpack.c.l.b16 %v2028
        %v2336 = vunpack.c.h.b16 %v2028
        %v2337 = vunpack.c.l.b16 %v2029
        %v2338 = vunpack.c.h.b16 %v2029
        %v2339 = vunpack.c.l.b16 %v2030
        %v2340 = vunpack.c.h.b16 %v2030
        %v2341 = vunpack.c.l.b16 %v2031
        %v2342 = vunpack.c.h.b16 %v2031
        %v2343 = vunpack.c.l.b16 %v2032
        %v2344 = vunpack.c.h.b16 %v2032
        %v2345 = vunpack.c.l.b16 %v2033
        %v2346 = vunpack.c.h.b16 %v2033
        %v2347 = vunpack.c.l.b16 %v2034
        %v2348 = vunpack.c.h.b16 %v2034
        %v2349 = vunpack.c.l.b16 %v2035
        %v2350 = vunpack.c.h.b16 %v2035
        %v2351 = vunpack.c.l.b16 %v2036
        %v2352 = vunpack.c.h.b16 %v2036
        %v2353 = vunpack.c.l.b16 %v2037
        %v2354 = vunpack.c.h.b16 %v2037
        %v2355 = vunpack.c.l.b16 %v2038
        %v2356 = vunpack.c.h.b16 %v2038
        %v2357 = vunpack.c.l.b16 %v2039
        %v2358 = vunpack.c.h.b16 %v2039
        %v2359 = vunpack.c.l.b16 %v2040
        %v2360 = vunpack.c.h.b16 %v2040
        %v2361 = vunpack.c.l.b16 %v2041
        %v2362 = vunpack.c.h.b16 %v2041
        %v2363 = vunpack.c.l.b16 %v2042
        %v2364 = vunpack.c.h.b16 %v2042
        %v2365 = vunpack.c.l.b16 %v2043
        %v2366 = vunpack.c.h.b16 %v2043
        %v2367 = vunpack.c.l.b16 %v2044
        %v2368 = vunpack.c.h.b16 %v2044
        %v2369 = vunpack.c.l.b16 %v2045
        %v2370 = vunpack.c.h.b16 %v2045
        %v2371 = vunpack.c.l.b16 %v2046
        %v2372 = vunpack.c.h.b16 %v2046
        %v2373 = vunpack.c.l.b16 %v2047
        %v2374 = vunpack.c.h.b16 %v2047
        %v2375 = vunpack.c.l.b16 %v2048
        %v2376 = vunpack.c.h.b16 %v2048
        %v2377 = vunpack.c.l.b16 %v2049
        %v2378 = vunpack.c.h.b16 %v2049
        %v2379 = vunpack.c.l.b16 %v2050
        %v2380 = vunpack.c.h.b16 %v2050
        %v2381 = vunpack.c.l.b16 %v2051
        %v2382 = vunpack.c.h.b16 %v2051
        %v2383 = vunpack.c.l.b16 %v2052
        %v2384 = vunpack.c.h.b16 %v2052
        %v2385 = vunpack.c.l.b16 %v2053
        %v2386 = vunpack.c.h.b16 %v2053
        %v2387 = vunpack.c.l.b16 %v2054
        %v2388 = vunpack.c.h.b16 %v2054
        %v2389 = vunpack.c.l.b16 %v2055
        %v2390 = vunpack.c.h.b16 %v2055
        %v2391 = vunpack.c.l.b16 %v2056
        %v2392 = vunpack.c.h.b16 %v2056
        %v2393 = vunpack.c.l.b16 %v2057
        %v2394 = vunpack.c.h.b16 %v2057
        %v2395 = vunpack.c.l.b16 %v2058
        %v2396 = vunpack.c.h.b16 %v2058
        %v2397 = vunpack.c.l.b16 %v2059
        %v2398 = vunpack.c.h.b16 %v2059
        %v2399 = vunpack.c.l.b16 %v2060
        %v2400 = vunpack.c.h.b16 %v2060
        %v2401 = vunpack.c.l.b16 %v2061
        %v2402 = vunpack.c.h.b16 %v2061
        %v2403 = vunpack.c.l.b16 %v2062
        %v2404 = vunpack.c.h.b16 %v2062
        %v2405 = vunpack.c.l.b16 %v2063
        %v2406 = vunpack.c.h.b16 %v2063
        %v2407 = vunpack.c.l.b16 %v2064
        %v2408 = vunpack.c.h.b16 %v2064
        %v2409 = vunpack.c.l.b16 %v2065
        %v2410 = vunpack.c.h.b16 %v2065
        %v2411 = vunpack.c.l.b16 %v2066
        %v2412 = vunpack.c.h.b16 %v2066
        %v2413 = vunpack.c.l.b16 %v2067
        %v2414 = vunpack.c.h.b16 %v2067
        %v2415 = vunpack.c.l.b16 %v2068
        %v2416 = vunpack.c.h.b16 %v2068
        %v2417 = vunpack.c.l.b16 %v2069
        %v2418 = vunpack.c.h.b16 %v2069
        %v2419 = vunpack.c.l.b16 %v2070
        %v2420 = vunpack.c.h.b16 %v2070
        %v2421 = vunpack.c.l.b16 %v2071
        %v2422 = vunpack.c.h.b16 %v2071
        %v2423 = vunpack.c.l.b16 %v2072
        %v2424 = vunpack.c.h.b16 %v2072
        %v2425 = vunpack.c.l.b16 %v2073
        %v2426 = vunpack.c.h.b16 %v2073
        %v2427 = vunpack.c.l.b16 %v2074
        %v2428 = vunpack.c.h.b16 %v2074
        %v2429 = vunpack.c.l.b16 %v2075
        %v2430 = vunpack.c.h.b16 %v2075
        %v2431 = vunpack.c.l.b16 %v2076
        %v2432 = vunpack.c.h.b16 %v2076
        %v2433 = vunpack.c.l.b16 %v2077
        %v2434 = vunpack.c.h.b16 %v2077
        %v2435 = vunpack.c.l.b16 %v2078
        %v2436 = vunpack.c.h.b16 %v2078
        %v2437 = vunpack.c.l.b16 %v2079
        %v2438 = vunpack.c.h.b16 %v2079
        %v2439 = vunpack.c.l.b16 %v2080
        %v2440 = vunpack.c.h.b16 %v2080
        %v2441 = vunpack.c.l.b16 %v2081
        %v2442 = vunpack.c.h.b16 %v2081
        %v2443 = vunpack.c.l.b16 %v2082
        %v2444 = vunpack.c.h.b16 %v2082
        %v2445 = vunpack.c.l.b16 %v2083
        %v2446 = vunpack.c.h.b16 %v2083
        %v2447 = vunpack.c.l.b16 %v2084
        %v2448 = vunpack.c.h.b16 %v2084
        %v2449 = vunpack.c.l.b16 %v2085
        %v2450 = vunpack.c.h.b16 %v2085
        %v2451 = vunpack.c.l.b16 %v2086
        %v2452 = vunpack.c.h.b16 %v2086
        %v2453 = vunpack.c.l.b16 %v2087
        %v2454 = vunpack.c.h.b16 %v2087
        %v2455 = vunpack.c.l.b16 %v2088
        %v2456 = vunpack.c.h.b16 %v2088
        %v2457 = vunpack.c.l.b16 %v2089
        %v2458 = vunpack.c.h.b16 %v2089
        %v2459 = vunpack.c.l.b16 %v2090
        %v2460 = vunpack.c.h.b16 %v2090
        %v2461 = vunpack.c.l.b16 %v2091
        %v2462 = vunpack.c.h.b16 %v2091
        %v2463 = vunpack.c.l.b16 %v2092
        %v2464 = vunpack.c.h.b16 %v2092
        %v2465 = vunpack.c.l.b16 %v2093
        %v2466 = vunpack.c.h.b16 %v2093
        %v2467 = vunpack.c.l.b16 %v2094
        %v2468 = vunpack.c.h.b16 %v2094
        %v2469 = vunpack.c.l.b16 %v2095
        %v2470 = vunpack.c.h.b16 %v2095
        %v2471 = vunpack.c.l.b16 %v2096
        %v2472 = vunpack.c.h.b16 %v2096
        %v2473 = vunpack.c.l.b16 %v2097
        %v2474 = vunpack.c.h.b16 %v2097
        %v2475 = vunpack.c.l.b16 %v2098
        %v2476 = vunpack.c.h.b16 %v2098
        %v2477 = vunpack.c.l.b16 %v2099
        %v2478 = vunpack.c.h.b16 %v2099
        %v2479 = vunpack.c.l.b16 %v2100
        %v2480 = vunpack.c.h.b16 %v2100
        %v2481 = vunpack.c.l.b16 %v2101
        %v2482 = vunpack.c.h.b16 %v2101
        %v2483 = vunpack.c.l.b16 %v2102
        %v2484 = vunpack.c.h.b16 %v2102
        %v2485 = vunpack.c.l.b16 %v2103
        %v2486 = vunpack.c.h.b16 %v2103
        %v2487 = vunpack.c.l.b16 %v2104
        %v2488 = vunpack.c.h.b16 %v2104
        %v2489 = vunpack.c.l.b16 %v2105
        %v2490 = vunpack.c.h.b16 %v2105
        %v2491 = vunpack.c.l.b16 %v2106
        %v2492 = vunpack.c.h.b16 %v2106
        %v2493 = vunpack.c.l.b16 %v2107
        %v2494 = vunpack.c.h.b16 %v2107
        %v2495 = vunpack.c.l.b16 %v2108
        %v2496 = vunpack.c.h.b16 %v2108
        %v2497 = vunpack.c.l.b16 %v2109
        %v2498 = vunpack.c.h.b16 %v2109
        %v2499 = vunpack.c.l.b16 %v2110
        %v2500 = vunpack.c.h.b16 %v2110
        %v2501 = vunpack.c.l.b16 %v2111
        %v2502 = vunpack.c.h.b16 %v2111
        %v2503 = vunpack.c.l.b16 %v2112
        %v2504 = vunpack.c.h.b16 %v2112
        %v2505 = vunpack.c.l.b16 %v2113
        %v2506 = vunpack.c.h.b16 %v2113
        %v2507 = vunpack.c.l.b16 %v2114
        %v2508 = vunpack.c.h.b16 %v2114
        %v2509 = vunpack.c.l.b16 %v2115
        %v2510 = vunpack.c.h.b16 %v2115
        %v2511 = vunpack.c.l.b16 %v2116
        %v2512 = vunpack.c.h.b16 %v2116
        %v2513 = vpack.c.b16 %v2259, %v2257
        %v2514 = vpack.c.b16 %v2260, %v2258
        %v2515 = vpack.c.b16 %v2263, %v2261
        %v2516 = vpack.c.b16 %v2264, %v2262
        %v2517 = vpack.c.b16 %v2267, %v2265
        %v2518 = vpack.c.b16 %v2268, %v2266
        %v2519 = vpack.c.b16 %v2271, %v2269
        %v2520 = vpack.c.b16 %v2272, %v2270
        %v2521 = vpack.c.b16 %v2275, %v2273
        %v2522 = vpack.c.b16 %v2276, %v2274
        %v2523 = vpack.c.b16 %v2279, %v2277
        %v2524 = vpack.c.b16 %v2280, %v2278
        %v2525 = vpack.c.b16 %v2283, %v2281
        %v2526 = vpack.c.b16 %v2284, %v2282
        %v2527 = vpack.c.b16 %v2287, %v2285
        %v2528 = vpack.c.b16 %v2288, %v2286
        %v2529 = vpack.c.b16 %v2291, %v2289
        %v2530 = vpack.c.b16 %v2292, %v2290
        %v2531 = vpack.c.b16 %v2295, %v2293
        %v2532 = vpack.c.b16 %v2296, %v2294
        %v2533 = vpack.c.b16 %v2299, %v2297
        %v2534 = vpack.c.b16 %v2300, %v2298
        %v2535 = vpack.c.b16 %v2303, %v2301
        %v2536 = vpack.c.b16 %v2304, %v2302
        %v2537 = vpack.c.b16 %v2307, %v2305
        %v2538 = vpack.c.b16 %v2308, %v2306
        %v2539 = vpack.c.b16 %v2311, %v2309
        %v2540 = vpack.c.b16 %v2312, %v2310
        %v2541 = vpack.c.b16 %v2315, %v2313
        %v2542 = vpack.c.b16 %v2316, %v2314
        %v2543 = vpack.c.b16 %v2319, %v2317
        %v2544 = vpack.c.b16 %v2320, %v2318
        %v2545 = vpack.c.b16 %v2323, %v2321
        %v2546 = vpack.c.b16 %v2324, %v2322
        %v2547 = vpack.c.b16 %v2327, %v2325
        %v2548 = vpack.c.b16 %v2328, %v2326
        %v2549 = vpack.c.b16 %v2331, %v2329
        %v2550 = vpack.c.b16 %v2332, %v2330
        %v2551 = vpack.c.b16 %v2335, %v2333
        %v2552 = vpack.c.b16 %v2336, %v2334
        %v2553 = vpack.c.b16 %v2339, %v2337
        %v2554 = vpack.c.b16 %v2340, %v2338
        %v2555 = vpack.c.b16 %v2343, %v2341
        %v2556 = vpack.c.b16 %v2344, %v2342
        %v2557 = vpack.c.b16 %v2347, %v2345
        %v2558 = vpack.c.b16 %v2348, %v2346
        %v2559 = vpack.c.b16 %v2351, %v2349
        %v2560 = vpack.c.b16 %v2352, %v2350
        %v2561 = vpack.c.b16 %v2355, %v2353
        %v2562 = vpack.c.b16 %v2356, %v2354
        %v2563 = vpack.c.b16 %v2359, %v2357
        %v2564 = vpack.c.b16 %v2360, %v2358
        %v2565 = vpack.c.b16 %v2363, %v2361
        %v2566 = vpack.c.b16 %v2364, %v2362
        %v2567 = vpack.c.b16 %v2367, %v2365
        %v2568 = vpack.c.b16 %v2368, %v2366
        %v2569 = vpack.c.b16 %v2371, %v2369
        %v2570 = vpack.c.b16 %v2372, %v2370
        %v2571 = vpack.c.b16 %v2375, %v2373
        %v2572 = vpack.c.b16 %v2376, %v2374
        %v2573 = vpack.c.b16 %v2379, %v2377
        %v2574 = vpack.c.b16 %v2380, %v2378
        %v2575 = vpack.c.b16 %v2383, %v2381
        %v2576 = vpack.c.b16 %v2384, %v2382
        %v2577 = vpack.c.b16 %v2387, %v2385
        %v2578 = vpack.c.b16 %v2388, %v2386
        %v2579 = vpack.c.b16 %v2391, %v2389
        %v2580 = vpack.c.b16 %v2392, %v2390
        %v2581 = vpack.c.b16 %v2395, %v2393
        %v2582 = vpack.c.b16 %v2396, %v2394
        %v2583 = vpack.c.b16 %v2399, %v2397
        %v2584 = vpack.c.b16 %v2400, %v2398
        %v2585 = vpack.c.b16 %v2403, %v2401
        %v2586 = vpack.c.b16 %v2404, %v2402
        %v2587 = vpack.c.b16 %v2407, %v2405
        %v2588 = vpack.c.b16 %v2408, %v2406
        %v2589 = vpack.c.b16 %v2411, %v2409
        %v2590 = vpack.c.b16 %v2412, %v2410
        %v2591 = vpack.c.b16 %v2415, %v2413
        %v2592 = vpack.c.b16 %v2416, %v2414
        %v2593 = vpack.c.b16 %v2419, %v2417
        %v2594 = vpack.c.b16 %v2420, %v2418
        %v2595 = vpack.c.b16 %v2423, %v2421
        %v2596 = vpack.c.b16 %v2424, %v2422
        %v2597 = vpack.c.b16 %v2427, %v2425
        %v2598 = vpack.c.b16 %v2428, %v2426
        %v2599 = vpack.c.b16 %v2431, %v2429
        %v2600 = vpack.c.b16 %v2432, %v2430
        %v2601 = vpack.c.b16 %v2435, %v2433
        %v2602 = vpack.c.b16 %v2436, %v2434
        %v2603 = vpack.c.b16 %v2439, %v2437
        %v2604 = vpack.c.b16 %v2440, %v2438
        %v2605 = vpack.c.b16 %v2443, %v2441
        %v2606 = vpack.c.b16 %v2444, %v2442
        %v2607 = vpack.c.b16 %v2447, %v2445
        %v2608 = vpack.c.b16 %v2448, %v2446
        %v2609 = vpack.c.b16 %v2451, %v2449
        %v2610 = vpack.c.b16 %v2452, %v2450
        %v2611 = vpack.c.b16 %v2455, %v2453
        %v2612 = vpack.c.b16 %v2456, %v2454
        %v2613 = vpack.c.b16 %v2459, %v2457
        %v2614 = vpack.c.b16 %v2460, %v2458
        %v2615 = vpack.c.b16 %v2463, %v2461
        %v2616 = vpack.c.b16 %v2464, %v2462
        %v2617 = vpack.c.b16 %v2467, %v2465
        %v2618 = vpack.c.b16 %v2468, %v2466
        %v2619 = vpack.c.b16 %v2471, %v2469
        %v2620 = vpack.c.b16 %v2472, %v2470
        %v2621 = vpack.c.b16 %v2475, %v2473
        %v2622 = vpack.c.b16 %v2476, %v2474
        %v2623 = vpack.c.b16 %v2479, %v2477
        %v2624 = vpack.c.b16 %v2480, %v2478
        %v2625 = vpack.c.b16 %v2483, %v2481
        %v2626 = vpack.c.b16 %v2484, %v2482
        %v2627 = vpack.c.b16 %v2487, %v2485
        %v2628 = vpack.c.b16 %v2488, %v2486
        %v2629 = vpack.c.b16 %v2491, %v2489
        %v2630 = vpack.c.b16 %v2492, %v2490
        %v2631 = vpack.c.b16 %v2495, %v2493
        %v2632 = vpack.c.b16 %v2496, %v2494
        %v2633 = vpack.c.b16 %v2499, %v2497
        %v2634 = vpack.c.b16 %v2500, %v2498
        %v2635 = vpack.c.b16 %v2503, %v2501
        %v2636 = vpack.c.b16 %v2504, %v2502
        %v2637 = vpack.c.b16 %v2507, %v2505
        %v2638 = vpack.c.b16 %v2508, %v2506
        %v2639 = vpack.c.b16 %v2511, %v2509
        %v2640 = vpack.c.b16 %v2512, %v2510
        %2769 = vmatprep.subr.bf16.mxu0 %v2528
        %2770 = vmatpush1.bf16.msra.mxu0 %v2527
        %2771 = vmatprep.subr.bf16.mxu0 %v2526
        %2772 = vmatpush1.bf16.msra.mxu0 %v2525
        %2773 = vmatprep.subr.bf16.mxu0 %v2524
        %2774 = vmatpush1.bf16.msra.mxu0 %v2523
        %2775 = vmatprep.subr.bf16.mxu0 %v2522
        %2776 = vmatpush1.bf16.msra.mxu0 %v2521
        %2777 = vmatprep.subr.bf16.mxu0 %v2520
        %2778 = vmatpush1.bf16.msra.mxu0 %v2519
        %2779 = vmatprep.subr.bf16.mxu0 %v2518
        %2780 = vmatpush1.bf16.msra.mxu0 %v2517
        %2781 = vmatprep.subr.bf16.mxu0 %v2516
        %2782 = vmatpush1.bf16.msra.mxu0 %v2515
        %2783 = vmatprep.subr.bf16.mxu0 %v2514
        %2784 = vmatpush1.bf16.msra.mxu0 %v2513
        %2785 = vmatprep.subr.bf16.mxu0 %v2544
        %2786 = vmatpush2.bf16.msra.mxu0 %v2543
        %2787 = vmatprep.subr.bf16.mxu0 %v2542
        %2788 = vmatpush2.bf16.msra.mxu0 %v2541
        %2789 = vmatprep.subr.bf16.mxu0 %v2540
        %2790 = vmatpush2.bf16.msra.mxu0 %v2539
        %2791 = vmatprep.subr.bf16.mxu0 %v2538
        %2792 = vmatpush2.bf16.msra.mxu0 %v2537
        %2793 = vmatprep.subr.bf16.mxu0 %v2536
        %2794 = vmatpush2.bf16.msra.mxu0 %v2535
        %2795 = vmatprep.subr.bf16.mxu0 %v2534
        %2796 = vmatpush2.bf16.msra.mxu0 %v2533
        %2797 = vmatprep.subr.bf16.mxu0 %v2532
        %2798 = vmatpush2.bf16.msra.mxu0 %v2531
        %2799 = vmatprep.subr.bf16.mxu0 %v2530
        %2800 = vmatpush2.bf16.msra.mxu0 %v2529
        %2801 = vmatprep.mubr.bf16.mxu0 %v1982
        %2802 = vmatmul.mubr.bf16.gmra.mxu0 %v1981
        %v2803 = vpop.f32.mrf.mxu0
        %v2804 = vadd.f32 %v2122, %v2803
        %v2805 = vpop.f32.mrf.mxu0
        %v2806 = vadd.f32 %v2126, %v2805
        %v2807 = vpop.f32.mrf.mxu0
        %v2808 = vpop.f32.mrf.mxu0
        %2809 = vdwg.mxu0
        %2810 = vmatprep.subr.bf16.mxu0 %v2560
        %2811 = vmatpush1.bf16.msra.mxu0 %v2559
        %2812 = vmatprep.subr.bf16.mxu0 %v2558
        %2813 = vmatpush1.bf16.msra.mxu0 %v2557
        %2814 = vmatprep.subr.bf16.mxu0 %v2556
        %2815 = vmatpush1.bf16.msra.mxu0 %v2555
        %2816 = vmatprep.subr.bf16.mxu0 %v2554
        %2817 = vmatpush1.bf16.msra.mxu0 %v2553
        %2818 = vmatprep.subr.bf16.mxu0 %v2552
        %2819 = vmatpush1.bf16.msra.mxu0 %v2551
        %2820 = vmatprep.subr.bf16.mxu0 %v2550
        %2821 = vmatpush1.bf16.msra.mxu0 %v2549
        %2822 = vmatprep.subr.bf16.mxu0 %v2548
        %2823 = vmatpush1.bf16.msra.mxu0 %v2547
        %2824 = vmatprep.subr.bf16.mxu0 %v2546
        %2825 = vmatpush1.bf16.msra.mxu0 %v2545
        %2826 = vmatprep.subr.bf16.mxu0 %v2576
        %2827 = vmatpush2.bf16.msra.mxu0 %v2575
        %2828 = vmatprep.subr.bf16.mxu0 %v2574
        %2829 = vmatpush2.bf16.msra.mxu0 %v2573
        %2830 = vmatprep.subr.bf16.mxu0 %v2572
        %2831 = vmatpush2.bf16.msra.mxu0 %v2571
        %2832 = vmatprep.subr.bf16.mxu0 %v2570
        %2833 = vmatpush2.bf16.msra.mxu0 %v2569
        %2834 = vmatprep.subr.bf16.mxu0 %v2568
        %2835 = vmatpush2.bf16.msra.mxu0 %v2567
        %2836 = vmatprep.subr.bf16.mxu0 %v2566
        %2837 = vmatpush2.bf16.msra.mxu0 %v2565
        %2838 = vmatprep.subr.bf16.mxu0 %v2564
        %2839 = vmatpush2.bf16.msra.mxu0 %v2563
        %2840 = vmatprep.subr.bf16.mxu0 %v2562
        %2841 = vmatpush2.bf16.msra.mxu0 %v2561
        %2842 = vmatprep.mubr.bf16.mxu0 %v1984
        %2843 = vmatmul.mubr.bf16.gmra.mxu0 %v1983
        %v2844 = vpop.f32.mrf.mxu0
        %v2845 = vadd.f32 %v2804, %v2844
        %v2846 = vpop.f32.mrf.mxu0
        %v2847 = vadd.f32 %v2806, %v2846
        %v2848 = vpop.f32.mrf.mxu0
        %v2849 = vpop.f32.mrf.mxu0
        %2850 = vdwg.mxu0
        %2851 = vmatprep.subr.bf16.mxu0 %v2592
        %2852 = vmatpush1.bf16.msra.mxu0 %v2591
        %2853 = vmatprep.subr.bf16.mxu0 %v2590
        %2854 = vmatpush1.bf16.msra.mxu0 %v2589
        %2855 = vmatprep.subr.bf16.mxu0 %v2588
        %2856 = vmatpush1.bf16.msra.mxu0 %v2587
        %2857 = vmatprep.subr.bf16.mxu0 %v2586
        %2858 = vmatpush1.bf16.msra.mxu0 %v2585
        %2859 = vmatprep.subr.bf16.mxu0 %v2584
        %2860 = vmatpush1.bf16.msra.mxu0 %v2583
        %2861 = vmatprep.subr.bf16.mxu0 %v2582
        %2862 = vmatpush1.bf16.msra.mxu0 %v2581
        %2863 = vmatprep.subr.bf16.mxu0 %v2580
        %2864 = vmatpush1.bf16.msra.mxu0 %v2579
        %2865 = vmatprep.subr.bf16.mxu0 %v2578
        %2866 = vmatpush1.bf16.msra.mxu0 %v2577
        %2867 = vmatprep.subr.bf16.mxu0 %v2608
        %2868 = vmatpush2.bf16.msra.mxu0 %v2607
        %2869 = vmatprep.subr.bf16.mxu0 %v2606
        %2870 = vmatpush2.bf16.msra.mxu0 %v2605
        %2871 = vmatprep.subr.bf16.mxu0 %v2604
        %2872 = vmatpush2.bf16.msra.mxu0 %v2603
        %2873 = vmatprep.subr.bf16.mxu0 %v2602
        %2874 = vmatpush2.bf16.msra.mxu0 %v2601
        %2875 = vmatprep.subr.bf16.mxu0 %v2600
        %2876 = vmatpush2.bf16.msra.mxu0 %v2599
        %2877 = vmatprep.subr.bf16.mxu0 %v2598
        %2878 = vmatpush2.bf16.msra.mxu0 %v2597
        %2879 = vmatprep.subr.bf16.mxu0 %v2596
        %2880 = vmatpush2.bf16.msra.mxu0 %v2595
        %2881 = vmatprep.subr.bf16.mxu0 %v2594
        %2882 = vmatpush2.bf16.msra.mxu0 %v2593
        %2883 = vmatprep.mubr.bf16.mxu0 %v1986
        %2884 = vmatmul.mubr.bf16.gmra.mxu0 %v1985
        %v2885 = vpop.f32.mrf.mxu0
        %v2886 = vadd.f32 %v2845, %v2885
        %v2887 = vpop.f32.mrf.mxu0
        %v2888 = vadd.f32 %v2847, %v2887
        %v2889 = vpop.f32.mrf.mxu0
        %v2890 = vpop.f32.mrf.mxu0
        %2891 = vdwg.mxu0
        %2892 = vmatprep.subr.bf16.mxu0 %v2624
        %2893 = vmatpush1.bf16.msra.mxu0 %v2623
        %2894 = vmatprep.subr.bf16.mxu0 %v2622
        %2895 = vmatpush1.bf16.msra.mxu0 %v2621
        %2896 = vmatprep.subr.bf16.mxu0 %v2620
        %2897 = vmatpush1.bf16.msra.mxu0 %v2619
        %2898 = vmatprep.subr.bf16.mxu0 %v2618
        %2899 = vmatpush1.bf16.msra.mxu0 %v2617
        %2900 = vmatprep.subr.bf16.mxu0 %v2616
        %2901 = vmatpush1.bf16.msra.mxu0 %v2615
        %2902 = vmatprep.subr.bf16.mxu0 %v2614
        %2903 = vmatpush1.bf16.msra.mxu0 %v2613
        %2904 = vmatprep.subr.bf16.mxu0 %v2612
        %2905 = vmatpush1.bf16.msra.mxu0 %v2611
        %2906 = vmatprep.subr.bf16.mxu0 %v2610
        %2907 = vmatpush1.bf16.msra.mxu0 %v2609
        %2908 = vmatprep.subr.bf16.mxu0 %v2640
        %2909 = vmatpush2.bf16.msra.mxu0 %v2639
        %2910 = vmatprep.subr.bf16.mxu0 %v2638
        %2911 = vmatpush2.bf16.msra.mxu0 %v2637
        %2912 = vmatprep.subr.bf16.mxu0 %v2636
        %2913 = vmatpush2.bf16.msra.mxu0 %v2635
        %2914 = vmatprep.subr.bf16.mxu0 %v2634
        %2915 = vmatpush2.bf16.msra.mxu0 %v2633
        %2916 = vmatprep.subr.bf16.mxu0 %v2632
        %2917 = vmatpush2.bf16.msra.mxu0 %v2631
        %2918 = vmatprep.subr.bf16.mxu0 %v2630
        %2919 = vmatpush2.bf16.msra.mxu0 %v2629
        %2920 = vmatprep.subr.bf16.mxu0 %v2628
        %2921 = vmatpush2.bf16.msra.mxu0 %v2627
        %2922 = vmatprep.subr.bf16.mxu0 %v2626
        %2923 = vmatpush2.bf16.msra.mxu0 %v2625
        %2924 = vmatprep.mubr.bf16.mxu0 %v1988
        %2925 = vmatmul.mubr.bf16.gmra.mxu0 %v1987
        %v2926 = vpop.f32.mrf.mxu0
        %v2927 = vadd.f32 %v2886, %v2926
        %v2928 = vpop.f32.mrf.mxu0
        %v2929 = vadd.f32 %v2888, %v2928
        %v2930 = vpop.f32.mrf.mxu0
        %v2931 = vpop.f32.mrf.mxu0
        %2932 = vdwg.mxu0
        %v2933 = vld [vmem:[%s11] sm:$0x3]
        %v2935 = vlaneseq
        %v2936 = vshrl.u32 %v2935, 7
        %v2937 = vsub.s32 0, %v2936
        %v2938 = vrot.slane %v2933, %v2937
        %v2939 = vlaneseq
        %v2940 = vshrl.u32 %v2939, 7
        %v2941 = vsub.s32 1, %v2940
        %v2942 = vrot.slane %v2933, %v2941
        %v2945 = vmul.f32 %v2938, %v2927
        %v2946 = vmul.f32 %v2942, %v2929
        %v2947 = vadd.f32 %v722, %v2945
        %v2948 = vadd.f32 %v724, %v2946
        %v2949 = vrot.slane %v2947, 4
        %v2950 = vadd.f32 %v2947, %v2949
        %v2951 = vrot.slane %v2950, 2
        %v2952 = vadd.f32 %v2950, %v2951
        %v2953 = vrot.slane %v2952, 1
        %v2954 = vadd.f32 %v2952, %v2953
        %v2955 = vrot.slane %v2948, 4
        %v2956 = vadd.f32 %v2948, %v2955
        %v2957 = vrot.slane %v2956, 2
        %v2958 = vadd.f32 %v2956, %v2957
        %v2959 = vrot.slane %v2958, 1
        %v2960 = vadd.f32 %v2958, %v2959
        %v2961 = vmul.f32 %v2954, 0.125
        %v2962 = vmul.f32 %v2960, 0.125
        %v2963 = vld [vmem:[%s12] sm:$0x3]
        %v2964 = vld [vmem:[%s13] sm:$0x3]
        %v2965 = vadd.f32 %v2961, %v2962
        %2966 = vadd.xlane.f32.xlu0 %v2965
        %v2967 = vpop.xlane.xlu0 %2966
        %v2968 = vmul.f32 %v2967, %v925
        %v2969 = vsub.f32 %v2961, %v2968
        %v2970 = vsub.f32 %v2962, %v2968
        %v2971 = vmul.f32 %v2969, %v2969
        %v2972 = vmul.f32 %v2970, %v2970
        %v2973 = vadd.f32 %v2971, %v2972
        %2974 = vadd.xlane.f32.xlu0 %v2973
        %v2975 = vpop.xlane.xlu0 %2974
        %v2976 = vmul.f32 %v2975, %v925
        %v2977 = vadd.f32 %v2976, 1e-05
        %v2978 = vrsqrt.pop %v2977
        %v2979 = vmul.f32 %v2969, %v2978
        %v2980 = vmul.f32 %v2970, %v2978
        %v2982 = vlaneseq
        %v2983 = vshrl.u32 %v2982, 7
        %v2984 = vsub.s32 0, %v2983
        %v2985 = vrot.slane %v2963, %v2984
        %v2986 = vlaneseq
        %v2987 = vshrl.u32 %v2986, 7
        %v2988 = vsub.s32 1, %v2987
        %v2989 = vrot.slane %v2963, %v2988
        %v2992 = vmul.f32 %v2979, %v2985
        %v2993 = vmul.f32 %v2980, %v2989
        %v2995 = vlaneseq
        %v2996 = vshrl.u32 %v2995, 7
        %v2997 = vsub.s32 0, %v2996
        %v2998 = vrot.slane %v2964, %v2997
        %v2999 = vlaneseq
        %v3000 = vshrl.u32 %v2999, 7
        %v3001 = vsub.s32 1, %v3000
        %v3002 = vrot.slane %v2964, %v3001
        %v3005 = vadd.f32 %v2992, %v2998
        %v3006 = vadd.f32 %v2993, %v3002
        %v3009 = vcombine.low %v3005, %v3006
        %v3011 = vunpack.c.l.s4 1966171168
        %v3012 = vunpack.c.0.s8 %v3011
        %v3013 = vlaneseq
        %v3014 = vshrl.u32 %v3013, 7
        %v3015 = vsub.s32 %v3012, %v3014
        %v3016 = vrot.slane %v3009, %v3015
        %v3018 = vunpack.c.l.s4 1966171168
        %v3019 = vunpack.c.0.s8 %v3018
        %v3020 = vlaneseq
        %v3021 = vshrl.u32 %v3020, 7
        %v3022 = vsub.s32 %v3019, %v3021
        %v3023 = vrot.slane %v3016, %v3022
        %v3025 = vlaneseq
        %vm3026 = vcmp.ge.s32.totalorder %v3025, 0
        %vm3027 = vcmp.lt.s32.totalorder %v3025, 256
        %vm3028 = vmand %vm3026, %vm3027
        %3029 = vst.msk [vmem:[%s478] sm:$0x3] %vm3028, %v3023
        %p3030 = scmp.lt.s32.totalorder %s26, 1
        %s3031 = scalar_select %p3030, %s26, 1
        %s3032 = smul.addr %s3031, 2
        %s3033 = scalar_lea.vmem %s14, %s3032
        // Predicated region
        $region81: #{convnext1d_forward.7} parent=75 // pred_check
          %p3034 = pneg %p343
        $region82: #{convnext1d_forward.7} parent=75 // pred_check_branch
          %3036 = sbr.rel (%p3034) target = $region84
        $region83: #{convnext1d_forward.7} parent=75 // pred_region
          _
        $region84: #{convnext1d_forward.7} parent=75 // pred_fallthru
          _
      $region76: #{convnext1d_forward.7} parent=5 // pred_fallthru
        _
      %p3037 = scmp.le.s32.totalorder 2, %s21
      // Predicated region
      $region85: #{convnext1d_forward.7} parent=5 // pred_check
        %p3038 = pneg %p3037
      $region86: #{convnext1d_forward.7} parent=5 // pred_check_branch
        %3040 = sbr.rel (%p3038) target = $region88
      $region87: #{convnext1d_forward.7} parent=5 // pred_region
        %s3041 = ssub.s32 %s21, 2
        // Predicated region
        $region89: #{convnext1d_forward.7} parent=87 // pred_check
          %p3042 = pneg %p349
        $region90: #{convnext1d_forward.7} parent=87 // pred_check_branch
          %3044 = sbr.rel (%p3042) target = $region92
        $region91: #{convnext1d_forward.7} parent=87 // pred_region
          %p3045 = scmp.lt.s32.totalorder %s27, 1
          %s3046 = scalar_select %p3045, %s27, 1
          %s3047 = smul.addr %s3046, 2
          %s3048 = scalar_lea.vmem %s14, %s3047
        $region92: #{convnext1d_forward.7} parent=87 // pred_fallthru
          _
      $region88: #{convnext1d_forward.7} parent=5 // pred_fallthru
        _
    $region6: #{convnext1d_forward.7} parent=1 // loop_footer
      %s25 = sadd.s32 1, %s21
    $region7: #{convnext1d_forward.7} parent=1 // loop_footer_branch
      %20 = sbr.rel target = $region3
    $region8: #{convnext1d_forward.7} parent=1 // loop_exit
      _
    %3049 = vsyncpa [#allocation3], 1
    %s3050 = scalar_lea.sflag [#allocation3], 1
    %3051 = vsyncpa %s3050, 1

</llo_original>
